<compile_context>
chip_gen: v5e
topology: v5e:2x2
jax: 0.10.0
libtpu: 0.0.40
codegen_flags: <defaults>
</compile_context>

<pallas_src>
import numpy as np
import jax
import jax.numpy as jnp
from jax.experimental import pallas as pl
from jax.experimental.pallas import tpu as pltpu

EMBED = 112        # AdaptiveAvgPool2d target (112, 112)
FEAT_DIM = 512     # backbone embedding dimension
LANE = 128         # TPU lane width; pooled W axis padded 112 -> 128


def _pool_matrix_cropped(full, crop_start, crop_len, out):
    """(out, full) f32 matrix folding the crop + torch adaptive-pool bins."""
    m = np.zeros((out, full), dtype=np.float32)
    for i in range(out):
        s = (i * crop_len) // out
        e = -((-(i + 1) * crop_len) // out)          # ceil
        m[i, crop_start + s: crop_start + e] = 1.0 / float(e - s)
    return m


def _id_loss_kernel(x_ref, y_ref, ahc_ref, awt_ref, pm_ref,
                    w1_ref, b1_ref, w2_ref, b2_ref, loss_ref):
    N, C, S, _ = x_ref.shape
    P = N * C

    ahc = ahc_ref[...]          # (112, S)     bf16  crop-folded H pool matrix
    awt = awt_ref[...]          # (S, 128)     bf16  crop-folded W pool matrix^T (padded)
    pm = pm_ref[...]            # (N, P*112)   bf16  0/1 per-sample pooling matrix
    w1 = w1_ref[...]            # (128, 512)   bf16
    b1 = b1_ref[...]            # (1, 512)     f32
    w2 = w2_ref[...]            # (512, 512)   bf16
    b2 = b2_ref[...]            # (1, 512)     f32
    inv_rows = 1.0 / float(C * EMBED)

    def group_feats(img_ref):
        # --- crop + adaptive avg-pool, stage 1 (W contraction): one matmul ---
        xb = img_ref[...].reshape(P * S, S).astype(jnp.bfloat16)      # free reshape
        t = jnp.dot(xb, awt, preferred_element_type=jnp.float32)      # (P*S, 128)
        tb = t.astype(jnp.bfloat16)
        # --- stage 2 (H contraction): per-plane matmul, statically unrolled ---
        planes = [
            jnp.dot(ahc, tb[p * S:(p + 1) * S, :],
                    preferred_element_type=jnp.float32)               # (112, 128)
            for p in range(P)
        ]
        # tokens: pooled planes in their natural row layout -> no patchify.
        tokens = jnp.concatenate(planes, axis=0).astype(jnp.bfloat16)  # (P*112, 128)
        # --- synthetic backbone: row-embed MLP -> per-sample mean -> linear ---
        h = jnp.dot(tokens, w1, preferred_element_type=jnp.float32) + b1
        h = jnp.maximum(h, 0.0)                                        # (P*112, 512) f32
        pooled = jnp.dot(pm, h.astype(jnp.bfloat16),
                         preferred_element_type=jnp.float32) * inv_rows  # (N, 512)
        e = jnp.dot(pooled.astype(jnp.bfloat16), w2,
                    preferred_element_type=jnp.float32) + b2            # (N, 512)
        inv_norm = jax.lax.rsqrt(
            jnp.sum(e * e, axis=-1, keepdims=True) + 1e-12)
        return e * inv_norm                                             # L2-normalized f32

    fx = group_feats(x_ref)     # x features (detached in torch; forward value identical)
    fy = group_feats(y_ref)     # y_hat features

    # mean_i (1 - <fy_i, fx_i>), reduced fully in-kernel.
    prod = fx * fy                                   # (N, 512)
    s = jnp.sum(prod, axis=0, keepdims=True)         # (1, 512)
    s = jnp.sum(s, axis=1, keepdims=True)            # (1, 1)
    loss_ref[...] = 1.0 - s * (1.0 / float(N))


def init_params(key):
    """Deterministic synthetic-backbone parameters (stand-in for ir_se50)."""
    k1, k2 = jax.random.split(key)
    w1 = jnp.zeros((LANE, FEAT_DIM), jnp.float32).at[:EMBED, :].set(
        jax.random.normal(k1, (EMBED, FEAT_DIM), jnp.float32) * (EMBED ** -0.5))
    b1 = jnp.zeros((1, FEAT_DIM), jnp.float32)
    w2 = jax.random.normal(k2, (FEAT_DIM, FEAT_DIM), jnp.float32) * (FEAT_DIM ** -0.5)
    b2 = jnp.zeros((1, FEAT_DIM), jnp.float32)
    return (w1.astype(jnp.bfloat16), b1, w2.astype(jnp.bfloat16), b2)


@jax.jit
def id_loss_forward(x, y_hat, w1, b1, w2, b2):
    N, C, S, S2 = x.shape
    assert S == S2 and S % 256 == 0
    factor = S // 256

    # Crop folded into the pooling matrices (torch bin boundaries; weights are
    # 1.0 / 0.5 for factor=1 -> exact in bf16).
    ahc = jnp.asarray(
        _pool_matrix_cropped(S, 35 * factor, 188 * factor, EMBED),
        dtype=jnp.bfloat16)                                   # (112, S)
    awc = _pool_matrix_cropped(S, 32 * factor, 188 * factor, EMBED)
    awt_np = np.zeros((S, LANE), np.float32)
    awt_np[:, :EMBED] = awc.T                                 # pre-transposed + lane-padded
    awt = jnp.asarray(awt_np, dtype=jnp.bfloat16)             # (S, 128)

    # 0/1 per-sample pooling matrix (exact in bf16; 1/(C*112) applied in f32 in-kernel).
    pm_np = np.zeros((N, N * C * EMBED), np.float32)
    for n in range(N):
        pm_np[n, n * C * EMBED:(n + 1) * C * EMBED] = 1.0
    pm = jnp.asarray(pm_np, dtype=jnp.bfloat16)               # (N, N*C*112)

    loss = pl.pallas_call(
        _id_loss_kernel,
        out_shape=jax.ShapeDtypeStruct((1, 1), jnp.float32),
        in_specs=[pl.BlockSpec(memory_space=pltpu.MemorySpace.VMEM)] * 9,
        out_specs=pl.BlockSpec(memory_space=pltpu.MemorySpace.VMEM),
        compiler_params=pltpu.CompilerParams(
            vmem_limit_bytes=48 * 1024 * 1024),
    )(x.astype(jnp.float32), y_hat.astype(jnp.float32),
      ahc, awt, pm, w1, b1, w2, b2)
    return loss[0, 0]


if __name__ == "__main__":
    key = jax.random.PRNGKey(0)
    kx, ky = jax.random.split(key)
    # batch=2, RGB, 256x256 (factor=1: crop -> 188x188, pool -> 112x112)
    x = jax.random.normal(kx, (2, 3, 256, 256), jnp.float32)
    y_hat = jax.random.normal(ky, (2, 3, 256, 256), jnp.float32)

    params = init_params(jax.random.PRNGKey(42))
    loss = id_loss_forward(x, y_hat, *params)
    jax.block_until_ready(loss)
    assert loss.shape == () and bool(jnp.isfinite(loss))
    print("KERNEL_OK")
</pallas_src>

<mosaic_0001>
module attributes {stable_mosaic.version = 11 : i64} {
  func.func @_id_loss_kernel(%arg0: memref<2x3x256x256xf32, #tpu.memory_space<vmem>>, %arg1: memref<2x3x256x256xf32, #tpu.memory_space<vmem>>, %arg2: memref<112x256xbf16, #tpu.memory_space<vmem>>, %arg3: memref<256x128xbf16, #tpu.memory_space<vmem>>, %arg4: memref<2x672xbf16, #tpu.memory_space<vmem>>, %arg5: memref<128x512xbf16, #tpu.memory_space<vmem>>, %arg6: memref<1x512xf32, #tpu.memory_space<vmem>>, %arg7: memref<512x512xbf16, #tpu.memory_space<vmem>>, %arg8: memref<1x512xf32, #tpu.memory_space<vmem>>, %arg9: memref<1x1xf32, #tpu.memory_space<vmem>>) attributes {dimension_semantics = [], scalar_prefetch = 0 : i64, scratch_operands = 0 : i64, tpu.core_type = #tpu.core_type<tc>} {
    %c0 = arith.constant 0 : index
    %c0_0 = arith.constant 0 : index
    %0 = vector.load %arg2[%c0, %c0_0] : memref<112x256xbf16, #tpu.memory_space<vmem>>, vector<112x256xbf16>
    %c0_1 = arith.constant 0 : index
    %c0_2 = arith.constant 0 : index
    %1 = vector.load %arg3[%c0_1, %c0_2] : memref<256x128xbf16, #tpu.memory_space<vmem>>, vector<256x128xbf16>
    %c0_3 = arith.constant 0 : index
    %c0_4 = arith.constant 0 : index
    %2 = vector.load %arg4[%c0_3, %c0_4] : memref<2x672xbf16, #tpu.memory_space<vmem>>, vector<2x672xbf16>
    %c0_5 = arith.constant 0 : index
    %c0_6 = arith.constant 0 : index
    %3 = vector.load %arg5[%c0_5, %c0_6] : memref<128x512xbf16, #tpu.memory_space<vmem>>, vector<128x512xbf16>
    %c0_7 = arith.constant 0 : index
    %c0_8 = arith.constant 0 : index
    %4 = vector.load %arg6[%c0_7, %c0_8] : memref<1x512xf32, #tpu.memory_space<vmem>>, vector<1x512xf32>
    %c0_9 = arith.constant 0 : index
    %c0_10 = arith.constant 0 : index
    %5 = vector.load %arg7[%c0_9, %c0_10] : memref<512x512xbf16, #tpu.memory_space<vmem>>, vector<512x512xbf16>
    %c0_11 = arith.constant 0 : index
    %c0_12 = arith.constant 0 : index
    %6 = vector.load %arg8[%c0_11, %c0_12] : memref<1x512xf32, #tpu.memory_space<vmem>>, vector<1x512xf32>
    %c0_13 = arith.constant 0 : index
    %c0_14 = arith.constant 0 : index
    %c0_15 = arith.constant 0 : index
    %c0_16 = arith.constant 0 : index
    %7 = vector.load %arg0[%c0_13, %c0_14, %c0_15, %c0_16] : memref<2x3x256x256xf32, #tpu.memory_space<vmem>>, vector<2x3x256x256xf32>
    %8 = vector.shape_cast %7 : vector<2x3x256x256xf32> to vector<1536x256xf32>
    %9 = arith.truncf %8 : vector<1536x256xf32> to vector<1536x256xbf16>
    %cst = arith.constant dense<0.000000e+00> : vector<1536x128xf32>
    %10 = tpu.matmul %9, %1, %cst {dimension_numbers = #tpu.dot_dimension_numbers<[1], [0], [0], [1], [0, 0, 1, 1], [], []>} : vector<1536x256xbf16>, vector<256x128xbf16>, vector<1536x128xf32> -> vector<1536x128xf32>
    %11 = arith.truncf %10 : vector<1536x128xf32> to vector<1536x128xbf16>
    %12 = vector.extract_strided_slice %11 {offsets = [0, 0], sizes = [256, 128], strides = [1, 1]} : vector<1536x128xbf16> to vector<256x128xbf16>
    %cst_17 = arith.constant dense<0.000000e+00> : vector<112x128xf32>
    %13 = tpu.matmul %0, %12, %cst_17 {dimension_numbers = #tpu.dot_dimension_numbers<[1], [0], [0], [1], [0, 0, 1, 1], [], []>} : vector<112x256xbf16>, vector<256x128xbf16>, vector<112x128xf32> -> vector<112x128xf32>
    %14 = vector.extract_strided_slice %11 {offsets = [256, 0], sizes = [256, 128], strides = [1, 1]} : vector<1536x128xbf16> to vector<256x128xbf16>
    %cst_18 = arith.constant dense<0.000000e+00> : vector<112x128xf32>
    %15 = tpu.matmul %0, %14, %cst_18 {dimension_numbers = #tpu.dot_dimension_numbers<[1], [0], [0], [1], [0, 0, 1, 1], [], []>} : vector<112x256xbf16>, vector<256x128xbf16>, vector<112x128xf32> -> vector<112x128xf32>
    %16 = vector.extract_strided_slice %11 {offsets = [512, 0], sizes = [256, 128], strides = [1, 1]} : vector<1536x128xbf16> to vector<256x128xbf16>
    %cst_19 = arith.constant dense<0.000000e+00> : vector<112x128xf32>
    %17 = tpu.matmul %0, %16, %cst_19 {dimension_numbers = #tpu.dot_dimension_numbers<[1], [0], [0], [1], [0, 0, 1, 1], [], []>} : vector<112x256xbf16>, vector<256x128xbf16>, vector<112x128xf32> -> vector<112x128xf32>
    %18 = vector.extract_strided_slice %11 {offsets = [768, 0], sizes = [256, 128], strides = [1, 1]} : vector<1536x128xbf16> to vector<256x128xbf16>
    %cst_20 = arith.constant dense<0.000000e+00> : vector<112x128xf32>
    %19 = tpu.matmul %0, %18, %cst_20 {dimension_numbers = #tpu.dot_dimension_numbers<[1], [0], [0], [1], [0, 0, 1, 1], [], []>} : vector<112x256xbf16>, vector<256x128xbf16>, vector<112x128xf32> -> vector<112x128xf32>
    %20 = vector.extract_strided_slice %11 {offsets = [1024, 0], sizes = [256, 128], strides = [1, 1]} : vector<1536x128xbf16> to vector<256x128xbf16>
    %cst_21 = arith.constant dense<0.000000e+00> : vector<112x128xf32>
    %21 = tpu.matmul %0, %20, %cst_21 {dimension_numbers = #tpu.dot_dimension_numbers<[1], [0], [0], [1], [0, 0, 1, 1], [], []>} : vector<112x256xbf16>, vector<256x128xbf16>, vector<112x128xf32> -> vector<112x128xf32>
    %22 = vector.extract_strided_slice %11 {offsets = [1280, 0], sizes = [256, 128], strides = [1, 1]} : vector<1536x128xbf16> to vector<256x128xbf16>
    %cst_22 = arith.constant dense<0.000000e+00> : vector<112x128xf32>
    %23 = tpu.matmul %0, %22, %cst_22 {dimension_numbers = #tpu.dot_dimension_numbers<[1], [0], [0], [1], [0, 0, 1, 1], [], []>} : vector<112x256xbf16>, vector<256x128xbf16>, vector<112x128xf32> -> vector<112x128xf32>
    %24 = tpu.concatenate %13, %15, %17, %19, %21, %23 in 0 : vector<112x128xf32>, vector<112x128xf32>, vector<112x128xf32>, vector<112x128xf32>, vector<112x128xf32>, vector<112x128xf32> -> vector<672x128xf32>
    %25 = arith.truncf %24 : vector<672x128xf32> to vector<672x128xbf16>
    %cst_23 = arith.constant dense<0.000000e+00> : vector<672x512xf32>
    %26 = tpu.matmul %25, %3, %cst_23 {dimension_numbers = #tpu.dot_dimension_numbers<[1], [0], [0], [1], [0, 0, 1, 1], [], []>} : vector<672x128xbf16>, vector<128x512xbf16>, vector<672x512xf32> -> vector<672x512xf32>
    %27 = vector.broadcast %4 : vector<1x512xf32> to vector<672x512xf32>
    %28 = arith.addf %26, %27 : vector<672x512xf32>
    %cst_24 = arith.constant 0.000000e+00 : f32
    %29 = vector.broadcast %cst_24 : f32 to vector<672x512xf32>
    %30 = arith.maximumf %28, %29 : vector<672x512xf32>
    %31 = arith.truncf %30 : vector<672x512xf32> to vector<672x512xbf16>
    %cst_25 = arith.constant dense<0.000000e+00> : vector<2x512xf32>
    %32 = tpu.matmul %2, %31, %cst_25 {dimension_numbers = #tpu.dot_dimension_numbers<[1], [0], [0], [1], [0, 0, 1, 1], [], []>} : vector<2x672xbf16>, vector<672x512xbf16>, vector<2x512xf32> -> vector<2x512xf32>
    %cst_26 = arith.constant 0.00297619053 : f32
    %33 = vector.broadcast %cst_26 : f32 to vector<2x512xf32>
    %34 = arith.mulf %32, %33 : vector<2x512xf32>
    %35 = arith.truncf %34 : vector<2x512xf32> to vector<2x512xbf16>
    %cst_27 = arith.constant dense<0.000000e+00> : vector<2x512xf32>
    %36 = tpu.matmul %35, %5, %cst_27 {dimension_numbers = #tpu.dot_dimension_numbers<[1], [0], [0], [1], [0, 0, 1, 1], [], []>} : vector<2x512xbf16>, vector<512x512xbf16>, vector<2x512xf32> -> vector<2x512xf32>
    %37 = vector.broadcast %6 : vector<1x512xf32> to vector<2x512xf32>
    %38 = arith.addf %36, %37 : vector<2x512xf32>
    %39 = arith.mulf %38, %38 : vector<2x512xf32>
    %cst_28 = arith.constant dense<0.000000e+00> : vector<2xf32>
    %40 = vector.multi_reduction <add>, %39, %cst_28 [1] : vector<2x512xf32> to vector<2xf32>
    %41 = vector.shape_cast %40 : vector<2xf32> to vector<2x1xf32>
    %cst_29 = arith.constant 9.99999996E-13 : f32
    %42 = vector.broadcast %cst_29 : f32 to vector<2x1xf32>
    %43 = arith.addf %41, %42 : vector<2x1xf32>
    %44 = math.rsqrt %43 : vector<2x1xf32>
    %45 = vector.broadcast %44 : vector<2x1xf32> to vector<2x512xf32>
    %46 = arith.mulf %38, %45 : vector<2x512xf32>
    %c0_30 = arith.constant 0 : index
    %c0_31 = arith.constant 0 : index
    %c0_32 = arith.constant 0 : index
    %c0_33 = arith.constant 0 : index
    %47 = vector.load %arg1[%c0_30, %c0_31, %c0_32, %c0_33] : memref<2x3x256x256xf32, #tpu.memory_space<vmem>>, vector<2x3x256x256xf32>
    %48 = vector.shape_cast %47 : vector<2x3x256x256xf32> to vector<1536x256xf32>
    %49 = arith.truncf %48 : vector<1536x256xf32> to vector<1536x256xbf16>
    %cst_34 = arith.constant dense<0.000000e+00> : vector<1536x128xf32>
    %50 = tpu.matmul %49, %1, %cst_34 {dimension_numbers = #tpu.dot_dimension_numbers<[1], [0], [0], [1], [0, 0, 1, 1], [], []>} : vector<1536x256xbf16>, vector<256x128xbf16>, vector<1536x128xf32> -> vector<1536x128xf32>
    %51 = arith.truncf %50 : vector<1536x128xf32> to vector<1536x128xbf16>
    %52 = vector.extract_strided_slice %51 {offsets = [0, 0], sizes = [256, 128], strides = [1, 1]} : vector<1536x128xbf16> to vector<256x128xbf16>
    %cst_35 = arith.constant dense<0.000000e+00> : vector<112x128xf32>
    %53 = tpu.matmul %0, %52, %cst_35 {dimension_numbers = #tpu.dot_dimension_numbers<[1], [0], [0], [1], [0, 0, 1, 1], [], []>} : vector<112x256xbf16>, vector<256x128xbf16>, vector<112x128xf32> -> vector<112x128xf32>
    %54 = vector.extract_strided_slice %51 {offsets = [256, 0], sizes = [256, 128], strides = [1, 1]} : vector<1536x128xbf16> to vector<256x128xbf16>
    %cst_36 = arith.constant dense<0.000000e+00> : vector<112x128xf32>
    %55 = tpu.matmul %0, %54, %cst_36 {dimension_numbers = #tpu.dot_dimension_numbers<[1], [0], [0], [1], [0, 0, 1, 1], [], []>} : vector<112x256xbf16>, vector<256x128xbf16>, vector<112x128xf32> -> vector<112x128xf32>
    %56 = vector.extract_strided_slice %51 {offsets = [512, 0], sizes = [256, 128], strides = [1, 1]} : vector<1536x128xbf16> to vector<256x128xbf16>
    %cst_37 = arith.constant dense<0.000000e+00> : vector<112x128xf32>
    %57 = tpu.matmul %0, %56, %cst_37 {dimension_numbers = #tpu.dot_dimension_numbers<[1], [0], [0], [1], [0, 0, 1, 1], [], []>} : vector<112x256xbf16>, vector<256x128xbf16>, vector<112x128xf32> -> vector<112x128xf32>
    %58 = vector.extract_strided_slice %51 {offsets = [768, 0], sizes = [256, 128], strides = [1, 1]} : vector<1536x128xbf16> to vector<256x128xbf16>
    %cst_38 = arith.constant dense<0.000000e+00> : vector<112x128xf32>
    %59 = tpu.matmul %0, %58, %cst_38 {dimension_numbers = #tpu.dot_dimension_numbers<[1], [0], [0], [1], [0, 0, 1, 1], [], []>} : vector<112x256xbf16>, vector<256x128xbf16>, vector<112x128xf32> -> vector<112x128xf32>
    %60 = vector.extract_strided_slice %51 {offsets = [1024, 0], sizes = [256, 128], strides = [1, 1]} : vector<1536x128xbf16> to vector<256x128xbf16>
    %cst_39 = arith.constant dense<0.000000e+00> : vector<112x128xf32>
    %61 = tpu.matmul %0, %60, %cst_39 {dimension_numbers = #tpu.dot_dimension_numbers<[1], [0], [0], [1], [0, 0, 1, 1], [], []>} : vector<112x256xbf16>, vector<256x128xbf16>, vector<112x128xf32> -> vector<112x128xf32>
    %62 = vector.extract_strided_slice %51 {offsets = [1280, 0], sizes = [256, 128], strides = [1, 1]} : vector<1536x128xbf16> to vector<256x128xbf16>
    %cst_40 = arith.constant dense<0.000000e+00> : vector<112x128xf32>
    %63 = tpu.matmul %0, %62, %cst_40 {dimension_numbers = #tpu.dot_dimension_numbers<[1], [0], [0], [1], [0, 0, 1, 1], [], []>} : vector<112x256xbf16>, vector<256x128xbf16>, vector<112x128xf32> -> vector<112x128xf32>
    %64 = tpu.concatenate %53, %55, %57, %59, %61, %63 in 0 : vector<112x128xf32>, vector<112x128xf32>, vector<112x128xf32>, vector<112x128xf32>, vector<112x128xf32>, vector<112x128xf32> -> vector<672x128xf32>
    %65 = arith.truncf %64 : vector<672x128xf32> to vector<672x128xbf16>
    %cst_41 = arith.constant dense<0.000000e+00> : vector<672x512xf32>
    %66 = tpu.matmul %65, %3, %cst_41 {dimension_numbers = #tpu.dot_dimension_numbers<[1], [0], [0], [1], [0, 0, 1, 1], [], []>} : vector<672x128xbf16>, vector<128x512xbf16>, vector<672x512xf32> -> vector<672x512xf32>
    %67 = vector.broadcast %4 : vector<1x512xf32> to vector<672x512xf32>
    %68 = arith.addf %66, %67 : vector<672x512xf32>
    %cst_42 = arith.constant 0.000000e+00 : f32
    %69 = vector.broadcast %cst_42 : f32 to vector<672x512xf32>
    %70 = arith.maximumf %68, %69 : vector<672x512xf32>
    %71 = arith.truncf %70 : vector<672x512xf32> to vector<672x512xbf16>
    %cst_43 = arith.constant dense<0.000000e+00> : vector<2x512xf32>
    %72 = tpu.matmul %2, %71, %cst_43 {dimension_numbers = #tpu.dot_dimension_numbers<[1], [0], [0], [1], [0, 0, 1, 1], [], []>} : vector<2x672xbf16>, vector<672x512xbf16>, vector<2x512xf32> -> vector<2x512xf32>
    %cst_44 = arith.constant 0.00297619053 : f32
    %73 = vector.broadcast %cst_44 : f32 to vector<2x512xf32>
    %74 = arith.mulf %72, %73 : vector<2x512xf32>
    %75 = arith.truncf %74 : vector<2x512xf32> to vector<2x512xbf16>
    %cst_45 = arith.constant dense<0.000000e+00> : vector<2x512xf32>
    %76 = tpu.matmul %75, %5, %cst_45 {dimension_numbers = #tpu.dot_dimension_numbers<[1], [0], [0], [1], [0, 0, 1, 1], [], []>} : vector<2x512xbf16>, vector<512x512xbf16>, vector<2x512xf32> -> vector<2x512xf32>
    %77 = vector.broadcast %6 : vector<1x512xf32> to vector<2x512xf32>
    %78 = arith.addf %76, %77 : vector<2x512xf32>
    %79 = arith.mulf %78, %78 : vector<2x512xf32>
    %cst_46 = arith.constant dense<0.000000e+00> : vector<2xf32>
    %80 = vector.multi_reduction <add>, %79, %cst_46 [1] : vector<2x512xf32> to vector<2xf32>
    %81 = vector.shape_cast %80 : vector<2xf32> to vector<2x1xf32>
    %cst_47 = arith.constant 9.99999996E-13 : f32
    %82 = vector.broadcast %cst_47 : f32 to vector<2x1xf32>
    %83 = arith.addf %81, %82 : vector<2x1xf32>
    %84 = math.rsqrt %83 : vector<2x1xf32>
    %85 = vector.broadcast %84 : vector<2x1xf32> to vector<2x512xf32>
    %86 = arith.mulf %78, %85 : vector<2x512xf32>
    %87 = arith.mulf %46, %86 : vector<2x512xf32>
    %cst_48 = arith.constant dense<0.000000e+00> : vector<512xf32>
    %88 = vector.multi_reduction <add>, %87, %cst_48 [0] : vector<2x512xf32> to vector<512xf32>
    %89 = vector.shape_cast %88 : vector<512xf32> to vector<1x512xf32>
    %cst_49 = arith.constant dense<0.000000e+00> : vector<1xf32>
    %90 = vector.multi_reduction <add>, %89, %cst_49 [1] : vector<1x512xf32> to vector<1xf32>
    %91 = vector.shape_cast %90 : vector<1xf32> to vector<1x1xf32>
    %cst_50 = arith.constant 5.000000e-01 : f32
    %92 = vector.broadcast %cst_50 : f32 to vector<1x1xf32>
    %93 = arith.mulf %91, %92 : vector<1x1xf32>
    %cst_51 = arith.constant 1.000000e+00 : f32
    %94 = vector.broadcast %cst_51 : f32 to vector<1x1xf32>
    %95 = arith.subf %94, %93 : vector<1x1xf32>
    %c0_52 = arith.constant 0 : index
    %c0_53 = arith.constant 0 : index
    %96 = vector.load %arg9[%c0_52, %c0_53] : memref<1x1xf32, #tpu.memory_space<vmem>>, vector<1x1xf32>
    tpu.vector_store %arg9[%c0_52, %c0_53], %95 {strides = array<i32>} : memref<1x1xf32, #tpu.memory_space<vmem>>, vector<1x1xf32>,
    return
  }
}

</mosaic_0001>

<llo_original>
// kernel: id_loss_forward.1
$region0: #{id_loss_forward.1}
  #allocation0 [shape = 'u32[]', space=smem, size = 0x4, offset = 0x4, fixed_abs, tag = 'smem constant byte address 0x4 - core index']
  #allocation1 [shape = 'u32[72,128]{1,0:T(1,128)}', space=vmem, size = 0x9000, scoped, tag = 'internal scratch']
  %s0 = inlined_call_operand.hbm [shape: f32[2,3,256,256], index: 0, kind: input, shape index: {}]
  %s1 = inlined_call_operand.hbm [shape: f32[2,3,256,256], index: 1, kind: input, shape index: {}]
  %s2 = inlined_call_operand.hbm [shape: bf16[112,256], index: 2, kind: input, shape index: {}]
  %s3 = inlined_call_operand.hbm [shape: bf16[256,128], index: 3, kind: input, shape index: {}]
  %s4 = inlined_call_operand.hbm [shape: bf16[2,672], index: 4, kind: input, shape index: {}]
  %s5 = inlined_call_operand.hbm [shape: bf16[128,512], index: 5, kind: input, shape index: {}]
  %s6 = inlined_call_operand.hbm [shape: f32[1,512], index: 6, kind: input, shape index: {}]
  %s7 = inlined_call_operand.hbm [shape: bf16[512,512], index: 7, kind: input, shape index: {}]
  %s8 = inlined_call_operand.hbm [shape: f32[1,512], index: 8, kind: input, shape index: {}]
  %s9 = inlined_call_operand.hbm [shape: f32[1,1], index: 9, kind: output, shape index: {}]
  %s10 = sld [smem:[#allocation0]]
  $region82: #{id_loss_forward.1} parent=0
    _
  %s12 = ssub.s32 1, %s10
  %s13 = scalar_select 0, %s12, %s10
  $region1: #{id_loss_forward.1} parent=0
    #allocation2 [shape = 'u8[1572864]{0}', space=vmem, size = 0x180000, scoped, tag = 'input window, operand 0, single buffered']
    #allocation3 [shape = 's32[1]{0}', space=sflag, size = 0x4, scoped, tag = 'scoped memory for id_loss_forward.1']
    #allocation4 [shape = 's32[1]{0}', space=sflag, size = 0x4, scoped, tag = 'scoped memory for id_loss_forward.1']
    #allocation5 [shape = 'u8[1572864]{0}', space=vmem, size = 0x180000, scoped, tag = 'input window, operand 1, single buffered']
    #allocation6 [shape = 's32[1]{0}', space=sflag, size = 0x4, scoped, tag = 'scoped memory for id_loss_forward.1']
    #allocation7 [shape = 'u8[57344]{0}', space=vmem, size = 0xe000, scoped, tag = 'input window, operand 2, single buffered']
    #allocation8 [shape = 'u8[65536]{0}', space=vmem, size = 0x10000, scoped, tag = 'input window, operand 3, single buffered']
    #allocation9 [shape = 's32[1]{0}', space=sflag, size = 0x4, scoped, tag = 'scoped memory for id_loss_forward.1']
    #allocation10 [shape = 'u8[3072]{0}', space=vmem, size = 0xc00, scoped, tag = 'input window, operand 4, single buffered']
    #allocation11 [shape = 'u8[131072]{0}', space=vmem, size = 0x20000, scoped, tag = 'input window, operand 5, single buffered']
    #allocation12 [shape = 's32[1]{0}', space=sflag, size = 0x4, scoped, tag = 'scoped memory for id_loss_forward.1']
    #allocation13 [shape = 'u8[2048]{0}', space=vmem, size = 0x800, scoped, tag = 'input window, operand 6, single buffered']
    #allocation14 [shape = 'u8[524288]{0}', space=vmem, size = 0x80000, scoped, tag = 'input window, operand 7, single buffered']
    #allocation15 [shape = 's32[1]{0}', space=sflag, size = 0x4, scoped, tag = 'scoped memory for id_loss_forward.1']
    #allocation16 [shape = 'u8[2048]{0}', space=vmem, size = 0x800, scoped, tag = 'input window, operand 8, single buffered']
    #allocation17 [shape = 'u8[512]{0}', space=vmem, size = 0x400, scoped, tag = 'output window, operand 0, single buffered']
    %14 = vsyncpa [#allocation3], 0
    %15 = vsyncpa [#allocation6], 0
    %16 = vsyncpa [#allocation9], 0
    %17 = vsyncpa [#allocation12], 0
    %18 = vsyncpa [#allocation15], 0
    %19 = vsyncpa [#allocation4], 0
    // Predicated region
    $region2: #{id_loss_forward.1} parent=1 // pred_check
      _
    $region3: #{id_loss_forward.1} parent=1 // pred_check_branch
      %21 = sbr.rel (0) target = $region5
    $region4: #{id_loss_forward.1} parent=1 // pred_region
      %23 = vsyncadd [#allocation3], 0
      %s24 = sshll.u32 %s0, 4
      %s25 = int_to_ptr.hbm [resolvable:$true] %s24
      %s26 = sshll.u32 [#allocation2], 4
      %s27 = int_to_ptr.vmem [resolvable:$true] %s26
      %32 = dma.hbm_to_vmem [thread:$0]  %s25, 49152, %s27, [#allocation3], 256, 256, 16
    $region5: #{id_loss_forward.1} parent=1 // pred_fallthru
      _
    // Predicated region
    $region6: #{id_loss_forward.1} parent=1 // pred_check
      _
    $region7: #{id_loss_forward.1} parent=1 // pred_check_branch
      %34 = sbr.rel (0) target = $region9
    $region8: #{id_loss_forward.1} parent=1 // pred_region
      %36 = vsyncadd [#allocation6], 0
      %s37 = sshll.u32 %s1, 4
      %s38 = int_to_ptr.hbm [resolvable:$true] %s37
      %s39 = sshll.u32 [#allocation5], 4
      %s40 = int_to_ptr.vmem [resolvable:$true] %s39
      %45 = dma.hbm_to_vmem [thread:$0]  %s38, 49152, %s40, [#allocation6], 256, 256, 16
    $region9: #{id_loss_forward.1} parent=1 // pred_fallthru
      _
    // Predicated region
    $region10: #{id_loss_forward.1} parent=1 // pred_check
      _
    $region11: #{id_loss_forward.1} parent=1 // pred_check_branch
      %47 = sbr.rel (0) target = $region13
    $region12: #{id_loss_forward.1} parent=1 // pred_region
      %49 = vsyncadd [#allocation6], 0
      %s50 = sshll.u32 %s2, 4
      %s51 = int_to_ptr.hbm [resolvable:$true] %s50
      %s52 = sshll.u32 [#allocation7], 4
      %s53 = int_to_ptr.vmem [resolvable:$true] %s52
      %58 = dma.hbm_to_vmem [thread:$0]  %s51, 1792, %s53, [#allocation6], 128, 128, 8
    $region13: #{id_loss_forward.1} parent=1 // pred_fallthru
      _
    // Predicated region
    $region14: #{id_loss_forward.1} parent=1 // pred_check
      _
    $region15: #{id_loss_forward.1} parent=1 // pred_check_branch
      %60 = sbr.rel (0) target = $region17
    $region16: #{id_loss_forward.1} parent=1 // pred_region
      %62 = vsyncadd [#allocation9], 0
      %s63 = sshll.u32 %s3, 4
      %s64 = int_to_ptr.hbm [resolvable:$true] %s63
      %s65 = sshll.u32 [#allocation8], 4
      %s66 = int_to_ptr.vmem [resolvable:$true] %s65
      %71 = dma.hbm_to_vmem [thread:$0]  %s64, 2048, %s66, [#allocation9], 64, 64, 4
    $region17: #{id_loss_forward.1} parent=1 // pred_fallthru
      _
    // Predicated region
    $region18: #{id_loss_forward.1} parent=1 // pred_check
      _
    $region19: #{id_loss_forward.1} parent=1 // pred_check_branch
      %73 = sbr.rel (0) target = $region21
    $region20: #{id_loss_forward.1} parent=1 // pred_region
      %75 = vsyncadd [#allocation9], 0
      %s77 = sshll.u32 %s4, 4
      %s78 = int_to_ptr.hbm [resolvable:$true] %s77
      %s79 = sshll.u32 [#allocation10], 4
      %s80 = int_to_ptr.vmem [resolvable:$true] %s79
      %82 = dma.hbm_to_vmem [thread:$0]  %s78, 96, %s80, [#allocation9]
    $region21: #{id_loss_forward.1} parent=1 // pred_fallthru
      _
    // Predicated region
    $region22: #{id_loss_forward.1} parent=1 // pred_check
      _
    $region23: #{id_loss_forward.1} parent=1 // pred_check_branch
      %84 = sbr.rel (0) target = $region25
    $region24: #{id_loss_forward.1} parent=1 // pred_region
      %86 = vsyncadd [#allocation12], 0
      %s87 = sshll.u32 %s5, 4
      %s88 = int_to_ptr.hbm [resolvable:$true] %s87
      %s89 = sshll.u32 [#allocation11], 4
      %s90 = int_to_ptr.vmem [resolvable:$true] %s89
      %95 = dma.hbm_to_vmem [thread:$0]  %s88, 4096, %s90, [#allocation12], 256, 256, 16
    $region25: #{id_loss_forward.1} parent=1 // pred_fallthru
      _
    // Predicated region
    $region26: #{id_loss_forward.1} parent=1 // pred_check
      _
    $region27: #{id_loss_forward.1} parent=1 // pred_check_branch
      %97 = sbr.rel (0) target = $region29
    $region28: #{id_loss_forward.1} parent=1 // pred_region
      %99 = vsyncadd [#allocation12], 0
      %s101 = sshll.u32 %s6, 4
      %s102 = int_to_ptr.hbm [resolvable:$true] %s101
      %s103 = sshll.u32 [#allocation13], 4
      %s104 = int_to_ptr.vmem [resolvable:$true] %s103
      %106 = dma.hbm_to_vmem [thread:$0]  %s102, 64, %s104, [#allocation12]
    $region29: #{id_loss_forward.1} parent=1 // pred_fallthru
      _
    // Predicated region
    $region30: #{id_loss_forward.1} parent=1 // pred_check
      _
    $region31: #{id_loss_forward.1} parent=1 // pred_check_branch
      %108 = sbr.rel (0) target = $region33
    $region32: #{id_loss_forward.1} parent=1 // pred_region
      %110 = vsyncadd [#allocation15], 0
      %s111 = sshll.u32 %s7, 4
      %s112 = int_to_ptr.hbm [resolvable:$true] %s111
      %s113 = sshll.u32 [#allocation14], 4
      %s114 = int_to_ptr.vmem [resolvable:$true] %s113
      %119 = dma.hbm_to_vmem [thread:$0]  %s112, 16384, %s114, [#allocation15], 256, 256, 16
    $region33: #{id_loss_forward.1} parent=1 // pred_fallthru
      _
    // Predicated region
    $region34: #{id_loss_forward.1} parent=1 // pred_check
      _
    $region35: #{id_loss_forward.1} parent=1 // pred_check_branch
      %121 = sbr.rel (0) target = $region37
    $region36: #{id_loss_forward.1} parent=1 // pred_region
      %123 = vsyncadd [#allocation15], 0
      %s125 = sshll.u32 %s8, 4
      %s126 = int_to_ptr.hbm [resolvable:$true] %s125
      %s127 = sshll.u32 [#allocation16], 4
      %s128 = int_to_ptr.vmem [resolvable:$true] %s127
      %130 = dma.hbm_to_vmem [thread:$0]  %s126, 64, %s128, [#allocation15]
    $region37: #{id_loss_forward.1} parent=1 // pred_fallthru
      _
    // Predicated region
    $region38: #{id_loss_forward.1} parent=1 // pred_check
      _
    $region39: #{id_loss_forward.1} parent=1 // pred_check_branch
      %132 = sbr.rel (0) target = $region41
    $region40: #{id_loss_forward.1} parent=1 // pred_region
      %134 = dma.done [#allocation3], 49152
    $region41: #{id_loss_forward.1} parent=1 // pred_fallthru
      _
    // Predicated region
    $region42: #{id_loss_forward.1} parent=1 // pred_check
      _
    $region43: #{id_loss_forward.1} parent=1 // pred_check_branch
      %136 = sbr.rel (0) target = $region45
    $region44: #{id_loss_forward.1} parent=1 // pred_region
      %138 = dma.done [#allocation6], 49152
    $region45: #{id_loss_forward.1} parent=1 // pred_fallthru
      _
    // Predicated region
    $region46: #{id_loss_forward.1} parent=1 // pred_check
      _
    $region47: #{id_loss_forward.1} parent=1 // pred_check_branch
      %140 = sbr.rel (0) target = $region49
    $region48: #{id_loss_forward.1} parent=1 // pred_region
      %142 = dma.done [#allocation6], 1792
    $region49: #{id_loss_forward.1} parent=1 // pred_fallthru
      _
    // Predicated region
    $region50: #{id_loss_forward.1} parent=1 // pred_check
      _
    $region51: #{id_loss_forward.1} parent=1 // pred_check_branch
      %144 = sbr.rel (0) target = $region53
    $region52: #{id_loss_forward.1} parent=1 // pred_region
      %146 = dma.done [#allocation9], 2048
    $region53: #{id_loss_forward.1} parent=1 // pred_fallthru
      _
    // Predicated region
    $region54: #{id_loss_forward.1} parent=1 // pred_check
      _
    $region55: #{id_loss_forward.1} parent=1 // pred_check_branch
      %148 = sbr.rel (0) target = $region57
    $region56: #{id_loss_forward.1} parent=1 // pred_region
      %150 = dma.done [#allocation9], 96
    $region57: #{id_loss_forward.1} parent=1 // pred_fallthru
      _
    // Predicated region
    $region58: #{id_loss_forward.1} parent=1 // pred_check
      _
    $region59: #{id_loss_forward.1} parent=1 // pred_check_branch
      %152 = sbr.rel (0) target = $region61
    $region60: #{id_loss_forward.1} parent=1 // pred_region
      %154 = dma.done [#allocation12], 4096
    $region61: #{id_loss_forward.1} parent=1 // pred_fallthru
      _
    // Predicated region
    $region62: #{id_loss_forward.1} parent=1 // pred_check
      _
    $region63: #{id_loss_forward.1} parent=1 // pred_check_branch
      %156 = sbr.rel (0) target = $region65
    $region64: #{id_loss_forward.1} parent=1 // pred_region
      %158 = dma.done [#allocation12], 64
    $region65: #{id_loss_forward.1} parent=1 // pred_fallthru
      _
    // Predicated region
    $region66: #{id_loss_forward.1} parent=1 // pred_check
      _
    $region67: #{id_loss_forward.1} parent=1 // pred_check_branch
      %160 = sbr.rel (0) target = $region69
    $region68: #{id_loss_forward.1} parent=1 // pred_region
      %162 = dma.done [#allocation15], 16384
    $region69: #{id_loss_forward.1} parent=1 // pred_fallthru
      _
    // Predicated region
    $region70: #{id_loss_forward.1} parent=1 // pred_check
      _
    $region71: #{id_loss_forward.1} parent=1 // pred_check_branch
      %164 = sbr.rel (0) target = $region73
    $region72: #{id_loss_forward.1} parent=1 // pred_region
      %166 = dma.done [#allocation15], 64
    $region73: #{id_loss_forward.1} parent=1 // pred_fallthru
      _
    %v168 = vld [vmem:[#allocation7] sm:$0xff]
    %v169 = vld [vmem:[#allocation7 + $0x8] sm:$0xff]
    %v170 = vld [vmem:[#allocation7 + $0x10] sm:$0xff]
    %v171 = vld [vmem:[#allocation7 + $0x18] sm:$0xff]
    %v172 = vld [vmem:[#allocation7 + $0x20] sm:$0xff]
    %v173 = vld [vmem:[#allocation7 + $0x28] sm:$0xff]
    %v174 = vld [vmem:[#allocation7 + $0x30] sm:$0xff]
    %v175 = vld [vmem:[#allocation7 + $0x38] sm:$0xff]
    %v176 = vld [vmem:[#allocation7 + $0x40] sm:$0xff]
    %v177 = vld [vmem:[#allocation7 + $0x48] sm:$0xff]
    %v178 = vld [vmem:[#allocation7 + $0x50] sm:$0xff]
    %v179 = vld [vmem:[#allocation7 + $0x58] sm:$0xff]
    %v180 = vld [vmem:[#allocation7 + $0x60] sm:$0xff]
    %v181 = vld [vmem:[#allocation7 + $0x68] sm:$0xff]
    %v182 = vld [vmem:[#allocation8] sm:$0xf]
    %v183 = vld [vmem:[#allocation8 + $0x4] sm:$0xf]
    %v184 = vld [vmem:[#allocation8 + $0x8] sm:$0xf]
    %v185 = vld [vmem:[#allocation8 + $0xc] sm:$0xf]
    %v186 = vld [vmem:[#allocation8 + $0x10] sm:$0xf]
    %v187 = vld [vmem:[#allocation8 + $0x14] sm:$0xf]
    %v188 = vld [vmem:[#allocation8 + $0x18] sm:$0xf]
    %v189 = vld [vmem:[#allocation8 + $0x1c] sm:$0xf]
    %v190 = vld [vmem:[#allocation8 + $0x20] sm:$0xf]
    %v191 = vld [vmem:[#allocation8 + $0x24] sm:$0xf]
    %v192 = vld [vmem:[#allocation8 + $0x28] sm:$0xf]
    %v193 = vld [vmem:[#allocation8 + $0x2c] sm:$0xf]
    %v194 = vld [vmem:[#allocation8 + $0x30] sm:$0xf]
    %v195 = vld [vmem:[#allocation8 + $0x34] sm:$0xf]
    %v196 = vld [vmem:[#allocation8 + $0x38] sm:$0xf]
    %v197 = vld [vmem:[#allocation8 + $0x3c] sm:$0xf]
    %v198 = vld [vmem:[#allocation8 + $0x40] sm:$0xf]
    %v199 = vld [vmem:[#allocation8 + $0x44] sm:$0xf]
    %v200 = vld [vmem:[#allocation8 + $0x48] sm:$0xf]
    %v201 = vld [vmem:[#allocation8 + $0x4c] sm:$0xf]
    %v202 = vld [vmem:[#allocation8 + $0x50] sm:$0xf]
    %v203 = vld [vmem:[#allocation8 + $0x54] sm:$0xf]
    %v204 = vld [vmem:[#allocation8 + $0x58] sm:$0xf]
    %v205 = vld [vmem:[#allocation8 + $0x5c] sm:$0xf]
    %v206 = vld [vmem:[#allocation8 + $0x60] sm:$0xf]
    %v207 = vld [vmem:[#allocation8 + $0x64] sm:$0xf]
    %v208 = vld [vmem:[#allocation8 + $0x68] sm:$0xf]
    %v209 = vld [vmem:[#allocation8 + $0x6c] sm:$0xf]
    %v210 = vld [vmem:[#allocation8 + $0x70] sm:$0xf]
    %v211 = vld [vmem:[#allocation8 + $0x74] sm:$0xf]
    %v212 = vld [vmem:[#allocation8 + $0x78] sm:$0xf]
    %v213 = vld [vmem:[#allocation8 + $0x7c] sm:$0xf]
    %v214 = vld [vmem:[#allocation10] sm:$0x3f]
    %v215 = vld [vmem:[#allocation11] sm:$0xff]
    %v216 = vld [vmem:[#allocation11 + $0x8] sm:$0xff]
    %v217 = vld [vmem:[#allocation11 + $0x10] sm:$0xff]
    %v218 = vld [vmem:[#allocation11 + $0x18] sm:$0xff]
    %v219 = vld [vmem:[#allocation11 + $0x20] sm:$0xff]
    %v220 = vld [vmem:[#allocation11 + $0x28] sm:$0xff]
    %v221 = vld [vmem:[#allocation11 + $0x30] sm:$0xff]
    %v222 = vld [vmem:[#allocation11 + $0x38] sm:$0xff]
    %v223 = vld [vmem:[#allocation11 + $0x40] sm:$0xff]
    %v224 = vld [vmem:[#allocation11 + $0x48] sm:$0xff]
    %v225 = vld [vmem:[#allocation11 + $0x50] sm:$0xff]
    %v226 = vld [vmem:[#allocation11 + $0x58] sm:$0xff]
    %v227 = vld [vmem:[#allocation11 + $0x60] sm:$0xff]
    %v228 = vld [vmem:[#allocation11 + $0x68] sm:$0xff]
    %v229 = vld [vmem:[#allocation11 + $0x70] sm:$0xff]
    %v230 = vld [vmem:[#allocation11 + $0x78] sm:$0xff]
    %v231 = vld [vmem:[#allocation11 + $0x80] sm:$0xff]
    %v232 = vld [vmem:[#allocation11 + $0x88] sm:$0xff]
    %v233 = vld [vmem:[#allocation11 + $0x90] sm:$0xff]
    %v234 = vld [vmem:[#allocation11 + $0x98] sm:$0xff]
    %v235 = vld [vmem:[#allocation11 + $0xa0] sm:$0xff]
    %v236 = vld [vmem:[#allocation11 + $0xa8] sm:$0xff]
    %v237 = vld [vmem:[#allocation11 + $0xb0] sm:$0xff]
    %v238 = vld [vmem:[#allocation11 + $0xb8] sm:$0xff]
    %v239 = vld [vmem:[#allocation11 + $0xc0] sm:$0xff]
    %v240 = vld [vmem:[#allocation11 + $0xc8] sm:$0xff]
    %v241 = vld [vmem:[#allocation11 + $0xd0] sm:$0xff]
    %v242 = vld [vmem:[#allocation11 + $0xd8] sm:$0xff]
    %v243 = vld [vmem:[#allocation11 + $0xe0] sm:$0xff]
    %v244 = vld [vmem:[#allocation11 + $0xe8] sm:$0xff]
    %v245 = vld [vmem:[#allocation11 + $0xf0] sm:$0xff]
    %v246 = vld [vmem:[#allocation11 + $0xf8] sm:$0xff]
    %v247 = vld [vmem:[#allocation13] sm:$0xf]
    %v248 = vld [vmem:[#allocation14] sm:$0xff]
    %v249 = vld [vmem:[#allocation14 + $0x8] sm:$0xff]
    %v250 = vld [vmem:[#allocation14 + $0x10] sm:$0xff]
    %v251 = vld [vmem:[#allocation14 + $0x18] sm:$0xff]
    %v252 = vld [vmem:[#allocation14 + $0x20] sm:$0xff]
    %v253 = vld [vmem:[#allocation14 + $0x28] sm:$0xff]
    %v254 = vld [vmem:[#allocation14 + $0x30] sm:$0xff]
    %v255 = vld [vmem:[#allocation14 + $0x38] sm:$0xff]
    %v256 = vld [vmem:[#allocation14 + $0x40] sm:$0xff]
    %v257 = vld [vmem:[#allocation14 + $0x48] sm:$0xff]
    %v258 = vld [vmem:[#allocation14 + $0x50] sm:$0xff]
    %v259 = vld [vmem:[#allocation14 + $0x58] sm:$0xff]
    %v260 = vld [vmem:[#allocation14 + $0x60] sm:$0xff]
    %v261 = vld [vmem:[#allocation14 + $0x68] sm:$0xff]
    %v262 = vld [vmem:[#allocation14 + $0x70] sm:$0xff]
    %v263 = vld [vmem:[#allocation14 + $0x78] sm:$0xff]
    %v264 = vld [vmem:[#allocation14 + $0x80] sm:$0xff]
    %v265 = vld [vmem:[#allocation14 + $0x88] sm:$0xff]
    %v266 = vld [vmem:[#allocation14 + $0x90] sm:$0xff]
    %v267 = vld [vmem:[#allocation14 + $0x98] sm:$0xff]
    %v268 = vld [vmem:[#allocation14 + $0xa0] sm:$0xff]
    %v269 = vld [vmem:[#allocation14 + $0xa8] sm:$0xff]
    %v270 = vld [vmem:[#allocation14 + $0xb0] sm:$0xff]
    %v271 = vld [vmem:[#allocation14 + $0xb8] sm:$0xff]
    %v272 = vld [vmem:[#allocation14 + $0xc0] sm:$0xff]
    %v273 = vld [vmem:[#allocation14 + $0xc8] sm:$0xff]
    %v274 = vld [vmem:[#allocation14 + $0xd0] sm:$0xff]
    %v275 = vld [vmem:[#allocation14 + $0xd8] sm:$0xff]
    %v276 = vld [vmem:[#allocation14 + $0xe0] sm:$0xff]
    %v277 = vld [vmem:[#allocation14 + $0xe8] sm:$0xff]
    %v278 = vld [vmem:[#allocation14 + $0xf0] sm:$0xff]
    %v279 = vld [vmem:[#allocation14 + $0xf8] sm:$0xff]
    %v280 = vld [vmem:[#allocation14 + $0x100] sm:$0xff]
    %v281 = vld [vmem:[#allocation14 + $0x108] sm:$0xff]
    %v282 = vld [vmem:[#allocation14 + $0x110] sm:$0xff]
    %v283 = vld [vmem:[#allocation14 + $0x118] sm:$0xff]
    %v284 = vld [vmem:[#allocation14 + $0x120] sm:$0xff]
    %v285 = vld [vmem:[#allocation14 + $0x128] sm:$0xff]
    %v286 = vld [vmem:[#allocation14 + $0x130] sm:$0xff]
    %v287 = vld [vmem:[#allocation14 + $0x138] sm:$0xff]
    %v288 = vld [vmem:[#allocation14 + $0x140] sm:$0xff]
    %v289 = vld [vmem:[#allocation14 + $0x148] sm:$0xff]
    %v290 = vld [vmem:[#allocation14 + $0x150] sm:$0xff]
    %v291 = vld [vmem:[#allocation14 + $0x158] sm:$0xff]
    %v292 = vld [vmem:[#allocation14 + $0x160] sm:$0xff]
    %v293 = vld [vmem:[#allocation14 + $0x168] sm:$0xff]
    %v294 = vld [vmem:[#allocation14 + $0x170] sm:$0xff]
    %v295 = vld [vmem:[#allocation14 + $0x178] sm:$0xff]
    %v296 = vld [vmem:[#allocation14 + $0x180] sm:$0xff]
    %v297 = vld [vmem:[#allocation14 + $0x188] sm:$0xff]
    %v298 = vld [vmem:[#allocation14 + $0x190] sm:$0xff]
    %v299 = vld [vmem:[#allocation14 + $0x198] sm:$0xff]
    %v300 = vld [vmem:[#allocation14 + $0x1a0] sm:$0xff]
    %v301 = vld [vmem:[#allocation14 + $0x1a8] sm:$0xff]
    %v302 = vld [vmem:[#allocation14 + $0x1b0] sm:$0xff]
    %v303 = vld [vmem:[#allocation14 + $0x1b8] sm:$0xff]
    %v304 = vld [vmem:[#allocation14 + $0x1c0] sm:$0xff]
    %v305 = vld [vmem:[#allocation14 + $0x1c8] sm:$0xff]
    %v306 = vld [vmem:[#allocation14 + $0x1d0] sm:$0xff]
    %v307 = vld [vmem:[#allocation14 + $0x1d8] sm:$0xff]
    %v308 = vld [vmem:[#allocation14 + $0x1e0] sm:$0xff]
    %v309 = vld [vmem:[#allocation14 + $0x1e8] sm:$0xff]
    %v310 = vld [vmem:[#allocation14 + $0x1f0] sm:$0xff]
    %v311 = vld [vmem:[#allocation14 + $0x1f8] sm:$0xff]
    %v312 = vld [vmem:[#allocation14 + $0x200] sm:$0xff]
    %v313 = vld [vmem:[#allocation14 + $0x208] sm:$0xff]
    %v314 = vld [vmem:[#allocation14 + $0x210] sm:$0xff]
    %v315 = vld [vmem:[#allocation14 + $0x218] sm:$0xff]
    %v316 = vld [vmem:[#allocation14 + $0x220] sm:$0xff]
    %v317 = vld [vmem:[#allocation14 + $0x228] sm:$0xff]
    %v318 = vld [vmem:[#allocation14 + $0x230] sm:$0xff]
    %v319 = vld [vmem:[#allocation14 + $0x238] sm:$0xff]
    %v320 = vld [vmem:[#allocation14 + $0x240] sm:$0xff]
    %v321 = vld [vmem:[#allocation14 + $0x248] sm:$0xff]
    %v322 = vld [vmem:[#allocation14 + $0x250] sm:$0xff]
    %v323 = vld [vmem:[#allocation14 + $0x258] sm:$0xff]
    %v324 = vld [vmem:[#allocation14 + $0x260] sm:$0xff]
    %v325 = vld [vmem:[#allocation14 + $0x268] sm:$0xff]
    %v326 = vld [vmem:[#allocation14 + $0x270] sm:$0xff]
    %v327 = vld [vmem:[#allocation14 + $0x278] sm:$0xff]
    %v328 = vld [vmem:[#allocation14 + $0x280] sm:$0xff]
    %v329 = vld [vmem:[#allocation14 + $0x288] sm:$0xff]
    %v330 = vld [vmem:[#allocation14 + $0x290] sm:$0xff]
    %v331 = vld [vmem:[#allocation14 + $0x298] sm:$0xff]
    %v332 = vld [vmem:[#allocation14 + $0x2a0] sm:$0xff]
    %v333 = vld [vmem:[#allocation14 + $0x2a8] sm:$0xff]
    %v334 = vld [vmem:[#allocation14 + $0x2b0] sm:$0xff]
    %v335 = vld [vmem:[#allocation14 + $0x2b8] sm:$0xff]
    %v336 = vld [vmem:[#allocation14 + $0x2c0] sm:$0xff]
    %v337 = vld [vmem:[#allocation14 + $0x2c8] sm:$0xff]
    %v338 = vld [vmem:[#allocation14 + $0x2d0] sm:$0xff]
    %v339 = vld [vmem:[#allocation14 + $0x2d8] sm:$0xff]
    %v340 = vld [vmem:[#allocation14 + $0x2e0] sm:$0xff]
    %v341 = vld [vmem:[#allocation14 + $0x2e8] sm:$0xff]
    %v342 = vld [vmem:[#allocation14 + $0x2f0] sm:$0xff]
    %v343 = vld [vmem:[#allocation14 + $0x2f8] sm:$0xff]
    %v344 = vld [vmem:[#allocation14 + $0x300] sm:$0xff]
    %v345 = vld [vmem:[#allocation14 + $0x308] sm:$0xff]
    %v346 = vld [vmem:[#allocation14 + $0x310] sm:$0xff]
    %v347 = vld [vmem:[#allocation14 + $0x318] sm:$0xff]
    %v348 = vld [vmem:[#allocation14 + $0x320] sm:$0xff]
    %v349 = vld [vmem:[#allocation14 + $0x328] sm:$0xff]
    %v350 = vld [vmem:[#allocation14 + $0x330] sm:$0xff]
    %v351 = vld [vmem:[#allocation14 + $0x338] sm:$0xff]
    %v352 = vld [vmem:[#allocation14 + $0x340] sm:$0xff]
    %v353 = vld [vmem:[#allocation14 + $0x348] sm:$0xff]
    %v354 = vld [vmem:[#allocation14 + $0x350] sm:$0xff]
    %v355 = vld [vmem:[#allocation14 + $0x358] sm:$0xff]
    %v356 = vld [vmem:[#allocation14 + $0x360] sm:$0xff]
    %v357 = vld [vmem:[#allocation14 + $0x368] sm:$0xff]
    %v358 = vld [vmem:[#allocation14 + $0x370] sm:$0xff]
    %v359 = vld [vmem:[#allocation14 + $0x378] sm:$0xff]
    %v360 = vld [vmem:[#allocation14 + $0x380] sm:$0xff]
    %v361 = vld [vmem:[#allocation14 + $0x388] sm:$0xff]
    %v362 = vld [vmem:[#allocation14 + $0x390] sm:$0xff]
    %v363 = vld [vmem:[#allocation14 + $0x398] sm:$0xff]
    %v364 = vld [vmem:[#allocation14 + $0x3a0] sm:$0xff]
    %v365 = vld [vmem:[#allocation14 + $0x3a8] sm:$0xff]
    %v366 = vld [vmem:[#allocation14 + $0x3b0] sm:$0xff]
    %v367 = vld [vmem:[#allocation14 + $0x3b8] sm:$0xff]
    %v368 = vld [vmem:[#allocation14 + $0x3c0] sm:$0xff]
    %v369 = vld [vmem:[#allocation14 + $0x3c8] sm:$0xff]
    %v370 = vld [vmem:[#allocation14 + $0x3d0] sm:$0xff]
    %v371 = vld [vmem:[#allocation14 + $0x3d8] sm:$0xff]
    %v372 = vld [vmem:[#allocation14 + $0x3e0] sm:$0xff]
    %v373 = vld [vmem:[#allocation14 + $0x3e8] sm:$0xff]
    %v374 = vld [vmem:[#allocation14 + $0x3f0] sm:$0xff]
    %v375 = vld [vmem:[#allocation14 + $0x3f8] sm:$0xff]
    %v376 = vld [vmem:[#allocation16] sm:$0xf]
    %v377 = vld [vmem:[#allocation2] sm:$0xff]
    %v378 = vld [vmem:[#allocation2 + $0x8] sm:$0xff]
    %v379 = vld [vmem:[#allocation2 + $0x10] sm:$0xff]
    %v380 = vld [vmem:[#allocation2 + $0x18] sm:$0xff]
    %v381 = vld [vmem:[#allocation2 + $0x20] sm:$0xff]
    %v382 = vld [vmem:[#allocation2 + $0x28] sm:$0xff]
    %v383 = vld [vmem:[#allocation2 + $0x30] sm:$0xff]
    %v384 = vld [vmem:[#allocation2 + $0x38] sm:$0xff]
    %v385 = vld [vmem:[#allocation2 + $0x40] sm:$0xff]
    %v386 = vld [vmem:[#allocation2 + $0x48] sm:$0xff]
    %v387 = vld [vmem:[#allocation2 + $0x50] sm:$0xff]
    %v388 = vld [vmem:[#allocation2 + $0x58] sm:$0xff]
    %v389 = vld [vmem:[#allocation2 + $0x60] sm:$0xff]
    %v390 = vld [vmem:[#allocation2 + $0x68] sm:$0xff]
    %v391 = vld [vmem:[#allocation2 + $0x70] sm:$0xff]
    %v392 = vld [vmem:[#allocation2 + $0x78] sm:$0xff]
    %v393 = vld [vmem:[#allocation2 + $0x80] sm:$0xff]
    %v394 = vld [vmem:[#allocation2 + $0x88] sm:$0xff]
    %v395 = vld [vmem:[#allocation2 + $0x90] sm:$0xff]
    %v396 = vld [vmem:[#allocation2 + $0x98] sm:$0xff]
    %v397 = vld [vmem:[#allocation2 + $0xa0] sm:$0xff]
    %v398 = vld [vmem:[#allocation2 + $0xa8] sm:$0xff]
    %v399 = vld [vmem:[#allocation2 + $0xb0] sm:$0xff]
    %v400 = vld [vmem:[#allocation2 + $0xb8] sm:$0xff]
    %v401 = vld [vmem:[#allocation2 + $0xc0] sm:$0xff]
    %v402 = vld [vmem:[#allocation2 + $0xc8] sm:$0xff]
    %v403 = vld [vmem:[#allocation2 + $0xd0] sm:$0xff]
    %v404 = vld [vmem:[#allocation2 + $0xd8] sm:$0xff]
    %v405 = vld [vmem:[#allocation2 + $0xe0] sm:$0xff]
    %v406 = vld [vmem:[#allocation2 + $0xe8] sm:$0xff]
    %v407 = vld [vmem:[#allocation2 + $0xf0] sm:$0xff]
    %v408 = vld [vmem:[#allocation2 + $0xf8] sm:$0xff]
    %v409 = vld [vmem:[#allocation2 + $0x100] sm:$0xff]
    %v410 = vld [vmem:[#allocation2 + $0x108] sm:$0xff]
    %v411 = vld [vmem:[#allocation2 + $0x110] sm:$0xff]
    %v412 = vld [vmem:[#allocation2 + $0x118] sm:$0xff]
    %v413 = vld [vmem:[#allocation2 + $0x120] sm:$0xff]
    %v414 = vld [vmem:[#allocation2 + $0x128] sm:$0xff]
    %v415 = vld [vmem:[#allocation2 + $0x130] sm:$0xff]
    %v416 = vld [vmem:[#allocation2 + $0x138] sm:$0xff]
    %v417 = vld [vmem:[#allocation2 + $0x140] sm:$0xff]
    %v418 = vld [vmem:[#allocation2 + $0x148] sm:$0xff]
    %v419 = vld [vmem:[#allocation2 + $0x150] sm:$0xff]
    %v420 = vld [vmem:[#allocation2 + $0x158] sm:$0xff]
    %v421 = vld [vmem:[#allocation2 + $0x160] sm:$0xff]
    %v422 = vld [vmem:[#allocation2 + $0x168] sm:$0xff]
    %v423 = vld [vmem:[#allocation2 + $0x170] sm:$0xff]
    %v424 = vld [vmem:[#allocation2 + $0x178] sm:$0xff]
    %v425 = vld [vmem:[#allocation2 + $0x180] sm:$0xff]
    %v426 = vld [vmem:[#allocation2 + $0x188] sm:$0xff]
    %v427 = vld [vmem:[#allocation2 + $0x190] sm:$0xff]
    %v428 = vld [vmem:[#allocation2 + $0x198] sm:$0xff]
    %v429 = vld [vmem:[#allocation2 + $0x1a0] sm:$0xff]
    %v430 = vld [vmem:[#allocation2 + $0x1a8] sm:$0xff]
    %v431 = vld [vmem:[#allocation2 + $0x1b0] sm:$0xff]
    %v432 = vld [vmem:[#allocation2 + $0x1b8] sm:$0xff]
    %v433 = vld [vmem:[#allocation2 + $0x1c0] sm:$0xff]
    %v434 = vld [vmem:[#allocation2 + $0x1c8] sm:$0xff]
    %v435 = vld [vmem:[#allocation2 + $0x1d0] sm:$0xff]
    %v436 = vld [vmem:[#allocation2 + $0x1d8] sm:$0xff]
    %v437 = vld [vmem:[#allocation2 + $0x1e0] sm:$0xff]
    %v438 = vld [vmem:[#allocation2 + $0x1e8] sm:$0xff]
    %v439 = vld [vmem:[#allocation2 + $0x1f0] sm:$0xff]
    %v440 = vld [vmem:[#allocation2 + $0x1f8] sm:$0xff]
    %v441 = vld [vmem:[#allocation2 + $0x200] sm:$0xff]
    %v442 = vld [vmem:[#allocation2 + $0x208] sm:$0xff]
    %v443 = vld [vmem:[#allocation2 + $0x210] sm:$0xff]
    %v444 = vld [vmem:[#allocation2 + $0x218] sm:$0xff]
    %v445 = vld [vmem:[#allocation2 + $0x220] sm:$0xff]
    %v446 = vld [vmem:[#allocation2 + $0x228] sm:$0xff]
    %v447 = vld [vmem:[#allocation2 + $0x230] sm:$0xff]
    %v448 = vld [vmem:[#allocation2 + $0x238] sm:$0xff]
    %v449 = vld [vmem:[#allocation2 + $0x240] sm:$0xff]
    %v450 = vld [vmem:[#allocation2 + $0x248] sm:$0xff]
    %v451 = vld [vmem:[#allocation2 + $0x250] sm:$0xff]
    %v452 = vld [vmem:[#allocation2 + $0x258] sm:$0xff]
    %v453 = vld [vmem:[#allocation2 + $0x260] sm:$0xff]
    %v454 = vld [vmem:[#allocation2 + $0x268] sm:$0xff]
    %v455 = vld [vmem:[#allocation2 + $0x270] sm:$0xff]
    %v456 = vld [vmem:[#allocation2 + $0x278] sm:$0xff]
    %v457 = vld [vmem:[#allocation2 + $0x280] sm:$0xff]
    %v458 = vld [vmem:[#allocation2 + $0x288] sm:$0xff]
    %v459 = vld [vmem:[#allocation2 + $0x290] sm:$0xff]
    %v460 = vld [vmem:[#allocation2 + $0x298] sm:$0xff]
    %v461 = vld [vmem:[#allocation2 + $0x2a0] sm:$0xff]
    %v462 = vld [vmem:[#allocation2 + $0x2a8] sm:$0xff]
    %v463 = vld [vmem:[#allocation2 + $0x2b0] sm:$0xff]
    %v464 = vld [vmem:[#allocation2 + $0x2b8] sm:$0xff]
    %v465 = vld [vmem:[#allocation2 + $0x2c0] sm:$0xff]
    %v466 = vld [vmem:[#allocation2 + $0x2c8] sm:$0xff]
    %v467 = vld [vmem:[#allocation2 + $0x2d0] sm:$0xff]
    %v468 = vld [vmem:[#allocation2 + $0x2d8] sm:$0xff]
    %v469 = vld [vmem:[#allocation2 + $0x2e0] sm:$0xff]
    %v470 = vld [vmem:[#allocation2 + $0x2e8] sm:$0xff]
    %v471 = vld [vmem:[#allocation2 + $0x2f0] sm:$0xff]
    %v472 = vld [vmem:[#allocation2 + $0x2f8] sm:$0xff]
    %v473 = vld [vmem:[#allocation2 + $0x300] sm:$0xff]
    %v474 = vld [vmem:[#allocation2 + $0x308] sm:$0xff]
    %v475 = vld [vmem:[#allocation2 + $0x310] sm:$0xff]
    %v476 = vld [vmem:[#allocation2 + $0x318] sm:$0xff]
    %v477 = vld [vmem:[#allocation2 + $0x320] sm:$0xff]
    %v478 = vld [vmem:[#allocation2 + $0x328] sm:$0xff]
    %v479 = vld [vmem:[#allocation2 + $0x330] sm:$0xff]
    %v480 = vld [vmem:[#allocation2 + $0x338] sm:$0xff]
    %v481 = vld [vmem:[#allocation2 + $0x340] sm:$0xff]
    %v482 = vld [vmem:[#allocation2 + $0x348] sm:$0xff]
    %v483 = vld [vmem:[#allocation2 + $0x350] sm:$0xff]
    %v484 = vld [vmem:[#allocation2 + $0x358] sm:$0xff]
    %v485 = vld [vmem:[#allocation2 + $0x360] sm:$0xff]
    %v486 = vld [vmem:[#allocation2 + $0x368] sm:$0xff]
    %v487 = vld [vmem:[#allocation2 + $0x370] sm:$0xff]
    %v488 = vld [vmem:[#allocation2 + $0x378] sm:$0xff]
    %v489 = vld [vmem:[#allocation2 + $0x380] sm:$0xff]
    %v490 = vld [vmem:[#allocation2 + $0x388] sm:$0xff]
    %v491 = vld [vmem:[#allocation2 + $0x390] sm:$0xff]
    %v492 = vld [vmem:[#allocation2 + $0x398] sm:$0xff]
    %v493 = vld [vmem:[#allocation2 + $0x3a0] sm:$0xff]
    %v494 = vld [vmem:[#allocation2 + $0x3a8] sm:$0xff]
    %v495 = vld [vmem:[#allocation2 + $0x3b0] sm:$0xff]
    %v496 = vld [vmem:[#allocation2 + $0x3b8] sm:$0xff]
    %v497 = vld [vmem:[#allocation2 + $0x3c0] sm:$0xff]
    %v498 = vld [vmem:[#allocation2 + $0x3c8] sm:$0xff]
    %v499 = vld [vmem:[#allocation2 + $0x3d0] sm:$0xff]
    %v500 = vld [vmem:[#allocation2 + $0x3d8] sm:$0xff]
    %v501 = vld [vmem:[#allocation2 + $0x3e0] sm:$0xff]
    %v502 = vld [vmem:[#allocation2 + $0x3e8] sm:$0xff]
    %v503 = vld [vmem:[#allocation2 + $0x3f0] sm:$0xff]
    %v504 = vld [vmem:[#allocation2 + $0x3f8] sm:$0xff]
    %v505 = vld [vmem:[#allocation2 + $0x400] sm:$0xff]
    %v506 = vld [vmem:[#allocation2 + $0x408] sm:$0xff]
    %v507 = vld [vmem:[#allocation2 + $0x410] sm:$0xff]
    %v508 = vld [vmem:[#allocation2 + $0x418] sm:$0xff]
    %v509 = vld [vmem:[#allocation2 + $0x420] sm:$0xff]
    %v510 = vld [vmem:[#allocation2 + $0x428] sm:$0xff]
    %v511 = vld [vmem:[#allocation2 + $0x430] sm:$0xff]
    %v512 = vld [vmem:[#allocation2 + $0x438] sm:$0xff]
    %v513 = vld [vmem:[#allocation2 + $0x440] sm:$0xff]
    %v514 = vld [vmem:[#allocation2 + $0x448] sm:$0xff]
    %v515 = vld [vmem:[#allocation2 + $0x450] sm:$0xff]
    %v516 = vld [vmem:[#allocation2 + $0x458] sm:$0xff]
    %v517 = vld [vmem:[#allocation2 + $0x460] sm:$0xff]
    %v518 = vld [vmem:[#allocation2 + $0x468] sm:$0xff]
    %v519 = vld [vmem:[#allocation2 + $0x470] sm:$0xff]
    %v520 = vld [vmem:[#allocation2 + $0x478] sm:$0xff]
    %v521 = vld [vmem:[#allocation2 + $0x480] sm:$0xff]
    %v522 = vld [vmem:[#allocation2 + $0x488] sm:$0xff]
    %v523 = vld [vmem:[#allocation2 + $0x490] sm:$0xff]
    %v524 = vld [vmem:[#allocation2 + $0x498] sm:$0xff]
    %v525 = vld [vmem:[#allocation2 + $0x4a0] sm:$0xff]
    %v526 = vld [vmem:[#allocation2 + $0x4a8] sm:$0xff]
    %v527 = vld [vmem:[#allocation2 + $0x4b0] sm:$0xff]
    %v528 = vld [vmem:[#allocation2 + $0x4b8] sm:$0xff]
    %v529 = vld [vmem:[#allocation2 + $0x4c0] sm:$0xff]
    %v530 = vld [vmem:[#allocation2 + $0x4c8] sm:$0xff]
    %v531 = vld [vmem:[#allocation2 + $0x4d0] sm:$0xff]
    %v532 = vld [vmem:[#allocation2 + $0x4d8] sm:$0xff]
    %v533 = vld [vmem:[#allocation2 + $0x4e0] sm:$0xff]
    %v534 = vld [vmem:[#allocation2 + $0x4e8] sm:$0xff]
    %v535 = vld [vmem:[#allocation2 + $0x4f0] sm:$0xff]
    %v536 = vld [vmem:[#allocation2 + $0x4f8] sm:$0xff]
    %v537 = vld [vmem:[#allocation2 + $0x500] sm:$0xff]
    %v538 = vld [vmem:[#allocation2 + $0x508] sm:$0xff]
    %v539 = vld [vmem:[#allocation2 + $0x510] sm:$0xff]
    %v540 = vld [vmem:[#allocation2 + $0x518] sm:$0xff]
    %v541 = vld [vmem:[#allocation2 + $0x520] sm:$0xff]
    %v542 = vld [vmem:[#allocation2 + $0x528] sm:$0xff]
    %v543 = vld [vmem:[#allocation2 + $0x530] sm:$0xff]
    %v544 = vld [vmem:[#allocation2 + $0x538] sm:$0xff]
    %v545 = vld [vmem:[#allocation2 + $0x540] sm:$0xff]
    %v546 = vld [vmem:[#allocation2 + $0x548] sm:$0xff]
    %v547 = vld [vmem:[#allocation2 + $0x550] sm:$0xff]
    %v548 = vld [vmem:[#allocation2 + $0x558] sm:$0xff]
    %v549 = vld [vmem:[#allocation2 + $0x560] sm:$0xff]
    %v550 = vld [vmem:[#allocation2 + $0x568] sm:$0xff]
    %v551 = vld [vmem:[#allocation2 + $0x570] sm:$0xff]
    %v552 = vld [vmem:[#allocation2 + $0x578] sm:$0xff]
    %v553 = vld [vmem:[#allocation2 + $0x580] sm:$0xff]
    %v554 = vld [vmem:[#allocation2 + $0x588] sm:$0xff]
    %v555 = vld [vmem:[#allocation2 + $0x590] sm:$0xff]
    %v556 = vld [vmem:[#allocation2 + $0x598] sm:$0xff]
    %v557 = vld [vmem:[#allocation2 + $0x5a0] sm:$0xff]
    %v558 = vld [vmem:[#allocation2 + $0x5a8] sm:$0xff]
    %v559 = vld [vmem:[#allocation2 + $0x5b0] sm:$0xff]
    %v560 = vld [vmem:[#allocation2 + $0x5b8] sm:$0xff]
    %v561 = vld [vmem:[#allocation2 + $0x5c0] sm:$0xff]
    %v562 = vld [vmem:[#allocation2 + $0x5c8] sm:$0xff]
    %v563 = vld [vmem:[#allocation2 + $0x5d0] sm:$0xff]
    %v564 = vld [vmem:[#allocation2 + $0x5d8] sm:$0xff]
    %v565 = vld [vmem:[#allocation2 + $0x5e0] sm:$0xff]
    %v566 = vld [vmem:[#allocation2 + $0x5e8] sm:$0xff]
    %v567 = vld [vmem:[#allocation2 + $0x5f0] sm:$0xff]
    %v568 = vld [vmem:[#allocation2 + $0x5f8] sm:$0xff]
    %v569 = vld [vmem:[#allocation2 + $0x600] sm:$0xff]
    %v570 = vld [vmem:[#allocation2 + $0x608] sm:$0xff]
    %v571 = vld [vmem:[#allocation2 + $0x610] sm:$0xff]
    %v572 = vld [vmem:[#allocation2 + $0x618] sm:$0xff]
    %v573 = vld [vmem:[#allocation2 + $0x620] sm:$0xff]
    %v574 = vld [vmem:[#allocation2 + $0x628] sm:$0xff]
    %v575 = vld [vmem:[#allocation2 + $0x630] sm:$0xff]
    %v576 = vld [vmem:[#allocation2 + $0x638] sm:$0xff]
    %v577 = vld [vmem:[#allocation2 + $0x640] sm:$0xff]
    %v578 = vld [vmem:[#allocation2 + $0x648] sm:$0xff]
    %v579 = vld [vmem:[#allocation2 + $0x650] sm:$0xff]
    %v580 = vld [vmem:[#allocation2 + $0x658] sm:$0xff]
    %v581 = vld [vmem:[#allocation2 + $0x660] sm:$0xff]
    %v582 = vld [vmem:[#allocation2 + $0x668] sm:$0xff]
    %v583 = vld [vmem:[#allocation2 + $0x670] sm:$0xff]
    %v584 = vld [vmem:[#allocation2 + $0x678] sm:$0xff]
    %v585 = vld [vmem:[#allocation2 + $0x680] sm:$0xff]
    %v586 = vld [vmem:[#allocation2 + $0x688] sm:$0xff]
    %v587 = vld [vmem:[#allocation2 + $0x690] sm:$0xff]
    %v588 = vld [vmem:[#allocation2 + $0x698] sm:$0xff]
    %v589 = vld [vmem:[#allocation2 + $0x6a0] sm:$0xff]
    %v590 = vld [vmem:[#allocation2 + $0x6a8] sm:$0xff]
    %v591 = vld [vmem:[#allocation2 + $0x6b0] sm:$0xff]
    %v592 = vld [vmem:[#allocation2 + $0x6b8] sm:$0xff]
    %v593 = vld [vmem:[#allocation2 + $0x6c0] sm:$0xff]
    %v594 = vld [vmem:[#allocation2 + $0x6c8] sm:$0xff]
    %v595 = vld [vmem:[#allocation2 + $0x6d0] sm:$0xff]
    %v596 = vld [vmem:[#allocation2 + $0x6d8] sm:$0xff]
    %v597 = vld [vmem:[#allocation2 + $0x6e0] sm:$0xff]
    %v598 = vld [vmem:[#allocation2 + $0x6e8] sm:$0xff]
    %v599 = vld [vmem:[#allocation2 + $0x6f0] sm:$0xff]
    %v600 = vld [vmem:[#allocation2 + $0x6f8] sm:$0xff]
    %v601 = vld [vmem:[#allocation2 + $0x700] sm:$0xff]
    %v602 = vld [vmem:[#allocation2 + $0x708] sm:$0xff]
    %v603 = vld [vmem:[#allocation2 + $0x710] sm:$0xff]
    %v604 = vld [vmem:[#allocation2 + $0x718] sm:$0xff]
    %v605 = vld [vmem:[#allocation2 + $0x720] sm:$0xff]
    %v606 = vld [vmem:[#allocation2 + $0x728] sm:$0xff]
    %v607 = vld [vmem:[#allocation2 + $0x730] sm:$0xff]
    %v608 = vld [vmem:[#allocation2 + $0x738] sm:$0xff]
    %v609 = vld [vmem:[#allocation2 + $0x740] sm:$0xff]
    %v610 = vld [vmem:[#allocation2 + $0x748] sm:$0xff]
    %v611 = vld [vmem:[#allocation2 + $0x750] sm:$0xff]
    %v612 = vld [vmem:[#allocation2 + $0x758] sm:$0xff]
    %v613 = vld [vmem:[#allocation2 + $0x760] sm:$0xff]
    %v614 = vld [vmem:[#allocation2 + $0x768] sm:$0xff]
    %v615 = vld [vmem:[#allocation2 + $0x770] sm:$0xff]
    %v616 = vld [vmem:[#allocation2 + $0x778] sm:$0xff]
    %v617 = vld [vmem:[#allocation2 + $0x780] sm:$0xff]
    %v618 = vld [vmem:[#allocation2 + $0x788] sm:$0xff]
    %v619 = vld [vmem:[#allocation2 + $0x790] sm:$0xff]
    %v620 = vld [vmem:[#allocation2 + $0x798] sm:$0xff]
    %v621 = vld [vmem:[#allocation2 + $0x7a0] sm:$0xff]
    %v622 = vld [vmem:[#allocation2 + $0x7a8] sm:$0xff]
    %v623 = vld [vmem:[#allocation2 + $0x7b0] sm:$0xff]
    %v624 = vld [vmem:[#allocation2 + $0x7b8] sm:$0xff]
    %v625 = vld [vmem:[#allocation2 + $0x7c0] sm:$0xff]
    %v626 = vld [vmem:[#allocation2 + $0x7c8] sm:$0xff]
    %v627 = vld [vmem:[#allocation2 + $0x7d0] sm:$0xff]
    %v628 = vld [vmem:[#allocation2 + $0x7d8] sm:$0xff]
    %v629 = vld [vmem:[#allocation2 + $0x7e0] sm:$0xff]
    %v630 = vld [vmem:[#allocation2 + $0x7e8] sm:$0xff]
    %v631 = vld [vmem:[#allocation2 + $0x7f0] sm:$0xff]
    %v632 = vld [vmem:[#allocation2 + $0x7f8] sm:$0xff]
    %v633 = vld [vmem:[#allocation2 + $0x800] sm:$0xff]
    %v634 = vld [vmem:[#allocation2 + $0x808] sm:$0xff]
    %v635 = vld [vmem:[#allocation2 + $0x810] sm:$0xff]
    %v636 = vld [vmem:[#allocation2 + $0x818] sm:$0xff]
    %v637 = vld [vmem:[#allocation2 + $0x820] sm:$0xff]
    %v638 = vld [vmem:[#allocation2 + $0x828] sm:$0xff]
    %v639 = vld [vmem:[#allocation2 + $0x830] sm:$0xff]
    %v640 = vld [vmem:[#allocation2 + $0x838] sm:$0xff]
    %v641 = vld [vmem:[#allocation2 + $0x840] sm:$0xff]
    %v642 = vld [vmem:[#allocation2 + $0x848] sm:$0xff]
    %v643 = vld [vmem:[#allocation2 + $0x850] sm:$0xff]
    %v644 = vld [vmem:[#allocation2 + $0x858] sm:$0xff]
    %v645 = vld [vmem:[#allocation2 + $0x860] sm:$0xff]
    %v646 = vld [vmem:[#allocation2 + $0x868] sm:$0xff]
    %v647 = vld [vmem:[#allocation2 + $0x870] sm:$0xff]
    %v648 = vld [vmem:[#allocation2 + $0x878] sm:$0xff]
    %v649 = vld [vmem:[#allocation2 + $0x880] sm:$0xff]
    %v650 = vld [vmem:[#allocation2 + $0x888] sm:$0xff]
    %v651 = vld [vmem:[#allocation2 + $0x890] sm:$0xff]
    %v652 = vld [vmem:[#allocation2 + $0x898] sm:$0xff]
    %v653 = vld [vmem:[#allocation2 + $0x8a0] sm:$0xff]
    %v654 = vld [vmem:[#allocation2 + $0x8a8] sm:$0xff]
    %v655 = vld [vmem:[#allocation2 + $0x8b0] sm:$0xff]
    %v656 = vld [vmem:[#allocation2 + $0x8b8] sm:$0xff]
    %v657 = vld [vmem:[#allocation2 + $0x8c0] sm:$0xff]
    %v658 = vld [vmem:[#allocation2 + $0x8c8] sm:$0xff]
    %v659 = vld [vmem:[#allocation2 + $0x8d0] sm:$0xff]
    %v660 = vld [vmem:[#allocation2 + $0x8d8] sm:$0xff]
    %v661 = vld [vmem:[#allocation2 + $0x8e0] sm:$0xff]
    %v662 = vld [vmem:[#allocation2 + $0x8e8] sm:$0xff]
    %v663 = vld [vmem:[#allocation2 + $0x8f0] sm:$0xff]
    %v664 = vld [vmem:[#allocation2 + $0x8f8] sm:$0xff]
    %v665 = vld [vmem:[#allocation2 + $0x900] sm:$0xff]
    %v666 = vld [vmem:[#allocation2 + $0x908] sm:$0xff]
    %v667 = vld [vmem:[#allocation2 + $0x910] sm:$0xff]
    %v668 = vld [vmem:[#allocation2 + $0x918] sm:$0xff]
    %v669 = vld [vmem:[#allocation2 + $0x920] sm:$0xff]
    %v670 = vld [vmem:[#allocation2 + $0x928] sm:$0xff]
    %v671 = vld [vmem:[#allocation2 + $0x930] sm:$0xff]
    %v672 = vld [vmem:[#allocation2 + $0x938] sm:$0xff]
    %v673 = vld [vmem:[#allocation2 + $0x940] sm:$0xff]
    %v674 = vld [vmem:[#allocation2 + $0x948] sm:$0xff]
    %v675 = vld [vmem:[#allocation2 + $0x950] sm:$0xff]
    %v676 = vld [vmem:[#allocation2 + $0x958] sm:$0xff]
    %v677 = vld [vmem:[#allocation2 + $0x960] sm:$0xff]
    %v678 = vld [vmem:[#allocation2 + $0x968] sm:$0xff]
    %v679 = vld [vmem:[#allocation2 + $0x970] sm:$0xff]
    %v680 = vld [vmem:[#allocation2 + $0x978] sm:$0xff]
    %v681 = vld [vmem:[#allocation2 + $0x980] sm:$0xff]
    %v682 = vld [vmem:[#allocation2 + $0x988] sm:$0xff]
    %v683 = vld [vmem:[#allocation2 + $0x990] sm:$0xff]
    %v684 = vld [vmem:[#allocation2 + $0x998] sm:$0xff]
    %v685 = vld [vmem:[#allocation2 + $0x9a0] sm:$0xff]
    %v686 = vld [vmem:[#allocation2 + $0x9a8] sm:$0xff]
    %v687 = vld [vmem:[#allocation2 + $0x9b0] sm:$0xff]
    %v688 = vld [vmem:[#allocation2 + $0x9b8] sm:$0xff]
    %v689 = vld [vmem:[#allocation2 + $0x9c0] sm:$0xff]
    %v690 = vld [vmem:[#allocation2 + $0x9c8] sm:$0xff]
    %v691 = vld [vmem:[#allocation2 + $0x9d0] sm:$0xff]
    %v692 = vld [vmem:[#allocation2 + $0x9d8] sm:$0xff]
    %v693 = vld [vmem:[#allocation2 + $0x9e0] sm:$0xff]
    %v694 = vld [vmem:[#allocation2 + $0x9e8] sm:$0xff]
    %v695 = vld [vmem:[#allocation2 + $0x9f0] sm:$0xff]
    %v696 = vld [vmem:[#allocation2 + $0x9f8] sm:$0xff]
    %v697 = vld [vmem:[#allocation2 + $0xa00] sm:$0xff]
    %v698 = vld [vmem:[#allocation2 + $0xa08] sm:$0xff]
    %v699 = vld [vmem:[#allocation2 + $0xa10] sm:$0xff]
    %v700 = vld [vmem:[#allocation2 + $0xa18] sm:$0xff]
    %v701 = vld [vmem:[#allocation2 + $0xa20] sm:$0xff]
    %v702 = vld [vmem:[#allocation2 + $0xa28] sm:$0xff]
    %v703 = vld [vmem:[#allocation2 + $0xa30] sm:$0xff]
    %v704 = vld [vmem:[#allocation2 + $0xa38] sm:$0xff]
    %v705 = vld [vmem:[#allocation2 + $0xa40] sm:$0xff]
    %v706 = vld [vmem:[#allocation2 + $0xa48] sm:$0xff]
    %v707 = vld [vmem:[#allocation2 + $0xa50] sm:$0xff]
    %v708 = vld [vmem:[#allocation2 + $0xa58] sm:$0xff]
    %v709 = vld [vmem:[#allocation2 + $0xa60] sm:$0xff]
    %v710 = vld [vmem:[#allocation2 + $0xa68] sm:$0xff]
    %v711 = vld [vmem:[#allocation2 + $0xa70] sm:$0xff]
    %v712 = vld [vmem:[#allocation2 + $0xa78] sm:$0xff]
    %v713 = vld [vmem:[#allocation2 + $0xa80] sm:$0xff]
    %v714 = vld [vmem:[#allocation2 + $0xa88] sm:$0xff]
    %v715 = vld [vmem:[#allocation2 + $0xa90] sm:$0xff]
    %v716 = vld [vmem:[#allocation2 + $0xa98] sm:$0xff]
    %v717 = vld [vmem:[#allocation2 + $0xaa0] sm:$0xff]
    %v718 = vld [vmem:[#allocation2 + $0xaa8] sm:$0xff]
    %v719 = vld [vmem:[#allocation2 + $0xab0] sm:$0xff]
    %v720 = vld [vmem:[#allocation2 + $0xab8] sm:$0xff]
    %v721 = vld [vmem:[#allocation2 + $0xac0] sm:$0xff]
    %v722 = vld [vmem:[#allocation2 + $0xac8] sm:$0xff]
    %v723 = vld [vmem:[#allocation2 + $0xad0] sm:$0xff]
    %v724 = vld [vmem:[#allocation2 + $0xad8] sm:$0xff]
    %v725 = vld [vmem:[#allocation2 + $0xae0] sm:$0xff]
    %v726 = vld [vmem:[#allocation2 + $0xae8] sm:$0xff]
    %v727 = vld [vmem:[#allocation2 + $0xaf0] sm:$0xff]
    %v728 = vld [vmem:[#allocation2 + $0xaf8] sm:$0xff]
    %v729 = vld [vmem:[#allocation2 + $0xb00] sm:$0xff]
    %v730 = vld [vmem:[#allocation2 + $0xb08] sm:$0xff]
    %v731 = vld [vmem:[#allocation2 + $0xb10] sm:$0xff]
    %v732 = vld [vmem:[#allocation2 + $0xb18] sm:$0xff]
    %v733 = vld [vmem:[#allocation2 + $0xb20] sm:$0xff]
    %v734 = vld [vmem:[#allocation2 + $0xb28] sm:$0xff]
    %v735 = vld [vmem:[#allocation2 + $0xb30] sm:$0xff]
    %v736 = vld [vmem:[#allocation2 + $0xb38] sm:$0xff]
    %v737 = vld [vmem:[#allocation2 + $0xb40] sm:$0xff]
    %v738 = vld [vmem:[#allocation2 + $0xb48] sm:$0xff]
    %v739 = vld [vmem:[#allocation2 + $0xb50] sm:$0xff]
    %v740 = vld [vmem:[#allocation2 + $0xb58] sm:$0xff]
    %v741 = vld [vmem:[#allocation2 + $0xb60] sm:$0xff]
    %v742 = vld [vmem:[#allocation2 + $0xb68] sm:$0xff]
    %v743 = vld [vmem:[#allocation2 + $0xb70] sm:$0xff]
    %v744 = vld [vmem:[#allocation2 + $0xb78] sm:$0xff]
    %v745 = vld [vmem:[#allocation2 + $0xb80] sm:$0xff]
    %v746 = vld [vmem:[#allocation2 + $0xb88] sm:$0xff]
    %v747 = vld [vmem:[#allocation2 + $0xb90] sm:$0xff]
    %v748 = vld [vmem:[#allocation2 + $0xb98] sm:$0xff]
    %v749 = vld [vmem:[#allocation2 + $0xba0] sm:$0xff]
    %v750 = vld [vmem:[#allocation2 + $0xba8] sm:$0xff]
    %v751 = vld [vmem:[#allocation2 + $0xbb0] sm:$0xff]
    %v752 = vld [vmem:[#allocation2 + $0xbb8] sm:$0xff]
    %v753 = vld [vmem:[#allocation2 + $0xbc0] sm:$0xff]
    %v754 = vld [vmem:[#allocation2 + $0xbc8] sm:$0xff]
    %v755 = vld [vmem:[#allocation2 + $0xbd0] sm:$0xff]
    %v756 = vld [vmem:[#allocation2 + $0xbd8] sm:$0xff]
    %v757 = vld [vmem:[#allocation2 + $0xbe0] sm:$0xff]
    %v758 = vld [vmem:[#allocation2 + $0xbe8] sm:$0xff]
    %v759 = vld [vmem:[#allocation2 + $0xbf0] sm:$0xff]
    %v760 = vld [vmem:[#allocation2 + $0xbf8] sm:$0xff]
    %v761 = vpack.c.bf16 %v379, %v377
    %v762 = vpack.c.bf16 %v380, %v378
    %v763 = vpack.c.bf16 %v383, %v381
    %v764 = vpack.c.bf16 %v384, %v382
    %v765 = vpack.c.bf16 %v387, %v385
    %v766 = vpack.c.bf16 %v388, %v386
    %v767 = vpack.c.bf16 %v391, %v389
    %v768 = vpack.c.bf16 %v392, %v390
    %v769 = vpack.c.bf16 %v395, %v393
    %v770 = vpack.c.bf16 %v396, %v394
    %v771 = vpack.c.bf16 %v399, %v397
    %v772 = vpack.c.bf16 %v400, %v398
    %v773 = vpack.c.bf16 %v403, %v401
    %v774 = vpack.c.bf16 %v404, %v402
    %v775 = vpack.c.bf16 %v407, %v405
    %v776 = vpack.c.bf16 %v408, %v406
    %v777 = vpack.c.bf16 %v411, %v409
    %v778 = vpack.c.bf16 %v412, %v410
    %v779 = vpack.c.bf16 %v415, %v413
    %v780 = vpack.c.bf16 %v416, %v414
    %v781 = vpack.c.bf16 %v419, %v417
    %v782 = vpack.c.bf16 %v420, %v418
    %v783 = vpack.c.bf16 %v423, %v421
    %v784 = vpack.c.bf16 %v424, %v422
    %v785 = vpack.c.bf16 %v427, %v425
    %v786 = vpack.c.bf16 %v428, %v426
    %v787 = vpack.c.bf16 %v431, %v429
    %v788 = vpack.c.bf16 %v432, %v430
    %v789 = vpack.c.bf16 %v435, %v433
    %v790 = vpack.c.bf16 %v436, %v434
    %v791 = vpack.c.bf16 %v439, %v437
    %v792 = vpack.c.bf16 %v440, %v438
    %v793 = vpack.c.bf16 %v443, %v441
    %v794 = vpack.c.bf16 %v444, %v442
    %v795 = vpack.c.bf16 %v447, %v445
    %v796 = vpack.c.bf16 %v448, %v446
    %v797 = vpack.c.bf16 %v451, %v449
    %v798 = vpack.c.bf16 %v452, %v450
    %v799 = vpack.c.bf16 %v455, %v453
    %v800 = vpack.c.bf16 %v456, %v454
    %v801 = vpack.c.bf16 %v459, %v457
    %v802 = vpack.c.bf16 %v460, %v458
    %v803 = vpack.c.bf16 %v463, %v461
    %v804 = vpack.c.bf16 %v464, %v462
    %v805 = vpack.c.bf16 %v467, %v465
    %v806 = vpack.c.bf16 %v468, %v466
    %v807 = vpack.c.bf16 %v471, %v469
    %v808 = vpack.c.bf16 %v472, %v470
    %v809 = vpack.c.bf16 %v475, %v473
    %v810 = vpack.c.bf16 %v476, %v474
    %v811 = vpack.c.bf16 %v479, %v477
    %v812 = vpack.c.bf16 %v480, %v478
    %v813 = vpack.c.bf16 %v483, %v481
    %v814 = vpack.c.bf16 %v484, %v482
    %v815 = vpack.c.bf16 %v487, %v485
    %v816 = vpack.c.bf16 %v488, %v486
    %v817 = vpack.c.bf16 %v491, %v489
    %v818 = vpack.c.bf16 %v492, %v490
    %v819 = vpack.c.bf16 %v495, %v493
    %v820 = vpack.c.bf16 %v496, %v494
    %v821 = vpack.c.bf16 %v499, %v497
    %v822 = vpack.c.bf16 %v500, %v498
    %v823 = vpack.c.bf16 %v503, %v501
    %v824 = vpack.c.bf16 %v504, %v502
    %v825 = vpack.c.bf16 %v507, %v505
    %v826 = vpack.c.bf16 %v508, %v506
    %v827 = vpack.c.bf16 %v511, %v509
    %v828 = vpack.c.bf16 %v512, %v510
    %v829 = vpack.c.bf16 %v515, %v513
    %v830 = vpack.c.bf16 %v516, %v514
    %v831 = vpack.c.bf16 %v519, %v517
    %v832 = vpack.c.bf16 %v520, %v518
    %v833 = vpack.c.bf16 %v523, %v521
    %v834 = vpack.c.bf16 %v524, %v522
    %v835 = vpack.c.bf16 %v527, %v525
    %v836 = vpack.c.bf16 %v528, %v526
    %v837 = vpack.c.bf16 %v531, %v529
    %v838 = vpack.c.bf16 %v532, %v530
    %v839 = vpack.c.bf16 %v535, %v533
    %v840 = vpack.c.bf16 %v536, %v534
    %v841 = vpack.c.bf16 %v539, %v537
    %v842 = vpack.c.bf16 %v540, %v538
    %v843 = vpack.c.bf16 %v543, %v541
    %v844 = vpack.c.bf16 %v544, %v542
    %v845 = vpack.c.bf16 %v547, %v545
    %v846 = vpack.c.bf16 %v548, %v546
    %v847 = vpack.c.bf16 %v551, %v549
    %v848 = vpack.c.bf16 %v552, %v550
    %v849 = vpack.c.bf16 %v555, %v553
    %v850 = vpack.c.bf16 %v556, %v554
    %v851 = vpack.c.bf16 %v559, %v557
    %v852 = vpack.c.bf16 %v560, %v558
    %v853 = vpack.c.bf16 %v563, %v561
    %v854 = vpack.c.bf16 %v564, %v562
    %v855 = vpack.c.bf16 %v567, %v565
    %v856 = vpack.c.bf16 %v568, %v566
    %v857 = vpack.c.bf16 %v571, %v569
    %v858 = vpack.c.bf16 %v572, %v570
    %v859 = vpack.c.bf16 %v575, %v573
    %v860 = vpack.c.bf16 %v576, %v574
    %v861 = vpack.c.bf16 %v579, %v577
    %v862 = vpack.c.bf16 %v580, %v578
    %v863 = vpack.c.bf16 %v583, %v581
    %v864 = vpack.c.bf16 %v584, %v582
    %v865 = vpack.c.bf16 %v587, %v585
    %v866 = vpack.c.bf16 %v588, %v586
    %v867 = vpack.c.bf16 %v591, %v589
    %v868 = vpack.c.bf16 %v592, %v590
    %v869 = vpack.c.bf16 %v595, %v593
    %v870 = vpack.c.bf16 %v596, %v594
    %v871 = vpack.c.bf16 %v599, %v597
    %v872 = vpack.c.bf16 %v600, %v598
    %v873 = vpack.c.bf16 %v603, %v601
    %v874 = vpack.c.bf16 %v604, %v602
    %v875 = vpack.c.bf16 %v607, %v605
    %v876 = vpack.c.bf16 %v608, %v606
    %v877 = vpack.c.bf16 %v611, %v609
    %v878 = vpack.c.bf16 %v612, %v610
    %v879 = vpack.c.bf16 %v615, %v613
    %v880 = vpack.c.bf16 %v616, %v614
    %v881 = vpack.c.bf16 %v619, %v617
    %v882 = vpack.c.bf16 %v620, %v618
    %v883 = vpack.c.bf16 %v623, %v621
    %v884 = vpack.c.bf16 %v624, %v622
    %v885 = vpack.c.bf16 %v627, %v625
    %v886 = vpack.c.bf16 %v628, %v626
    %v887 = vpack.c.bf16 %v631, %v629
    %v888 = vpack.c.bf16 %v632, %v630
    %v889 = vpack.c.bf16 %v635, %v633
    %v890 = vpack.c.bf16 %v636, %v634
    %v891 = vpack.c.bf16 %v639, %v637
    %v892 = vpack.c.bf16 %v640, %v638
    %v893 = vpack.c.bf16 %v643, %v641
    %v894 = vpack.c.bf16 %v644, %v642
    %v895 = vpack.c.bf16 %v647, %v645
    %v896 = vpack.c.bf16 %v648, %v646
    %v897 = vpack.c.bf16 %v651, %v649
    %v898 = vpack.c.bf16 %v652, %v650
    %v899 = vpack.c.bf16 %v655, %v653
    %v900 = vpack.c.bf16 %v656, %v654
    %v901 = vpack.c.bf16 %v659, %v657
    %v902 = vpack.c.bf16 %v660, %v658
    %v903 = vpack.c.bf16 %v663, %v661
    %v904 = vpack.c.bf16 %v664, %v662
    %v905 = vpack.c.bf16 %v667, %v665
    %v906 = vpack.c.bf16 %v668, %v666
    %v907 = vpack.c.bf16 %v671, %v669
    %v908 = vpack.c.bf16 %v672, %v670
    %v909 = vpack.c.bf16 %v675, %v673
    %v910 = vpack.c.bf16 %v676, %v674
    %v911 = vpack.c.bf16 %v679, %v677
    %v912 = vpack.c.bf16 %v680, %v678
    %v913 = vpack.c.bf16 %v683, %v681
    %v914 = vpack.c.bf16 %v684, %v682
    %v915 = vpack.c.bf16 %v687, %v685
    %v916 = vpack.c.bf16 %v688, %v686
    %v917 = vpack.c.bf16 %v691, %v689
    %v918 = vpack.c.bf16 %v692, %v690
    %v919 = vpack.c.bf16 %v695, %v693
    %v920 = vpack.c.bf16 %v696, %v694
    %v921 = vpack.c.bf16 %v699, %v697
    %v922 = vpack.c.bf16 %v700, %v698
    %v923 = vpack.c.bf16 %v703, %v701
    %v924 = vpack.c.bf16 %v704, %v702
    %v925 = vpack.c.bf16 %v707, %v705
    %v926 = vpack.c.bf16 %v708, %v706
    %v927 = vpack.c.bf16 %v711, %v709
    %v928 = vpack.c.bf16 %v712, %v710
    %v929 = vpack.c.bf16 %v715, %v713
    %v930 = vpack.c.bf16 %v716, %v714
    %v931 = vpack.c.bf16 %v719, %v717
    %v932 = vpack.c.bf16 %v720, %v718
    %v933 = vpack.c.bf16 %v723, %v721
    %v934 = vpack.c.bf16 %v724, %v722
    %v935 = vpack.c.bf16 %v727, %v725
    %v936 = vpack.c.bf16 %v728, %v726
    %v937 = vpack.c.bf16 %v731, %v729
    %v938 = vpack.c.bf16 %v732, %v730
    %v939 = vpack.c.bf16 %v735, %v733
    %v940 = vpack.c.bf16 %v736, %v734
    %v941 = vpack.c.bf16 %v739, %v737
    %v942 = vpack.c.bf16 %v740, %v738
    %v943 = vpack.c.bf16 %v743, %v741
    %v944 = vpack.c.bf16 %v744, %v742
    %v945 = vpack.c.bf16 %v747, %v745
    %v946 = vpack.c.bf16 %v748, %v746
    %v947 = vpack.c.bf16 %v751, %v749
    %v948 = vpack.c.bf16 %v752, %v750
    %v949 = vpack.c.bf16 %v755, %v753
    %v950 = vpack.c.bf16 %v756, %v754
    %v951 = vpack.c.bf16 %v759, %v757
    %v952 = vpack.c.bf16 %v760, %v758
    %v985 = vunpack.c.l.b16 %v182
    %v986 = vunpack.c.l.b16 %v183
    %v987 = vunpack.c.l.b16 %v184
    %v988 = vunpack.c.l.b16 %v185
    %v989 = vunpack.c.l.b16 %v186
    %v990 = vunpack.c.l.b16 %v187
    %v991 = vunpack.c.l.b16 %v188
    %v992 = vunpack.c.l.b16 %v189
    %v993 = vunpack.c.l.b16 %v190
    %v994 = vunpack.c.l.b16 %v191
    %v995 = vunpack.c.l.b16 %v192
    %v996 = vunpack.c.l.b16 %v193
    %v997 = vunpack.c.l.b16 %v194
    %v998 = vunpack.c.l.b16 %v195
    %v999 = vunpack.c.l.b16 %v196
    %v1000 = vunpack.c.l.b16 %v197
    %v1001 = vunpack.c.l.b16 %v198
    %v1002 = vunpack.c.l.b16 %v199
    %v1003 = vunpack.c.l.b16 %v200
    %v1004 = vunpack.c.l.b16 %v201
    %v1005 = vunpack.c.l.b16 %v202
    %v1006 = vunpack.c.l.b16 %v203
    %v1007 = vunpack.c.l.b16 %v204
    %v1008 = vunpack.c.l.b16 %v205
    %v1009 = vunpack.c.l.b16 %v206
    %v1010 = vunpack.c.l.b16 %v207
    %v1011 = vunpack.c.l.b16 %v208
    %v1012 = vunpack.c.l.b16 %v209
    %v1013 = vunpack.c.l.b16 %v210
    %v1014 = vunpack.c.l.b16 %v211
    %v1015 = vunpack.c.l.b16 %v212
    %v1016 = vunpack.c.l.b16 %v213
    %v1017 = vpack.c.b16 %v986, %v985
    %v1018 = vpack.c.b16 %v988, %v987
    %v1019 = vpack.c.b16 %v990, %v989
    %v1020 = vpack.c.b16 %v992, %v991
    %v1021 = vpack.c.b16 %v994, %v993
    %v1022 = vpack.c.b16 %v996, %v995
    %v1023 = vpack.c.b16 %v998, %v997
    %v1024 = vpack.c.b16 %v1000, %v999
    %v1025 = vpack.c.b16 %v1002, %v1001
    %v1026 = vpack.c.b16 %v1004, %v1003
    %v1027 = vpack.c.b16 %v1006, %v1005
    %v1028 = vpack.c.b16 %v1008, %v1007
    %v1029 = vpack.c.b16 %v1010, %v1009
    %v1030 = vpack.c.b16 %v1012, %v1011
    %v1031 = vpack.c.b16 %v1014, %v1013
    %v1032 = vpack.c.b16 %v1016, %v1015
    %1049 = vmatpush.bf16.msra.mxu0 %v1024
    %1050 = vmatpush.bf16.msra.mxu0 %v1023
    %1051 = vmatpush.bf16.msra.mxu0 %v1022
    %1052 = vmatpush.bf16.msra.mxu0 %v1021
    %1053 = vmatpush.bf16.msra.mxu0 %v1020
    %1054 = vmatpush.bf16.msra.mxu0 %v1019
    %1055 = vmatpush.bf16.msra.mxu0 %v1018
    %1056 = vmatpush.bf16.msra.mxu0 %v1017
    %1057 = vmatmul.bf16.gmra.mxu0 %v761
    %v1058 = vpop.f32.mrf.mxu0
    %v1059 = vadd.f32 0.0, %v1058
    %v1060 = vpop.f32.mrf.mxu0
    %v1061 = vadd.f32 0.0, %v1060
    %1062 = vmatmul.bf16.gmra.mxu0 %v763
    %v1063 = vpop.f32.mrf.mxu0
    %v1064 = vadd.f32 0.0, %v1063
    %v1065 = vpop.f32.mrf.mxu0
    %v1066 = vadd.f32 0.0, %v1065
    %1067 = vmatmul.bf16.gmra.mxu0 %v765
    %v1068 = vpop.f32.mrf.mxu0
    %v1069 = vadd.f32 0.0, %v1068
    %v1070 = vpop.f32.mrf.mxu0
    %v1071 = vadd.f32 0.0, %v1070
    %1072 = vmatmul.bf16.gmra.mxu0 %v767
    %v1073 = vpop.f32.mrf.mxu0
    %v1074 = vadd.f32 0.0, %v1073
    %v1075 = vpop.f32.mrf.mxu0
    %v1076 = vadd.f32 0.0, %v1075
    %1077 = vmatmul.bf16.gmra.mxu0 %v769
    %v1078 = vpop.f32.mrf.mxu0
    %v1079 = vadd.f32 0.0, %v1078
    %v1080 = vpop.f32.mrf.mxu0
    %v1081 = vadd.f32 0.0, %v1080
    %1082 = vmatmul.bf16.gmra.mxu0 %v771
    %v1083 = vpop.f32.mrf.mxu0
    %v1084 = vadd.f32 0.0, %v1083
    %v1085 = vpop.f32.mrf.mxu0
    %v1086 = vadd.f32 0.0, %v1085
    %1087 = vmatmul.bf16.gmra.mxu0 %v773
    %v1088 = vpop.f32.mrf.mxu0
    %v1089 = vadd.f32 0.0, %v1088
    %v1090 = vpop.f32.mrf.mxu0
    %v1091 = vadd.f32 0.0, %v1090
    %1092 = vmatmul.bf16.gmra.mxu0 %v775
    %v1093 = vpop.f32.mrf.mxu0
    %v1094 = vadd.f32 0.0, %v1093
    %v1095 = vpop.f32.mrf.mxu0
    %v1096 = vadd.f32 0.0, %v1095
    %1097 = vmatmul.bf16.gmra.mxu0 %v777
    %v1098 = vpop.f32.mrf.mxu0
    %v1099 = vadd.f32 0.0, %v1098
    %v1100 = vpop.f32.mrf.mxu0
    %v1101 = vadd.f32 0.0, %v1100
    %1102 = vmatmul.bf16.gmra.mxu0 %v779
    %v1103 = vpop.f32.mrf.mxu0
    %v1104 = vadd.f32 0.0, %v1103
    %v1105 = vpop.f32.mrf.mxu0
    %v1106 = vadd.f32 0.0, %v1105
    %1107 = vmatmul.bf16.gmra.mxu0 %v781
    %v1108 = vpop.f32.mrf.mxu0
    %v1109 = vadd.f32 0.0, %v1108
    %v1110 = vpop.f32.mrf.mxu0
    %v1111 = vadd.f32 0.0, %v1110
    %1112 = vmatmul.bf16.gmra.mxu0 %v783
    %v1113 = vpop.f32.mrf.mxu0
    %v1114 = vadd.f32 0.0, %v1113
    %v1115 = vpop.f32.mrf.mxu0
    %v1116 = vadd.f32 0.0, %v1115
    %1117 = vmatmul.bf16.gmra.mxu0 %v785
    %v1118 = vpop.f32.mrf.mxu0
    %v1119 = vadd.f32 0.0, %v1118
    %v1120 = vpop.f32.mrf.mxu0
    %v1121 = vadd.f32 0.0, %v1120
    %1122 = vmatmul.bf16.gmra.mxu0 %v787
    %v1123 = vpop.f32.mrf.mxu0
    %v1124 = vadd.f32 0.0, %v1123
    %v1125 = vpop.f32.mrf.mxu0
    %v1126 = vadd.f32 0.0, %v1125
    %1127 = vmatmul.bf16.gmra.mxu0 %v789
    %v1128 = vpop.f32.mrf.mxu0
    %v1129 = vadd.f32 0.0, %v1128
    %v1130 = vpop.f32.mrf.mxu0
    %v1131 = vadd.f32 0.0, %v1130
    %1132 = vmatmul.bf16.gmra.mxu0 %v791
    %v1133 = vpop.f32.mrf.mxu0
    %v1134 = vadd.f32 0.0, %v1133
    %v1135 = vpop.f32.mrf.mxu0
    %v1136 = vadd.f32 0.0, %v1135
    %1137 = vmatmul.bf16.gmra.mxu0 %v793
    %v1138 = vpop.f32.mrf.mxu0
    %v1139 = vadd.f32 0.0, %v1138
    %v1140 = vpop.f32.mrf.mxu0
    %v1141 = vadd.f32 0.0, %v1140
    %1142 = vmatmul.bf16.gmra.mxu0 %v795
    %v1143 = vpop.f32.mrf.mxu0
    %v1144 = vadd.f32 0.0, %v1143
    %v1145 = vpop.f32.mrf.mxu0
    %v1146 = vadd.f32 0.0, %v1145
    %1147 = vmatmul.bf16.gmra.mxu0 %v797
    %v1148 = vpop.f32.mrf.mxu0
    %v1149 = vadd.f32 0.0, %v1148
    %v1150 = vpop.f32.mrf.mxu0
    %v1151 = vadd.f32 0.0, %v1150
    %1152 = vmatmul.bf16.gmra.mxu0 %v799
    %v1153 = vpop.f32.mrf.mxu0
    %v1154 = vadd.f32 0.0, %v1153
    %v1155 = vpop.f32.mrf.mxu0
    %v1156 = vadd.f32 0.0, %v1155
    %1157 = vmatmul.bf16.gmra.mxu0 %v801
    %v1158 = vpop.f32.mrf.mxu0
    %v1159 = vadd.f32 0.0, %v1158
    %v1160 = vpop.f32.mrf.mxu0
    %v1161 = vadd.f32 0.0, %v1160
    %1162 = vmatmul.bf16.gmra.mxu0 %v803
    %v1163 = vpop.f32.mrf.mxu0
    %v1164 = vadd.f32 0.0, %v1163
    %v1165 = vpop.f32.mrf.mxu0
    %v1166 = vadd.f32 0.0, %v1165
    %1167 = vmatmul.bf16.gmra.mxu0 %v805
    %v1168 = vpop.f32.mrf.mxu0
    %v1169 = vadd.f32 0.0, %v1168
    %v1170 = vpop.f32.mrf.mxu0
    %v1171 = vadd.f32 0.0, %v1170
    %1172 = vmatmul.bf16.gmra.mxu0 %v807
    %v1173 = vpop.f32.mrf.mxu0
    %v1174 = vadd.f32 0.0, %v1173
    %v1175 = vpop.f32.mrf.mxu0
    %v1176 = vadd.f32 0.0, %v1175
    %1177 = vmatmul.bf16.gmra.mxu0 %v809
    %v1178 = vpop.f32.mrf.mxu0
    %v1179 = vadd.f32 0.0, %v1178
    %v1180 = vpop.f32.mrf.mxu0
    %v1181 = vadd.f32 0.0, %v1180
    %1182 = vmatmul.bf16.gmra.mxu0 %v811
    %v1183 = vpop.f32.mrf.mxu0
    %v1184 = vadd.f32 0.0, %v1183
    %v1185 = vpop.f32.mrf.mxu0
    %v1186 = vadd.f32 0.0, %v1185
    %1187 = vmatmul.bf16.gmra.mxu0 %v813
    %v1188 = vpop.f32.mrf.mxu0
    %v1189 = vadd.f32 0.0, %v1188
    %v1190 = vpop.f32.mrf.mxu0
    %v1191 = vadd.f32 0.0, %v1190
    %1192 = vmatmul.bf16.gmra.mxu0 %v815
    %v1193 = vpop.f32.mrf.mxu0
    %v1194 = vadd.f32 0.0, %v1193
    %v1195 = vpop.f32.mrf.mxu0
    %v1196 = vadd.f32 0.0, %v1195
    %1197 = vmatmul.bf16.gmra.mxu0 %v817
    %v1198 = vpop.f32.mrf.mxu0
    %v1199 = vadd.f32 0.0, %v1198
    %v1200 = vpop.f32.mrf.mxu0
    %v1201 = vadd.f32 0.0, %v1200
    %1202 = vmatmul.bf16.gmra.mxu0 %v819
    %v1203 = vpop.f32.mrf.mxu0
    %v1204 = vadd.f32 0.0, %v1203
    %v1205 = vpop.f32.mrf.mxu0
    %v1206 = vadd.f32 0.0, %v1205
    %1207 = vmatmul.bf16.gmra.mxu0 %v821
    %v1208 = vpop.f32.mrf.mxu0
    %v1209 = vadd.f32 0.0, %v1208
    %v1210 = vpop.f32.mrf.mxu0
    %v1211 = vadd.f32 0.0, %v1210
    %1212 = vmatmul.bf16.gmra.mxu0 %v823
    %v1213 = vpop.f32.mrf.mxu0
    %v1214 = vadd.f32 0.0, %v1213
    %v1215 = vpop.f32.mrf.mxu0
    %v1216 = vadd.f32 0.0, %v1215
    %1217 = vmatmul.bf16.gmra.mxu0 %v825
    %v1218 = vpop.f32.mrf.mxu0
    %v1219 = vadd.f32 0.0, %v1218
    %v1220 = vpop.f32.mrf.mxu0
    %v1221 = vadd.f32 0.0, %v1220
    %1222 = vmatmul.bf16.gmra.mxu0 %v827
    %v1223 = vpop.f32.mrf.mxu0
    %v1224 = vadd.f32 0.0, %v1223
    %v1225 = vpop.f32.mrf.mxu0
    %v1226 = vadd.f32 0.0, %v1225
    %1227 = vmatmul.bf16.gmra.mxu0 %v829
    %v1228 = vpop.f32.mrf.mxu0
    %v1229 = vadd.f32 0.0, %v1228
    %v1230 = vpop.f32.mrf.mxu0
    %v1231 = vadd.f32 0.0, %v1230
    %1232 = vmatmul.bf16.gmra.mxu0 %v831
    %v1233 = vpop.f32.mrf.mxu0
    %v1234 = vadd.f32 0.0, %v1233
    %v1235 = vpop.f32.mrf.mxu0
    %v1236 = vadd.f32 0.0, %v1235
    %1237 = vmatmul.bf16.gmra.mxu0 %v833
    %v1238 = vpop.f32.mrf.mxu0
    %v1239 = vadd.f32 0.0, %v1238
    %v1240 = vpop.f32.mrf.mxu0
    %v1241 = vadd.f32 0.0, %v1240
    %1242 = vmatmul.bf16.gmra.mxu0 %v835
    %v1243 = vpop.f32.mrf.mxu0
    %v1244 = vadd.f32 0.0, %v1243
    %v1245 = vpop.f32.mrf.mxu0
    %v1246 = vadd.f32 0.0, %v1245
    %1247 = vmatmul.bf16.gmra.mxu0 %v837
    %v1248 = vpop.f32.mrf.mxu0
    %v1249 = vadd.f32 0.0, %v1248
    %v1250 = vpop.f32.mrf.mxu0
    %v1251 = vadd.f32 0.0, %v1250
    %1252 = vmatmul.bf16.gmra.mxu0 %v839
    %v1253 = vpop.f32.mrf.mxu0
    %v1254 = vadd.f32 0.0, %v1253
    %v1255 = vpop.f32.mrf.mxu0
    %v1256 = vadd.f32 0.0, %v1255
    %1257 = vmatmul.bf16.gmra.mxu0 %v841
    %v1258 = vpop.f32.mrf.mxu0
    %v1259 = vadd.f32 0.0, %v1258
    %v1260 = vpop.f32.mrf.mxu0
    %v1261 = vadd.f32 0.0, %v1260
    %1262 = vmatmul.bf16.gmra.mxu0 %v843
    %v1263 = vpop.f32.mrf.mxu0
    %v1264 = vadd.f32 0.0, %v1263
    %v1265 = vpop.f32.mrf.mxu0
    %v1266 = vadd.f32 0.0, %v1265
    %1267 = vmatmul.bf16.gmra.mxu0 %v845
    %v1268 = vpop.f32.mrf.mxu0
    %v1269 = vadd.f32 0.0, %v1268
    %v1270 = vpop.f32.mrf.mxu0
    %v1271 = vadd.f32 0.0, %v1270
    %1272 = vmatmul.bf16.gmra.mxu0 %v847
    %v1273 = vpop.f32.mrf.mxu0
    %v1274 = vadd.f32 0.0, %v1273
    %v1275 = vpop.f32.mrf.mxu0
    %v1276 = vadd.f32 0.0, %v1275
    %1277 = vmatmul.bf16.gmra.mxu0 %v849
    %v1278 = vpop.f32.mrf.mxu0
    %v1279 = vadd.f32 0.0, %v1278
    %v1280 = vpop.f32.mrf.mxu0
    %v1281 = vadd.f32 0.0, %v1280
    %1282 = vmatmul.bf16.gmra.mxu0 %v851
    %v1283 = vpop.f32.mrf.mxu0
    %v1284 = vadd.f32 0.0, %v1283
    %v1285 = vpop.f32.mrf.mxu0
    %v1286 = vadd.f32 0.0, %v1285
    %1287 = vmatmul.bf16.gmra.mxu0 %v853
    %v1288 = vpop.f32.mrf.mxu0
    %v1289 = vadd.f32 0.0, %v1288
    %v1290 = vpop.f32.mrf.mxu0
    %v1291 = vadd.f32 0.0, %v1290
    %1292 = vmatmul.bf16.gmra.mxu0 %v855
    %v1293 = vpop.f32.mrf.mxu0
    %v1294 = vadd.f32 0.0, %v1293
    %v1295 = vpop.f32.mrf.mxu0
    %v1296 = vadd.f32 0.0, %v1295
    %1297 = vmatmul.bf16.gmra.mxu0 %v857
    %v1298 = vpop.f32.mrf.mxu0
    %v1299 = vadd.f32 0.0, %v1298
    %v1300 = vpop.f32.mrf.mxu0
    %v1301 = vadd.f32 0.0, %v1300
    %1302 = vmatmul.bf16.gmra.mxu0 %v859
    %v1303 = vpop.f32.mrf.mxu0
    %v1304 = vadd.f32 0.0, %v1303
    %v1305 = vpop.f32.mrf.mxu0
    %v1306 = vadd.f32 0.0, %v1305
    %1307 = vmatmul.bf16.gmra.mxu0 %v861
    %v1308 = vpop.f32.mrf.mxu0
    %v1309 = vadd.f32 0.0, %v1308
    %v1310 = vpop.f32.mrf.mxu0
    %v1311 = vadd.f32 0.0, %v1310
    %1312 = vmatmul.bf16.gmra.mxu0 %v863
    %v1313 = vpop.f32.mrf.mxu0
    %v1314 = vadd.f32 0.0, %v1313
    %v1315 = vpop.f32.mrf.mxu0
    %v1316 = vadd.f32 0.0, %v1315
    %1317 = vmatmul.bf16.gmra.mxu0 %v865
    %v1318 = vpop.f32.mrf.mxu0
    %v1319 = vadd.f32 0.0, %v1318
    %v1320 = vpop.f32.mrf.mxu0
    %v1321 = vadd.f32 0.0, %v1320
    %1322 = vmatmul.bf16.gmra.mxu0 %v867
    %v1323 = vpop.f32.mrf.mxu0
    %v1324 = vadd.f32 0.0, %v1323
    %v1325 = vpop.f32.mrf.mxu0
    %v1326 = vadd.f32 0.0, %v1325
    %1327 = vmatmul.bf16.gmra.mxu0 %v869
    %v1328 = vpop.f32.mrf.mxu0
    %v1329 = vadd.f32 0.0, %v1328
    %v1330 = vpop.f32.mrf.mxu0
    %v1331 = vadd.f32 0.0, %v1330
    %1332 = vmatmul.bf16.gmra.mxu0 %v871
    %v1333 = vpop.f32.mrf.mxu0
    %v1334 = vadd.f32 0.0, %v1333
    %v1335 = vpop.f32.mrf.mxu0
    %v1336 = vadd.f32 0.0, %v1335
    %1337 = vmatmul.bf16.gmra.mxu0 %v873
    %v1338 = vpop.f32.mrf.mxu0
    %v1339 = vadd.f32 0.0, %v1338
    %v1340 = vpop.f32.mrf.mxu0
    %v1341 = vadd.f32 0.0, %v1340
    %1342 = vmatmul.bf16.gmra.mxu0 %v875
    %v1343 = vpop.f32.mrf.mxu0
    %v1344 = vadd.f32 0.0, %v1343
    %v1345 = vpop.f32.mrf.mxu0
    %v1346 = vadd.f32 0.0, %v1345
    %1347 = vmatmul.bf16.gmra.mxu0 %v877
    %v1348 = vpop.f32.mrf.mxu0
    %v1349 = vadd.f32 0.0, %v1348
    %v1350 = vpop.f32.mrf.mxu0
    %v1351 = vadd.f32 0.0, %v1350
    %1352 = vmatmul.bf16.gmra.mxu0 %v879
    %v1353 = vpop.f32.mrf.mxu0
    %v1354 = vadd.f32 0.0, %v1353
    %v1355 = vpop.f32.mrf.mxu0
    %v1356 = vadd.f32 0.0, %v1355
    %1357 = vmatmul.bf16.gmra.mxu0 %v881
    %v1358 = vpop.f32.mrf.mxu0
    %v1359 = vadd.f32 0.0, %v1358
    %v1360 = vpop.f32.mrf.mxu0
    %v1361 = vadd.f32 0.0, %v1360
    %1362 = vmatmul.bf16.gmra.mxu0 %v883
    %v1363 = vpop.f32.mrf.mxu0
    %v1364 = vadd.f32 0.0, %v1363
    %v1365 = vpop.f32.mrf.mxu0
    %v1366 = vadd.f32 0.0, %v1365
    %1367 = vmatmul.bf16.gmra.mxu0 %v885
    %v1368 = vpop.f32.mrf.mxu0
    %v1369 = vadd.f32 0.0, %v1368
    %v1370 = vpop.f32.mrf.mxu0
    %v1371 = vadd.f32 0.0, %v1370
    %1372 = vmatmul.bf16.gmra.mxu0 %v887
    %v1373 = vpop.f32.mrf.mxu0
    %v1374 = vadd.f32 0.0, %v1373
    %v1375 = vpop.f32.mrf.mxu0
    %v1376 = vadd.f32 0.0, %v1375
    %1377 = vmatmul.bf16.gmra.mxu0 %v889
    %v1378 = vpop.f32.mrf.mxu0
    %v1379 = vadd.f32 0.0, %v1378
    %v1380 = vpop.f32.mrf.mxu0
    %v1381 = vadd.f32 0.0, %v1380
    %1382 = vmatmul.bf16.gmra.mxu0 %v891
    %v1383 = vpop.f32.mrf.mxu0
    %v1384 = vadd.f32 0.0, %v1383
    %v1385 = vpop.f32.mrf.mxu0
    %v1386 = vadd.f32 0.0, %v1385
    %1387 = vmatmul.bf16.gmra.mxu0 %v893
    %v1388 = vpop.f32.mrf.mxu0
    %v1389 = vadd.f32 0.0, %v1388
    %v1390 = vpop.f32.mrf.mxu0
    %v1391 = vadd.f32 0.0, %v1390
    %1392 = vmatmul.bf16.gmra.mxu0 %v895
    %v1393 = vpop.f32.mrf.mxu0
    %v1394 = vadd.f32 0.0, %v1393
    %v1395 = vpop.f32.mrf.mxu0
    %v1396 = vadd.f32 0.0, %v1395
    %1397 = vmatmul.bf16.gmra.mxu0 %v897
    %v1398 = vpop.f32.mrf.mxu0
    %v1399 = vadd.f32 0.0, %v1398
    %v1400 = vpop.f32.mrf.mxu0
    %v1401 = vadd.f32 0.0, %v1400
    %1402 = vmatmul.bf16.gmra.mxu0 %v899
    %v1403 = vpop.f32.mrf.mxu0
    %v1404 = vadd.f32 0.0, %v1403
    %v1405 = vpop.f32.mrf.mxu0
    %v1406 = vadd.f32 0.0, %v1405
    %1407 = vmatmul.bf16.gmra.mxu0 %v901
    %v1408 = vpop.f32.mrf.mxu0
    %v1409 = vadd.f32 0.0, %v1408
    %v1410 = vpop.f32.mrf.mxu0
    %v1411 = vadd.f32 0.0, %v1410
    %1412 = vmatmul.bf16.gmra.mxu0 %v903
    %v1413 = vpop.f32.mrf.mxu0
    %v1414 = vadd.f32 0.0, %v1413
    %v1415 = vpop.f32.mrf.mxu0
    %v1416 = vadd.f32 0.0, %v1415
    %1417 = vmatmul.bf16.gmra.mxu0 %v905
    %v1418 = vpop.f32.mrf.mxu0
    %v1419 = vadd.f32 0.0, %v1418
    %v1420 = vpop.f32.mrf.mxu0
    %v1421 = vadd.f32 0.0, %v1420
    %1422 = vmatmul.bf16.gmra.mxu0 %v907
    %v1423 = vpop.f32.mrf.mxu0
    %v1424 = vadd.f32 0.0, %v1423
    %v1425 = vpop.f32.mrf.mxu0
    %v1426 = vadd.f32 0.0, %v1425
    %1427 = vmatmul.bf16.gmra.mxu0 %v909
    %v1428 = vpop.f32.mrf.mxu0
    %v1429 = vadd.f32 0.0, %v1428
    %v1430 = vpop.f32.mrf.mxu0
    %v1431 = vadd.f32 0.0, %v1430
    %1432 = vmatmul.bf16.gmra.mxu0 %v911
    %v1433 = vpop.f32.mrf.mxu0
    %v1434 = vadd.f32 0.0, %v1433
    %v1435 = vpop.f32.mrf.mxu0
    %v1436 = vadd.f32 0.0, %v1435
    %1437 = vmatmul.bf16.gmra.mxu0 %v913
    %v1438 = vpop.f32.mrf.mxu0
    %v1439 = vadd.f32 0.0, %v1438
    %v1440 = vpop.f32.mrf.mxu0
    %v1441 = vadd.f32 0.0, %v1440
    %1442 = vmatmul.bf16.gmra.mxu0 %v915
    %v1443 = vpop.f32.mrf.mxu0
    %v1444 = vadd.f32 0.0, %v1443
    %v1445 = vpop.f32.mrf.mxu0
    %v1446 = vadd.f32 0.0, %v1445
    %1447 = vmatmul.bf16.gmra.mxu0 %v917
    %v1448 = vpop.f32.mrf.mxu0
    %v1449 = vadd.f32 0.0, %v1448
    %v1450 = vpop.f32.mrf.mxu0
    %v1451 = vadd.f32 0.0, %v1450
    %1452 = vmatmul.bf16.gmra.mxu0 %v919
    %v1453 = vpop.f32.mrf.mxu0
    %v1454 = vadd.f32 0.0, %v1453
    %v1455 = vpop.f32.mrf.mxu0
    %v1456 = vadd.f32 0.0, %v1455
    %1457 = vmatmul.bf16.gmra.mxu0 %v921
    %v1458 = vpop.f32.mrf.mxu0
    %v1459 = vadd.f32 0.0, %v1458
    %v1460 = vpop.f32.mrf.mxu0
    %v1461 = vadd.f32 0.0, %v1460
    %1462 = vmatmul.bf16.gmra.mxu0 %v923
    %v1463 = vpop.f32.mrf.mxu0
    %v1464 = vadd.f32 0.0, %v1463
    %v1465 = vpop.f32.mrf.mxu0
    %v1466 = vadd.f32 0.0, %v1465
    %1467 = vmatmul.bf16.gmra.mxu0 %v925
    %v1468 = vpop.f32.mrf.mxu0
    %v1469 = vadd.f32 0.0, %v1468
    %v1470 = vpop.f32.mrf.mxu0
    %v1471 = vadd.f32 0.0, %v1470
    %1472 = vmatmul.bf16.gmra.mxu0 %v927
    %v1473 = vpop.f32.mrf.mxu0
    %v1474 = vadd.f32 0.0, %v1473
    %v1475 = vpop.f32.mrf.mxu0
    %v1476 = vadd.f32 0.0, %v1475
    %1477 = vmatmul.bf16.gmra.mxu0 %v929
    %v1478 = vpop.f32.mrf.mxu0
    %v1479 = vadd.f32 0.0, %v1478
    %v1480 = vpop.f32.mrf.mxu0
    %v1481 = vadd.f32 0.0, %v1480
    %1482 = vmatmul.bf16.gmra.mxu0 %v931
    %v1483 = vpop.f32.mrf.mxu0
    %v1484 = vadd.f32 0.0, %v1483
    %v1485 = vpop.f32.mrf.mxu0
    %v1486 = vadd.f32 0.0, %v1485
    %1487 = vmatmul.bf16.gmra.mxu0 %v933
    %v1488 = vpop.f32.mrf.mxu0
    %v1489 = vadd.f32 0.0, %v1488
    %v1490 = vpop.f32.mrf.mxu0
    %v1491 = vadd.f32 0.0, %v1490
    %1492 = vmatmul.bf16.gmra.mxu0 %v935
    %v1493 = vpop.f32.mrf.mxu0
    %v1494 = vadd.f32 0.0, %v1493
    %v1495 = vpop.f32.mrf.mxu0
    %v1496 = vadd.f32 0.0, %v1495
    %1497 = vmatmul.bf16.gmra.mxu0 %v937
    %v1498 = vpop.f32.mrf.mxu0
    %v1499 = vadd.f32 0.0, %v1498
    %v1500 = vpop.f32.mrf.mxu0
    %v1501 = vadd.f32 0.0, %v1500
    %1502 = vmatmul.bf16.gmra.mxu0 %v939
    %v1503 = vpop.f32.mrf.mxu0
    %v1504 = vadd.f32 0.0, %v1503
    %v1505 = vpop.f32.mrf.mxu0
    %v1506 = vadd.f32 0.0, %v1505
    %1507 = vmatmul.bf16.gmra.mxu0 %v941
    %v1508 = vpop.f32.mrf.mxu0
    %v1509 = vadd.f32 0.0, %v1508
    %v1510 = vpop.f32.mrf.mxu0
    %v1511 = vadd.f32 0.0, %v1510
    %1512 = vmatmul.bf16.gmra.mxu0 %v943
    %v1513 = vpop.f32.mrf.mxu0
    %v1514 = vadd.f32 0.0, %v1513
    %v1515 = vpop.f32.mrf.mxu0
    %v1516 = vadd.f32 0.0, %v1515
    %1517 = vmatmul.bf16.gmra.mxu0 %v945
    %v1518 = vpop.f32.mrf.mxu0
    %v1519 = vadd.f32 0.0, %v1518
    %v1520 = vpop.f32.mrf.mxu0
    %v1521 = vadd.f32 0.0, %v1520
    %1522 = vmatmul.bf16.gmra.mxu0 %v947
    %v1523 = vpop.f32.mrf.mxu0
    %v1524 = vadd.f32 0.0, %v1523
    %v1525 = vpop.f32.mrf.mxu0
    %v1526 = vadd.f32 0.0, %v1525
    %1527 = vmatmul.bf16.gmra.mxu0 %v949
    %v1528 = vpop.f32.mrf.mxu0
    %v1529 = vadd.f32 0.0, %v1528
    %v1530 = vpop.f32.mrf.mxu0
    %v1531 = vadd.f32 0.0, %v1530
    %1532 = vmatmul.bf16.gmra.mxu0 %v951
    %v1533 = vpop.f32.mrf.mxu0
    %v1534 = vadd.f32 0.0, %v1533
    %v1535 = vpop.f32.mrf.mxu0
    %v1536 = vadd.f32 0.0, %v1535
    %1537 = vdwg.mxu0
    %1538 = vmatpush.bf16.msra.mxu0 %v1032
    %1539 = vmatpush.bf16.msra.mxu0 %v1031
    %1540 = vmatpush.bf16.msra.mxu0 %v1030
    %1541 = vmatpush.bf16.msra.mxu0 %v1029
    %1542 = vmatpush.bf16.msra.mxu0 %v1028
    %1543 = vmatpush.bf16.msra.mxu0 %v1027
    %1544 = vmatpush.bf16.msra.mxu0 %v1026
    %1545 = vmatpush.bf16.msra.mxu0 %v1025
    %1546 = vmatmul.bf16.gmra.mxu0 %v762
    %v1547 = vpop.f32.mrf.mxu0
    %v1548 = vadd.f32 %v1059, %v1547
    %v1549 = vpop.f32.mrf.mxu0
    %v1550 = vadd.f32 %v1061, %v1549
    %1551 = vmatmul.bf16.gmra.mxu0 %v764
    %v1552 = vpop.f32.mrf.mxu0
    %v1553 = vadd.f32 %v1064, %v1552
    %v1554 = vpop.f32.mrf.mxu0
    %v1555 = vadd.f32 %v1066, %v1554
    %1556 = vmatmul.bf16.gmra.mxu0 %v766
    %v1557 = vpop.f32.mrf.mxu0
    %v1558 = vadd.f32 %v1069, %v1557
    %v1559 = vpop.f32.mrf.mxu0
    %v1560 = vadd.f32 %v1071, %v1559
    %1561 = vmatmul.bf16.gmra.mxu0 %v768
    %v1562 = vpop.f32.mrf.mxu0
    %v1563 = vadd.f32 %v1074, %v1562
    %v1564 = vpop.f32.mrf.mxu0
    %v1565 = vadd.f32 %v1076, %v1564
    %1566 = vmatmul.bf16.gmra.mxu0 %v770
    %v1567 = vpop.f32.mrf.mxu0
    %v1568 = vadd.f32 %v1079, %v1567
    %v1569 = vpop.f32.mrf.mxu0
    %v1570 = vadd.f32 %v1081, %v1569
    %1571 = vmatmul.bf16.gmra.mxu0 %v772
    %v1572 = vpop.f32.mrf.mxu0
    %v1573 = vadd.f32 %v1084, %v1572
    %v1574 = vpop.f32.mrf.mxu0
    %v1575 = vadd.f32 %v1086, %v1574
    %1576 = vmatmul.bf16.gmra.mxu0 %v774
    %v1577 = vpop.f32.mrf.mxu0
    %v1578 = vadd.f32 %v1089, %v1577
    %v1579 = vpop.f32.mrf.mxu0
    %v1580 = vadd.f32 %v1091, %v1579
    %1581 = vmatmul.bf16.gmra.mxu0 %v776
    %v1582 = vpop.f32.mrf.mxu0
    %v1583 = vadd.f32 %v1094, %v1582
    %v1584 = vpop.f32.mrf.mxu0
    %v1585 = vadd.f32 %v1096, %v1584
    %1586 = vmatmul.bf16.gmra.mxu0 %v778
    %v1587 = vpop.f32.mrf.mxu0
    %v1588 = vadd.f32 %v1099, %v1587
    %v1589 = vpop.f32.mrf.mxu0
    %v1590 = vadd.f32 %v1101, %v1589
    %1591 = vmatmul.bf16.gmra.mxu0 %v780
    %v1592 = vpop.f32.mrf.mxu0
    %v1593 = vadd.f32 %v1104, %v1592
    %v1594 = vpop.f32.mrf.mxu0
    %v1595 = vadd.f32 %v1106, %v1594
    %1596 = vmatmul.bf16.gmra.mxu0 %v782
    %v1597 = vpop.f32.mrf.mxu0
    %v1598 = vadd.f32 %v1109, %v1597
    %v1599 = vpop.f32.mrf.mxu0
    %v1600 = vadd.f32 %v1111, %v1599
    %1601 = vmatmul.bf16.gmra.mxu0 %v784
    %v1602 = vpop.f32.mrf.mxu0
    %v1603 = vadd.f32 %v1114, %v1602
    %v1604 = vpop.f32.mrf.mxu0
    %v1605 = vadd.f32 %v1116, %v1604
    %1606 = vmatmul.bf16.gmra.mxu0 %v786
    %v1607 = vpop.f32.mrf.mxu0
    %v1608 = vadd.f32 %v1119, %v1607
    %v1609 = vpop.f32.mrf.mxu0
    %v1610 = vadd.f32 %v1121, %v1609
    %1611 = vmatmul.bf16.gmra.mxu0 %v788
    %v1612 = vpop.f32.mrf.mxu0
    %v1613 = vadd.f32 %v1124, %v1612
    %v1614 = vpop.f32.mrf.mxu0
    %v1615 = vadd.f32 %v1126, %v1614
    %1616 = vmatmul.bf16.gmra.mxu0 %v790
    %v1617 = vpop.f32.mrf.mxu0
    %v1618 = vadd.f32 %v1129, %v1617
    %v1619 = vpop.f32.mrf.mxu0
    %v1620 = vadd.f32 %v1131, %v1619
    %1621 = vmatmul.bf16.gmra.mxu0 %v792
    %v1622 = vpop.f32.mrf.mxu0
    %v1623 = vadd.f32 %v1134, %v1622
    %v1624 = vpop.f32.mrf.mxu0
    %v1625 = vadd.f32 %v1136, %v1624
    %1626 = vmatmul.bf16.gmra.mxu0 %v794
    %v1627 = vpop.f32.mrf.mxu0
    %v1628 = vadd.f32 %v1139, %v1627
    %v1629 = vpop.f32.mrf.mxu0
    %v1630 = vadd.f32 %v1141, %v1629
    %1631 = vmatmul.bf16.gmra.mxu0 %v796
    %v1632 = vpop.f32.mrf.mxu0
    %v1633 = vadd.f32 %v1144, %v1632
    %v1634 = vpop.f32.mrf.mxu0
    %v1635 = vadd.f32 %v1146, %v1634
    %1636 = vmatmul.bf16.gmra.mxu0 %v798
    %v1637 = vpop.f32.mrf.mxu0
    %v1638 = vadd.f32 %v1149, %v1637
    %v1639 = vpop.f32.mrf.mxu0
    %v1640 = vadd.f32 %v1151, %v1639
    %1641 = vmatmul.bf16.gmra.mxu0 %v800
    %v1642 = vpop.f32.mrf.mxu0
    %v1643 = vadd.f32 %v1154, %v1642
    %v1644 = vpop.f32.mrf.mxu0
    %v1645 = vadd.f32 %v1156, %v1644
    %1646 = vmatmul.bf16.gmra.mxu0 %v802
    %v1647 = vpop.f32.mrf.mxu0
    %v1648 = vadd.f32 %v1159, %v1647
    %v1649 = vpop.f32.mrf.mxu0
    %v1650 = vadd.f32 %v1161, %v1649
    %1651 = vmatmul.bf16.gmra.mxu0 %v804
    %v1652 = vpop.f32.mrf.mxu0
    %v1653 = vadd.f32 %v1164, %v1652
    %v1654 = vpop.f32.mrf.mxu0
    %v1655 = vadd.f32 %v1166, %v1654
    %1656 = vmatmul.bf16.gmra.mxu0 %v806
    %v1657 = vpop.f32.mrf.mxu0
    %v1658 = vadd.f32 %v1169, %v1657
    %v1659 = vpop.f32.mrf.mxu0
    %v1660 = vadd.f32 %v1171, %v1659
    %1661 = vmatmul.bf16.gmra.mxu0 %v808
    %v1662 = vpop.f32.mrf.mxu0
    %v1663 = vadd.f32 %v1174, %v1662
    %v1664 = vpop.f32.mrf.mxu0
    %v1665 = vadd.f32 %v1176, %v1664
    %1666 = vmatmul.bf16.gmra.mxu0 %v810
    %v1667 = vpop.f32.mrf.mxu0
    %v1668 = vadd.f32 %v1179, %v1667
    %v1669 = vpop.f32.mrf.mxu0
    %v1670 = vadd.f32 %v1181, %v1669
    %1671 = vmatmul.bf16.gmra.mxu0 %v812
    %v1672 = vpop.f32.mrf.mxu0
    %v1673 = vadd.f32 %v1184, %v1672
    %v1674 = vpop.f32.mrf.mxu0
    %v1675 = vadd.f32 %v1186, %v1674
    %1676 = vmatmul.bf16.gmra.mxu0 %v814
    %v1677 = vpop.f32.mrf.mxu0
    %v1678 = vadd.f32 %v1189, %v1677
    %v1679 = vpop.f32.mrf.mxu0
    %v1680 = vadd.f32 %v1191, %v1679
    %1681 = vmatmul.bf16.gmra.mxu0 %v816
    %v1682 = vpop.f32.mrf.mxu0
    %v1683 = vadd.f32 %v1194, %v1682
    %v1684 = vpop.f32.mrf.mxu0
    %v1685 = vadd.f32 %v1196, %v1684
    %1686 = vmatmul.bf16.gmra.mxu0 %v818
    %v1687 = vpop.f32.mrf.mxu0
    %v1688 = vadd.f32 %v1199, %v1687
    %v1689 = vpop.f32.mrf.mxu0
    %v1690 = vadd.f32 %v1201, %v1689
    %1691 = vmatmul.bf16.gmra.mxu0 %v820
    %v1692 = vpop.f32.mrf.mxu0
    %v1693 = vadd.f32 %v1204, %v1692
    %v1694 = vpop.f32.mrf.mxu0
    %v1695 = vadd.f32 %v1206, %v1694
    %1696 = vmatmul.bf16.gmra.mxu0 %v822
    %v1697 = vpop.f32.mrf.mxu0
    %v1698 = vadd.f32 %v1209, %v1697
    %v1699 = vpop.f32.mrf.mxu0
    %v1700 = vadd.f32 %v1211, %v1699
    %1701 = vmatmul.bf16.gmra.mxu0 %v824
    %v1702 = vpop.f32.mrf.mxu0
    %v1703 = vadd.f32 %v1214, %v1702
    %v1704 = vpop.f32.mrf.mxu0
    %v1705 = vadd.f32 %v1216, %v1704
    %1706 = vmatmul.bf16.gmra.mxu0 %v826
    %v1707 = vpop.f32.mrf.mxu0
    %v1708 = vadd.f32 %v1219, %v1707
    %v1709 = vpop.f32.mrf.mxu0
    %v1710 = vadd.f32 %v1221, %v1709
    %1711 = vmatmul.bf16.gmra.mxu0 %v828
    %v1712 = vpop.f32.mrf.mxu0
    %v1713 = vadd.f32 %v1224, %v1712
    %v1714 = vpop.f32.mrf.mxu0
    %v1715 = vadd.f32 %v1226, %v1714
    %1716 = vmatmul.bf16.gmra.mxu0 %v830
    %v1717 = vpop.f32.mrf.mxu0
    %v1718 = vadd.f32 %v1229, %v1717
    %v1719 = vpop.f32.mrf.mxu0
    %v1720 = vadd.f32 %v1231, %v1719
    %1721 = vmatmul.bf16.gmra.mxu0 %v832
    %v1722 = vpop.f32.mrf.mxu0
    %v1723 = vadd.f32 %v1234, %v1722
    %v1724 = vpop.f32.mrf.mxu0
    %v1725 = vadd.f32 %v1236, %v1724
    %1726 = vmatmul.bf16.gmra.mxu0 %v834
    %v1727 = vpop.f32.mrf.mxu0
    %v1728 = vadd.f32 %v1239, %v1727
    %v1729 = vpop.f32.mrf.mxu0
    %v1730 = vadd.f32 %v1241, %v1729
    %1731 = vmatmul.bf16.gmra.mxu0 %v836
    %v1732 = vpop.f32.mrf.mxu0
    %v1733 = vadd.f32 %v1244, %v1732
    %v1734 = vpop.f32.mrf.mxu0
    %v1735 = vadd.f32 %v1246, %v1734
    %1736 = vmatmul.bf16.gmra.mxu0 %v838
    %v1737 = vpop.f32.mrf.mxu0
    %v1738 = vadd.f32 %v1249, %v1737
    %v1739 = vpop.f32.mrf.mxu0
    %v1740 = vadd.f32 %v1251, %v1739
    %1741 = vmatmul.bf16.gmra.mxu0 %v840
    %v1742 = vpop.f32.mrf.mxu0
    %v1743 = vadd.f32 %v1254, %v1742
    %v1744 = vpop.f32.mrf.mxu0
    %v1745 = vadd.f32 %v1256, %v1744
    %1746 = vmatmul.bf16.gmra.mxu0 %v842
    %v1747 = vpop.f32.mrf.mxu0
    %v1748 = vadd.f32 %v1259, %v1747
    %v1749 = vpop.f32.mrf.mxu0
    %v1750 = vadd.f32 %v1261, %v1749
    %1751 = vmatmul.bf16.gmra.mxu0 %v844
    %v1752 = vpop.f32.mrf.mxu0
    %v1753 = vadd.f32 %v1264, %v1752
    %v1754 = vpop.f32.mrf.mxu0
    %v1755 = vadd.f32 %v1266, %v1754
    %1756 = vmatmul.bf16.gmra.mxu0 %v846
    %v1757 = vpop.f32.mrf.mxu0
    %v1758 = vadd.f32 %v1269, %v1757
    %v1759 = vpop.f32.mrf.mxu0
    %v1760 = vadd.f32 %v1271, %v1759
    %1761 = vmatmul.bf16.gmra.mxu0 %v848
    %v1762 = vpop.f32.mrf.mxu0
    %v1763 = vadd.f32 %v1274, %v1762
    %v1764 = vpop.f32.mrf.mxu0
    %v1765 = vadd.f32 %v1276, %v1764
    %1766 = vmatmul.bf16.gmra.mxu0 %v850
    %v1767 = vpop.f32.mrf.mxu0
    %v1768 = vadd.f32 %v1279, %v1767
    %v1769 = vpop.f32.mrf.mxu0
    %v1770 = vadd.f32 %v1281, %v1769
    %1771 = vmatmul.bf16.gmra.mxu0 %v852
    %v1772 = vpop.f32.mrf.mxu0
    %v1773 = vadd.f32 %v1284, %v1772
    %v1774 = vpop.f32.mrf.mxu0
    %v1775 = vadd.f32 %v1286, %v1774
    %1776 = vmatmul.bf16.gmra.mxu0 %v854
    %v1777 = vpop.f32.mrf.mxu0
    %v1778 = vadd.f32 %v1289, %v1777
    %v1779 = vpop.f32.mrf.mxu0
    %v1780 = vadd.f32 %v1291, %v1779
    %1781 = vmatmul.bf16.gmra.mxu0 %v856
    %v1782 = vpop.f32.mrf.mxu0
    %v1783 = vadd.f32 %v1294, %v1782
    %v1784 = vpop.f32.mrf.mxu0
    %v1785 = vadd.f32 %v1296, %v1784
    %1786 = vmatmul.bf16.gmra.mxu0 %v858
    %v1787 = vpop.f32.mrf.mxu0
    %v1788 = vadd.f32 %v1299, %v1787
    %v1789 = vpop.f32.mrf.mxu0
    %v1790 = vadd.f32 %v1301, %v1789
    %1791 = vmatmul.bf16.gmra.mxu0 %v860
    %v1792 = vpop.f32.mrf.mxu0
    %v1793 = vadd.f32 %v1304, %v1792
    %v1794 = vpop.f32.mrf.mxu0
    %v1795 = vadd.f32 %v1306, %v1794
    %1796 = vmatmul.bf16.gmra.mxu0 %v862
    %v1797 = vpop.f32.mrf.mxu0
    %v1798 = vadd.f32 %v1309, %v1797
    %v1799 = vpop.f32.mrf.mxu0
    %v1800 = vadd.f32 %v1311, %v1799
    %1801 = vmatmul.bf16.gmra.mxu0 %v864
    %v1802 = vpop.f32.mrf.mxu0
    %v1803 = vadd.f32 %v1314, %v1802
    %v1804 = vpop.f32.mrf.mxu0
    %v1805 = vadd.f32 %v1316, %v1804
    %1806 = vmatmul.bf16.gmra.mxu0 %v866
    %v1807 = vpop.f32.mrf.mxu0
    %v1808 = vadd.f32 %v1319, %v1807
    %v1809 = vpop.f32.mrf.mxu0
    %v1810 = vadd.f32 %v1321, %v1809
    %1811 = vmatmul.bf16.gmra.mxu0 %v868
    %v1812 = vpop.f32.mrf.mxu0
    %v1813 = vadd.f32 %v1324, %v1812
    %v1814 = vpop.f32.mrf.mxu0
    %v1815 = vadd.f32 %v1326, %v1814
    %1816 = vmatmul.bf16.gmra.mxu0 %v870
    %v1817 = vpop.f32.mrf.mxu0
    %v1818 = vadd.f32 %v1329, %v1817
    %v1819 = vpop.f32.mrf.mxu0
    %v1820 = vadd.f32 %v1331, %v1819
    %1821 = vmatmul.bf16.gmra.mxu0 %v872
    %v1822 = vpop.f32.mrf.mxu0
    %v1823 = vadd.f32 %v1334, %v1822
    %v1824 = vpop.f32.mrf.mxu0
    %v1825 = vadd.f32 %v1336, %v1824
    %1826 = vmatmul.bf16.gmra.mxu0 %v874
    %v1827 = vpop.f32.mrf.mxu0
    %v1828 = vadd.f32 %v1339, %v1827
    %v1829 = vpop.f32.mrf.mxu0
    %v1830 = vadd.f32 %v1341, %v1829
    %1831 = vmatmul.bf16.gmra.mxu0 %v876
    %v1832 = vpop.f32.mrf.mxu0
    %v1833 = vadd.f32 %v1344, %v1832
    %v1834 = vpop.f32.mrf.mxu0
    %v1835 = vadd.f32 %v1346, %v1834
    %1836 = vmatmul.bf16.gmra.mxu0 %v878
    %v1837 = vpop.f32.mrf.mxu0
    %v1838 = vadd.f32 %v1349, %v1837
    %v1839 = vpop.f32.mrf.mxu0
    %v1840 = vadd.f32 %v1351, %v1839
    %1841 = vmatmul.bf16.gmra.mxu0 %v880
    %v1842 = vpop.f32.mrf.mxu0
    %v1843 = vadd.f32 %v1354, %v1842
    %v1844 = vpop.f32.mrf.mxu0
    %v1845 = vadd.f32 %v1356, %v1844
    %1846 = vmatmul.bf16.gmra.mxu0 %v882
    %v1847 = vpop.f32.mrf.mxu0
    %v1848 = vadd.f32 %v1359, %v1847
    %v1849 = vpop.f32.mrf.mxu0
    %v1850 = vadd.f32 %v1361, %v1849
    %1851 = vmatmul.bf16.gmra.mxu0 %v884
    %v1852 = vpop.f32.mrf.mxu0
    %v1853 = vadd.f32 %v1364, %v1852
    %v1854 = vpop.f32.mrf.mxu0
    %v1855 = vadd.f32 %v1366, %v1854
    %1856 = vmatmul.bf16.gmra.mxu0 %v886
    %v1857 = vpop.f32.mrf.mxu0
    %v1858 = vadd.f32 %v1369, %v1857
    %v1859 = vpop.f32.mrf.mxu0
    %v1860 = vadd.f32 %v1371, %v1859
    %1861 = vmatmul.bf16.gmra.mxu0 %v888
    %v1862 = vpop.f32.mrf.mxu0
    %v1863 = vadd.f32 %v1374, %v1862
    %v1864 = vpop.f32.mrf.mxu0
    %v1865 = vadd.f32 %v1376, %v1864
    %1866 = vmatmul.bf16.gmra.mxu0 %v890
    %v1867 = vpop.f32.mrf.mxu0
    %v1868 = vadd.f32 %v1379, %v1867
    %v1869 = vpop.f32.mrf.mxu0
    %v1870 = vadd.f32 %v1381, %v1869
    %1871 = vmatmul.bf16.gmra.mxu0 %v892
    %v1872 = vpop.f32.mrf.mxu0
    %v1873 = vadd.f32 %v1384, %v1872
    %v1874 = vpop.f32.mrf.mxu0
    %v1875 = vadd.f32 %v1386, %v1874
    %1876 = vmatmul.bf16.gmra.mxu0 %v894
    %v1877 = vpop.f32.mrf.mxu0
    %v1878 = vadd.f32 %v1389, %v1877
    %v1879 = vpop.f32.mrf.mxu0
    %v1880 = vadd.f32 %v1391, %v1879
    %1881 = vmatmul.bf16.gmra.mxu0 %v896
    %v1882 = vpop.f32.mrf.mxu0
    %v1883 = vadd.f32 %v1394, %v1882
    %v1884 = vpop.f32.mrf.mxu0
    %v1885 = vadd.f32 %v1396, %v1884
    %1886 = vmatmul.bf16.gmra.mxu0 %v898
    %v1887 = vpop.f32.mrf.mxu0
    %v1888 = vadd.f32 %v1399, %v1887
    %v1889 = vpop.f32.mrf.mxu0
    %v1890 = vadd.f32 %v1401, %v1889
    %1891 = vmatmul.bf16.gmra.mxu0 %v900
    %v1892 = vpop.f32.mrf.mxu0
    %v1893 = vadd.f32 %v1404, %v1892
    %v1894 = vpop.f32.mrf.mxu0
    %v1895 = vadd.f32 %v1406, %v1894
    %1896 = vmatmul.bf16.gmra.mxu0 %v902
    %v1897 = vpop.f32.mrf.mxu0
    %v1898 = vadd.f32 %v1409, %v1897
    %v1899 = vpop.f32.mrf.mxu0
    %v1900 = vadd.f32 %v1411, %v1899
    %1901 = vmatmul.bf16.gmra.mxu0 %v904
    %v1902 = vpop.f32.mrf.mxu0
    %v1903 = vadd.f32 %v1414, %v1902
    %v1904 = vpop.f32.mrf.mxu0
    %v1905 = vadd.f32 %v1416, %v1904
    %1906 = vmatmul.bf16.gmra.mxu0 %v906
    %v1907 = vpop.f32.mrf.mxu0
    %v1908 = vadd.f32 %v1419, %v1907
    %v1909 = vpop.f32.mrf.mxu0
    %v1910 = vadd.f32 %v1421, %v1909
    %1911 = vmatmul.bf16.gmra.mxu0 %v908
    %v1912 = vpop.f32.mrf.mxu0
    %v1913 = vadd.f32 %v1424, %v1912
    %v1914 = vpop.f32.mrf.mxu0
    %v1915 = vadd.f32 %v1426, %v1914
    %1916 = vmatmul.bf16.gmra.mxu0 %v910
    %v1917 = vpop.f32.mrf.mxu0
    %v1918 = vadd.f32 %v1429, %v1917
    %v1919 = vpop.f32.mrf.mxu0
    %v1920 = vadd.f32 %v1431, %v1919
    %1921 = vmatmul.bf16.gmra.mxu0 %v912
    %v1922 = vpop.f32.mrf.mxu0
    %v1923 = vadd.f32 %v1434, %v1922
    %v1924 = vpop.f32.mrf.mxu0
    %v1925 = vadd.f32 %v1436, %v1924
    %1926 = vmatmul.bf16.gmra.mxu0 %v914
    %v1927 = vpop.f32.mrf.mxu0
    %v1928 = vadd.f32 %v1439, %v1927
    %v1929 = vpop.f32.mrf.mxu0
    %v1930 = vadd.f32 %v1441, %v1929
    %1931 = vmatmul.bf16.gmra.mxu0 %v916
    %v1932 = vpop.f32.mrf.mxu0
    %v1933 = vadd.f32 %v1444, %v1932
    %v1934 = vpop.f32.mrf.mxu0
    %v1935 = vadd.f32 %v1446, %v1934
    %1936 = vmatmul.bf16.gmra.mxu0 %v918
    %v1937 = vpop.f32.mrf.mxu0
    %v1938 = vadd.f32 %v1449, %v1937
    %v1939 = vpop.f32.mrf.mxu0
    %v1940 = vadd.f32 %v1451, %v1939
    %1941 = vmatmul.bf16.gmra.mxu0 %v920
    %v1942 = vpop.f32.mrf.mxu0
    %v1943 = vadd.f32 %v1454, %v1942
    %v1944 = vpop.f32.mrf.mxu0
    %v1945 = vadd.f32 %v1456, %v1944
    %1946 = vmatmul.bf16.gmra.mxu0 %v922
    %v1947 = vpop.f32.mrf.mxu0
    %v1948 = vadd.f32 %v1459, %v1947
    %v1949 = vpop.f32.mrf.mxu0
    %v1950 = vadd.f32 %v1461, %v1949
    %1951 = vmatmul.bf16.gmra.mxu0 %v924
    %v1952 = vpop.f32.mrf.mxu0
    %v1953 = vadd.f32 %v1464, %v1952
    %v1954 = vpop.f32.mrf.mxu0
    %v1955 = vadd.f32 %v1466, %v1954
    %1956 = vmatmul.bf16.gmra.mxu0 %v926
    %v1957 = vpop.f32.mrf.mxu0
    %v1958 = vadd.f32 %v1469, %v1957
    %v1959 = vpop.f32.mrf.mxu0
    %v1960 = vadd.f32 %v1471, %v1959
    %1961 = vmatmul.bf16.gmra.mxu0 %v928
    %v1962 = vpop.f32.mrf.mxu0
    %v1963 = vadd.f32 %v1474, %v1962
    %v1964 = vpop.f32.mrf.mxu0
    %v1965 = vadd.f32 %v1476, %v1964
    %1966 = vmatmul.bf16.gmra.mxu0 %v930
    %v1967 = vpop.f32.mrf.mxu0
    %v1968 = vadd.f32 %v1479, %v1967
    %v1969 = vpop.f32.mrf.mxu0
    %v1970 = vadd.f32 %v1481, %v1969
    %1971 = vmatmul.bf16.gmra.mxu0 %v932
    %v1972 = vpop.f32.mrf.mxu0
    %v1973 = vadd.f32 %v1484, %v1972
    %v1974 = vpop.f32.mrf.mxu0
    %v1975 = vadd.f32 %v1486, %v1974
    %1976 = vmatmul.bf16.gmra.mxu0 %v934
    %v1977 = vpop.f32.mrf.mxu0
    %v1978 = vadd.f32 %v1489, %v1977
    %v1979 = vpop.f32.mrf.mxu0
    %v1980 = vadd.f32 %v1491, %v1979
    %1981 = vmatmul.bf16.gmra.mxu0 %v936
    %v1982 = vpop.f32.mrf.mxu0
    %v1983 = vadd.f32 %v1494, %v1982
    %v1984 = vpop.f32.mrf.mxu0
    %v1985 = vadd.f32 %v1496, %v1984
    %1986 = vmatmul.bf16.gmra.mxu0 %v938
    %v1987 = vpop.f32.mrf.mxu0
    %v1988 = vadd.f32 %v1499, %v1987
    %v1989 = vpop.f32.mrf.mxu0
    %v1990 = vadd.f32 %v1501, %v1989
    %1991 = vmatmul.bf16.gmra.mxu0 %v940
    %v1992 = vpop.f32.mrf.mxu0
    %v1993 = vadd.f32 %v1504, %v1992
    %v1994 = vpop.f32.mrf.mxu0
    %v1995 = vadd.f32 %v1506, %v1994
    %1996 = vmatmul.bf16.gmra.mxu0 %v942
    %v1997 = vpop.f32.mrf.mxu0
    %v1998 = vadd.f32 %v1509, %v1997
    %v1999 = vpop.f32.mrf.mxu0
    %v2000 = vadd.f32 %v1511, %v1999
    %2001 = vmatmul.bf16.gmra.mxu0 %v944
    %v2002 = vpop.f32.mrf.mxu0
    %v2003 = vadd.f32 %v1514, %v2002
    %v2004 = vpop.f32.mrf.mxu0
    %v2005 = vadd.f32 %v1516, %v2004
    %2006 = vmatmul.bf16.gmra.mxu0 %v946
    %v2007 = vpop.f32.mrf.mxu0
    %v2008 = vadd.f32 %v1519, %v2007
    %v2009 = vpop.f32.mrf.mxu0
    %v2010 = vadd.f32 %v1521, %v2009
    %2011 = vmatmul.bf16.gmra.mxu0 %v948
    %v2012 = vpop.f32.mrf.mxu0
    %v2013 = vadd.f32 %v1524, %v2012
    %v2014 = vpop.f32.mrf.mxu0
    %v2015 = vadd.f32 %v1526, %v2014
    %2016 = vmatmul.bf16.gmra.mxu0 %v950
    %v2017 = vpop.f32.mrf.mxu0
    %v2018 = vadd.f32 %v1529, %v2017
    %v2019 = vpop.f32.mrf.mxu0
    %v2020 = vadd.f32 %v1531, %v2019
    %2021 = vmatmul.bf16.gmra.mxu0 %v952
    %v2022 = vpop.f32.mrf.mxu0
    %v2023 = vadd.f32 %v1534, %v2022
    %v2024 = vpop.f32.mrf.mxu0
    %v2025 = vadd.f32 %v1536, %v2024
    %2026 = vdwg.mxu0
    %v2027 = vpack.c.bf16 %v1548, %v1548
    %v2028 = vpack.c.bf16 %v1550, %v1550
    %v2029 = vpack.c.bf16 %v1553, %v1553
    %v2030 = vpack.c.bf16 %v1555, %v1555
    %v2031 = vpack.c.bf16 %v1558, %v1558
    %v2032 = vpack.c.bf16 %v1560, %v1560
    %v2033 = vpack.c.bf16 %v1563, %v1563
    %v2034 = vpack.c.bf16 %v1565, %v1565
    %v2035 = vpack.c.bf16 %v1568, %v1568
    %v2036 = vpack.c.bf16 %v1570, %v1570
    %v2037 = vpack.c.bf16 %v1573, %v1573
    %v2038 = vpack.c.bf16 %v1575, %v1575
    %v2039 = vpack.c.bf16 %v1578, %v1578
    %v2040 = vpack.c.bf16 %v1580, %v1580
    %v2041 = vpack.c.bf16 %v1583, %v1583
    %v2042 = vpack.c.bf16 %v1585, %v1585
    %v2043 = vpack.c.bf16 %v1588, %v1588
    %v2044 = vpack.c.bf16 %v1590, %v1590
    %v2045 = vpack.c.bf16 %v1593, %v1593
    %v2046 = vpack.c.bf16 %v1595, %v1595
    %v2047 = vpack.c.bf16 %v1598, %v1598
    %v2048 = vpack.c.bf16 %v1600, %v1600
    %v2049 = vpack.c.bf16 %v1603, %v1603
    %v2050 = vpack.c.bf16 %v1605, %v1605
    %v2051 = vpack.c.bf16 %v1608, %v1608
    %v2052 = vpack.c.bf16 %v1610, %v1610
    %v2053 = vpack.c.bf16 %v1613, %v1613
    %v2054 = vpack.c.bf16 %v1615, %v1615
    %v2055 = vpack.c.bf16 %v1618, %v1618
    %v2056 = vpack.c.bf16 %v1620, %v1620
    %v2057 = vpack.c.bf16 %v1623, %v1623
    %v2058 = vpack.c.bf16 %v1625, %v1625
    %v2059 = vpack.c.bf16 %v1628, %v1628
    %v2060 = vpack.c.bf16 %v1630, %v1630
    %v2061 = vpack.c.bf16 %v1633, %v1633
    %v2062 = vpack.c.bf16 %v1635, %v1635
    %v2063 = vpack.c.bf16 %v1638, %v1638
    %v2064 = vpack.c.bf16 %v1640, %v1640
    %v2065 = vpack.c.bf16 %v1643, %v1643
    %v2066 = vpack.c.bf16 %v1645, %v1645
    %v2067 = vpack.c.bf16 %v1648, %v1648
    %v2068 = vpack.c.bf16 %v1650, %v1650
    %v2069 = vpack.c.bf16 %v1653, %v1653
    %v2070 = vpack.c.bf16 %v1655, %v1655
    %v2071 = vpack.c.bf16 %v1658, %v1658
    %v2072 = vpack.c.bf16 %v1660, %v1660
    %v2073 = vpack.c.bf16 %v1663, %v1663
    %v2074 = vpack.c.bf16 %v1665, %v1665
    %v2075 = vpack.c.bf16 %v1668, %v1668
    %v2076 = vpack.c.bf16 %v1670, %v1670
    %v2077 = vpack.c.bf16 %v1673, %v1673
    %v2078 = vpack.c.bf16 %v1675, %v1675
    %v2079 = vpack.c.bf16 %v1678, %v1678
    %v2080 = vpack.c.bf16 %v1680, %v1680
    %v2081 = vpack.c.bf16 %v1683, %v1683
    %v2082 = vpack.c.bf16 %v1685, %v1685
    %v2083 = vpack.c.bf16 %v1688, %v1688
    %v2084 = vpack.c.bf16 %v1690, %v1690
    %v2085 = vpack.c.bf16 %v1693, %v1693
    %v2086 = vpack.c.bf16 %v1695, %v1695
    %v2087 = vpack.c.bf16 %v1698, %v1698
    %v2088 = vpack.c.bf16 %v1700, %v1700
    %v2089 = vpack.c.bf16 %v1703, %v1703
    %v2090 = vpack.c.bf16 %v1705, %v1705
    %v2091 = vpack.c.bf16 %v1708, %v1708
    %v2092 = vpack.c.bf16 %v1710, %v1710
    %v2093 = vpack.c.bf16 %v1713, %v1713
    %v2094 = vpack.c.bf16 %v1715, %v1715
    %v2095 = vpack.c.bf16 %v1718, %v1718
    %v2096 = vpack.c.bf16 %v1720, %v1720
    %v2097 = vpack.c.bf16 %v1723, %v1723
    %v2098 = vpack.c.bf16 %v1725, %v1725
    %v2099 = vpack.c.bf16 %v1728, %v1728
    %v2100 = vpack.c.bf16 %v1730, %v1730
    %v2101 = vpack.c.bf16 %v1733, %v1733
    %v2102 = vpack.c.bf16 %v1735, %v1735
    %v2103 = vpack.c.bf16 %v1738, %v1738
    %v2104 = vpack.c.bf16 %v1740, %v1740
    %v2105 = vpack.c.bf16 %v1743, %v1743
    %v2106 = vpack.c.bf16 %v1745, %v1745
    %v2107 = vpack.c.bf16 %v1748, %v1748
    %v2108 = vpack.c.bf16 %v1750, %v1750
    %v2109 = vpack.c.bf16 %v1753, %v1753
    %v2110 = vpack.c.bf16 %v1755, %v1755
    %v2111 = vpack.c.bf16 %v1758, %v1758
    %v2112 = vpack.c.bf16 %v1760, %v1760
    %v2113 = vpack.c.bf16 %v1763, %v1763
    %v2114 = vpack.c.bf16 %v1765, %v1765
    %v2115 = vpack.c.bf16 %v1768, %v1768
    %v2116 = vpack.c.bf16 %v1770, %v1770
    %v2117 = vpack.c.bf16 %v1773, %v1773
    %v2118 = vpack.c.bf16 %v1775, %v1775
    %v2119 = vpack.c.bf16 %v1778, %v1778
    %v2120 = vpack.c.bf16 %v1780, %v1780
    %v2121 = vpack.c.bf16 %v1783, %v1783
    %v2122 = vpack.c.bf16 %v1785, %v1785
    %v2123 = vpack.c.bf16 %v1788, %v1788
    %v2124 = vpack.c.bf16 %v1790, %v1790
    %v2125 = vpack.c.bf16 %v1793, %v1793
    %v2126 = vpack.c.bf16 %v1795, %v1795
    %v2127 = vpack.c.bf16 %v1798, %v1798
    %v2128 = vpack.c.bf16 %v1800, %v1800
    %v2129 = vpack.c.bf16 %v1803, %v1803
    %v2130 = vpack.c.bf16 %v1805, %v1805
    %v2131 = vpack.c.bf16 %v1808, %v1808
    %v2132 = vpack.c.bf16 %v1810, %v1810
    %v2133 = vpack.c.bf16 %v1813, %v1813
    %v2134 = vpack.c.bf16 %v1815, %v1815
    %v2135 = vpack.c.bf16 %v1818, %v1818
    %v2136 = vpack.c.bf16 %v1820, %v1820
    %v2137 = vpack.c.bf16 %v1823, %v1823
    %v2138 = vpack.c.bf16 %v1825, %v1825
    %v2139 = vpack.c.bf16 %v1828, %v1828
    %v2140 = vpack.c.bf16 %v1830, %v1830
    %v2141 = vpack.c.bf16 %v1833, %v1833
    %v2142 = vpack.c.bf16 %v1835, %v1835
    %v2143 = vpack.c.bf16 %v1838, %v1838
    %v2144 = vpack.c.bf16 %v1840, %v1840
    %v2145 = vpack.c.bf16 %v1843, %v1843
    %v2146 = vpack.c.bf16 %v1845, %v1845
    %v2147 = vpack.c.bf16 %v1848, %v1848
    %v2148 = vpack.c.bf16 %v1850, %v1850
    %v2149 = vpack.c.bf16 %v1853, %v1853
    %v2150 = vpack.c.bf16 %v1855, %v1855
    %v2151 = vpack.c.bf16 %v1858, %v1858
    %v2152 = vpack.c.bf16 %v1860, %v1860
    %v2153 = vpack.c.bf16 %v1863, %v1863
    %v2154 = vpack.c.bf16 %v1865, %v1865
    %v2155 = vpack.c.bf16 %v1868, %v1868
    %v2156 = vpack.c.bf16 %v1870, %v1870
    %v2157 = vpack.c.bf16 %v1873, %v1873
    %v2158 = vpack.c.bf16 %v1875, %v1875
    %v2159 = vpack.c.bf16 %v1878, %v1878
    %v2160 = vpack.c.bf16 %v1880, %v1880
    %v2161 = vpack.c.bf16 %v1883, %v1883
    %v2162 = vpack.c.bf16 %v1885, %v1885
    %v2163 = vpack.c.bf16 %v1888, %v1888
    %v2164 = vpack.c.bf16 %v1890, %v1890
    %v2165 = vpack.c.bf16 %v1893, %v1893
    %v2166 = vpack.c.bf16 %v1895, %v1895
    %v2167 = vpack.c.bf16 %v1898, %v1898
    %v2168 = vpack.c.bf16 %v1900, %v1900
    %v2169 = vpack.c.bf16 %v1903, %v1903
    %v2170 = vpack.c.bf16 %v1905, %v1905
    %v2171 = vpack.c.bf16 %v1908, %v1908
    %v2172 = vpack.c.bf16 %v1910, %v1910
    %v2173 = vpack.c.bf16 %v1913, %v1913
    %v2174 = vpack.c.bf16 %v1915, %v1915
    %v2175 = vpack.c.bf16 %v1918, %v1918
    %v2176 = vpack.c.bf16 %v1920, %v1920
    %v2177 = vpack.c.bf16 %v1923, %v1923
    %v2178 = vpack.c.bf16 %v1925, %v1925
    %v2179 = vpack.c.bf16 %v1928, %v1928
    %v2180 = vpack.c.bf16 %v1930, %v1930
    %v2181 = vpack.c.bf16 %v1933, %v1933
    %v2182 = vpack.c.bf16 %v1935, %v1935
    %v2183 = vpack.c.bf16 %v1938, %v1938
    %v2184 = vpack.c.bf16 %v1940, %v1940
    %v2185 = vpack.c.bf16 %v1943, %v1943
    %v2186 = vpack.c.bf16 %v1945, %v1945
    %v2187 = vpack.c.bf16 %v1948, %v1948
    %v2188 = vpack.c.bf16 %v1950, %v1950
    %v2189 = vpack.c.bf16 %v1953, %v1953
    %v2190 = vpack.c.bf16 %v1955, %v1955
    %v2191 = vpack.c.bf16 %v1958, %v1958
    %v2192 = vpack.c.bf16 %v1960, %v1960
    %v2193 = vpack.c.bf16 %v1963, %v1963
    %v2194 = vpack.c.bf16 %v1965, %v1965
    %v2195 = vpack.c.bf16 %v1968, %v1968
    %v2196 = vpack.c.bf16 %v1970, %v1970
    %v2197 = vpack.c.bf16 %v1973, %v1973
    %v2198 = vpack.c.bf16 %v1975, %v1975
    %v2199 = vpack.c.bf16 %v1978, %v1978
    %v2200 = vpack.c.bf16 %v1980, %v1980
    %v2201 = vpack.c.bf16 %v1983, %v1983
    %v2202 = vpack.c.bf16 %v1985, %v1985
    %v2203 = vpack.c.bf16 %v1988, %v1988
    %v2204 = vpack.c.bf16 %v1990, %v1990
    %v2205 = vpack.c.bf16 %v1993, %v1993
    %v2206 = vpack.c.bf16 %v1995, %v1995
    %v2207 = vpack.c.bf16 %v1998, %v1998
    %v2208 = vpack.c.bf16 %v2000, %v2000
    %v2209 = vpack.c.bf16 %v2003, %v2003
    %v2210 = vpack.c.bf16 %v2005, %v2005
    %v2211 = vpack.c.bf16 %v2008, %v2008
    %v2212 = vpack.c.bf16 %v2010, %v2010
    %v2213 = vpack.c.bf16 %v2013, %v2013
    %v2214 = vpack.c.bf16 %v2015, %v2015
    %v2215 = vpack.c.bf16 %v2018, %v2018
    %v2216 = vpack.c.bf16 %v2020, %v2020
    %v2217 = vpack.c.bf16 %v2023, %v2023
    %v2218 = vpack.c.bf16 %v2025, %v2025
    %v2233 = vunpack.c.l.b16 %v168
    %v2234 = vunpack.c.h.b16 %v168
    %v2235 = vunpack.c.l.b16 %v169
    %v2236 = vunpack.c.h.b16 %v169
    %v2237 = vunpack.c.l.b16 %v170
    %v2238 = vunpack.c.h.b16 %v170
    %v2239 = vunpack.c.l.b16 %v171
    %v2240 = vunpack.c.h.b16 %v171
    %v2241 = vunpack.c.l.b16 %v172
    %v2242 = vunpack.c.h.b16 %v172
    %v2243 = vunpack.c.l.b16 %v173
    %v2244 = vunpack.c.h.b16 %v173
    %v2245 = vunpack.c.l.b16 %v174
    %v2246 = vunpack.c.h.b16 %v174
    %v2247 = vunpack.c.l.b16 %v175
    %v2248 = vunpack.c.h.b16 %v175
    %v2249 = vunpack.c.l.b16 %v176
    %v2250 = vunpack.c.h.b16 %v176
    %v2251 = vunpack.c.l.b16 %v177
    %v2252 = vunpack.c.h.b16 %v177
    %v2253 = vunpack.c.l.b16 %v178
    %v2254 = vunpack.c.h.b16 %v178
    %v2255 = vunpack.c.l.b16 %v179
    %v2256 = vunpack.c.h.b16 %v179
    %v2257 = vunpack.c.l.b16 %v180
    %v2258 = vunpack.c.h.b16 %v180
    %v2259 = vunpack.c.l.b16 %v181
    %v2260 = vunpack.c.h.b16 %v181
    %v2261 = vpack.c.b16 %v2235, %v2233
    %v2262 = vpack.c.b16 %v2236, %v2234
    %v2263 = vpack.c.b16 %v2239, %v2237
    %v2264 = vpack.c.b16 %v2240, %v2238
    %v2265 = vpack.c.b16 %v2243, %v2241
    %v2266 = vpack.c.b16 %v2244, %v2242
    %v2267 = vpack.c.b16 %v2247, %v2245
    %v2268 = vpack.c.b16 %v2248, %v2246
    %v2269 = vpack.c.b16 %v2251, %v2249
    %v2270 = vpack.c.b16 %v2252, %v2250
    %v2271 = vpack.c.b16 %v2255, %v2253
    %v2272 = vpack.c.b16 %v2256, %v2254
    %v2273 = vpack.c.b16 %v2259, %v2257
    %v2274 = vpack.c.b16 %v2260, %v2258
    %v2321 = vunpack.c.l.b16 %v2027
    %v2322 = vunpack.c.l.b16 %v2028
    %v2323 = vunpack.c.l.b16 %v2029
    %v2324 = vunpack.c.l.b16 %v2030
    %v2325 = vunpack.c.l.b16 %v2031
    %v2326 = vunpack.c.l.b16 %v2032
    %v2327 = vunpack.c.l.b16 %v2033
    %v2328 = vunpack.c.l.b16 %v2034
    %v2329 = vunpack.c.l.b16 %v2035
    %v2330 = vunpack.c.l.b16 %v2036
    %v2331 = vunpack.c.l.b16 %v2037
    %v2332 = vunpack.c.l.b16 %v2038
    %v2333 = vunpack.c.l.b16 %v2039
    %v2334 = vunpack.c.l.b16 %v2040
    %v2335 = vunpack.c.l.b16 %v2041
    %v2336 = vunpack.c.l.b16 %v2042
    %v2337 = vunpack.c.l.b16 %v2043
    %v2338 = vunpack.c.l.b16 %v2044
    %v2339 = vunpack.c.l.b16 %v2045
    %v2340 = vunpack.c.l.b16 %v2046
    %v2341 = vunpack.c.l.b16 %v2047
    %v2342 = vunpack.c.l.b16 %v2048
    %v2343 = vunpack.c.l.b16 %v2049
    %v2344 = vunpack.c.l.b16 %v2050
    %v2345 = vunpack.c.l.b16 %v2051
    %v2346 = vunpack.c.l.b16 %v2052
    %v2347 = vunpack.c.l.b16 %v2053
    %v2348 = vunpack.c.l.b16 %v2054
    %v2349 = vunpack.c.l.b16 %v2055
    %v2350 = vunpack.c.l.b16 %v2056
    %v2351 = vunpack.c.l.b16 %v2057
    %v2352 = vunpack.c.l.b16 %v2058
    %v2353 = vpack.c.b16 %v2322, %v2321
    %v2354 = vpack.c.b16 %v2324, %v2323
    %v2355 = vpack.c.b16 %v2326, %v2325
    %v2356 = vpack.c.b16 %v2328, %v2327
    %v2357 = vpack.c.b16 %v2330, %v2329
    %v2358 = vpack.c.b16 %v2332, %v2331
    %v2359 = vpack.c.b16 %v2334, %v2333
    %v2360 = vpack.c.b16 %v2336, %v2335
    %v2361 = vpack.c.b16 %v2338, %v2337
    %v2362 = vpack.c.b16 %v2340, %v2339
    %v2363 = vpack.c.b16 %v2342, %v2341
    %v2364 = vpack.c.b16 %v2344, %v2343
    %v2365 = vpack.c.b16 %v2346, %v2345
    %v2366 = vpack.c.b16 %v2348, %v2347
    %v2367 = vpack.c.b16 %v2350, %v2349
    %v2368 = vpack.c.b16 %v2352, %v2351
    %2385 = vmatpush.bf16.msra.mxu0 %v2360
    %2386 = vmatpush.bf16.msra.mxu0 %v2359
    %2387 = vmatpush.bf16.msra.mxu0 %v2358
    %2388 = vmatpush.bf16.msra.mxu0 %v2357
    %2389 = vmatpush.bf16.msra.mxu0 %v2356
    %2390 = vmatpush.bf16.msra.mxu0 %v2355
    %2391 = vmatpush.bf16.msra.mxu0 %v2354
    %2392 = vmatpush.bf16.msra.mxu0 %v2353
    %2393 = vmatmul.bf16.gmra.mxu0 %v2261
    %v2394 = vpop.f32.mrf.mxu0
    %v2395 = vadd.f32 0.0, %v2394
    %v2396 = vpop.f32.mrf.mxu0
    %v2397 = vadd.f32 0.0, %v2396
    %2398 = vmatmul.bf16.gmra.mxu0 %v2263
    %v2399 = vpop.f32.mrf.mxu0
    %v2400 = vadd.f32 0.0, %v2399
    %v2401 = vpop.f32.mrf.mxu0
    %v2402 = vadd.f32 0.0, %v2401
    %2403 = vmatmul.bf16.gmra.mxu0 %v2265
    %v2404 = vpop.f32.mrf.mxu0
    %v2405 = vadd.f32 0.0, %v2404
    %v2406 = vpop.f32.mrf.mxu0
    %v2407 = vadd.f32 0.0, %v2406
    %2408 = vmatmul.bf16.gmra.mxu0 %v2267
    %v2409 = vpop.f32.mrf.mxu0
    %v2410 = vadd.f32 0.0, %v2409
    %v2411 = vpop.f32.mrf.mxu0
    %v2412 = vadd.f32 0.0, %v2411
    %2413 = vmatmul.bf16.gmra.mxu0 %v2269
    %v2414 = vpop.f32.mrf.mxu0
    %v2415 = vadd.f32 0.0, %v2414
    %v2416 = vpop.f32.mrf.mxu0
    %v2417 = vadd.f32 0.0, %v2416
    %2418 = vmatmul.bf16.gmra.mxu0 %v2271
    %v2419 = vpop.f32.mrf.mxu0
    %v2420 = vadd.f32 0.0, %v2419
    %v2421 = vpop.f32.mrf.mxu0
    %v2422 = vadd.f32 0.0, %v2421
    %2423 = vmatmul.bf16.gmra.mxu0 %v2273
    %v2424 = vpop.f32.mrf.mxu0
    %v2425 = vadd.f32 0.0, %v2424
    %v2426 = vpop.f32.mrf.mxu0
    %v2427 = vadd.f32 0.0, %v2426
    %2428 = vdwg.mxu0
    %2429 = vmatpush.bf16.msra.mxu0 %v2368
    %2430 = vmatpush.bf16.msra.mxu0 %v2367
    %2431 = vmatpush.bf16.msra.mxu0 %v2366
    %2432 = vmatpush.bf16.msra.mxu0 %v2365
    %2433 = vmatpush.bf16.msra.mxu0 %v2364
    %2434 = vmatpush.bf16.msra.mxu0 %v2363
    %2435 = vmatpush.bf16.msra.mxu0 %v2362
    %2436 = vmatpush.bf16.msra.mxu0 %v2361
    %2437 = vmatmul.bf16.gmra.mxu0 %v2262
    %v2438 = vpop.f32.mrf.mxu0
    %v2439 = vadd.f32 %v2395, %v2438
    %v2440 = vpop.f32.mrf.mxu0
    %v2441 = vadd.f32 %v2397, %v2440
    %2442 = vmatmul.bf16.gmra.mxu0 %v2264
    %v2443 = vpop.f32.mrf.mxu0
    %v2444 = vadd.f32 %v2400, %v2443
    %v2445 = vpop.f32.mrf.mxu0
    %v2446 = vadd.f32 %v2402, %v2445
    %2447 = vmatmul.bf16.gmra.mxu0 %v2266
    %v2448 = vpop.f32.mrf.mxu0
    %v2449 = vadd.f32 %v2405, %v2448
    %v2450 = vpop.f32.mrf.mxu0
    %v2451 = vadd.f32 %v2407, %v2450
    %2452 = vmatmul.bf16.gmra.mxu0 %v2268
    %v2453 = vpop.f32.mrf.mxu0
    %v2454 = vadd.f32 %v2410, %v2453
    %v2455 = vpop.f32.mrf.mxu0
    %v2456 = vadd.f32 %v2412, %v2455
    %2457 = vmatmul.bf16.gmra.mxu0 %v2270
    %v2458 = vpop.f32.mrf.mxu0
    %v2459 = vadd.f32 %v2415, %v2458
    %v2460 = vpop.f32.mrf.mxu0
    %v2461 = vadd.f32 %v2417, %v2460
    %2462 = vmatmul.bf16.gmra.mxu0 %v2272
    %v2463 = vpop.f32.mrf.mxu0
    %v2464 = vadd.f32 %v2420, %v2463
    %v2465 = vpop.f32.mrf.mxu0
    %v2466 = vadd.f32 %v2422, %v2465
    %2467 = vmatmul.bf16.gmra.mxu0 %v2274
    %v2468 = vpop.f32.mrf.mxu0
    %v2469 = vadd.f32 %v2425, %v2468
    %v2470 = vpop.f32.mrf.mxu0
    %v2471 = vadd.f32 %v2427, %v2470
    %2472 = vdwg.mxu0
    %v2505 = vunpack.c.l.b16 %v2059
    %v2506 = vunpack.c.l.b16 %v2060
    %v2507 = vunpack.c.l.b16 %v2061
    %v2508 = vunpack.c.l.b16 %v2062
    %v2509 = vunpack.c.l.b16 %v2063
    %v2510 = vunpack.c.l.b16 %v2064
    %v2511 = vunpack.c.l.b16 %v2065
    %v2512 = vunpack.c.l.b16 %v2066
    %v2513 = vunpack.c.l.b16 %v2067
    %v2514 = vunpack.c.l.b16 %v2068
    %v2515 = vunpack.c.l.b16 %v2069
    %v2516 = vunpack.c.l.b16 %v2070
    %v2517 = vunpack.c.l.b16 %v2071
    %v2518 = vunpack.c.l.b16 %v2072
    %v2519 = vunpack.c.l.b16 %v2073
    %v2520 = vunpack.c.l.b16 %v2074
    %v2521 = vunpack.c.l.b16 %v2075
    %v2522 = vunpack.c.l.b16 %v2076
    %v2523 = vunpack.c.l.b16 %v2077
    %v2524 = vunpack.c.l.b16 %v2078
    %v2525 = vunpack.c.l.b16 %v2079
    %v2526 = vunpack.c.l.b16 %v2080
    %v2527 = vunpack.c.l.b16 %v2081
    %v2528 = vunpack.c.l.b16 %v2082
    %v2529 = vunpack.c.l.b16 %v2083
    %v2530 = vunpack.c.l.b16 %v2084
    %v2531 = vunpack.c.l.b16 %v2085
    %v2532 = vunpack.c.l.b16 %v2086
    %v2533 = vunpack.c.l.b16 %v2087
    %v2534 = vunpack.c.l.b16 %v2088
    %v2535 = vunpack.c.l.b16 %v2089
    %v2536 = vunpack.c.l.b16 %v2090
    %v2537 = vpack.c.b16 %v2506, %v2505
    %v2538 = vpack.c.b16 %v2508, %v2507
    %v2539 = vpack.c.b16 %v2510, %v2509
    %v2540 = vpack.c.b16 %v2512, %v2511
    %v2541 = vpack.c.b16 %v2514, %v2513
    %v2542 = vpack.c.b16 %v2516, %v2515
    %v2543 = vpack.c.b16 %v2518, %v2517
    %v2544 = vpack.c.b16 %v2520, %v2519
    %v2545 = vpack.c.b16 %v2522, %v2521
    %v2546 = vpack.c.b16 %v2524, %v2523
    %v2547 = vpack.c.b16 %v2526, %v2525
    %v2548 = vpack.c.b16 %v2528, %v2527
    %v2549 = vpack.c.b16 %v2530, %v2529
    %v2550 = vpack.c.b16 %v2532, %v2531
    %v2551 = vpack.c.b16 %v2534, %v2533
    %v2552 = vpack.c.b16 %v2536, %v2535
    %2569 = vmatpush.bf16.msra.mxu0 %v2544
    %2570 = vmatpush.bf16.msra.mxu0 %v2543
    %2571 = vmatpush.bf16.msra.mxu0 %v2542
    %2572 = vmatpush.bf16.msra.mxu0 %v2541
    %2573 = vmatpush.bf16.msra.mxu0 %v2540
    %2574 = vmatpush.bf16.msra.mxu0 %v2539
    %2575 = vmatpush.bf16.msra.mxu0 %v2538
    %2576 = vmatpush.bf16.msra.mxu0 %v2537
    %2577 = vmatmul.bf16.gmra.mxu0 %v2261
    %v2578 = vpop.f32.mrf.mxu0
    %v2579 = vadd.f32 0.0, %v2578
    %v2580 = vpop.f32.mrf.mxu0
    %v2581 = vadd.f32 0.0, %v2580
    %2582 = vmatmul.bf16.gmra.mxu0 %v2263
    %v2583 = vpop.f32.mrf.mxu0
    %v2584 = vadd.f32 0.0, %v2583
    %v2585 = vpop.f32.mrf.mxu0
    %v2586 = vadd.f32 0.0, %v2585
    %2587 = vmatmul.bf16.gmra.mxu0 %v2265
    %v2588 = vpop.f32.mrf.mxu0
    %v2589 = vadd.f32 0.0, %v2588
    %v2590 = vpop.f32.mrf.mxu0
    %v2591 = vadd.f32 0.0, %v2590
    %2592 = vmatmul.bf16.gmra.mxu0 %v2267
    %v2593 = vpop.f32.mrf.mxu0
    %v2594 = vadd.f32 0.0, %v2593
    %v2595 = vpop.f32.mrf.mxu0
    %v2596 = vadd.f32 0.0, %v2595
    %2597 = vmatmul.bf16.gmra.mxu0 %v2269
    %v2598 = vpop.f32.mrf.mxu0
    %v2599 = vadd.f32 0.0, %v2598
    %v2600 = vpop.f32.mrf.mxu0
    %v2601 = vadd.f32 0.0, %v2600
    %2602 = vmatmul.bf16.gmra.mxu0 %v2271
    %v2603 = vpop.f32.mrf.mxu0
    %v2604 = vadd.f32 0.0, %v2603
    %v2605 = vpop.f32.mrf.mxu0
    %v2606 = vadd.f32 0.0, %v2605
    %2607 = vmatmul.bf16.gmra.mxu0 %v2273
    %v2608 = vpop.f32.mrf.mxu0
    %v2609 = vadd.f32 0.0, %v2608
    %v2610 = vpop.f32.mrf.mxu0
    %v2611 = vadd.f32 0.0, %v2610
    %2612 = vdwg.mxu0
    %2613 = vmatpush.bf16.msra.mxu0 %v2552
    %2614 = vmatpush.bf16.msra.mxu0 %v2551
    %2615 = vmatpush.bf16.msra.mxu0 %v2550
    %2616 = vmatpush.bf16.msra.mxu0 %v2549
    %2617 = vmatpush.bf16.msra.mxu0 %v2548
    %2618 = vmatpush.bf16.msra.mxu0 %v2547
    %2619 = vmatpush.bf16.msra.mxu0 %v2546
    %2620 = vmatpush.bf16.msra.mxu0 %v2545
    %2621 = vmatmul.bf16.gmra.mxu0 %v2262
    %v2622 = vpop.f32.mrf.mxu0
    %v2623 = vadd.f32 %v2579, %v2622
    %v2624 = vpop.f32.mrf.mxu0
    %v2625 = vadd.f32 %v2581, %v2624
    %2626 = vmatmul.bf16.gmra.mxu0 %v2264
    %v2627 = vpop.f32.mrf.mxu0
    %v2628 = vadd.f32 %v2584, %v2627
    %v2629 = vpop.f32.mrf.mxu0
    %v2630 = vadd.f32 %v2586, %v2629
    %2631 = vmatmul.bf16.gmra.mxu0 %v2266
    %v2632 = vpop.f32.mrf.mxu0
    %v2633 = vadd.f32 %v2589, %v2632
    %v2634 = vpop.f32.mrf.mxu0
    %v2635 = vadd.f32 %v2591, %v2634
    %2636 = vmatmul.bf16.gmra.mxu0 %v2268
    %v2637 = vpop.f32.mrf.mxu0
    %v2638 = vadd.f32 %v2594, %v2637
    %v2639 = vpop.f32.mrf.mxu0
    %v2640 = vadd.f32 %v2596, %v2639
    %2641 = vmatmul.bf16.gmra.mxu0 %v2270
    %v2642 = vpop.f32.mrf.mxu0
    %v2643 = vadd.f32 %v2599, %v2642
    %v2644 = vpop.f32.mrf.mxu0
    %v2645 = vadd.f32 %v2601, %v2644
    %2646 = vmatmul.bf16.gmra.mxu0 %v2272
    %v2647 = vpop.f32.mrf.mxu0
    %v2648 = vadd.f32 %v2604, %v2647
    %v2649 = vpop.f32.mrf.mxu0
    %v2650 = vadd.f32 %v2606, %v2649
    %2651 = vmatmul.bf16.gmra.mxu0 %v2274
    %v2652 = vpop.f32.mrf.mxu0
    %v2653 = vadd.f32 %v2609, %v2652
    %v2654 = vpop.f32.mrf.mxu0
    %v2655 = vadd.f32 %v2611, %v2654
    %2656 = vdwg.mxu0
    %v2689 = vunpack.c.l.b16 %v2091
    %v2690 = vunpack.c.l.b16 %v2092
    %v2691 = vunpack.c.l.b16 %v2093
    %v2692 = vunpack.c.l.b16 %v2094
    %v2693 = vunpack.c.l.b16 %v2095
    %v2694 = vunpack.c.l.b16 %v2096
    %v2695 = vunpack.c.l.b16 %v2097
    %v2696 = vunpack.c.l.b16 %v2098
    %v2697 = vunpack.c.l.b16 %v2099
    %v2698 = vunpack.c.l.b16 %v2100
    %v2699 = vunpack.c.l.b16 %v2101
    %v2700 = vunpack.c.l.b16 %v2102
    %v2701 = vunpack.c.l.b16 %v2103
    %v2702 = vunpack.c.l.b16 %v2104
    %v2703 = vunpack.c.l.b16 %v2105
    %v2704 = vunpack.c.l.b16 %v2106
    %v2705 = vunpack.c.l.b16 %v2107
    %v2706 = vunpack.c.l.b16 %v2108
    %v2707 = vunpack.c.l.b16 %v2109
    %v2708 = vunpack.c.l.b16 %v2110
    %v2709 = vunpack.c.l.b16 %v2111
    %v2710 = vunpack.c.l.b16 %v2112
    %v2711 = vunpack.c.l.b16 %v2113
    %v2712 = vunpack.c.l.b16 %v2114
    %v2713 = vunpack.c.l.b16 %v2115
    %v2714 = vunpack.c.l.b16 %v2116
    %v2715 = vunpack.c.l.b16 %v2117
    %v2716 = vunpack.c.l.b16 %v2118
    %v2717 = vunpack.c.l.b16 %v2119
    %v2718 = vunpack.c.l.b16 %v2120
    %v2719 = vunpack.c.l.b16 %v2121
    %v2720 = vunpack.c.l.b16 %v2122
    %v2721 = vpack.c.b16 %v2690, %v2689
    %v2722 = vpack.c.b16 %v2692, %v2691
    %v2723 = vpack.c.b16 %v2694, %v2693
    %v2724 = vpack.c.b16 %v2696, %v2695
    %v2725 = vpack.c.b16 %v2698, %v2697
    %v2726 = vpack.c.b16 %v2700, %v2699
    %v2727 = vpack.c.b16 %v2702, %v2701
    %v2728 = vpack.c.b16 %v2704, %v2703
    %v2729 = vpack.c.b16 %v2706, %v2705
    %v2730 = vpack.c.b16 %v2708, %v2707
    %v2731 = vpack.c.b16 %v2710, %v2709
    %v2732 = vpack.c.b16 %v2712, %v2711
    %v2733 = vpack.c.b16 %v2714, %v2713
    %v2734 = vpack.c.b16 %v2716, %v2715
    %v2735 = vpack.c.b16 %v2718, %v2717
    %v2736 = vpack.c.b16 %v2720, %v2719
    %2753 = vmatpush.bf16.msra.mxu0 %v2728
    %2754 = vmatpush.bf16.msra.mxu0 %v2727
    %2755 = vmatpush.bf16.msra.mxu0 %v2726
    %2756 = vmatpush.bf16.msra.mxu0 %v2725
    %2757 = vmatpush.bf16.msra.mxu0 %v2724
    %2758 = vmatpush.bf16.msra.mxu0 %v2723
    %2759 = vmatpush.bf16.msra.mxu0 %v2722
    %2760 = vmatpush.bf16.msra.mxu0 %v2721
    %2761 = vmatmul.bf16.gmra.mxu0 %v2261
    %v2762 = vpop.f32.mrf.mxu0
    %v2763 = vadd.f32 0.0, %v2762
    %v2764 = vpop.f32.mrf.mxu0
    %v2765 = vadd.f32 0.0, %v2764
    %2766 = vmatmul.bf16.gmra.mxu0 %v2263
    %v2767 = vpop.f32.mrf.mxu0
    %v2768 = vadd.f32 0.0, %v2767
    %v2769 = vpop.f32.mrf.mxu0
    %v2770 = vadd.f32 0.0, %v2769
    %2771 = vmatmul.bf16.gmra.mxu0 %v2265
    %v2772 = vpop.f32.mrf.mxu0
    %v2773 = vadd.f32 0.0, %v2772
    %v2774 = vpop.f32.mrf.mxu0
    %v2775 = vadd.f32 0.0, %v2774
    %2776 = vmatmul.bf16.gmra.mxu0 %v2267
    %v2777 = vpop.f32.mrf.mxu0
    %v2778 = vadd.f32 0.0, %v2777
    %v2779 = vpop.f32.mrf.mxu0
    %v2780 = vadd.f32 0.0, %v2779
    %2781 = vmatmul.bf16.gmra.mxu0 %v2269
    %v2782 = vpop.f32.mrf.mxu0
    %v2783 = vadd.f32 0.0, %v2782
    %v2784 = vpop.f32.mrf.mxu0
    %v2785 = vadd.f32 0.0, %v2784
    %2786 = vmatmul.bf16.gmra.mxu0 %v2271
    %v2787 = vpop.f32.mrf.mxu0
    %v2788 = vadd.f32 0.0, %v2787
    %v2789 = vpop.f32.mrf.mxu0
    %v2790 = vadd.f32 0.0, %v2789
    %2791 = vmatmul.bf16.gmra.mxu0 %v2273
    %v2792 = vpop.f32.mrf.mxu0
    %v2793 = vadd.f32 0.0, %v2792
    %v2794 = vpop.f32.mrf.mxu0
    %v2795 = vadd.f32 0.0, %v2794
    %2796 = vdwg.mxu0
    %2797 = vmatpush.bf16.msra.mxu0 %v2736
    %2798 = vmatpush.bf16.msra.mxu0 %v2735
    %2799 = vmatpush.bf16.msra.mxu0 %v2734
    %2800 = vmatpush.bf16.msra.mxu0 %v2733
    %2801 = vmatpush.bf16.msra.mxu0 %v2732
    %2802 = vmatpush.bf16.msra.mxu0 %v2731
    %2803 = vmatpush.bf16.msra.mxu0 %v2730
    %2804 = vmatpush.bf16.msra.mxu0 %v2729
    %2805 = vmatmul.bf16.gmra.mxu0 %v2262
    %v2806 = vpop.f32.mrf.mxu0
    %v2807 = vadd.f32 %v2763, %v2806
    %v2808 = vpop.f32.mrf.mxu0
    %v2809 = vadd.f32 %v2765, %v2808
    %2810 = vmatmul.bf16.gmra.mxu0 %v2264
    %v2811 = vpop.f32.mrf.mxu0
    %v2812 = vadd.f32 %v2768, %v2811
    %v2813 = vpop.f32.mrf.mxu0
    %v2814 = vadd.f32 %v2770, %v2813
    %2815 = vmatmul.bf16.gmra.mxu0 %v2266
    %v2816 = vpop.f32.mrf.mxu0
    %v2817 = vadd.f32 %v2773, %v2816
    %v2818 = vpop.f32.mrf.mxu0
    %v2819 = vadd.f32 %v2775, %v2818
    %2820 = vmatmul.bf16.gmra.mxu0 %v2268
    %v2821 = vpop.f32.mrf.mxu0
    %v2822 = vadd.f32 %v2778, %v2821
    %v2823 = vpop.f32.mrf.mxu0
    %v2824 = vadd.f32 %v2780, %v2823
    %2825 = vmatmul.bf16.gmra.mxu0 %v2270
    %v2826 = vpop.f32.mrf.mxu0
    %v2827 = vadd.f32 %v2783, %v2826
    %v2828 = vpop.f32.mrf.mxu0
    %v2829 = vadd.f32 %v2785, %v2828
    %2830 = vmatmul.bf16.gmra.mxu0 %v2272
    %v2831 = vpop.f32.mrf.mxu0
    %v2832 = vadd.f32 %v2788, %v2831
    %v2833 = vpop.f32.mrf.mxu0
    %v2834 = vadd.f32 %v2790, %v2833
    %2835 = vmatmul.bf16.gmra.mxu0 %v2274
    %v2836 = vpop.f32.mrf.mxu0
    %v2837 = vadd.f32 %v2793, %v2836
    %v2838 = vpop.f32.mrf.mxu0
    %v2839 = vadd.f32 %v2795, %v2838
    %2840 = vdwg.mxu0
    %v2873 = vunpack.c.l.b16 %v2123
    %v2874 = vunpack.c.l.b16 %v2124
    %v2875 = vunpack.c.l.b16 %v2125
    %v2876 = vunpack.c.l.b16 %v2126
    %v2877 = vunpack.c.l.b16 %v2127
    %v2878 = vunpack.c.l.b16 %v2128
    %v2879 = vunpack.c.l.b16 %v2129
    %v2880 = vunpack.c.l.b16 %v2130
    %v2881 = vunpack.c.l.b16 %v2131
    %v2882 = vunpack.c.l.b16 %v2132
    %v2883 = vunpack.c.l.b16 %v2133
    %v2884 = vunpack.c.l.b16 %v2134
    %v2885 = vunpack.c.l.b16 %v2135
    %v2886 = vunpack.c.l.b16 %v2136
    %v2887 = vunpack.c.l.b16 %v2137
    %v2888 = vunpack.c.l.b16 %v2138
    %v2889 = vunpack.c.l.b16 %v2139
    %v2890 = vunpack.c.l.b16 %v2140
    %v2891 = vunpack.c.l.b16 %v2141
    %v2892 = vunpack.c.l.b16 %v2142
    %v2893 = vunpack.c.l.b16 %v2143
    %v2894 = vunpack.c.l.b16 %v2144
    %v2895 = vunpack.c.l.b16 %v2145
    %v2896 = vunpack.c.l.b16 %v2146
    %v2897 = vunpack.c.l.b16 %v2147
    %v2898 = vunpack.c.l.b16 %v2148
    %v2899 = vunpack.c.l.b16 %v2149
    %v2900 = vunpack.c.l.b16 %v2150
    %v2901 = vunpack.c.l.b16 %v2151
    %v2902 = vunpack.c.l.b16 %v2152
    %v2903 = vunpack.c.l.b16 %v2153
    %v2904 = vunpack.c.l.b16 %v2154
    %v2905 = vpack.c.b16 %v2874, %v2873
    %v2906 = vpack.c.b16 %v2876, %v2875
    %v2907 = vpack.c.b16 %v2878, %v2877
    %v2908 = vpack.c.b16 %v2880, %v2879
    %v2909 = vpack.c.b16 %v2882, %v2881
    %v2910 = vpack.c.b16 %v2884, %v2883
    %v2911 = vpack.c.b16 %v2886, %v2885
    %v2912 = vpack.c.b16 %v2888, %v2887
    %v2913 = vpack.c.b16 %v2890, %v2889
    %v2914 = vpack.c.b16 %v2892, %v2891
    %v2915 = vpack.c.b16 %v2894, %v2893
    %v2916 = vpack.c.b16 %v2896, %v2895
    %v2917 = vpack.c.b16 %v2898, %v2897
    %v2918 = vpack.c.b16 %v2900, %v2899
    %v2919 = vpack.c.b16 %v2902, %v2901
    %v2920 = vpack.c.b16 %v2904, %v2903
    %2937 = vmatpush.bf16.msra.mxu0 %v2912
    %2938 = vmatpush.bf16.msra.mxu0 %v2911
    %2939 = vmatpush.bf16.msra.mxu0 %v2910
    %2940 = vmatpush.bf16.msra.mxu0 %v2909
    %2941 = vmatpush.bf16.msra.mxu0 %v2908
    %2942 = vmatpush.bf16.msra.mxu0 %v2907
    %2943 = vmatpush.bf16.msra.mxu0 %v2906
    %2944 = vmatpush.bf16.msra.mxu0 %v2905
    %2945 = vmatmul.bf16.gmra.mxu0 %v2261
    %v2946 = vpop.f32.mrf.mxu0
    %v2947 = vadd.f32 0.0, %v2946
    %v2948 = vpop.f32.mrf.mxu0
    %v2949 = vadd.f32 0.0, %v2948
    %2950 = vmatmul.bf16.gmra.mxu0 %v2263
    %v2951 = vpop.f32.mrf.mxu0
    %v2952 = vadd.f32 0.0, %v2951
    %v2953 = vpop.f32.mrf.mxu0
    %v2954 = vadd.f32 0.0, %v2953
    %2955 = vmatmul.bf16.gmra.mxu0 %v2265
    %v2956 = vpop.f32.mrf.mxu0
    %v2957 = vadd.f32 0.0, %v2956
    %v2958 = vpop.f32.mrf.mxu0
    %v2959 = vadd.f32 0.0, %v2958
    %2960 = vmatmul.bf16.gmra.mxu0 %v2267
    %v2961 = vpop.f32.mrf.mxu0
    %v2962 = vadd.f32 0.0, %v2961
    %v2963 = vpop.f32.mrf.mxu0
    %v2964 = vadd.f32 0.0, %v2963
    %2965 = vmatmul.bf16.gmra.mxu0 %v2269
    %v2966 = vpop.f32.mrf.mxu0
    %v2967 = vadd.f32 0.0, %v2966
    %v2968 = vpop.f32.mrf.mxu0
    %v2969 = vadd.f32 0.0, %v2968
    %2970 = vmatmul.bf16.gmra.mxu0 %v2271
    %v2971 = vpop.f32.mrf.mxu0
    %v2972 = vadd.f32 0.0, %v2971
    %v2973 = vpop.f32.mrf.mxu0
    %v2974 = vadd.f32 0.0, %v2973
    %2975 = vmatmul.bf16.gmra.mxu0 %v2273
    %v2976 = vpop.f32.mrf.mxu0
    %v2977 = vadd.f32 0.0, %v2976
    %v2978 = vpop.f32.mrf.mxu0
    %v2979 = vadd.f32 0.0, %v2978
    %2980 = vdwg.mxu0
    %2981 = vmatpush.bf16.msra.mxu0 %v2920
    %2982 = vmatpush.bf16.msra.mxu0 %v2919
    %2983 = vmatpush.bf16.msra.mxu0 %v2918
    %2984 = vmatpush.bf16.msra.mxu0 %v2917
    %2985 = vmatpush.bf16.msra.mxu0 %v2916
    %2986 = vmatpush.bf16.msra.mxu0 %v2915
    %2987 = vmatpush.bf16.msra.mxu0 %v2914
    %2988 = vmatpush.bf16.msra.mxu0 %v2913
    %2989 = vmatmul.bf16.gmra.mxu0 %v2262
    %v2990 = vpop.f32.mrf.mxu0
    %v2991 = vadd.f32 %v2947, %v2990
    %v2992 = vpop.f32.mrf.mxu0
    %v2993 = vadd.f32 %v2949, %v2992
    %2994 = vmatmul.bf16.gmra.mxu0 %v2264
    %v2995 = vpop.f32.mrf.mxu0
    %v2996 = vadd.f32 %v2952, %v2995
    %v2997 = vpop.f32.mrf.mxu0
    %v2998 = vadd.f32 %v2954, %v2997
    %2999 = vmatmul.bf16.gmra.mxu0 %v2266
    %v3000 = vpop.f32.mrf.mxu0
    %v3001 = vadd.f32 %v2957, %v3000
    %v3002 = vpop.f32.mrf.mxu0
    %v3003 = vadd.f32 %v2959, %v3002
    %3004 = vmatmul.bf16.gmra.mxu0 %v2268
    %v3005 = vpop.f32.mrf.mxu0
    %v3006 = vadd.f32 %v2962, %v3005
    %v3007 = vpop.f32.mrf.mxu0
    %v3008 = vadd.f32 %v2964, %v3007
    %3009 = vmatmul.bf16.gmra.mxu0 %v2270
    %v3010 = vpop.f32.mrf.mxu0
    %v3011 = vadd.f32 %v2967, %v3010
    %v3012 = vpop.f32.mrf.mxu0
    %v3013 = vadd.f32 %v2969, %v3012
    %3014 = vmatmul.bf16.gmra.mxu0 %v2272
    %v3015 = vpop.f32.mrf.mxu0
    %v3016 = vadd.f32 %v2972, %v3015
    %v3017 = vpop.f32.mrf.mxu0
    %v3018 = vadd.f32 %v2974, %v3017
    %3019 = vmatmul.bf16.gmra.mxu0 %v2274
    %v3020 = vpop.f32.mrf.mxu0
    %v3021 = vadd.f32 %v2977, %v3020
    %v3022 = vpop.f32.mrf.mxu0
    %v3023 = vadd.f32 %v2979, %v3022
    %3024 = vdwg.mxu0
    %v3057 = vunpack.c.l.b16 %v2155
    %v3058 = vunpack.c.l.b16 %v2156
    %v3059 = vunpack.c.l.b16 %v2157
    %v3060 = vunpack.c.l.b16 %v2158
    %v3061 = vunpack.c.l.b16 %v2159
    %v3062 = vunpack.c.l.b16 %v2160
    %v3063 = vunpack.c.l.b16 %v2161
    %v3064 = vunpack.c.l.b16 %v2162
    %v3065 = vunpack.c.l.b16 %v2163
    %v3066 = vunpack.c.l.b16 %v2164
    %v3067 = vunpack.c.l.b16 %v2165
    %v3068 = vunpack.c.l.b16 %v2166
    %v3069 = vunpack.c.l.b16 %v2167
    %v3070 = vunpack.c.l.b16 %v2168
    %v3071 = vunpack.c.l.b16 %v2169
    %v3072 = vunpack.c.l.b16 %v2170
    %v3073 = vunpack.c.l.b16 %v2171
    %v3074 = vunpack.c.l.b16 %v2172
    %v3075 = vunpack.c.l.b16 %v2173
    %v3076 = vunpack.c.l.b16 %v2174
    %v3077 = vunpack.c.l.b16 %v2175
    %v3078 = vunpack.c.l.b16 %v2176
    %v3079 = vunpack.c.l.b16 %v2177
    %v3080 = vunpack.c.l.b16 %v2178
    %v3081 = vunpack.c.l.b16 %v2179
    %v3082 = vunpack.c.l.b16 %v2180
    %v3083 = vunpack.c.l.b16 %v2181
    %v3084 = vunpack.c.l.b16 %v2182
    %v3085 = vunpack.c.l.b16 %v2183
    %v3086 = vunpack.c.l.b16 %v2184
    %v3087 = vunpack.c.l.b16 %v2185
    %v3088 = vunpack.c.l.b16 %v2186
    %v3089 = vpack.c.b16 %v3058, %v3057
    %v3090 = vpack.c.b16 %v3060, %v3059
    %v3091 = vpack.c.b16 %v3062, %v3061
    %v3092 = vpack.c.b16 %v3064, %v3063
    %v3093 = vpack.c.b16 %v3066, %v3065
    %v3094 = vpack.c.b16 %v3068, %v3067
    %v3095 = vpack.c.b16 %v3070, %v3069
    %v3096 = vpack.c.b16 %v3072, %v3071
    %v3097 = vpack.c.b16 %v3074, %v3073
    %v3098 = vpack.c.b16 %v3076, %v3075
    %v3099 = vpack.c.b16 %v3078, %v3077
    %v3100 = vpack.c.b16 %v3080, %v3079
    %v3101 = vpack.c.b16 %v3082, %v3081
    %v3102 = vpack.c.b16 %v3084, %v3083
    %v3103 = vpack.c.b16 %v3086, %v3085
    %v3104 = vpack.c.b16 %v3088, %v3087
    %3121 = vmatpush.bf16.msra.mxu0 %v3096
    %3122 = vmatpush.bf16.msra.mxu0 %v3095
    %3123 = vmatpush.bf16.msra.mxu0 %v3094
    %3124 = vmatpush.bf16.msra.mxu0 %v3093
    %3125 = vmatpush.bf16.msra.mxu0 %v3092
    %3126 = vmatpush.bf16.msra.mxu0 %v3091
    %3127 = vmatpush.bf16.msra.mxu0 %v3090
    %3128 = vmatpush.bf16.msra.mxu0 %v3089
    %3129 = vmatmul.bf16.gmra.mxu0 %v2261
    %v3130 = vpop.f32.mrf.mxu0
    %v3131 = vadd.f32 0.0, %v3130
    %v3132 = vpop.f32.mrf.mxu0
    %v3133 = vadd.f32 0.0, %v3132
    %3134 = vmatmul.bf16.gmra.mxu0 %v2263
    %v3135 = vpop.f32.mrf.mxu0
    %v3136 = vadd.f32 0.0, %v3135
    %v3137 = vpop.f32.mrf.mxu0
    %v3138 = vadd.f32 0.0, %v3137
    %3139 = vmatmul.bf16.gmra.mxu0 %v2265
    %v3140 = vpop.f32.mrf.mxu0
    %v3141 = vadd.f32 0.0, %v3140
    %v3142 = vpop.f32.mrf.mxu0
    %v3143 = vadd.f32 0.0, %v3142
    %3144 = vmatmul.bf16.gmra.mxu0 %v2267
    %v3145 = vpop.f32.mrf.mxu0
    %v3146 = vadd.f32 0.0, %v3145
    %v3147 = vpop.f32.mrf.mxu0
    %v3148 = vadd.f32 0.0, %v3147
    %3149 = vmatmul.bf16.gmra.mxu0 %v2269
    %v3150 = vpop.f32.mrf.mxu0
    %v3151 = vadd.f32 0.0, %v3150
    %v3152 = vpop.f32.mrf.mxu0
    %v3153 = vadd.f32 0.0, %v3152
    %3154 = vmatmul.bf16.gmra.mxu0 %v2271
    %v3155 = vpop.f32.mrf.mxu0
    %v3156 = vadd.f32 0.0, %v3155
    %v3157 = vpop.f32.mrf.mxu0
    %v3158 = vadd.f32 0.0, %v3157
    %3159 = vmatmul.bf16.gmra.mxu0 %v2273
    %v3160 = vpop.f32.mrf.mxu0
    %v3161 = vadd.f32 0.0, %v3160
    %v3162 = vpop.f32.mrf.mxu0
    %v3163 = vadd.f32 0.0, %v3162
    %3164 = vdwg.mxu0
    %3165 = vmatpush.bf16.msra.mxu0 %v3104
    %3166 = vmatpush.bf16.msra.mxu0 %v3103
    %3167 = vmatpush.bf16.msra.mxu0 %v3102
    %3168 = vmatpush.bf16.msra.mxu0 %v3101
    %3169 = vmatpush.bf16.msra.mxu0 %v3100
    %3170 = vmatpush.bf16.msra.mxu0 %v3099
    %3171 = vmatpush.bf16.msra.mxu0 %v3098
    %3172 = vmatpush.bf16.msra.mxu0 %v3097
    %3173 = vmatmul.bf16.gmra.mxu0 %v2262
    %v3174 = vpop.f32.mrf.mxu0
    %v3175 = vadd.f32 %v3131, %v3174
    %v3176 = vpop.f32.mrf.mxu0
    %v3177 = vadd.f32 %v3133, %v3176
    %3178 = vmatmul.bf16.gmra.mxu0 %v2264
    %v3179 = vpop.f32.mrf.mxu0
    %v3180 = vadd.f32 %v3136, %v3179
    %v3181 = vpop.f32.mrf.mxu0
    %v3182 = vadd.f32 %v3138, %v3181
    %3183 = vmatmul.bf16.gmra.mxu0 %v2266
    %v3184 = vpop.f32.mrf.mxu0
    %v3185 = vadd.f32 %v3141, %v3184
    %v3186 = vpop.f32.mrf.mxu0
    %v3187 = vadd.f32 %v3143, %v3186
    %3188 = vmatmul.bf16.gmra.mxu0 %v2268
    %v3189 = vpop.f32.mrf.mxu0
    %v3190 = vadd.f32 %v3146, %v3189
    %v3191 = vpop.f32.mrf.mxu0
    %v3192 = vadd.f32 %v3148, %v3191
    %3193 = vmatmul.bf16.gmra.mxu0 %v2270
    %v3194 = vpop.f32.mrf.mxu0
    %v3195 = vadd.f32 %v3151, %v3194
    %v3196 = vpop.f32.mrf.mxu0
    %v3197 = vadd.f32 %v3153, %v3196
    %3198 = vmatmul.bf16.gmra.mxu0 %v2272
    %v3199 = vpop.f32.mrf.mxu0
    %v3200 = vadd.f32 %v3156, %v3199
    %v3201 = vpop.f32.mrf.mxu0
    %v3202 = vadd.f32 %v3158, %v3201
    %3203 = vmatmul.bf16.gmra.mxu0 %v2274
    %v3204 = vpop.f32.mrf.mxu0
    %v3205 = vadd.f32 %v3161, %v3204
    %v3206 = vpop.f32.mrf.mxu0
    %v3207 = vadd.f32 %v3163, %v3206
    %3208 = vdwg.mxu0
    %v3241 = vunpack.c.l.b16 %v2187
    %v3242 = vunpack.c.l.b16 %v2188
    %v3243 = vunpack.c.l.b16 %v2189
    %v3244 = vunpack.c.l.b16 %v2190
    %v3245 = vunpack.c.l.b16 %v2191
    %v3246 = vunpack.c.l.b16 %v2192
    %v3247 = vunpack.c.l.b16 %v2193
    %v3248 = vunpack.c.l.b16 %v2194
    %v3249 = vunpack.c.l.b16 %v2195
    %v3250 = vunpack.c.l.b16 %v2196
    %v3251 = vunpack.c.l.b16 %v2197
    %v3252 = vunpack.c.l.b16 %v2198
    %v3253 = vunpack.c.l.b16 %v2199
    %v3254 = vunpack.c.l.b16 %v2200
    %v3255 = vunpack.c.l.b16 %v2201
    %v3256 = vunpack.c.l.b16 %v2202
    %v3257 = vunpack.c.l.b16 %v2203
    %v3258 = vunpack.c.l.b16 %v2204
    %v3259 = vunpack.c.l.b16 %v2205
    %v3260 = vunpack.c.l.b16 %v2206
    %v3261 = vunpack.c.l.b16 %v2207
    %v3262 = vunpack.c.l.b16 %v2208
    %v3263 = vunpack.c.l.b16 %v2209
    %v3264 = vunpack.c.l.b16 %v2210
    %v3265 = vunpack.c.l.b16 %v2211
    %v3266 = vunpack.c.l.b16 %v2212
    %v3267 = vunpack.c.l.b16 %v2213
    %v3268 = vunpack.c.l.b16 %v2214
    %v3269 = vunpack.c.l.b16 %v2215
    %v3270 = vunpack.c.l.b16 %v2216
    %v3271 = vunpack.c.l.b16 %v2217
    %v3272 = vunpack.c.l.b16 %v2218
    %v3273 = vpack.c.b16 %v3242, %v3241
    %v3274 = vpack.c.b16 %v3244, %v3243
    %v3275 = vpack.c.b16 %v3246, %v3245
    %v3276 = vpack.c.b16 %v3248, %v3247
    %v3277 = vpack.c.b16 %v3250, %v3249
    %v3278 = vpack.c.b16 %v3252, %v3251
    %v3279 = vpack.c.b16 %v3254, %v3253
    %v3280 = vpack.c.b16 %v3256, %v3255
    %v3281 = vpack.c.b16 %v3258, %v3257
    %v3282 = vpack.c.b16 %v3260, %v3259
    %v3283 = vpack.c.b16 %v3262, %v3261
    %v3284 = vpack.c.b16 %v3264, %v3263
    %v3285 = vpack.c.b16 %v3266, %v3265
    %v3286 = vpack.c.b16 %v3268, %v3267
    %v3287 = vpack.c.b16 %v3270, %v3269
    %v3288 = vpack.c.b16 %v3272, %v3271
    %3305 = vmatpush.bf16.msra.mxu0 %v3280
    %3306 = vmatpush.bf16.msra.mxu0 %v3279
    %3307 = vmatpush.bf16.msra.mxu0 %v3278
    %3308 = vmatpush.bf16.msra.mxu0 %v3277
    %3309 = vmatpush.bf16.msra.mxu0 %v3276
    %3310 = vmatpush.bf16.msra.mxu0 %v3275
    %3311 = vmatpush.bf16.msra.mxu0 %v3274
    %3312 = vmatpush.bf16.msra.mxu0 %v3273
    %3313 = vmatmul.bf16.gmra.mxu0 %v2261
    %v3314 = vpop.f32.mrf.mxu0
    %v3315 = vadd.f32 0.0, %v3314
    %v3316 = vpop.f32.mrf.mxu0
    %v3317 = vadd.f32 0.0, %v3316
    %3318 = vmatmul.bf16.gmra.mxu0 %v2263
    %v3319 = vpop.f32.mrf.mxu0
    %v3320 = vadd.f32 0.0, %v3319
    %v3321 = vpop.f32.mrf.mxu0
    %v3322 = vadd.f32 0.0, %v3321
    %3323 = vmatmul.bf16.gmra.mxu0 %v2265
    %v3324 = vpop.f32.mrf.mxu0
    %v3325 = vadd.f32 0.0, %v3324
    %v3326 = vpop.f32.mrf.mxu0
    %v3327 = vadd.f32 0.0, %v3326
    %3328 = vmatmul.bf16.gmra.mxu0 %v2267
    %v3329 = vpop.f32.mrf.mxu0
    %v3330 = vadd.f32 0.0, %v3329
    %v3331 = vpop.f32.mrf.mxu0
    %v3332 = vadd.f32 0.0, %v3331
    %3333 = vmatmul.bf16.gmra.mxu0 %v2269
    %v3334 = vpop.f32.mrf.mxu0
    %v3335 = vadd.f32 0.0, %v3334
    %v3336 = vpop.f32.mrf.mxu0
    %v3337 = vadd.f32 0.0, %v3336
    %3338 = vmatmul.bf16.gmra.mxu0 %v2271
    %v3339 = vpop.f32.mrf.mxu0
    %v3340 = vadd.f32 0.0, %v3339
    %v3341 = vpop.f32.mrf.mxu0
    %v3342 = vadd.f32 0.0, %v3341
    %3343 = vmatmul.bf16.gmra.mxu0 %v2273
    %v3344 = vpop.f32.mrf.mxu0
    %v3345 = vadd.f32 0.0, %v3344
    %v3346 = vpop.f32.mrf.mxu0
    %v3347 = vadd.f32 0.0, %v3346
    %3348 = vdwg.mxu0
    %3349 = vmatpush.bf16.msra.mxu0 %v3288
    %3350 = vmatpush.bf16.msra.mxu0 %v3287
    %3351 = vmatpush.bf16.msra.mxu0 %v3286
    %3352 = vmatpush.bf16.msra.mxu0 %v3285
    %3353 = vmatpush.bf16.msra.mxu0 %v3284
    %3354 = vmatpush.bf16.msra.mxu0 %v3283
    %3355 = vmatpush.bf16.msra.mxu0 %v3282
    %3356 = vmatpush.bf16.msra.mxu0 %v3281
    %3357 = vmatmul.bf16.gmra.mxu0 %v2262
    %v3358 = vpop.f32.mrf.mxu0
    %v3359 = vadd.f32 %v3315, %v3358
    %v3360 = vpop.f32.mrf.mxu0
    %v3361 = vadd.f32 %v3317, %v3360
    %3362 = vmatmul.bf16.gmra.mxu0 %v2264
    %v3363 = vpop.f32.mrf.mxu0
    %v3364 = vadd.f32 %v3320, %v3363
    %v3365 = vpop.f32.mrf.mxu0
    %v3366 = vadd.f32 %v3322, %v3365
    %3367 = vmatmul.bf16.gmra.mxu0 %v2266
    %v3368 = vpop.f32.mrf.mxu0
    %v3369 = vadd.f32 %v3325, %v3368
    %v3370 = vpop.f32.mrf.mxu0
    %v3371 = vadd.f32 %v3327, %v3370
    %3372 = vmatmul.bf16.gmra.mxu0 %v2268
    %v3373 = vpop.f32.mrf.mxu0
    %v3374 = vadd.f32 %v3330, %v3373
    %v3375 = vpop.f32.mrf.mxu0
    %v3376 = vadd.f32 %v3332, %v3375
    %3377 = vmatmul.bf16.gmra.mxu0 %v2270
    %v3378 = vpop.f32.mrf.mxu0
    %v3379 = vadd.f32 %v3335, %v3378
    %v3380 = vpop.f32.mrf.mxu0
    %v3381 = vadd.f32 %v3337, %v3380
    %3382 = vmatmul.bf16.gmra.mxu0 %v2272
    %v3383 = vpop.f32.mrf.mxu0
    %v3384 = vadd.f32 %v3340, %v3383
    %v3385 = vpop.f32.mrf.mxu0
    %v3386 = vadd.f32 %v3342, %v3385
    %3387 = vmatmul.bf16.gmra.mxu0 %v2274
    %v3388 = vpop.f32.mrf.mxu0
    %v3389 = vadd.f32 %v3345, %v3388
    %v3390 = vpop.f32.mrf.mxu0
    %v3391 = vadd.f32 %v3347, %v3390
    %3392 = vdwg.mxu0
    %v3393 = vpack.c.bf16 %v2441, %v2439
    %v3394 = vpack.c.bf16 %v2446, %v2444
    %v3395 = vpack.c.bf16 %v2451, %v2449
    %v3396 = vpack.c.bf16 %v2456, %v2454
    %v3397 = vpack.c.bf16 %v2461, %v2459
    %v3398 = vpack.c.bf16 %v2466, %v2464
    %v3399 = vpack.c.bf16 %v2471, %v2469
    %v3400 = vpack.c.bf16 %v2625, %v2623
    %v3401 = vpack.c.bf16 %v2630, %v2628
    %v3402 = vpack.c.bf16 %v2635, %v2633
    %v3403 = vpack.c.bf16 %v2640, %v2638
    %v3404 = vpack.c.bf16 %v2645, %v2643
    %v3405 = vpack.c.bf16 %v2650, %v2648
    %v3406 = vpack.c.bf16 %v2655, %v2653
    %v3407 = vpack.c.bf16 %v2809, %v2807
    %v3408 = vpack.c.bf16 %v2814, %v2812
    %v3409 = vpack.c.bf16 %v2819, %v2817
    %v3410 = vpack.c.bf16 %v2824, %v2822
    %v3411 = vpack.c.bf16 %v2829, %v2827
    %v3412 = vpack.c.bf16 %v2834, %v2832
    %v3413 = vpack.c.bf16 %v2839, %v2837
    %v3414 = vpack.c.bf16 %v2993, %v2991
    %v3415 = vpack.c.bf16 %v2998, %v2996
    %v3416 = vpack.c.bf16 %v3003, %v3001
    %v3417 = vpack.c.bf16 %v3008, %v3006
    %v3418 = vpack.c.bf16 %v3013, %v3011
    %v3419 = vpack.c.bf16 %v3018, %v3016
    %v3420 = vpack.c.bf16 %v3023, %v3021
    %v3421 = vpack.c.bf16 %v3177, %v3175
    %v3422 = vpack.c.bf16 %v3182, %v3180
    %v3423 = vpack.c.bf16 %v3187, %v3185
    %v3424 = vpack.c.bf16 %v3192, %v3190
    %v3425 = vpack.c.bf16 %v3197, %v3195
    %v3426 = vpack.c.bf16 %v3202, %v3200
    %v3427 = vpack.c.bf16 %v3207, %v3205
    %v3428 = vpack.c.bf16 %v3361, %v3359
    %v3429 = vpack.c.bf16 %v3366, %v3364
    %v3430 = vpack.c.bf16 %v3371, %v3369
    %v3431 = vpack.c.bf16 %v3376, %v3374
    %v3432 = vpack.c.bf16 %v3381, %v3379
    %v3433 = vpack.c.bf16 %v3386, %v3384
    %v3434 = vpack.c.bf16 %v3391, %v3389
    %v3436 = vperm.slane %v247, 0
    %v3437 = vperm.slane %v247, 1
    %v3438 = vperm.slane %v247, 2
    %v3439 = vperm.slane %v247, 3
    %v3476 = vunpack.c.l.b16 %v215
    %v3477 = vunpack.c.h.b16 %v215
    %v3478 = vunpack.c.l.b16 %v216
    %v3479 = vunpack.c.h.b16 %v216
    %v3480 = vunpack.c.l.b16 %v217
    %v3481 = vunpack.c.h.b16 %v217
    %v3482 = vunpack.c.l.b16 %v218
    %v3483 = vunpack.c.h.b16 %v218
    %v3484 = vunpack.c.l.b16 %v219
    %v3485 = vunpack.c.h.b16 %v219
    %v3486 = vunpack.c.l.b16 %v220
    %v3487 = vunpack.c.h.b16 %v220
    %v3488 = vunpack.c.l.b16 %v221
    %v3489 = vunpack.c.h.b16 %v221
    %v3490 = vunpack.c.l.b16 %v222
    %v3491 = vunpack.c.h.b16 %v222
    %v3492 = vunpack.c.l.b16 %v223
    %v3493 = vunpack.c.h.b16 %v223
    %v3494 = vunpack.c.l.b16 %v224
    %v3495 = vunpack.c.h.b16 %v224
    %v3496 = vunpack.c.l.b16 %v225
    %v3497 = vunpack.c.h.b16 %v225
    %v3498 = vunpack.c.l.b16 %v226
    %v3499 = vunpack.c.h.b16 %v226
    %v3500 = vunpack.c.l.b16 %v227
    %v3501 = vunpack.c.h.b16 %v227
    %v3502 = vunpack.c.l.b16 %v228
    %v3503 = vunpack.c.h.b16 %v228
    %v3504 = vunpack.c.l.b16 %v229
    %v3505 = vunpack.c.h.b16 %v229
    %v3506 = vunpack.c.l.b16 %v230
    %v3507 = vunpack.c.h.b16 %v230
    %v3508 = vunpack.c.l.b16 %v231
    %v3509 = vunpack.c.h.b16 %v231
    %v3510 = vunpack.c.l.b16 %v232
    %v3511 = vunpack.c.h.b16 %v232
    %v3512 = vunpack.c.l.b16 %v233
    %v3513 = vunpack.c.h.b16 %v233
    %v3514 = vunpack.c.l.b16 %v234
    %v3515 = vunpack.c.h.b16 %v234
    %v3516 = vunpack.c.l.b16 %v235
    %v3517 = vunpack.c.h.b16 %v235
    %v3518 = vunpack.c.l.b16 %v236
    %v3519 = vunpack.c.h.b16 %v236
    %v3520 = vunpack.c.l.b16 %v237
    %v3521 = vunpack.c.h.b16 %v237
    %v3522 = vunpack.c.l.b16 %v238
    %v3523 = vunpack.c.h.b16 %v238
    %v3524 = vunpack.c.l.b16 %v239
    %v3525 = vunpack.c.h.b16 %v239
    %v3526 = vunpack.c.l.b16 %v240
    %v3527 = vunpack.c.h.b16 %v240
    %v3528 = vunpack.c.l.b16 %v241
    %v3529 = vunpack.c.h.b16 %v241
    %v3530 = vunpack.c.l.b16 %v242
    %v3531 = vunpack.c.h.b16 %v242
    %v3532 = vunpack.c.l.b16 %v243
    %v3533 = vunpack.c.h.b16 %v243
    %v3534 = vunpack.c.l.b16 %v244
    %v3535 = vunpack.c.h.b16 %v244
    %v3536 = vunpack.c.l.b16 %v245
    %v3537 = vunpack.c.h.b16 %v245
    %v3538 = vunpack.c.l.b16 %v246
    %v3539 = vunpack.c.h.b16 %v246
    %v3540 = vpack.c.b16 %v3480, %v3476
    %v3541 = vpack.c.b16 %v3481, %v3477
    %v3542 = vpack.c.b16 %v3482, %v3478
    %v3543 = vpack.c.b16 %v3483, %v3479
    %v3544 = vpack.c.b16 %v3488, %v3484
    %v3545 = vpack.c.b16 %v3489, %v3485
    %v3546 = vpack.c.b16 %v3490, %v3486
    %v3547 = vpack.c.b16 %v3491, %v3487
    %v3548 = vpack.c.b16 %v3496, %v3492
    %v3549 = vpack.c.b16 %v3497, %v3493
    %v3550 = vpack.c.b16 %v3498, %v3494
    %v3551 = vpack.c.b16 %v3499, %v3495
    %v3552 = vpack.c.b16 %v3504, %v3500
    %v3553 = vpack.c.b16 %v3505, %v3501
    %v3554 = vpack.c.b16 %v3506, %v3502
    %v3555 = vpack.c.b16 %v3507, %v3503
    %v3556 = vpack.c.b16 %v3512, %v3508
    %v3557 = vpack.c.b16 %v3513, %v3509
    %v3558 = vpack.c.b16 %v3514, %v3510
    %v3559 = vpack.c.b16 %v3515, %v3511
    %v3560 = vpack.c.b16 %v3520, %v3516
    %v3561 = vpack.c.b16 %v3521, %v3517
    %v3562 = vpack.c.b16 %v3522, %v3518
    %v3563 = vpack.c.b16 %v3523, %v3519
    %v3564 = vpack.c.b16 %v3528, %v3524
    %v3565 = vpack.c.b16 %v3529, %v3525
    %v3566 = vpack.c.b16 %v3530, %v3526
    %v3567 = vpack.c.b16 %v3531, %v3527
    %v3568 = vpack.c.b16 %v3536, %v3532
    %v3569 = vpack.c.b16 %v3537, %v3533
    %v3570 = vpack.c.b16 %v3538, %v3534
    %v3571 = vpack.c.b16 %v3539, %v3535
    %3604 = vmatpush.bf16.msra.mxu0 %v3568
    %3605 = vmatpush.bf16.msra.mxu0 %v3564
    %3606 = vmatpush.bf16.msra.mxu0 %v3560
    %3607 = vmatpush.bf16.msra.mxu0 %v3556
    %3608 = vmatpush.bf16.msra.mxu0 %v3552
    %3609 = vmatpush.bf16.msra.mxu0 %v3548
    %3610 = vmatpush.bf16.msra.mxu0 %v3544
    %3611 = vmatpush.bf16.msra.mxu0 %v3540
    %3612 = vmatmul.bf16.gmra.mxu0 %v3393
    %v3613 = vpop.f32.mrf.mxu0
    %v3614 = vadd.f32 %v3436, %v3613
    %v3615 = vpop.f32.mrf.mxu0
    %v3616 = vadd.f32 %v3436, %v3615
    %3617 = vmatmul.bf16.gmra.mxu0 %v3394
    %v3618 = vpop.f32.mrf.mxu0
    %v3619 = vadd.f32 %v3436, %v3618
    %v3620 = vpop.f32.mrf.mxu0
    %v3621 = vadd.f32 %v3436, %v3620
    %3622 = vmatmul.bf16.gmra.mxu0 %v3395
    %v3623 = vpop.f32.mrf.mxu0
    %v3624 = vadd.f32 %v3436, %v3623
    %v3625 = vpop.f32.mrf.mxu0
    %v3626 = vadd.f32 %v3436, %v3625
    %3627 = vmatmul.bf16.gmra.mxu0 %v3396
    %v3628 = vpop.f32.mrf.mxu0
    %v3629 = vadd.f32 %v3436, %v3628
    %v3630 = vpop.f32.mrf.mxu0
    %v3631 = vadd.f32 %v3436, %v3630
    %3632 = vmatmul.bf16.gmra.mxu0 %v3397
    %v3633 = vpop.f32.mrf.mxu0
    %v3634 = vadd.f32 %v3436, %v3633
    %v3635 = vpop.f32.mrf.mxu0
    %v3636 = vadd.f32 %v3436, %v3635
    %3637 = vmatmul.bf16.gmra.mxu0 %v3398
    %v3638 = vpop.f32.mrf.mxu0
    %v3639 = vadd.f32 %v3436, %v3638
    %v3640 = vpop.f32.mrf.mxu0
    %v3641 = vadd.f32 %v3436, %v3640
    %3642 = vmatmul.bf16.gmra.mxu0 %v3399
    %v3643 = vpop.f32.mrf.mxu0
    %v3644 = vadd.f32 %v3436, %v3643
    %v3645 = vpop.f32.mrf.mxu0
    %v3646 = vadd.f32 %v3436, %v3645
    %3647 = vmatmul.bf16.gmra.mxu0 %v3400
    %v3648 = vpop.f32.mrf.mxu0
    %v3649 = vadd.f32 %v3436, %v3648
    %v3650 = vpop.f32.mrf.mxu0
    %v3651 = vadd.f32 %v3436, %v3650
    %3652 = vmatmul.bf16.gmra.mxu0 %v3401
    %v3653 = vpop.f32.mrf.mxu0
    %v3654 = vadd.f32 %v3436, %v3653
    %v3655 = vpop.f32.mrf.mxu0
    %v3656 = vadd.f32 %v3436, %v3655
    %3657 = vmatmul.bf16.gmra.mxu0 %v3402
    %v3658 = vpop.f32.mrf.mxu0
    %v3659 = vadd.f32 %v3436, %v3658
    %v3660 = vpop.f32.mrf.mxu0
    %v3661 = vadd.f32 %v3436, %v3660
    %3662 = vmatmul.bf16.gmra.mxu0 %v3403
    %v3663 = vpop.f32.mrf.mxu0
    %v3664 = vadd.f32 %v3436, %v3663
    %v3665 = vpop.f32.mrf.mxu0
    %v3666 = vadd.f32 %v3436, %v3665
    %3667 = vmatmul.bf16.gmra.mxu0 %v3404
    %v3668 = vpop.f32.mrf.mxu0
    %v3669 = vadd.f32 %v3436, %v3668
    %v3670 = vpop.f32.mrf.mxu0
    %v3671 = vadd.f32 %v3436, %v3670
    %3672 = vmatmul.bf16.gmra.mxu0 %v3405
    %v3673 = vpop.f32.mrf.mxu0
    %v3674 = vadd.f32 %v3436, %v3673
    %v3675 = vpop.f32.mrf.mxu0
    %v3676 = vadd.f32 %v3436, %v3675
    %3677 = vmatmul.bf16.gmra.mxu0 %v3406
    %v3678 = vpop.f32.mrf.mxu0
    %v3679 = vadd.f32 %v3436, %v3678
    %v3680 = vpop.f32.mrf.mxu0
    %v3681 = vadd.f32 %v3436, %v3680
    %3682 = vmatmul.bf16.gmra.mxu0 %v3407
    %v3683 = vpop.f32.mrf.mxu0
    %v3684 = vadd.f32 %v3436, %v3683
    %v3685 = vpop.f32.mrf.mxu0
    %v3686 = vadd.f32 %v3436, %v3685
    %3687 = vmatmul.bf16.gmra.mxu0 %v3408
    %v3688 = vpop.f32.mrf.mxu0
    %v3689 = vadd.f32 %v3436, %v3688
    %v3690 = vpop.f32.mrf.mxu0
    %v3691 = vadd.f32 %v3436, %v3690
    %3692 = vmatmul.bf16.gmra.mxu0 %v3409
    %v3693 = vpop.f32.mrf.mxu0
    %v3694 = vadd.f32 %v3436, %v3693
    %v3695 = vpop.f32.mrf.mxu0
    %v3696 = vadd.f32 %v3436, %v3695
    %3697 = vmatmul.bf16.gmra.mxu0 %v3410
    %v3698 = vpop.f32.mrf.mxu0
    %v3699 = vadd.f32 %v3436, %v3698
    %v3700 = vpop.f32.mrf.mxu0
    %v3701 = vadd.f32 %v3436, %v3700
    %3702 = vmatmul.bf16.gmra.mxu0 %v3411
    %v3703 = vpop.f32.mrf.mxu0
    %v3704 = vadd.f32 %v3436, %v3703
    %v3705 = vpop.f32.mrf.mxu0
    %v3706 = vadd.f32 %v3436, %v3705
    %3707 = vmatmul.bf16.gmra.mxu0 %v3412
    %v3708 = vpop.f32.mrf.mxu0
    %v3709 = vadd.f32 %v3436, %v3708
    %v3710 = vpop.f32.mrf.mxu0
    %v3711 = vadd.f32 %v3436, %v3710
    %3712 = vmatmul.bf16.gmra.mxu0 %v3413
    %v3713 = vpop.f32.mrf.mxu0
    %v3714 = vadd.f32 %v3436, %v3713
    %v3715 = vpop.f32.mrf.mxu0
    %v3716 = vadd.f32 %v3436, %v3715
    %3717 = vmatmul.bf16.gmra.mxu0 %v3414
    %v3718 = vpop.f32.mrf.mxu0
    %v3719 = vadd.f32 %v3436, %v3718
    %v3720 = vpop.f32.mrf.mxu0
    %v3721 = vadd.f32 %v3436, %v3720
    %3722 = vmatmul.bf16.gmra.mxu0 %v3415
    %v3723 = vpop.f32.mrf.mxu0
    %v3724 = vadd.f32 %v3436, %v3723
    %v3725 = vpop.f32.mrf.mxu0
    %v3726 = vadd.f32 %v3436, %v3725
    %3727 = vmatmul.bf16.gmra.mxu0 %v3416
    %v3728 = vpop.f32.mrf.mxu0
    %v3729 = vadd.f32 %v3436, %v3728
    %v3730 = vpop.f32.mrf.mxu0
    %v3731 = vadd.f32 %v3436, %v3730
    %3732 = vmatmul.bf16.gmra.mxu0 %v3417
    %v3733 = vpop.f32.mrf.mxu0
    %v3734 = vadd.f32 %v3436, %v3733
    %v3735 = vpop.f32.mrf.mxu0
    %v3736 = vadd.f32 %v3436, %v3735
    %3737 = vmatmul.bf16.gmra.mxu0 %v3418
    %v3738 = vpop.f32.mrf.mxu0
    %v3739 = vadd.f32 %v3436, %v3738
    %v3740 = vpop.f32.mrf.mxu0
    %v3741 = vadd.f32 %v3436, %v3740
    %3742 = vmatmul.bf16.gmra.mxu0 %v3419
    %v3743 = vpop.f32.mrf.mxu0
    %v3744 = vadd.f32 %v3436, %v3743
    %v3745 = vpop.f32.mrf.mxu0
    %v3746 = vadd.f32 %v3436, %v3745
    %3747 = vmatmul.bf16.gmra.mxu0 %v3420
    %v3748 = vpop.f32.mrf.mxu0
    %v3749 = vadd.f32 %v3436, %v3748
    %v3750 = vpop.f32.mrf.mxu0
    %v3751 = vadd.f32 %v3436, %v3750
    %3752 = vmatmul.bf16.gmra.mxu0 %v3421
    %v3753 = vpop.f32.mrf.mxu0
    %v3754 = vadd.f32 %v3436, %v3753
    %v3755 = vpop.f32.mrf.mxu0
    %v3756 = vadd.f32 %v3436, %v3755
    %3757 = vmatmul.bf16.gmra.mxu0 %v3422
    %v3758 = vpop.f32.mrf.mxu0
    %v3759 = vadd.f32 %v3436, %v3758
    %v3760 = vpop.f32.mrf.mxu0
    %v3761 = vadd.f32 %v3436, %v3760
    %3762 = vmatmul.bf16.gmra.mxu0 %v3423
    %v3763 = vpop.f32.mrf.mxu0
    %v3764 = vadd.f32 %v3436, %v3763
    %v3765 = vpop.f32.mrf.mxu0
    %v3766 = vadd.f32 %v3436, %v3765
    %3767 = vmatmul.bf16.gmra.mxu0 %v3424
    %v3768 = vpop.f32.mrf.mxu0
    %v3769 = vadd.f32 %v3436, %v3768
    %v3770 = vpop.f32.mrf.mxu0
    %v3771 = vadd.f32 %v3436, %v3770
    %3772 = vmatmul.bf16.gmra.mxu0 %v3425
    %v3773 = vpop.f32.mrf.mxu0
    %v3774 = vadd.f32 %v3436, %v3773
    %v3775 = vpop.f32.mrf.mxu0
    %v3776 = vadd.f32 %v3436, %v3775
    %3777 = vmatmul.bf16.gmra.mxu0 %v3426
    %v3778 = vpop.f32.mrf.mxu0
    %v3779 = vadd.f32 %v3436, %v3778
    %v3780 = vpop.f32.mrf.mxu0
    %v3781 = vadd.f32 %v3436, %v3780
    %3782 = vmatmul.bf16.gmra.mxu0 %v3427
    %v3783 = vpop.f32.mrf.mxu0
    %v3784 = vadd.f32 %v3436, %v3783
    %v3785 = vpop.f32.mrf.mxu0
    %v3786 = vadd.f32 %v3436, %v3785
    %3787 = vmatmul.bf16.gmra.mxu0 %v3428
    %v3788 = vpop.f32.mrf.mxu0
    %v3789 = vadd.f32 %v3436, %v3788
    %v3790 = vpop.f32.mrf.mxu0
    %v3791 = vadd.f32 %v3436, %v3790
    %3792 = vmatmul.bf16.gmra.mxu0 %v3429
    %v3793 = vpop.f32.mrf.mxu0
    %v3794 = vadd.f32 %v3436, %v3793
    %v3795 = vpop.f32.mrf.mxu0
    %v3796 = vadd.f32 %v3436, %v3795
    %3797 = vmatmul.bf16.gmra.mxu0 %v3430
    %v3798 = vpop.f32.mrf.mxu0
    %v3799 = vadd.f32 %v3436, %v3798
    %v3800 = vpop.f32.mrf.mxu0
    %v3801 = vadd.f32 %v3436, %v3800
    %3802 = vmatmul.bf16.gmra.mxu0 %v3431
    %v3803 = vpop.f32.mrf.mxu0
    %v3804 = vadd.f32 %v3436, %v3803
    %v3805 = vpop.f32.mrf.mxu0
    %v3806 = vadd.f32 %v3436, %v3805
    %3807 = vmatmul.bf16.gmra.mxu0 %v3432
    %v3808 = vpop.f32.mrf.mxu0
    %v3809 = vadd.f32 %v3436, %v3808
    %v3810 = vpop.f32.mrf.mxu0
    %v3811 = vadd.f32 %v3436, %v3810
    %3812 = vmatmul.bf16.gmra.mxu0 %v3433
    %v3813 = vpop.f32.mrf.mxu0
    %v3814 = vadd.f32 %v3436, %v3813
    %v3815 = vpop.f32.mrf.mxu0
    %v3816 = vadd.f32 %v3436, %v3815
    %3817 = vmatmul.bf16.gmra.mxu0 %v3434
    %v3818 = vpop.f32.mrf.mxu0
    %v3819 = vadd.f32 %v3436, %v3818
    %v3820 = vpop.f32.mrf.mxu0
    %v3821 = vadd.f32 %v3436, %v3820
    %3822 = vdwg.mxu0
    %3823 = vmatpush.bf16.msra.mxu0 %v3569
    %3824 = vmatpush.bf16.msra.mxu0 %v3565
    %3825 = vmatpush.bf16.msra.mxu0 %v3561
    %3826 = vmatpush.bf16.msra.mxu0 %v3557
    %3827 = vmatpush.bf16.msra.mxu0 %v3553
    %3828 = vmatpush.bf16.msra.mxu0 %v3549
    %3829 = vmatpush.bf16.msra.mxu0 %v3545
    %3830 = vmatpush.bf16.msra.mxu0 %v3541
    %3831 = vmatmul.bf16.gmra.mxu0 %v3393
    %v3832 = vpop.f32.mrf.mxu0
    %v3833 = vadd.f32 %v3437, %v3832
    %v3834 = vpop.f32.mrf.mxu0
    %v3835 = vadd.f32 %v3437, %v3834
    %3836 = vmatmul.bf16.gmra.mxu0 %v3394
    %v3837 = vpop.f32.mrf.mxu0
    %v3838 = vadd.f32 %v3437, %v3837
    %v3839 = vpop.f32.mrf.mxu0
    %v3840 = vadd.f32 %v3437, %v3839
    %3841 = vmatmul.bf16.gmra.mxu0 %v3395
    %v3842 = vpop.f32.mrf.mxu0
    %v3843 = vadd.f32 %v3437, %v3842
    %v3844 = vpop.f32.mrf.mxu0
    %v3845 = vadd.f32 %v3437, %v3844
    %3846 = vmatmul.bf16.gmra.mxu0 %v3396
    %v3847 = vpop.f32.mrf.mxu0
    %v3848 = vadd.f32 %v3437, %v3847
    %v3849 = vpop.f32.mrf.mxu0
    %v3850 = vadd.f32 %v3437, %v3849
    %3851 = vmatmul.bf16.gmra.mxu0 %v3397
    %v3852 = vpop.f32.mrf.mxu0
    %v3853 = vadd.f32 %v3437, %v3852
    %v3854 = vpop.f32.mrf.mxu0
    %v3855 = vadd.f32 %v3437, %v3854
    %3856 = vmatmul.bf16.gmra.mxu0 %v3398
    %v3857 = vpop.f32.mrf.mxu0
    %v3858 = vadd.f32 %v3437, %v3857
    %v3859 = vpop.f32.mrf.mxu0
    %v3860 = vadd.f32 %v3437, %v3859
    %3861 = vmatmul.bf16.gmra.mxu0 %v3399
    %v3862 = vpop.f32.mrf.mxu0
    %v3863 = vadd.f32 %v3437, %v3862
    %v3864 = vpop.f32.mrf.mxu0
    %v3865 = vadd.f32 %v3437, %v3864
    %3866 = vmatmul.bf16.gmra.mxu0 %v3400
    %v3867 = vpop.f32.mrf.mxu0
    %v3868 = vadd.f32 %v3437, %v3867
    %v3869 = vpop.f32.mrf.mxu0
    %v3870 = vadd.f32 %v3437, %v3869
    %3871 = vmatmul.bf16.gmra.mxu0 %v3401
    %v3872 = vpop.f32.mrf.mxu0
    %v3873 = vadd.f32 %v3437, %v3872
    %v3874 = vpop.f32.mrf.mxu0
    %v3875 = vadd.f32 %v3437, %v3874
    %3876 = vmatmul.bf16.gmra.mxu0 %v3402
    %v3877 = vpop.f32.mrf.mxu0
    %v3878 = vadd.f32 %v3437, %v3877
    %v3879 = vpop.f32.mrf.mxu0
    %v3880 = vadd.f32 %v3437, %v3879
    %3881 = vmatmul.bf16.gmra.mxu0 %v3403
    %v3882 = vpop.f32.mrf.mxu0
    %v3883 = vadd.f32 %v3437, %v3882
    %v3884 = vpop.f32.mrf.mxu0
    %v3885 = vadd.f32 %v3437, %v3884
    %3886 = vmatmul.bf16.gmra.mxu0 %v3404
    %v3887 = vpop.f32.mrf.mxu0
    %v3888 = vadd.f32 %v3437, %v3887
    %v3889 = vpop.f32.mrf.mxu0
    %v3890 = vadd.f32 %v3437, %v3889
    %3891 = vmatmul.bf16.gmra.mxu0 %v3405
    %v3892 = vpop.f32.mrf.mxu0
    %v3893 = vadd.f32 %v3437, %v3892
    %v3894 = vpop.f32.mrf.mxu0
    %v3895 = vadd.f32 %v3437, %v3894
    %3896 = vmatmul.bf16.gmra.mxu0 %v3406
    %v3897 = vpop.f32.mrf.mxu0
    %v3898 = vadd.f32 %v3437, %v3897
    %v3899 = vpop.f32.mrf.mxu0
    %v3900 = vadd.f32 %v3437, %v3899
    %3901 = vmatmul.bf16.gmra.mxu0 %v3407
    %v3902 = vpop.f32.mrf.mxu0
    %v3903 = vadd.f32 %v3437, %v3902
    %v3904 = vpop.f32.mrf.mxu0
    %v3905 = vadd.f32 %v3437, %v3904
    %3906 = vmatmul.bf16.gmra.mxu0 %v3408
    %v3907 = vpop.f32.mrf.mxu0
    %v3908 = vadd.f32 %v3437, %v3907
    %v3909 = vpop.f32.mrf.mxu0
    %v3910 = vadd.f32 %v3437, %v3909
    %3911 = vmatmul.bf16.gmra.mxu0 %v3409
    %v3912 = vpop.f32.mrf.mxu0
    %v3913 = vadd.f32 %v3437, %v3912
    %v3914 = vpop.f32.mrf.mxu0
    %v3915 = vadd.f32 %v3437, %v3914
    %3916 = vmatmul.bf16.gmra.mxu0 %v3410
    %v3917 = vpop.f32.mrf.mxu0
    %v3918 = vadd.f32 %v3437, %v3917
    %v3919 = vpop.f32.mrf.mxu0
    %v3920 = vadd.f32 %v3437, %v3919
    %3921 = vmatmul.bf16.gmra.mxu0 %v3411
    %v3922 = vpop.f32.mrf.mxu0
    %v3923 = vadd.f32 %v3437, %v3922
    %v3924 = vpop.f32.mrf.mxu0
    %v3925 = vadd.f32 %v3437, %v3924
    %3926 = vmatmul.bf16.gmra.mxu0 %v3412
    %v3927 = vpop.f32.mrf.mxu0
    %v3928 = vadd.f32 %v3437, %v3927
    %v3929 = vpop.f32.mrf.mxu0
    %v3930 = vadd.f32 %v3437, %v3929
    %3931 = vmatmul.bf16.gmra.mxu0 %v3413
    %v3932 = vpop.f32.mrf.mxu0
    %v3933 = vadd.f32 %v3437, %v3932
    %v3934 = vpop.f32.mrf.mxu0
    %v3935 = vadd.f32 %v3437, %v3934
    %3936 = vmatmul.bf16.gmra.mxu0 %v3414
    %v3937 = vpop.f32.mrf.mxu0
    %v3938 = vadd.f32 %v3437, %v3937
    %v3939 = vpop.f32.mrf.mxu0
    %v3940 = vadd.f32 %v3437, %v3939
    %3941 = vmatmul.bf16.gmra.mxu0 %v3415
    %v3942 = vpop.f32.mrf.mxu0
    %v3943 = vadd.f32 %v3437, %v3942
    %v3944 = vpop.f32.mrf.mxu0
    %v3945 = vadd.f32 %v3437, %v3944
    %3946 = vmatmul.bf16.gmra.mxu0 %v3416
    %v3947 = vpop.f32.mrf.mxu0
    %v3948 = vadd.f32 %v3437, %v3947
    %v3949 = vpop.f32.mrf.mxu0
    %v3950 = vadd.f32 %v3437, %v3949
    %3951 = vmatmul.bf16.gmra.mxu0 %v3417
    %v3952 = vpop.f32.mrf.mxu0
    %v3953 = vadd.f32 %v3437, %v3952
    %v3954 = vpop.f32.mrf.mxu0
    %v3955 = vadd.f32 %v3437, %v3954
    %3956 = vmatmul.bf16.gmra.mxu0 %v3418
    %v3957 = vpop.f32.mrf.mxu0
    %v3958 = vadd.f32 %v3437, %v3957
    %v3959 = vpop.f32.mrf.mxu0
    %v3960 = vadd.f32 %v3437, %v3959
    %3961 = vmatmul.bf16.gmra.mxu0 %v3419
    %v3962 = vpop.f32.mrf.mxu0
    %v3963 = vadd.f32 %v3437, %v3962
    %v3964 = vpop.f32.mrf.mxu0
    %v3965 = vadd.f32 %v3437, %v3964
    %3966 = vmatmul.bf16.gmra.mxu0 %v3420
    %v3967 = vpop.f32.mrf.mxu0
    %v3968 = vadd.f32 %v3437, %v3967
    %v3969 = vpop.f32.mrf.mxu0
    %v3970 = vadd.f32 %v3437, %v3969
    %3971 = vmatmul.bf16.gmra.mxu0 %v3421
    %v3972 = vpop.f32.mrf.mxu0
    %v3973 = vadd.f32 %v3437, %v3972
    %v3974 = vpop.f32.mrf.mxu0
    %v3975 = vadd.f32 %v3437, %v3974
    %3976 = vmatmul.bf16.gmra.mxu0 %v3422
    %v3977 = vpop.f32.mrf.mxu0
    %v3978 = vadd.f32 %v3437, %v3977
    %v3979 = vpop.f32.mrf.mxu0
    %v3980 = vadd.f32 %v3437, %v3979
    %3981 = vmatmul.bf16.gmra.mxu0 %v3423
    %v3982 = vpop.f32.mrf.mxu0
    %v3983 = vadd.f32 %v3437, %v3982
    %v3984 = vpop.f32.mrf.mxu0
    %v3985 = vadd.f32 %v3437, %v3984
    %3986 = vmatmul.bf16.gmra.mxu0 %v3424
    %v3987 = vpop.f32.mrf.mxu0
    %v3988 = vadd.f32 %v3437, %v3987
    %v3989 = vpop.f32.mrf.mxu0
    %v3990 = vadd.f32 %v3437, %v3989
    %3991 = vmatmul.bf16.gmra.mxu0 %v3425
    %v3992 = vpop.f32.mrf.mxu0
    %v3993 = vadd.f32 %v3437, %v3992
    %v3994 = vpop.f32.mrf.mxu0
    %v3995 = vadd.f32 %v3437, %v3994
    %3996 = vmatmul.bf16.gmra.mxu0 %v3426
    %v3997 = vpop.f32.mrf.mxu0
    %v3998 = vadd.f32 %v3437, %v3997
    %v3999 = vpop.f32.mrf.mxu0
    %v4000 = vadd.f32 %v3437, %v3999
    %4001 = vmatmul.bf16.gmra.mxu0 %v3427
    %v4002 = vpop.f32.mrf.mxu0
    %v4003 = vadd.f32 %v3437, %v4002
    %v4004 = vpop.f32.mrf.mxu0
    %v4005 = vadd.f32 %v3437, %v4004
    %4006 = vmatmul.bf16.gmra.mxu0 %v3428
    %v4007 = vpop.f32.mrf.mxu0
    %v4008 = vadd.f32 %v3437, %v4007
    %v4009 = vpop.f32.mrf.mxu0
    %v4010 = vadd.f32 %v3437, %v4009
    %4011 = vmatmul.bf16.gmra.mxu0 %v3429
    %v4012 = vpop.f32.mrf.mxu0
    %v4013 = vadd.f32 %v3437, %v4012
    %v4014 = vpop.f32.mrf.mxu0
    %v4015 = vadd.f32 %v3437, %v4014
    %4016 = vmatmul.bf16.gmra.mxu0 %v3430
    %v4017 = vpop.f32.mrf.mxu0
    %v4018 = vadd.f32 %v3437, %v4017
    %v4019 = vpop.f32.mrf.mxu0
    %v4020 = vadd.f32 %v3437, %v4019
    %4021 = vmatmul.bf16.gmra.mxu0 %v3431
    %v4022 = vpop.f32.mrf.mxu0
    %v4023 = vadd.f32 %v3437, %v4022
    %v4024 = vpop.f32.mrf.mxu0
    %v4025 = vadd.f32 %v3437, %v4024
    %4026 = vmatmul.bf16.gmra.mxu0 %v3432
    %v4027 = vpop.f32.mrf.mxu0
    %v4028 = vadd.f32 %v3437, %v4027
    %v4029 = vpop.f32.mrf.mxu0
    %v4030 = vadd.f32 %v3437, %v4029
    %4031 = vmatmul.bf16.gmra.mxu0 %v3433
    %v4032 = vpop.f32.mrf.mxu0
    %v4033 = vadd.f32 %v3437, %v4032
    %v4034 = vpop.f32.mrf.mxu0
    %v4035 = vadd.f32 %v3437, %v4034
    %4036 = vmatmul.bf16.gmra.mxu0 %v3434
    %v4037 = vpop.f32.mrf.mxu0
    %v4038 = vadd.f32 %v3437, %v4037
    %v4039 = vpop.f32.mrf.mxu0
    %v4040 = vadd.f32 %v3437, %v4039
    %4041 = vdwg.mxu0
    %4042 = vmatpush.bf16.msra.mxu0 %v3570
    %4043 = vmatpush.bf16.msra.mxu0 %v3566
    %4044 = vmatpush.bf16.msra.mxu0 %v3562
    %4045 = vmatpush.bf16.msra.mxu0 %v3558
    %4046 = vmatpush.bf16.msra.mxu0 %v3554
    %4047 = vmatpush.bf16.msra.mxu0 %v3550
    %4048 = vmatpush.bf16.msra.mxu0 %v3546
    %4049 = vmatpush.bf16.msra.mxu0 %v3542
    %4050 = vmatmul.bf16.gmra.mxu0 %v3393
    %v4051 = vpop.f32.mrf.mxu0
    %v4052 = vadd.f32 %v3438, %v4051
    %v4053 = vpop.f32.mrf.mxu0
    %v4054 = vadd.f32 %v3438, %v4053
    %4055 = vmatmul.bf16.gmra.mxu0 %v3394
    %v4056 = vpop.f32.mrf.mxu0
    %v4057 = vadd.f32 %v3438, %v4056
    %v4058 = vpop.f32.mrf.mxu0
    %v4059 = vadd.f32 %v3438, %v4058
    %4060 = vmatmul.bf16.gmra.mxu0 %v3395
    %v4061 = vpop.f32.mrf.mxu0
    %v4062 = vadd.f32 %v3438, %v4061
    %v4063 = vpop.f32.mrf.mxu0
    %v4064 = vadd.f32 %v3438, %v4063
    %4065 = vmatmul.bf16.gmra.mxu0 %v3396
    %v4066 = vpop.f32.mrf.mxu0
    %v4067 = vadd.f32 %v3438, %v4066
    %v4068 = vpop.f32.mrf.mxu0
    %v4069 = vadd.f32 %v3438, %v4068
    %4070 = vmatmul.bf16.gmra.mxu0 %v3397
    %v4071 = vpop.f32.mrf.mxu0
    %v4072 = vadd.f32 %v3438, %v4071
    %v4073 = vpop.f32.mrf.mxu0
    %v4074 = vadd.f32 %v3438, %v4073
    %4075 = vmatmul.bf16.gmra.mxu0 %v3398
    %v4076 = vpop.f32.mrf.mxu0
    %v4077 = vadd.f32 %v3438, %v4076
    %v4078 = vpop.f32.mrf.mxu0
    %v4079 = vadd.f32 %v3438, %v4078
    %4080 = vmatmul.bf16.gmra.mxu0 %v3399
    %v4081 = vpop.f32.mrf.mxu0
    %v4082 = vadd.f32 %v3438, %v4081
    %v4083 = vpop.f32.mrf.mxu0
    %v4084 = vadd.f32 %v3438, %v4083
    %4085 = vmatmul.bf16.gmra.mxu0 %v3400
    %v4086 = vpop.f32.mrf.mxu0
    %v4087 = vadd.f32 %v3438, %v4086
    %v4088 = vpop.f32.mrf.mxu0
    %v4089 = vadd.f32 %v3438, %v4088
    %4090 = vmatmul.bf16.gmra.mxu0 %v3401
    %v4091 = vpop.f32.mrf.mxu0
    %v4092 = vadd.f32 %v3438, %v4091
    %v4093 = vpop.f32.mrf.mxu0
    %v4094 = vadd.f32 %v3438, %v4093
    %4095 = vmatmul.bf16.gmra.mxu0 %v3402
    %v4096 = vpop.f32.mrf.mxu0
    %v4097 = vadd.f32 %v3438, %v4096
    %v4098 = vpop.f32.mrf.mxu0
    %v4099 = vadd.f32 %v3438, %v4098
    %4100 = vmatmul.bf16.gmra.mxu0 %v3403
    %v4101 = vpop.f32.mrf.mxu0
    %v4102 = vadd.f32 %v3438, %v4101
    %v4103 = vpop.f32.mrf.mxu0
    %v4104 = vadd.f32 %v3438, %v4103
    %4105 = vmatmul.bf16.gmra.mxu0 %v3404
    %v4106 = vpop.f32.mrf.mxu0
    %v4107 = vadd.f32 %v3438, %v4106
    %v4108 = vpop.f32.mrf.mxu0
    %v4109 = vadd.f32 %v3438, %v4108
    %4110 = vmatmul.bf16.gmra.mxu0 %v3405
    %v4111 = vpop.f32.mrf.mxu0
    %v4112 = vadd.f32 %v3438, %v4111
    %v4113 = vpop.f32.mrf.mxu0
    %v4114 = vadd.f32 %v3438, %v4113
    %4115 = vmatmul.bf16.gmra.mxu0 %v3406
    %v4116 = vpop.f32.mrf.mxu0
    %v4117 = vadd.f32 %v3438, %v4116
    %v4118 = vpop.f32.mrf.mxu0
    %v4119 = vadd.f32 %v3438, %v4118
    %4120 = vmatmul.bf16.gmra.mxu0 %v3407
    %v4121 = vpop.f32.mrf.mxu0
    %v4122 = vadd.f32 %v3438, %v4121
    %v4123 = vpop.f32.mrf.mxu0
    %v4124 = vadd.f32 %v3438, %v4123
    %4125 = vmatmul.bf16.gmra.mxu0 %v3408
    %v4126 = vpop.f32.mrf.mxu0
    %v4127 = vadd.f32 %v3438, %v4126
    %v4128 = vpop.f32.mrf.mxu0
    %v4129 = vadd.f32 %v3438, %v4128
    %4130 = vmatmul.bf16.gmra.mxu0 %v3409
    %v4131 = vpop.f32.mrf.mxu0
    %v4132 = vadd.f32 %v3438, %v4131
    %v4133 = vpop.f32.mrf.mxu0
    %v4134 = vadd.f32 %v3438, %v4133
    %4135 = vmatmul.bf16.gmra.mxu0 %v3410
    %v4136 = vpop.f32.mrf.mxu0
    %v4137 = vadd.f32 %v3438, %v4136
    %v4138 = vpop.f32.mrf.mxu0
    %v4139 = vadd.f32 %v3438, %v4138
    %4140 = vmatmul.bf16.gmra.mxu0 %v3411
    %v4141 = vpop.f32.mrf.mxu0
    %v4142 = vadd.f32 %v3438, %v4141
    %v4143 = vpop.f32.mrf.mxu0
    %v4144 = vadd.f32 %v3438, %v4143
    %4145 = vmatmul.bf16.gmra.mxu0 %v3412
    %v4146 = vpop.f32.mrf.mxu0
    %v4147 = vadd.f32 %v3438, %v4146
    %v4148 = vpop.f32.mrf.mxu0
    %v4149 = vadd.f32 %v3438, %v4148
    %4150 = vmatmul.bf16.gmra.mxu0 %v3413
    %v4151 = vpop.f32.mrf.mxu0
    %v4152 = vadd.f32 %v3438, %v4151
    %v4153 = vpop.f32.mrf.mxu0
    %v4154 = vadd.f32 %v3438, %v4153
    %4155 = vmatmul.bf16.gmra.mxu0 %v3414
    %v4156 = vpop.f32.mrf.mxu0
    %v4157 = vadd.f32 %v3438, %v4156
    %v4158 = vpop.f32.mrf.mxu0
    %v4159 = vadd.f32 %v3438, %v4158
    %4160 = vmatmul.bf16.gmra.mxu0 %v3415
    %v4161 = vpop.f32.mrf.mxu0
    %v4162 = vadd.f32 %v3438, %v4161
    %v4163 = vpop.f32.mrf.mxu0
    %v4164 = vadd.f32 %v3438, %v4163
    %4165 = vmatmul.bf16.gmra.mxu0 %v3416
    %v4166 = vpop.f32.mrf.mxu0
    %v4167 = vadd.f32 %v3438, %v4166
    %v4168 = vpop.f32.mrf.mxu0
    %v4169 = vadd.f32 %v3438, %v4168
    %4170 = vmatmul.bf16.gmra.mxu0 %v3417
    %v4171 = vpop.f32.mrf.mxu0
    %v4172 = vadd.f32 %v3438, %v4171
    %v4173 = vpop.f32.mrf.mxu0
    %v4174 = vadd.f32 %v3438, %v4173
    %4175 = vmatmul.bf16.gmra.mxu0 %v3418
    %v4176 = vpop.f32.mrf.mxu0
    %v4177 = vadd.f32 %v3438, %v4176
    %v4178 = vpop.f32.mrf.mxu0
    %v4179 = vadd.f32 %v3438, %v4178
    %4180 = vmatmul.bf16.gmra.mxu0 %v3419
    %v4181 = vpop.f32.mrf.mxu0
    %v4182 = vadd.f32 %v3438, %v4181
    %v4183 = vpop.f32.mrf.mxu0
    %v4184 = vadd.f32 %v3438, %v4183
    %4185 = vmatmul.bf16.gmra.mxu0 %v3420
    %v4186 = vpop.f32.mrf.mxu0
    %v4187 = vadd.f32 %v3438, %v4186
    %v4188 = vpop.f32.mrf.mxu0
    %v4189 = vadd.f32 %v3438, %v4188
    %4190 = vmatmul.bf16.gmra.mxu0 %v3421
    %v4191 = vpop.f32.mrf.mxu0
    %v4192 = vadd.f32 %v3438, %v4191
    %v4193 = vpop.f32.mrf.mxu0
    %v4194 = vadd.f32 %v3438, %v4193
    %4195 = vmatmul.bf16.gmra.mxu0 %v3422
    %v4196 = vpop.f32.mrf.mxu0
    %v4197 = vadd.f32 %v3438, %v4196
    %v4198 = vpop.f32.mrf.mxu0
    %v4199 = vadd.f32 %v3438, %v4198
    %4200 = vmatmul.bf16.gmra.mxu0 %v3423
    %v4201 = vpop.f32.mrf.mxu0
    %v4202 = vadd.f32 %v3438, %v4201
    %v4203 = vpop.f32.mrf.mxu0
    %v4204 = vadd.f32 %v3438, %v4203
    %4205 = vmatmul.bf16.gmra.mxu0 %v3424
    %v4206 = vpop.f32.mrf.mxu0
    %v4207 = vadd.f32 %v3438, %v4206
    %v4208 = vpop.f32.mrf.mxu0
    %v4209 = vadd.f32 %v3438, %v4208
    %4210 = vmatmul.bf16.gmra.mxu0 %v3425
    %v4211 = vpop.f32.mrf.mxu0
    %v4212 = vadd.f32 %v3438, %v4211
    %v4213 = vpop.f32.mrf.mxu0
    %v4214 = vadd.f32 %v3438, %v4213
    %4215 = vmatmul.bf16.gmra.mxu0 %v3426
    %v4216 = vpop.f32.mrf.mxu0
    %v4217 = vadd.f32 %v3438, %v4216
    %v4218 = vpop.f32.mrf.mxu0
    %v4219 = vadd.f32 %v3438, %v4218
    %4220 = vmatmul.bf16.gmra.mxu0 %v3427
    %v4221 = vpop.f32.mrf.mxu0
    %v4222 = vadd.f32 %v3438, %v4221
    %v4223 = vpop.f32.mrf.mxu0
    %v4224 = vadd.f32 %v3438, %v4223
    %4225 = vmatmul.bf16.gmra.mxu0 %v3428
    %v4226 = vpop.f32.mrf.mxu0
    %v4227 = vadd.f32 %v3438, %v4226
    %v4228 = vpop.f32.mrf.mxu0
    %v4229 = vadd.f32 %v3438, %v4228
    %4230 = vmatmul.bf16.gmra.mxu0 %v3429
    %v4231 = vpop.f32.mrf.mxu0
    %v4232 = vadd.f32 %v3438, %v4231
    %v4233 = vpop.f32.mrf.mxu0
    %v4234 = vadd.f32 %v3438, %v4233
    %4235 = vmatmul.bf16.gmra.mxu0 %v3430
    %v4236 = vpop.f32.mrf.mxu0
    %v4237 = vadd.f32 %v3438, %v4236
    %v4238 = vpop.f32.mrf.mxu0
    %v4239 = vadd.f32 %v3438, %v4238
    %4240 = vmatmul.bf16.gmra.mxu0 %v3431
    %v4241 = vpop.f32.mrf.mxu0
    %v4242 = vadd.f32 %v3438, %v4241
    %v4243 = vpop.f32.mrf.mxu0
    %v4244 = vadd.f32 %v3438, %v4243
    %4245 = vmatmul.bf16.gmra.mxu0 %v3432
    %v4246 = vpop.f32.mrf.mxu0
    %v4247 = vadd.f32 %v3438, %v4246
    %v4248 = vpop.f32.mrf.mxu0
    %v4249 = vadd.f32 %v3438, %v4248
    %4250 = vmatmul.bf16.gmra.mxu0 %v3433
    %v4251 = vpop.f32.mrf.mxu0
    %v4252 = vadd.f32 %v3438, %v4251
    %v4253 = vpop.f32.mrf.mxu0
    %v4254 = vadd.f32 %v3438, %v4253
    %4255 = vmatmul.bf16.gmra.mxu0 %v3434
    %v4256 = vpop.f32.mrf.mxu0
    %v4257 = vadd.f32 %v3438, %v4256
    %v4258 = vpop.f32.mrf.mxu0
    %v4259 = vadd.f32 %v3438, %v4258
    %4260 = vdwg.mxu0
    %4261 = vmatpush.bf16.msra.mxu0 %v3571
    %4262 = vmatpush.bf16.msra.mxu0 %v3567
    %4263 = vmatpush.bf16.msra.mxu0 %v3563
    %4264 = vmatpush.bf16.msra.mxu0 %v3559
    %4265 = vmatpush.bf16.msra.mxu0 %v3555
    %4266 = vmatpush.bf16.msra.mxu0 %v3551
    %4267 = vmatpush.bf16.msra.mxu0 %v3547
    %4268 = vmatpush.bf16.msra.mxu0 %v3543
    %4269 = vmatmul.bf16.gmra.mxu0 %v3393
    %v4270 = vpop.f32.mrf.mxu0
    %v4271 = vadd.f32 %v3439, %v4270
    %v4272 = vpop.f32.mrf.mxu0
    %v4273 = vadd.f32 %v3439, %v4272
    %4274 = vmatmul.bf16.gmra.mxu0 %v3394
    %v4275 = vpop.f32.mrf.mxu0
    %v4276 = vadd.f32 %v3439, %v4275
    %v4277 = vpop.f32.mrf.mxu0
    %v4278 = vadd.f32 %v3439, %v4277
    %4279 = vmatmul.bf16.gmra.mxu0 %v3395
    %v4280 = vpop.f32.mrf.mxu0
    %v4281 = vadd.f32 %v3439, %v4280
    %v4282 = vpop.f32.mrf.mxu0
    %v4283 = vadd.f32 %v3439, %v4282
    %4284 = vmatmul.bf16.gmra.mxu0 %v3396
    %v4285 = vpop.f32.mrf.mxu0
    %v4286 = vadd.f32 %v3439, %v4285
    %v4287 = vpop.f32.mrf.mxu0
    %v4288 = vadd.f32 %v3439, %v4287
    %4289 = vmatmul.bf16.gmra.mxu0 %v3397
    %v4290 = vpop.f32.mrf.mxu0
    %v4291 = vadd.f32 %v3439, %v4290
    %v4292 = vpop.f32.mrf.mxu0
    %v4293 = vadd.f32 %v3439, %v4292
    %4294 = vmatmul.bf16.gmra.mxu0 %v3398
    %v4295 = vpop.f32.mrf.mxu0
    %v4296 = vadd.f32 %v3439, %v4295
    %v4297 = vpop.f32.mrf.mxu0
    %v4298 = vadd.f32 %v3439, %v4297
    %4299 = vmatmul.bf16.gmra.mxu0 %v3399
    %v4300 = vpop.f32.mrf.mxu0
    %v4301 = vadd.f32 %v3439, %v4300
    %v4302 = vpop.f32.mrf.mxu0
    %v4303 = vadd.f32 %v3439, %v4302
    %4304 = vmatmul.bf16.gmra.mxu0 %v3400
    %v4305 = vpop.f32.mrf.mxu0
    %v4306 = vadd.f32 %v3439, %v4305
    %v4307 = vpop.f32.mrf.mxu0
    %v4308 = vadd.f32 %v3439, %v4307
    %4309 = vmatmul.bf16.gmra.mxu0 %v3401
    %v4310 = vpop.f32.mrf.mxu0
    %v4311 = vadd.f32 %v3439, %v4310
    %v4312 = vpop.f32.mrf.mxu0
    %v4313 = vadd.f32 %v3439, %v4312
    %4314 = vmatmul.bf16.gmra.mxu0 %v3402
    %v4315 = vpop.f32.mrf.mxu0
    %v4316 = vadd.f32 %v3439, %v4315
    %v4317 = vpop.f32.mrf.mxu0
    %v4318 = vadd.f32 %v3439, %v4317
    %4319 = vmatmul.bf16.gmra.mxu0 %v3403
    %v4320 = vpop.f32.mrf.mxu0
    %v4321 = vadd.f32 %v3439, %v4320
    %v4322 = vpop.f32.mrf.mxu0
    %v4323 = vadd.f32 %v3439, %v4322
    %4324 = vmatmul.bf16.gmra.mxu0 %v3404
    %v4325 = vpop.f32.mrf.mxu0
    %v4326 = vadd.f32 %v3439, %v4325
    %v4327 = vpop.f32.mrf.mxu0
    %v4328 = vadd.f32 %v3439, %v4327
    %4329 = vmatmul.bf16.gmra.mxu0 %v3405
    %v4330 = vpop.f32.mrf.mxu0
    %v4331 = vadd.f32 %v3439, %v4330
    %v4332 = vpop.f32.mrf.mxu0
    %v4333 = vadd.f32 %v3439, %v4332
    %4334 = vmatmul.bf16.gmra.mxu0 %v3406
    %v4335 = vpop.f32.mrf.mxu0
    %v4336 = vadd.f32 %v3439, %v4335
    %v4337 = vpop.f32.mrf.mxu0
    %v4338 = vadd.f32 %v3439, %v4337
    %4339 = vmatmul.bf16.gmra.mxu0 %v3407
    %v4340 = vpop.f32.mrf.mxu0
    %v4341 = vadd.f32 %v3439, %v4340
    %v4342 = vpop.f32.mrf.mxu0
    %v4343 = vadd.f32 %v3439, %v4342
    %4344 = vmatmul.bf16.gmra.mxu0 %v3408
    %v4345 = vpop.f32.mrf.mxu0
    %v4346 = vadd.f32 %v3439, %v4345
    %v4347 = vpop.f32.mrf.mxu0
    %v4348 = vadd.f32 %v3439, %v4347
    %4349 = vmatmul.bf16.gmra.mxu0 %v3409
    %v4350 = vpop.f32.mrf.mxu0
    %v4351 = vadd.f32 %v3439, %v4350
    %v4352 = vpop.f32.mrf.mxu0
    %v4353 = vadd.f32 %v3439, %v4352
    %4354 = vmatmul.bf16.gmra.mxu0 %v3410
    %v4355 = vpop.f32.mrf.mxu0
    %v4356 = vadd.f32 %v3439, %v4355
    %v4357 = vpop.f32.mrf.mxu0
    %v4358 = vadd.f32 %v3439, %v4357
    %4359 = vmatmul.bf16.gmra.mxu0 %v3411
    %v4360 = vpop.f32.mrf.mxu0
    %v4361 = vadd.f32 %v3439, %v4360
    %v4362 = vpop.f32.mrf.mxu0
    %v4363 = vadd.f32 %v3439, %v4362
    %4364 = vmatmul.bf16.gmra.mxu0 %v3412
    %v4365 = vpop.f32.mrf.mxu0
    %v4366 = vadd.f32 %v3439, %v4365
    %v4367 = vpop.f32.mrf.mxu0
    %v4368 = vadd.f32 %v3439, %v4367
    %4369 = vmatmul.bf16.gmra.mxu0 %v3413
    %v4370 = vpop.f32.mrf.mxu0
    %v4371 = vadd.f32 %v3439, %v4370
    %v4372 = vpop.f32.mrf.mxu0
    %v4373 = vadd.f32 %v3439, %v4372
    %4374 = vmatmul.bf16.gmra.mxu0 %v3414
    %v4375 = vpop.f32.mrf.mxu0
    %v4376 = vadd.f32 %v3439, %v4375
    %v4377 = vpop.f32.mrf.mxu0
    %v4378 = vadd.f32 %v3439, %v4377
    %4379 = vmatmul.bf16.gmra.mxu0 %v3415
    %v4380 = vpop.f32.mrf.mxu0
    %v4381 = vadd.f32 %v3439, %v4380
    %v4382 = vpop.f32.mrf.mxu0
    %v4383 = vadd.f32 %v3439, %v4382
    %4384 = vmatmul.bf16.gmra.mxu0 %v3416
    %v4385 = vpop.f32.mrf.mxu0
    %v4386 = vadd.f32 %v3439, %v4385
    %v4387 = vpop.f32.mrf.mxu0
    %v4388 = vadd.f32 %v3439, %v4387
    %4389 = vmatmul.bf16.gmra.mxu0 %v3417
    %v4390 = vpop.f32.mrf.mxu0
    %v4391 = vadd.f32 %v3439, %v4390
    %v4392 = vpop.f32.mrf.mxu0
    %v4393 = vadd.f32 %v3439, %v4392
    %4394 = vmatmul.bf16.gmra.mxu0 %v3418
    %v4395 = vpop.f32.mrf.mxu0
    %v4396 = vadd.f32 %v3439, %v4395
    %v4397 = vpop.f32.mrf.mxu0
    %v4398 = vadd.f32 %v3439, %v4397
    %4399 = vmatmul.bf16.gmra.mxu0 %v3419
    %v4400 = vpop.f32.mrf.mxu0
    %v4401 = vadd.f32 %v3439, %v4400
    %v4402 = vpop.f32.mrf.mxu0
    %v4403 = vadd.f32 %v3439, %v4402
    %4404 = vmatmul.bf16.gmra.mxu0 %v3420
    %v4405 = vpop.f32.mrf.mxu0
    %v4406 = vadd.f32 %v3439, %v4405
    %v4407 = vpop.f32.mrf.mxu0
    %v4408 = vadd.f32 %v3439, %v4407
    %4409 = vmatmul.bf16.gmra.mxu0 %v3421
    %v4410 = vpop.f32.mrf.mxu0
    %v4411 = vadd.f32 %v3439, %v4410
    %v4412 = vpop.f32.mrf.mxu0
    %v4413 = vadd.f32 %v3439, %v4412
    %4414 = vmatmul.bf16.gmra.mxu0 %v3422
    %v4415 = vpop.f32.mrf.mxu0
    %v4416 = vadd.f32 %v3439, %v4415
    %v4417 = vpop.f32.mrf.mxu0
    %v4418 = vadd.f32 %v3439, %v4417
    %4419 = vmatmul.bf16.gmra.mxu0 %v3423
    %v4420 = vpop.f32.mrf.mxu0
    %v4421 = vadd.f32 %v3439, %v4420
    %v4422 = vpop.f32.mrf.mxu0
    %v4423 = vadd.f32 %v3439, %v4422
    %4424 = vmatmul.bf16.gmra.mxu0 %v3424
    %v4425 = vpop.f32.mrf.mxu0
    %v4426 = vadd.f32 %v3439, %v4425
    %v4427 = vpop.f32.mrf.mxu0
    %v4428 = vadd.f32 %v3439, %v4427
    %4429 = vmatmul.bf16.gmra.mxu0 %v3425
    %v4430 = vpop.f32.mrf.mxu0
    %v4431 = vadd.f32 %v3439, %v4430
    %v4432 = vpop.f32.mrf.mxu0
    %v4433 = vadd.f32 %v3439, %v4432
    %4434 = vmatmul.bf16.gmra.mxu0 %v3426
    %v4435 = vpop.f32.mrf.mxu0
    %v4436 = vadd.f32 %v3439, %v4435
    %v4437 = vpop.f32.mrf.mxu0
    %v4438 = vadd.f32 %v3439, %v4437
    %4439 = vmatmul.bf16.gmra.mxu0 %v3427
    %v4440 = vpop.f32.mrf.mxu0
    %v4441 = vadd.f32 %v3439, %v4440
    %v4442 = vpop.f32.mrf.mxu0
    %v4443 = vadd.f32 %v3439, %v4442
    %4444 = vmatmul.bf16.gmra.mxu0 %v3428
    %v4445 = vpop.f32.mrf.mxu0
    %v4446 = vadd.f32 %v3439, %v4445
    %v4447 = vpop.f32.mrf.mxu0
    %v4448 = vadd.f32 %v3439, %v4447
    %4449 = vmatmul.bf16.gmra.mxu0 %v3429
    %v4450 = vpop.f32.mrf.mxu0
    %v4451 = vadd.f32 %v3439, %v4450
    %v4452 = vpop.f32.mrf.mxu0
    %v4453 = vadd.f32 %v3439, %v4452
    %4454 = vmatmul.bf16.gmra.mxu0 %v3430
    %v4455 = vpop.f32.mrf.mxu0
    %v4456 = vadd.f32 %v3439, %v4455
    %v4457 = vpop.f32.mrf.mxu0
    %v4458 = vadd.f32 %v3439, %v4457
    %4459 = vmatmul.bf16.gmra.mxu0 %v3431
    %v4460 = vpop.f32.mrf.mxu0
    %v4461 = vadd.f32 %v3439, %v4460
    %v4462 = vpop.f32.mrf.mxu0
    %v4463 = vadd.f32 %v3439, %v4462
    %4464 = vmatmul.bf16.gmra.mxu0 %v3432
    %v4465 = vpop.f32.mrf.mxu0
    %v4466 = vadd.f32 %v3439, %v4465
    %v4467 = vpop.f32.mrf.mxu0
    %v4468 = vadd.f32 %v3439, %v4467
    %4469 = vmatmul.bf16.gmra.mxu0 %v3433
    %v4470 = vpop.f32.mrf.mxu0
    %v4471 = vadd.f32 %v3439, %v4470
    %v4472 = vpop.f32.mrf.mxu0
    %v4473 = vadd.f32 %v3439, %v4472
    %4474 = vmatmul.bf16.gmra.mxu0 %v3434
    %v4475 = vpop.f32.mrf.mxu0
    %v4476 = vadd.f32 %v3439, %v4475
    %v4477 = vpop.f32.mrf.mxu0
    %v4478 = vadd.f32 %v3439, %v4477
    %4479 = vdwg.mxu0
    %v4480 = vmax.f32 %v3614, 0.0
    %v4481 = vmax.f32 %v3833, 0.0
    %v4482 = vmax.f32 %v4052, 0.0
    %v4483 = vmax.f32 %v4271, 0.0
    %v4484 = vmax.f32 %v3616, 0.0
    %v4485 = vmax.f32 %v3835, 0.0
    %v4486 = vmax.f32 %v4054, 0.0
    %v4487 = vmax.f32 %v4273, 0.0
    %v4488 = vmax.f32 %v3619, 0.0
    %v4489 = vmax.f32 %v3838, 0.0
    %v4490 = vmax.f32 %v4057, 0.0
    %v4491 = vmax.f32 %v4276, 0.0
    %v4492 = vmax.f32 %v3621, 0.0
    %v4493 = vmax.f32 %v3840, 0.0
    %v4494 = vmax.f32 %v4059, 0.0
    %v4495 = vmax.f32 %v4278, 0.0
    %v4496 = vmax.f32 %v3624, 0.0
    %v4497 = vmax.f32 %v3843, 0.0
    %v4498 = vmax.f32 %v4062, 0.0
    %v4499 = vmax.f32 %v4281, 0.0
    %v4500 = vmax.f32 %v3626, 0.0
    %v4501 = vmax.f32 %v3845, 0.0
    %v4502 = vmax.f32 %v4064, 0.0
    %v4503 = vmax.f32 %v4283, 0.0
    %v4504 = vmax.f32 %v3629, 0.0
    %v4505 = vmax.f32 %v3848, 0.0
    %v4506 = vmax.f32 %v4067, 0.0
    %v4507 = vmax.f32 %v4286, 0.0
    %v4508 = vmax.f32 %v3631, 0.0
    %v4509 = vmax.f32 %v3850, 0.0
    %v4510 = vmax.f32 %v4069, 0.0
    %v4511 = vmax.f32 %v4288, 0.0
    %v4512 = vmax.f32 %v3634, 0.0
    %v4513 = vmax.f32 %v3853, 0.0
    %v4514 = vmax.f32 %v4072, 0.0
    %v4515 = vmax.f32 %v4291, 0.0
    %v4516 = vmax.f32 %v3636, 0.0
    %v4517 = vmax.f32 %v3855, 0.0
    %v4518 = vmax.f32 %v4074, 0.0
    %v4519 = vmax.f32 %v4293, 0.0
    %v4520 = vmax.f32 %v3639, 0.0
    %v4521 = vmax.f32 %v3858, 0.0
    %v4522 = vmax.f32 %v4077, 0.0
    %v4523 = vmax.f32 %v4296, 0.0
    %v4524 = vmax.f32 %v3641, 0.0
    %v4525 = vmax.f32 %v3860, 0.0
    %v4526 = vmax.f32 %v4079, 0.0
    %v4527 = vmax.f32 %v4298, 0.0
    %v4528 = vmax.f32 %v3644, 0.0
    %v4529 = vmax.f32 %v3863, 0.0
    %v4530 = vmax.f32 %v4082, 0.0
    %v4531 = vmax.f32 %v4301, 0.0
    %v4532 = vmax.f32 %v3646, 0.0
    %v4533 = vmax.f32 %v3865, 0.0
    %v4534 = vmax.f32 %v4084, 0.0
    %v4535 = vmax.f32 %v4303, 0.0
    %v4536 = vmax.f32 %v3649, 0.0
    %v4537 = vmax.f32 %v3868, 0.0
    %v4538 = vmax.f32 %v4087, 0.0
    %v4539 = vmax.f32 %v4306, 0.0
    %v4540 = vmax.f32 %v3651, 0.0
    %v4541 = vmax.f32 %v3870, 0.0
    %v4542 = vmax.f32 %v4089, 0.0
    %v4543 = vmax.f32 %v4308, 0.0
    %v4544 = vmax.f32 %v3654, 0.0
    %v4545 = vmax.f32 %v3873, 0.0
    %v4546 = vmax.f32 %v4092, 0.0
    %v4547 = vmax.f32 %v4311, 0.0
    %v4548 = vmax.f32 %v3656, 0.0
    %v4549 = vmax.f32 %v3875, 0.0
    %v4550 = vmax.f32 %v4094, 0.0
    %v4551 = vmax.f32 %v4313, 0.0
    %v4552 = vmax.f32 %v3659, 0.0
    %v4553 = vmax.f32 %v3878, 0.0
    %v4554 = vmax.f32 %v4097, 0.0
    %v4555 = vmax.f32 %v4316, 0.0
    %v4556 = vmax.f32 %v3661, 0.0
    %v4557 = vmax.f32 %v3880, 0.0
    %v4558 = vmax.f32 %v4099, 0.0
    %v4559 = vmax.f32 %v4318, 0.0
    %v4560 = vmax.f32 %v3664, 0.0
    %v4561 = vmax.f32 %v3883, 0.0
    %v4562 = vmax.f32 %v4102, 0.0
    %v4563 = vmax.f32 %v4321, 0.0
    %v4564 = vmax.f32 %v3666, 0.0
    %v4565 = vmax.f32 %v3885, 0.0
    %v4566 = vmax.f32 %v4104, 0.0
    %v4567 = vmax.f32 %v4323, 0.0
    %v4568 = vmax.f32 %v3669, 0.0
    %v4569 = vmax.f32 %v3888, 0.0
    %v4570 = vmax.f32 %v4107, 0.0
    %v4571 = vmax.f32 %v4326, 0.0
    %v4572 = vmax.f32 %v3671, 0.0
    %v4573 = vmax.f32 %v3890, 0.0
    %v4574 = vmax.f32 %v4109, 0.0
    %v4575 = vmax.f32 %v4328, 0.0
    %v4576 = vmax.f32 %v3674, 0.0
    %v4577 = vmax.f32 %v3893, 0.0
    %v4578 = vmax.f32 %v4112, 0.0
    %v4579 = vmax.f32 %v4331, 0.0
    %v4580 = vmax.f32 %v3676, 0.0
    %v4581 = vmax.f32 %v3895, 0.0
    %v4582 = vmax.f32 %v4114, 0.0
    %v4583 = vmax.f32 %v4333, 0.0
    %v4584 = vmax.f32 %v3679, 0.0
    %v4585 = vmax.f32 %v3898, 0.0
    %v4586 = vmax.f32 %v4117, 0.0
    %v4587 = vmax.f32 %v4336, 0.0
    %v4588 = vmax.f32 %v3681, 0.0
    %v4589 = vmax.f32 %v3900, 0.0
    %v4590 = vmax.f32 %v4119, 0.0
    %v4591 = vmax.f32 %v4338, 0.0
    %v4592 = vmax.f32 %v3684, 0.0
    %v4593 = vmax.f32 %v3903, 0.0
    %v4594 = vmax.f32 %v4122, 0.0
    %v4595 = vmax.f32 %v4341, 0.0
    %v4596 = vmax.f32 %v3686, 0.0
    %v4597 = vmax.f32 %v3905, 0.0
    %v4598 = vmax.f32 %v4124, 0.0
    %v4599 = vmax.f32 %v4343, 0.0
    %v4600 = vmax.f32 %v3689, 0.0
    %v4601 = vmax.f32 %v3908, 0.0
    %v4602 = vmax.f32 %v4127, 0.0
    %v4603 = vmax.f32 %v4346, 0.0
    %v4604 = vmax.f32 %v3691, 0.0
    %v4605 = vmax.f32 %v3910, 0.0
    %v4606 = vmax.f32 %v4129, 0.0
    %v4607 = vmax.f32 %v4348, 0.0
    %v4608 = vmax.f32 %v3694, 0.0
    %v4609 = vmax.f32 %v3913, 0.0
    %v4610 = vmax.f32 %v4132, 0.0
    %v4611 = vmax.f32 %v4351, 0.0
    %v4612 = vmax.f32 %v3696, 0.0
    %v4613 = vmax.f32 %v3915, 0.0
    %v4614 = vmax.f32 %v4134, 0.0
    %v4615 = vmax.f32 %v4353, 0.0
    %v4616 = vmax.f32 %v3699, 0.0
    %v4617 = vmax.f32 %v3918, 0.0
    %v4618 = vmax.f32 %v4137, 0.0
    %v4619 = vmax.f32 %v4356, 0.0
    %v4620 = vmax.f32 %v3701, 0.0
    %v4621 = vmax.f32 %v3920, 0.0
    %v4622 = vmax.f32 %v4139, 0.0
    %v4623 = vmax.f32 %v4358, 0.0
    %v4624 = vmax.f32 %v3704, 0.0
    %v4625 = vmax.f32 %v3923, 0.0
    %v4626 = vmax.f32 %v4142, 0.0
    %v4627 = vmax.f32 %v4361, 0.0
    %v4628 = vmax.f32 %v3706, 0.0
    %v4629 = vmax.f32 %v3925, 0.0
    %v4630 = vmax.f32 %v4144, 0.0
    %v4631 = vmax.f32 %v4363, 0.0
    %v4632 = vmax.f32 %v3709, 0.0
    %v4633 = vmax.f32 %v3928, 0.0
    %v4634 = vmax.f32 %v4147, 0.0
    %v4635 = vmax.f32 %v4366, 0.0
    %v4636 = vmax.f32 %v3711, 0.0
    %v4637 = vmax.f32 %v3930, 0.0
    %v4638 = vmax.f32 %v4149, 0.0
    %v4639 = vmax.f32 %v4368, 0.0
    %v4640 = vmax.f32 %v3714, 0.0
    %v4641 = vmax.f32 %v3933, 0.0
    %v4642 = vmax.f32 %v4152, 0.0
    %v4643 = vmax.f32 %v4371, 0.0
    %v4644 = vmax.f32 %v3716, 0.0
    %v4645 = vmax.f32 %v3935, 0.0
    %v4646 = vmax.f32 %v4154, 0.0
    %v4647 = vmax.f32 %v4373, 0.0
    %v4648 = vmax.f32 %v3719, 0.0
    %v4649 = vmax.f32 %v3938, 0.0
    %v4650 = vmax.f32 %v4157, 0.0
    %v4651 = vmax.f32 %v4376, 0.0
    %v4652 = vmax.f32 %v3721, 0.0
    %v4653 = vmax.f32 %v3940, 0.0
    %v4654 = vmax.f32 %v4159, 0.0
    %v4655 = vmax.f32 %v4378, 0.0
    %v4656 = vmax.f32 %v3724, 0.0
    %v4657 = vmax.f32 %v3943, 0.0
    %v4658 = vmax.f32 %v4162, 0.0
    %v4659 = vmax.f32 %v4381, 0.0
    %v4660 = vmax.f32 %v3726, 0.0
    %v4661 = vmax.f32 %v3945, 0.0
    %v4662 = vmax.f32 %v4164, 0.0
    %v4663 = vmax.f32 %v4383, 0.0
    %v4664 = vmax.f32 %v3729, 0.0
    %v4665 = vmax.f32 %v3948, 0.0
    %v4666 = vmax.f32 %v4167, 0.0
    %v4667 = vmax.f32 %v4386, 0.0
    %v4668 = vmax.f32 %v3731, 0.0
    %v4669 = vmax.f32 %v3950, 0.0
    %v4670 = vmax.f32 %v4169, 0.0
    %v4671 = vmax.f32 %v4388, 0.0
    %v4672 = vmax.f32 %v3734, 0.0
    %v4673 = vmax.f32 %v3953, 0.0
    %v4674 = vmax.f32 %v4172, 0.0
    %v4675 = vmax.f32 %v4391, 0.0
    %v4676 = vmax.f32 %v3736, 0.0
    %v4677 = vmax.f32 %v3955, 0.0
    %v4678 = vmax.f32 %v4174, 0.0
    %v4679 = vmax.f32 %v4393, 0.0
    %v4680 = vmax.f32 %v3739, 0.0
    %v4681 = vmax.f32 %v3958, 0.0
    %v4682 = vmax.f32 %v4177, 0.0
    %v4683 = vmax.f32 %v4396, 0.0
    %v4684 = vmax.f32 %v3741, 0.0
    %v4685 = vmax.f32 %v3960, 0.0
    %v4686 = vmax.f32 %v4179, 0.0
    %v4687 = vmax.f32 %v4398, 0.0
    %v4688 = vmax.f32 %v3744, 0.0
    %v4689 = vmax.f32 %v3963, 0.0
    %v4690 = vmax.f32 %v4182, 0.0
    %v4691 = vmax.f32 %v4401, 0.0
    %v4692 = vmax.f32 %v3746, 0.0
    %v4693 = vmax.f32 %v3965, 0.0
    %v4694 = vmax.f32 %v4184, 0.0
    %v4695 = vmax.f32 %v4403, 0.0
    %v4696 = vmax.f32 %v3749, 0.0
    %v4697 = vmax.f32 %v3968, 0.0
    %v4698 = vmax.f32 %v4187, 0.0
    %v4699 = vmax.f32 %v4406, 0.0
    %v4700 = vmax.f32 %v3751, 0.0
    %v4701 = vmax.f32 %v3970, 0.0
    %v4702 = vmax.f32 %v4189, 0.0
    %v4703 = vmax.f32 %v4408, 0.0
    %v4704 = vmax.f32 %v3754, 0.0
    %v4705 = vmax.f32 %v3973, 0.0
    %v4706 = vmax.f32 %v4192, 0.0
    %v4707 = vmax.f32 %v4411, 0.0
    %v4708 = vmax.f32 %v3756, 0.0
    %v4709 = vmax.f32 %v3975, 0.0
    %v4710 = vmax.f32 %v4194, 0.0
    %v4711 = vmax.f32 %v4413, 0.0
    %v4712 = vmax.f32 %v3759, 0.0
    %v4713 = vmax.f32 %v3978, 0.0
    %v4714 = vmax.f32 %v4197, 0.0
    %v4715 = vmax.f32 %v4416, 0.0
    %v4716 = vmax.f32 %v3761, 0.0
    %v4717 = vmax.f32 %v3980, 0.0
    %v4718 = vmax.f32 %v4199, 0.0
    %v4719 = vmax.f32 %v4418, 0.0
    %v4720 = vmax.f32 %v3764, 0.0
    %v4721 = vmax.f32 %v3983, 0.0
    %v4722 = vmax.f32 %v4202, 0.0
    %v4723 = vmax.f32 %v4421, 0.0
    %v4724 = vmax.f32 %v3766, 0.0
    %v4725 = vmax.f32 %v3985, 0.0
    %v4726 = vmax.f32 %v4204, 0.0
    %v4727 = vmax.f32 %v4423, 0.0
    %v4728 = vmax.f32 %v3769, 0.0
    %v4729 = vmax.f32 %v3988, 0.0
    %v4730 = vmax.f32 %v4207, 0.0
    %v4731 = vmax.f32 %v4426, 0.0
    %v4732 = vmax.f32 %v3771, 0.0
    %v4733 = vmax.f32 %v3990, 0.0
    %v4734 = vmax.f32 %v4209, 0.0
    %v4735 = vmax.f32 %v4428, 0.0
    %v4736 = vmax.f32 %v3774, 0.0
    %v4737 = vmax.f32 %v3993, 0.0
    %v4738 = vmax.f32 %v4212, 0.0
    %v4739 = vmax.f32 %v4431, 0.0
    %v4740 = vmax.f32 %v3776, 0.0
    %v4741 = vmax.f32 %v3995, 0.0
    %v4742 = vmax.f32 %v4214, 0.0
    %v4743 = vmax.f32 %v4433, 0.0
    %v4744 = vmax.f32 %v3779, 0.0
    %v4745 = vmax.f32 %v3998, 0.0
    %v4746 = vmax.f32 %v4217, 0.0
    %v4747 = vmax.f32 %v4436, 0.0
    %v4748 = vmax.f32 %v3781, 0.0
    %v4749 = vmax.f32 %v4000, 0.0
    %v4750 = vmax.f32 %v4219, 0.0
    %v4751 = vmax.f32 %v4438, 0.0
    %v4752 = vmax.f32 %v3784, 0.0
    %v4753 = vmax.f32 %v4003, 0.0
    %v4754 = vmax.f32 %v4222, 0.0
    %v4755 = vmax.f32 %v4441, 0.0
    %v4756 = vmax.f32 %v3786, 0.0
    %v4757 = vmax.f32 %v4005, 0.0
    %v4758 = vmax.f32 %v4224, 0.0
    %v4759 = vmax.f32 %v4443, 0.0
    %v4760 = vmax.f32 %v3789, 0.0
    %v4761 = vmax.f32 %v4008, 0.0
    %v4762 = vmax.f32 %v4227, 0.0
    %v4763 = vmax.f32 %v4446, 0.0
    %v4764 = vmax.f32 %v3791, 0.0
    %v4765 = vmax.f32 %v4010, 0.0
    %v4766 = vmax.f32 %v4229, 0.0
    %v4767 = vmax.f32 %v4448, 0.0
    %v4768 = vmax.f32 %v3794, 0.0
    %v4769 = vmax.f32 %v4013, 0.0
    %v4770 = vmax.f32 %v4232, 0.0
    %v4771 = vmax.f32 %v4451, 0.0
    %v4772 = vmax.f32 %v3796, 0.0
    %v4773 = vmax.f32 %v4015, 0.0
    %v4774 = vmax.f32 %v4234, 0.0
    %v4775 = vmax.f32 %v4453, 0.0
    %v4776 = vmax.f32 %v3799, 0.0
    %v4777 = vmax.f32 %v4018, 0.0
    %v4778 = vmax.f32 %v4237, 0.0
    %v4779 = vmax.f32 %v4456, 0.0
    %v4780 = vmax.f32 %v3801, 0.0
    %v4781 = vmax.f32 %v4020, 0.0
    %v4782 = vmax.f32 %v4239, 0.0
    %v4783 = vmax.f32 %v4458, 0.0
    %v4784 = vmax.f32 %v3804, 0.0
    %v4785 = vmax.f32 %v4023, 0.0
    %v4786 = vmax.f32 %v4242, 0.0
    %v4787 = vmax.f32 %v4461, 0.0
    %v4788 = vmax.f32 %v3806, 0.0
    %v4789 = vmax.f32 %v4025, 0.0
    %v4790 = vmax.f32 %v4244, 0.0
    %v4791 = vmax.f32 %v4463, 0.0
    %v4792 = vmax.f32 %v3809, 0.0
    %v4793 = vmax.f32 %v4028, 0.0
    %v4794 = vmax.f32 %v4247, 0.0
    %v4795 = vmax.f32 %v4466, 0.0
    %v4796 = vmax.f32 %v3811, 0.0
    %v4797 = vmax.f32 %v4030, 0.0
    %v4798 = vmax.f32 %v4249, 0.0
    %v4799 = vmax.f32 %v4468, 0.0
    %v4800 = vmax.f32 %v3814, 0.0
    %v4801 = vmax.f32 %v4033, 0.0
    %v4802 = vmax.f32 %v4252, 0.0
    %v4803 = vmax.f32 %v4471, 0.0
    %v4804 = vmax.f32 %v3816, 0.0
    %v4805 = vmax.f32 %v4035, 0.0
    %v4806 = vmax.f32 %v4254, 0.0
    %v4807 = vmax.f32 %v4473, 0.0
    %v4808 = vmax.f32 %v3819, 0.0
    %v4809 = vmax.f32 %v4038, 0.0
    %v4810 = vmax.f32 %v4257, 0.0
    %v4811 = vmax.f32 %v4476, 0.0
    %v4812 = vmax.f32 %v3821, 0.0
    %v4813 = vmax.f32 %v4040, 0.0
    %v4814 = vmax.f32 %v4259, 0.0
    %v4815 = vmax.f32 %v4478, 0.0
    %v4816 = vpack.c.bf16 %v4484, %v4480
    %v4817 = vpack.c.bf16 %v4485, %v4481
    %v4818 = vpack.c.bf16 %v4486, %v4482
    %v4819 = vpack.c.bf16 %v4487, %v4483
    %v4820 = vpack.c.bf16 %v4492, %v4488
    %v4821 = vpack.c.bf16 %v4493, %v4489
    %v4822 = vpack.c.bf16 %v4494, %v4490
    %v4823 = vpack.c.bf16 %v4495, %v4491
    %v4824 = vpack.c.bf16 %v4500, %v4496
    %v4825 = vpack.c.bf16 %v4501, %v4497
    %v4826 = vpack.c.bf16 %v4502, %v4498
    %v4827 = vpack.c.bf16 %v4503, %v4499
    %v4828 = vpack.c.bf16 %v4508, %v4504
    %v4829 = vpack.c.bf16 %v4509, %v4505
    %v4830 = vpack.c.bf16 %v4510, %v4506
    %v4831 = vpack.c.bf16 %v4511, %v4507
    %v4832 = vpack.c.bf16 %v4516, %v4512
    %v4833 = vpack.c.bf16 %v4517, %v4513
    %v4834 = vpack.c.bf16 %v4518, %v4514
    %v4835 = vpack.c.bf16 %v4519, %v4515
    %v4836 = vpack.c.bf16 %v4524, %v4520
    %v4837 = vpack.c.bf16 %v4525, %v4521
    %v4838 = vpack.c.bf16 %v4526, %v4522
    %v4839 = vpack.c.bf16 %v4527, %v4523
    %v4840 = vpack.c.bf16 %v4532, %v4528
    %v4841 = vpack.c.bf16 %v4533, %v4529
    %v4842 = vpack.c.bf16 %v4534, %v4530
    %v4843 = vpack.c.bf16 %v4535, %v4531
    %v4844 = vpack.c.bf16 %v4540, %v4536
    %v4845 = vpack.c.bf16 %v4541, %v4537
    %v4846 = vpack.c.bf16 %v4542, %v4538
    %v4847 = vpack.c.bf16 %v4543, %v4539
    %v4848 = vpack.c.bf16 %v4548, %v4544
    %v4849 = vpack.c.bf16 %v4549, %v4545
    %v4850 = vpack.c.bf16 %v4550, %v4546
    %v4851 = vpack.c.bf16 %v4551, %v4547
    %v4852 = vpack.c.bf16 %v4556, %v4552
    %v4853 = vpack.c.bf16 %v4557, %v4553
    %v4854 = vpack.c.bf16 %v4558, %v4554
    %v4855 = vpack.c.bf16 %v4559, %v4555
    %v4856 = vpack.c.bf16 %v4564, %v4560
    %v4857 = vpack.c.bf16 %v4565, %v4561
    %v4858 = vpack.c.bf16 %v4566, %v4562
    %v4859 = vpack.c.bf16 %v4567, %v4563
    %v4860 = vpack.c.bf16 %v4572, %v4568
    %v4861 = vpack.c.bf16 %v4573, %v4569
    %v4862 = vpack.c.bf16 %v4574, %v4570
    %v4863 = vpack.c.bf16 %v4575, %v4571
    %v4864 = vpack.c.bf16 %v4580, %v4576
    %v4865 = vpack.c.bf16 %v4581, %v4577
    %v4866 = vpack.c.bf16 %v4582, %v4578
    %v4867 = vpack.c.bf16 %v4583, %v4579
    %v4868 = vpack.c.bf16 %v4588, %v4584
    %v4869 = vpack.c.bf16 %v4589, %v4585
    %v4870 = vpack.c.bf16 %v4590, %v4586
    %v4871 = vpack.c.bf16 %v4591, %v4587
    %v4872 = vpack.c.bf16 %v4596, %v4592
    %v4873 = vpack.c.bf16 %v4597, %v4593
    %v4874 = vpack.c.bf16 %v4598, %v4594
    %v4875 = vpack.c.bf16 %v4599, %v4595
    %v4876 = vpack.c.bf16 %v4604, %v4600
    %v4877 = vpack.c.bf16 %v4605, %v4601
    %v4878 = vpack.c.bf16 %v4606, %v4602
    %v4879 = vpack.c.bf16 %v4607, %v4603
    %v4880 = vpack.c.bf16 %v4612, %v4608
    %v4881 = vpack.c.bf16 %v4613, %v4609
    %v4882 = vpack.c.bf16 %v4614, %v4610
    %v4883 = vpack.c.bf16 %v4615, %v4611
    %v4884 = vpack.c.bf16 %v4620, %v4616
    %v4885 = vpack.c.bf16 %v4621, %v4617
    %v4886 = vpack.c.bf16 %v4622, %v4618
    %v4887 = vpack.c.bf16 %v4623, %v4619
    %v4888 = vpack.c.bf16 %v4628, %v4624
    %v4889 = vpack.c.bf16 %v4629, %v4625
    %v4890 = vpack.c.bf16 %v4630, %v4626
    %v4891 = vpack.c.bf16 %v4631, %v4627
    %v4892 = vpack.c.bf16 %v4636, %v4632
    %v4893 = vpack.c.bf16 %v4637, %v4633
    %v4894 = vpack.c.bf16 %v4638, %v4634
    %v4895 = vpack.c.bf16 %v4639, %v4635
    %v4896 = vpack.c.bf16 %v4644, %v4640
    %v4897 = vpack.c.bf16 %v4645, %v4641
    %v4898 = vpack.c.bf16 %v4646, %v4642
    %v4899 = vpack.c.bf16 %v4647, %v4643
    %v4900 = vpack.c.bf16 %v4652, %v4648
    %v4901 = vpack.c.bf16 %v4653, %v4649
    %v4902 = vpack.c.bf16 %v4654, %v4650
    %v4903 = vpack.c.bf16 %v4655, %v4651
    %v4904 = vpack.c.bf16 %v4660, %v4656
    %v4905 = vpack.c.bf16 %v4661, %v4657
    %v4906 = vpack.c.bf16 %v4662, %v4658
    %v4907 = vpack.c.bf16 %v4663, %v4659
    %v4908 = vpack.c.bf16 %v4668, %v4664
    %v4909 = vpack.c.bf16 %v4669, %v4665
    %v4910 = vpack.c.bf16 %v4670, %v4666
    %v4911 = vpack.c.bf16 %v4671, %v4667
    %v4912 = vpack.c.bf16 %v4676, %v4672
    %v4913 = vpack.c.bf16 %v4677, %v4673
    %v4914 = vpack.c.bf16 %v4678, %v4674
    %v4915 = vpack.c.bf16 %v4679, %v4675
    %v4916 = vpack.c.bf16 %v4684, %v4680
    %v4917 = vpack.c.bf16 %v4685, %v4681
    %v4918 = vpack.c.bf16 %v4686, %v4682
    %v4919 = vpack.c.bf16 %v4687, %v4683
    %v4920 = vpack.c.bf16 %v4692, %v4688
    %v4921 = vpack.c.bf16 %v4693, %v4689
    %v4922 = vpack.c.bf16 %v4694, %v4690
    %v4923 = vpack.c.bf16 %v4695, %v4691
    %v4924 = vpack.c.bf16 %v4700, %v4696
    %v4925 = vpack.c.bf16 %v4701, %v4697
    %v4926 = vpack.c.bf16 %v4702, %v4698
    %v4927 = vpack.c.bf16 %v4703, %v4699
    %v4928 = vpack.c.bf16 %v4708, %v4704
    %v4929 = vpack.c.bf16 %v4709, %v4705
    %v4930 = vpack.c.bf16 %v4710, %v4706
    %v4931 = vpack.c.bf16 %v4711, %v4707
    %v4932 = vpack.c.bf16 %v4716, %v4712
    %v4933 = vpack.c.bf16 %v4717, %v4713
    %v4934 = vpack.c.bf16 %v4718, %v4714
    %v4935 = vpack.c.bf16 %v4719, %v4715
    %v4936 = vpack.c.bf16 %v4724, %v4720
    %v4937 = vpack.c.bf16 %v4725, %v4721
    %v4938 = vpack.c.bf16 %v4726, %v4722
    %v4939 = vpack.c.bf16 %v4727, %v4723
    %v4940 = vpack.c.bf16 %v4732, %v4728
    %v4941 = vpack.c.bf16 %v4733, %v4729
    %v4942 = vpack.c.bf16 %v4734, %v4730
    %v4943 = vpack.c.bf16 %v4735, %v4731
    %v4944 = vpack.c.bf16 %v4740, %v4736
    %v4945 = vpack.c.bf16 %v4741, %v4737
    %v4946 = vpack.c.bf16 %v4742, %v4738
    %v4947 = vpack.c.bf16 %v4743, %v4739
    %v4948 = vpack.c.bf16 %v4748, %v4744
    %v4949 = vpack.c.bf16 %v4749, %v4745
    %v4950 = vpack.c.bf16 %v4750, %v4746
    %v4951 = vpack.c.bf16 %v4751, %v4747
    %v4952 = vpack.c.bf16 %v4756, %v4752
    %v4953 = vpack.c.bf16 %v4757, %v4753
    %v4954 = vpack.c.bf16 %v4758, %v4754
    %v4955 = vpack.c.bf16 %v4759, %v4755
    %v4956 = vpack.c.bf16 %v4764, %v4760
    %v4957 = vpack.c.bf16 %v4765, %v4761
    %v4958 = vpack.c.bf16 %v4766, %v4762
    %v4959 = vpack.c.bf16 %v4767, %v4763
    %v4960 = vpack.c.bf16 %v4772, %v4768
    %v4961 = vpack.c.bf16 %v4773, %v4769
    %v4962 = vpack.c.bf16 %v4774, %v4770
    %v4963 = vpack.c.bf16 %v4775, %v4771
    %v4964 = vpack.c.bf16 %v4780, %v4776
    %v4965 = vpack.c.bf16 %v4781, %v4777
    %v4966 = vpack.c.bf16 %v4782, %v4778
    %v4967 = vpack.c.bf16 %v4783, %v4779
    %v4968 = vpack.c.bf16 %v4788, %v4784
    %v4969 = vpack.c.bf16 %v4789, %v4785
    %v4970 = vpack.c.bf16 %v4790, %v4786
    %v4971 = vpack.c.bf16 %v4791, %v4787
    %v4972 = vpack.c.bf16 %v4796, %v4792
    %v4973 = vpack.c.bf16 %v4797, %v4793
    %v4974 = vpack.c.bf16 %v4798, %v4794
    %v4975 = vpack.c.bf16 %v4799, %v4795
    %v4976 = vpack.c.bf16 %v4804, %v4800
    %v4977 = vpack.c.bf16 %v4805, %v4801
    %v4978 = vpack.c.bf16 %v4806, %v4802
    %v4979 = vpack.c.bf16 %v4807, %v4803
    %v4980 = vpack.c.bf16 %v4812, %v4808
    %v4981 = vpack.c.bf16 %v4813, %v4809
    %v4982 = vpack.c.bf16 %v4814, %v4810
    %v4983 = vpack.c.bf16 %v4815, %v4811
    %4985 = vst [vmem:[#allocation1] ss:$9 sm:$0xff] %v214
    %v4986 = vld [vmem:[#allocation1] sm:$0xff]
    %v4987 = vld [vmem:[#allocation1 + $0x9] sm:$0xff]
    %v4988 = vld [vmem:[#allocation1 + $0x12] sm:$0xff]
    %v4989 = vld [vmem:[#allocation1 + $0x1b] sm:$0xff]
    %v4990 = vld [vmem:[#allocation1 + $0x24] sm:$0xff]
    %v4991 = vld [vmem:[#allocation1 + $0x2d] sm:$0xff]
    %vm4997 = vcmask 261120
    %v4998 = vsel %vm4997, %v4991, 0
    %5000 = vmatpush.bf16.msra.mxu0 %v4844
    %5001 = vmatpush.bf16.msra.mxu0 %v4840
    %5002 = vmatpush.bf16.msra.mxu0 %v4836
    %5003 = vmatpush.bf16.msra.mxu0 %v4832
    %5004 = vmatpush.bf16.msra.mxu0 %v4828
    %5005 = vmatpush.bf16.msra.mxu0 %v4824
    %5006 = vmatpush.bf16.msra.mxu0 %v4820
    %5007 = vmatpush.bf16.msra.mxu0 %v4816
    %5008 = vmatmul.bf16.gmra.mxu0 %v4986
    %v5009 = vpop.f32.mrf.mxu0
    %v5010 = vadd.f32 0.0, %v5009
    %v5011 = vpop.f32.mrf.mxu0
    %5012 = vdwg.mxu0
    %5013 = vmatpush.bf16.msra.mxu0 %v4876
    %5014 = vmatpush.bf16.msra.mxu0 %v4872
    %5015 = vmatpush.bf16.msra.mxu0 %v4868
    %5016 = vmatpush.bf16.msra.mxu0 %v4864
    %5017 = vmatpush.bf16.msra.mxu0 %v4860
    %5018 = vmatpush.bf16.msra.mxu0 %v4856
    %5019 = vmatpush.bf16.msra.mxu0 %v4852
    %5020 = vmatpush.bf16.msra.mxu0 %v4848
    %5021 = vmatmul.bf16.gmra.mxu0 %v4987
    %v5022 = vpop.f32.mrf.mxu0
    %v5023 = vadd.f32 %v5010, %v5022
    %v5024 = vpop.f32.mrf.mxu0
    %5025 = vdwg.mxu0
    %5026 = vmatpush.bf16.msra.mxu0 %v4908
    %5027 = vmatpush.bf16.msra.mxu0 %v4904
    %5028 = vmatpush.bf16.msra.mxu0 %v4900
    %5029 = vmatpush.bf16.msra.mxu0 %v4896
    %5030 = vmatpush.bf16.msra.mxu0 %v4892
    %5031 = vmatpush.bf16.msra.mxu0 %v4888
    %5032 = vmatpush.bf16.msra.mxu0 %v4884
    %5033 = vmatpush.bf16.msra.mxu0 %v4880
    %5034 = vmatmul.bf16.gmra.mxu0 %v4988
    %v5035 = vpop.f32.mrf.mxu0
    %v5036 = vadd.f32 %v5023, %v5035
    %v5037 = vpop.f32.mrf.mxu0
    %5038 = vdwg.mxu0
    %5039 = vmatpush.bf16.msra.mxu0 %v4940
    %5040 = vmatpush.bf16.msra.mxu0 %v4936
    %5041 = vmatpush.bf16.msra.mxu0 %v4932
    %5042 = vmatpush.bf16.msra.mxu0 %v4928
    %5043 = vmatpush.bf16.msra.mxu0 %v4924
    %5044 = vmatpush.bf16.msra.mxu0 %v4920
    %5045 = vmatpush.bf16.msra.mxu0 %v4916
    %5046 = vmatpush.bf16.msra.mxu0 %v4912
    %5047 = vmatmul.bf16.gmra.mxu0 %v4989
    %v5048 = vpop.f32.mrf.mxu0
    %v5049 = vadd.f32 %v5036, %v5048
    %v5050 = vpop.f32.mrf.mxu0
    %5051 = vdwg.mxu0
    %5052 = vmatpush.bf16.msra.mxu0 %v4972
    %5053 = vmatpush.bf16.msra.mxu0 %v4968
    %5054 = vmatpush.bf16.msra.mxu0 %v4964
    %5055 = vmatpush.bf16.msra.mxu0 %v4960
    %5056 = vmatpush.bf16.msra.mxu0 %v4956
    %5057 = vmatpush.bf16.msra.mxu0 %v4952
    %5058 = vmatpush.bf16.msra.mxu0 %v4948
    %5059 = vmatpush.bf16.msra.mxu0 %v4944
    %5060 = vmatmul.bf16.gmra.mxu0 %v4990
    %v5061 = vpop.f32.mrf.mxu0
    %v5062 = vadd.f32 %v5049, %v5061
    %v5063 = vpop.f32.mrf.mxu0
    %5064 = vdwg.mxu0
    %5065 = vmatpush.bf16.msra.mxu0 0
    %5066 = vmatpush.bf16.msra.mxu0 0
    %5067 = vmatpush.bf16.msra.mxu0 0
    %5068 = vmatpush.bf16.msra.mxu0 0
    %5069 = vmatpush.bf16.msra.mxu0 0
    %5070 = vmatpush.bf16.msra.mxu0 0
    %5071 = vmatpush.bf16.msra.mxu0 %v4980
    %5072 = vmatpush.bf16.msra.mxu0 %v4976
    %5073 = vmatmul.bf16.gmra.mxu0 %v4998
    %v5074 = vpop.f32.mrf.mxu0
    %v5075 = vadd.f32 %v5062, %v5074
    %v5076 = vpop.f32.mrf.mxu0
    %5077 = vdwg.mxu0
    %5078 = vmatpush.bf16.msra.mxu0 %v4845
    %5079 = vmatpush.bf16.msra.mxu0 %v4841
    %5080 = vmatpush.bf16.msra.mxu0 %v4837
    %5081 = vmatpush.bf16.msra.mxu0 %v4833
    %5082 = vmatpush.bf16.msra.mxu0 %v4829
    %5083 = vmatpush.bf16.msra.mxu0 %v4825
    %5084 = vmatpush.bf16.msra.mxu0 %v4821
    %5085 = vmatpush.bf16.msra.mxu0 %v4817
    %5086 = vmatmul.bf16.gmra.mxu0 %v4986
    %v5087 = vpop.f32.mrf.mxu0
    %v5088 = vadd.f32 0.0, %v5087
    %v5089 = vpop.f32.mrf.mxu0
    %5090 = vdwg.mxu0
    %5091 = vmatpush.bf16.msra.mxu0 %v4877
    %5092 = vmatpush.bf16.msra.mxu0 %v4873
    %5093 = vmatpush.bf16.msra.mxu0 %v4869
    %5094 = vmatpush.bf16.msra.mxu0 %v4865
    %5095 = vmatpush.bf16.msra.mxu0 %v4861
    %5096 = vmatpush.bf16.msra.mxu0 %v4857
    %5097 = vmatpush.bf16.msra.mxu0 %v4853
    %5098 = vmatpush.bf16.msra.mxu0 %v4849
    %5099 = vmatmul.bf16.gmra.mxu0 %v4987
    %v5100 = vpop.f32.mrf.mxu0
    %v5101 = vadd.f32 %v5088, %v5100
    %v5102 = vpop.f32.mrf.mxu0
    %5103 = vdwg.mxu0
    %5104 = vmatpush.bf16.msra.mxu0 %v4909
    %5105 = vmatpush.bf16.msra.mxu0 %v4905
    %5106 = vmatpush.bf16.msra.mxu0 %v4901
    %5107 = vmatpush.bf16.msra.mxu0 %v4897
    %5108 = vmatpush.bf16.msra.mxu0 %v4893
    %5109 = vmatpush.bf16.msra.mxu0 %v4889
    %5110 = vmatpush.bf16.msra.mxu0 %v4885
    %5111 = vmatpush.bf16.msra.mxu0 %v4881
    %5112 = vmatmul.bf16.gmra.mxu0 %v4988
    %v5113 = vpop.f32.mrf.mxu0
    %v5114 = vadd.f32 %v5101, %v5113
    %v5115 = vpop.f32.mrf.mxu0
    %5116 = vdwg.mxu0
    %5117 = vmatpush.bf16.msra.mxu0 %v4941
    %5118 = vmatpush.bf16.msra.mxu0 %v4937
    %5119 = vmatpush.bf16.msra.mxu0 %v4933
    %5120 = vmatpush.bf16.msra.mxu0 %v4929
    %5121 = vmatpush.bf16.msra.mxu0 %v4925
    %5122 = vmatpush.bf16.msra.mxu0 %v4921
    %5123 = vmatpush.bf16.msra.mxu0 %v4917
    %5124 = vmatpush.bf16.msra.mxu0 %v4913
    %5125 = vmatmul.bf16.gmra.mxu0 %v4989
    %v5126 = vpop.f32.mrf.mxu0
    %v5127 = vadd.f32 %v5114, %v5126
    %v5128 = vpop.f32.mrf.mxu0
    %5129 = vdwg.mxu0
    %5130 = vmatpush.bf16.msra.mxu0 %v4973
    %5131 = vmatpush.bf16.msra.mxu0 %v4969
    %5132 = vmatpush.bf16.msra.mxu0 %v4965
    %5133 = vmatpush.bf16.msra.mxu0 %v4961
    %5134 = vmatpush.bf16.msra.mxu0 %v4957
    %5135 = vmatpush.bf16.msra.mxu0 %v4953
    %5136 = vmatpush.bf16.msra.mxu0 %v4949
    %5137 = vmatpush.bf16.msra.mxu0 %v4945
    %5138 = vmatmul.bf16.gmra.mxu0 %v4990
    %v5139 = vpop.f32.mrf.mxu0
    %v5140 = vadd.f32 %v5127, %v5139
    %v5141 = vpop.f32.mrf.mxu0
    %5142 = vdwg.mxu0
    %5143 = vmatpush.bf16.msra.mxu0 0
    %5144 = vmatpush.bf16.msra.mxu0 0
    %5145 = vmatpush.bf16.msra.mxu0 0
    %5146 = vmatpush.bf16.msra.mxu0 0
    %5147 = vmatpush.bf16.msra.mxu0 0
    %5148 = vmatpush.bf16.msra.mxu0 0
    %5149 = vmatpush.bf16.msra.mxu0 %v4981
    %5150 = vmatpush.bf16.msra.mxu0 %v4977
    %5151 = vmatmul.bf16.gmra.mxu0 %v4998
    %v5152 = vpop.f32.mrf.mxu0
    %v5153 = vadd.f32 %v5140, %v5152
    %v5154 = vpop.f32.mrf.mxu0
    %5155 = vdwg.mxu0
    %5156 = vmatpush.bf16.msra.mxu0 %v4846
    %5157 = vmatpush.bf16.msra.mxu0 %v4842
    %5158 = vmatpush.bf16.msra.mxu0 %v4838
    %5159 = vmatpush.bf16.msra.mxu0 %v4834
    %5160 = vmatpush.bf16.msra.mxu0 %v4830
    %5161 = vmatpush.bf16.msra.mxu0 %v4826
    %5162 = vmatpush.bf16.msra.mxu0 %v4822
    %5163 = vmatpush.bf16.msra.mxu0 %v4818
    %5164 = vmatmul.bf16.gmra.mxu0 %v4986
    %v5165 = vpop.f32.mrf.mxu0
    %v5166 = vadd.f32 0.0, %v5165
    %v5167 = vpop.f32.mrf.mxu0
    %5168 = vdwg.mxu0
    %5169 = vmatpush.bf16.msra.mxu0 %v4878
    %5170 = vmatpush.bf16.msra.mxu0 %v4874
    %5171 = vmatpush.bf16.msra.mxu0 %v4870
    %5172 = vmatpush.bf16.msra.mxu0 %v4866
    %5173 = vmatpush.bf16.msra.mxu0 %v4862
    %5174 = vmatpush.bf16.msra.mxu0 %v4858
    %5175 = vmatpush.bf16.msra.mxu0 %v4854
    %5176 = vmatpush.bf16.msra.mxu0 %v4850
    %5177 = vmatmul.bf16.gmra.mxu0 %v4987
    %v5178 = vpop.f32.mrf.mxu0
    %v5179 = vadd.f32 %v5166, %v5178
    %v5180 = vpop.f32.mrf.mxu0
    %5181 = vdwg.mxu0
    %5182 = vmatpush.bf16.msra.mxu0 %v4910
    %5183 = vmatpush.bf16.msra.mxu0 %v4906
    %5184 = vmatpush.bf16.msra.mxu0 %v4902
    %5185 = vmatpush.bf16.msra.mxu0 %v4898
    %5186 = vmatpush.bf16.msra.mxu0 %v4894
    %5187 = vmatpush.bf16.msra.mxu0 %v4890
    %5188 = vmatpush.bf16.msra.mxu0 %v4886
    %5189 = vmatpush.bf16.msra.mxu0 %v4882
    %5190 = vmatmul.bf16.gmra.mxu0 %v4988
    %v5191 = vpop.f32.mrf.mxu0
    %v5192 = vadd.f32 %v5179, %v5191
    %v5193 = vpop.f32.mrf.mxu0
    %5194 = vdwg.mxu0
    %5195 = vmatpush.bf16.msra.mxu0 %v4942
    %5196 = vmatpush.bf16.msra.mxu0 %v4938
    %5197 = vmatpush.bf16.msra.mxu0 %v4934
    %5198 = vmatpush.bf16.msra.mxu0 %v4930
    %5199 = vmatpush.bf16.msra.mxu0 %v4926
    %5200 = vmatpush.bf16.msra.mxu0 %v4922
    %5201 = vmatpush.bf16.msra.mxu0 %v4918
    %5202 = vmatpush.bf16.msra.mxu0 %v4914
    %5203 = vmatmul.bf16.gmra.mxu0 %v4989
    %v5204 = vpop.f32.mrf.mxu0
    %v5205 = vadd.f32 %v5192, %v5204
    %v5206 = vpop.f32.mrf.mxu0
    %5207 = vdwg.mxu0
    %5208 = vmatpush.bf16.msra.mxu0 %v4974
    %5209 = vmatpush.bf16.msra.mxu0 %v4970
    %5210 = vmatpush.bf16.msra.mxu0 %v4966
    %5211 = vmatpush.bf16.msra.mxu0 %v4962
    %5212 = vmatpush.bf16.msra.mxu0 %v4958
    %5213 = vmatpush.bf16.msra.mxu0 %v4954
    %5214 = vmatpush.bf16.msra.mxu0 %v4950
    %5215 = vmatpush.bf16.msra.mxu0 %v4946
    %5216 = vmatmul.bf16.gmra.mxu0 %v4990
    %v5217 = vpop.f32.mrf.mxu0
    %v5218 = vadd.f32 %v5205, %v5217
    %v5219 = vpop.f32.mrf.mxu0
    %5220 = vdwg.mxu0
    %5221 = vmatpush.bf16.msra.mxu0 0
    %5222 = vmatpush.bf16.msra.mxu0 0
    %5223 = vmatpush.bf16.msra.mxu0 0
    %5224 = vmatpush.bf16.msra.mxu0 0
    %5225 = vmatpush.bf16.msra.mxu0 0
    %5226 = vmatpush.bf16.msra.mxu0 0
    %5227 = vmatpush.bf16.msra.mxu0 %v4982
    %5228 = vmatpush.bf16.msra.mxu0 %v4978
    %5229 = vmatmul.bf16.gmra.mxu0 %v4998
    %v5230 = vpop.f32.mrf.mxu0
    %v5231 = vadd.f32 %v5218, %v5230
    %v5232 = vpop.f32.mrf.mxu0
    %5233 = vdwg.mxu0
    %5234 = vmatpush.bf16.msra.mxu0 %v4847
    %5235 = vmatpush.bf16.msra.mxu0 %v4843
    %5236 = vmatpush.bf16.msra.mxu0 %v4839
    %5237 = vmatpush.bf16.msra.mxu0 %v4835
    %5238 = vmatpush.bf16.msra.mxu0 %v4831
    %5239 = vmatpush.bf16.msra.mxu0 %v4827
    %5240 = vmatpush.bf16.msra.mxu0 %v4823
    %5241 = vmatpush.bf16.msra.mxu0 %v4819
    %5242 = vmatmul.bf16.gmra.mxu0 %v4986
    %v5243 = vpop.f32.mrf.mxu0
    %v5244 = vadd.f32 0.0, %v5243
    %v5245 = vpop.f32.mrf.mxu0
    %5246 = vdwg.mxu0
    %5247 = vmatpush.bf16.msra.mxu0 %v4879
    %5248 = vmatpush.bf16.msra.mxu0 %v4875
    %5249 = vmatpush.bf16.msra.mxu0 %v4871
    %5250 = vmatpush.bf16.msra.mxu0 %v4867
    %5251 = vmatpush.bf16.msra.mxu0 %v4863
    %5252 = vmatpush.bf16.msra.mxu0 %v4859
    %5253 = vmatpush.bf16.msra.mxu0 %v4855
    %5254 = vmatpush.bf16.msra.mxu0 %v4851
    %5255 = vmatmul.bf16.gmra.mxu0 %v4987
    %v5256 = vpop.f32.mrf.mxu0
    %v5257 = vadd.f32 %v5244, %v5256
    %v5258 = vpop.f32.mrf.mxu0
    %5259 = vdwg.mxu0
    %5260 = vmatpush.bf16.msra.mxu0 %v4911
    %5261 = vmatpush.bf16.msra.mxu0 %v4907
    %5262 = vmatpush.bf16.msra.mxu0 %v4903
    %5263 = vmatpush.bf16.msra.mxu0 %v4899
    %5264 = vmatpush.bf16.msra.mxu0 %v4895
    %5265 = vmatpush.bf16.msra.mxu0 %v4891
    %5266 = vmatpush.bf16.msra.mxu0 %v4887
    %5267 = vmatpush.bf16.msra.mxu0 %v4883
    %5268 = vmatmul.bf16.gmra.mxu0 %v4988
    %v5269 = vpop.f32.mrf.mxu0
    %v5270 = vadd.f32 %v5257, %v5269
    %v5271 = vpop.f32.mrf.mxu0
    %5272 = vdwg.mxu0
    %5273 = vmatpush.bf16.msra.mxu0 %v4943
    %5274 = vmatpush.bf16.msra.mxu0 %v4939
    %5275 = vmatpush.bf16.msra.mxu0 %v4935
    %5276 = vmatpush.bf16.msra.mxu0 %v4931
    %5277 = vmatpush.bf16.msra.mxu0 %v4927
    %5278 = vmatpush.bf16.msra.mxu0 %v4923
    %5279 = vmatpush.bf16.msra.mxu0 %v4919
    %5280 = vmatpush.bf16.msra.mxu0 %v4915
    %5281 = vmatmul.bf16.gmra.mxu0 %v4989
    %v5282 = vpop.f32.mrf.mxu0
    %v5283 = vadd.f32 %v5270, %v5282
    %v5284 = vpop.f32.mrf.mxu0
    %5285 = vdwg.mxu0
    %5286 = vmatpush.bf16.msra.mxu0 %v4975
    %5287 = vmatpush.bf16.msra.mxu0 %v4971
    %5288 = vmatpush.bf16.msra.mxu0 %v4967
    %5289 = vmatpush.bf16.msra.mxu0 %v4963
    %5290 = vmatpush.bf16.msra.mxu0 %v4959
    %5291 = vmatpush.bf16.msra.mxu0 %v4955
    %5292 = vmatpush.bf16.msra.mxu0 %v4951
    %5293 = vmatpush.bf16.msra.mxu0 %v4947
    %5294 = vmatmul.bf16.gmra.mxu0 %v4990
    %v5295 = vpop.f32.mrf.mxu0
    %v5296 = vadd.f32 %v5283, %v5295
    %v5297 = vpop.f32.mrf.mxu0
    %5298 = vdwg.mxu0
    %5299 = vmatpush.bf16.msra.mxu0 0
    %5300 = vmatpush.bf16.msra.mxu0 0
    %5301 = vmatpush.bf16.msra.mxu0 0
    %5302 = vmatpush.bf16.msra.mxu0 0
    %5303 = vmatpush.bf16.msra.mxu0 0
    %5304 = vmatpush.bf16.msra.mxu0 0
    %5305 = vmatpush.bf16.msra.mxu0 %v4983
    %5306 = vmatpush.bf16.msra.mxu0 %v4979
    %5307 = vmatmul.bf16.gmra.mxu0 %v4998
    %v5308 = vpop.f32.mrf.mxu0
    %v5309 = vadd.f32 %v5296, %v5308
    %v5310 = vpop.f32.mrf.mxu0
    %5311 = vdwg.mxu0
    %v5312 = vmul.f32 %v5075, 0.0029761905
    %v5313 = vmul.f32 %v5153, 0.0029761905
    %v5314 = vmul.f32 %v5231, 0.0029761905
    %v5315 = vmul.f32 %v5309, 0.0029761905
    %v5316 = vpack.c.bf16 %v5312, %v5312
    %v5317 = vpack.c.bf16 %v5313, %v5313
    %v5318 = vpack.c.bf16 %v5314, %v5314
    %v5319 = vpack.c.bf16 %v5315, %v5315
    %v5321 = vperm.slane %v376, 0
    %v5322 = vperm.slane %v376, 1
    %v5323 = vperm.slane %v376, 2
    %v5324 = vperm.slane %v376, 3
    %v5457 = vunpack.c.l.b16 %v248
    %v5458 = vunpack.c.h.b16 %v248
    %v5459 = vunpack.c.l.b16 %v249
    %v5460 = vunpack.c.h.b16 %v249
    %v5461 = vunpack.c.l.b16 %v250
    %v5462 = vunpack.c.h.b16 %v250
    %v5463 = vunpack.c.l.b16 %v251
    %v5464 = vunpack.c.h.b16 %v251
    %v5465 = vunpack.c.l.b16 %v252
    %v5466 = vunpack.c.h.b16 %v252
    %v5467 = vunpack.c.l.b16 %v253
    %v5468 = vunpack.c.h.b16 %v253
    %v5469 = vunpack.c.l.b16 %v254
    %v5470 = vunpack.c.h.b16 %v254
    %v5471 = vunpack.c.l.b16 %v255
    %v5472 = vunpack.c.h.b16 %v255
    %v5473 = vunpack.c.l.b16 %v256
    %v5474 = vunpack.c.h.b16 %v256
    %v5475 = vunpack.c.l.b16 %v257
    %v5476 = vunpack.c.h.b16 %v257
    %v5477 = vunpack.c.l.b16 %v258
    %v5478 = vunpack.c.h.b16 %v258
    %v5479 = vunpack.c.l.b16 %v259
    %v5480 = vunpack.c.h.b16 %v259
    %v5481 = vunpack.c.l.b16 %v260
    %v5482 = vunpack.c.h.b16 %v260
    %v5483 = vunpack.c.l.b16 %v261
    %v5484 = vunpack.c.h.b16 %v261
    %v5485 = vunpack.c.l.b16 %v262
    %v5486 = vunpack.c.h.b16 %v262
    %v5487 = vunpack.c.l.b16 %v263
    %v5488 = vunpack.c.h.b16 %v263
    %v5489 = vunpack.c.l.b16 %v264
    %v5490 = vunpack.c.h.b16 %v264
    %v5491 = vunpack.c.l.b16 %v265
    %v5492 = vunpack.c.h.b16 %v265
    %v5493 = vunpack.c.l.b16 %v266
    %v5494 = vunpack.c.h.b16 %v266
    %v5495 = vunpack.c.l.b16 %v267
    %v5496 = vunpack.c.h.b16 %v267
    %v5497 = vunpack.c.l.b16 %v268
    %v5498 = vunpack.c.h.b16 %v268
    %v5499 = vunpack.c.l.b16 %v269
    %v5500 = vunpack.c.h.b16 %v269
    %v5501 = vunpack.c.l.b16 %v270
    %v5502 = vunpack.c.h.b16 %v270
    %v5503 = vunpack.c.l.b16 %v271
    %v5504 = vunpack.c.h.b16 %v271
    %v5505 = vunpack.c.l.b16 %v272
    %v5506 = vunpack.c.h.b16 %v272
    %v5507 = vunpack.c.l.b16 %v273
    %v5508 = vunpack.c.h.b16 %v273
    %v5509 = vunpack.c.l.b16 %v274
    %v5510 = vunpack.c.h.b16 %v274
    %v5511 = vunpack.c.l.b16 %v275
    %v5512 = vunpack.c.h.b16 %v275
    %v5513 = vunpack.c.l.b16 %v276
    %v5514 = vunpack.c.h.b16 %v276
    %v5515 = vunpack.c.l.b16 %v277
    %v5516 = vunpack.c.h.b16 %v277
    %v5517 = vunpack.c.l.b16 %v278
    %v5518 = vunpack.c.h.b16 %v278
    %v5519 = vunpack.c.l.b16 %v279
    %v5520 = vunpack.c.h.b16 %v279
    %v5521 = vunpack.c.l.b16 %v280
    %v5522 = vunpack.c.h.b16 %v280
    %v5523 = vunpack.c.l.b16 %v281
    %v5524 = vunpack.c.h.b16 %v281
    %v5525 = vunpack.c.l.b16 %v282
    %v5526 = vunpack.c.h.b16 %v282
    %v5527 = vunpack.c.l.b16 %v283
    %v5528 = vunpack.c.h.b16 %v283
    %v5529 = vunpack.c.l.b16 %v284
    %v5530 = vunpack.c.h.b16 %v284
    %v5531 = vunpack.c.l.b16 %v285
    %v5532 = vunpack.c.h.b16 %v285
    %v5533 = vunpack.c.l.b16 %v286
    %v5534 = vunpack.c.h.b16 %v286
    %v5535 = vunpack.c.l.b16 %v287
    %v5536 = vunpack.c.h.b16 %v287
    %v5537 = vunpack.c.l.b16 %v288
    %v5538 = vunpack.c.h.b16 %v288
    %v5539 = vunpack.c.l.b16 %v289
    %v5540 = vunpack.c.h.b16 %v289
    %v5541 = vunpack.c.l.b16 %v290
    %v5542 = vunpack.c.h.b16 %v290
    %v5543 = vunpack.c.l.b16 %v291
    %v5544 = vunpack.c.h.b16 %v291
    %v5545 = vunpack.c.l.b16 %v292
    %v5546 = vunpack.c.h.b16 %v292
    %v5547 = vunpack.c.l.b16 %v293
    %v5548 = vunpack.c.h.b16 %v293
    %v5549 = vunpack.c.l.b16 %v294
    %v5550 = vunpack.c.h.b16 %v294
    %v5551 = vunpack.c.l.b16 %v295
    %v5552 = vunpack.c.h.b16 %v295
    %v5553 = vunpack.c.l.b16 %v296
    %v5554 = vunpack.c.h.b16 %v296
    %v5555 = vunpack.c.l.b16 %v297
    %v5556 = vunpack.c.h.b16 %v297
    %v5557 = vunpack.c.l.b16 %v298
    %v5558 = vunpack.c.h.b16 %v298
    %v5559 = vunpack.c.l.b16 %v299
    %v5560 = vunpack.c.h.b16 %v299
    %v5561 = vunpack.c.l.b16 %v300
    %v5562 = vunpack.c.h.b16 %v300
    %v5563 = vunpack.c.l.b16 %v301
    %v5564 = vunpack.c.h.b16 %v301
    %v5565 = vunpack.c.l.b16 %v302
    %v5566 = vunpack.c.h.b16 %v302
    %v5567 = vunpack.c.l.b16 %v303
    %v5568 = vunpack.c.h.b16 %v303
    %v5569 = vunpack.c.l.b16 %v304
    %v5570 = vunpack.c.h.b16 %v304
    %v5571 = vunpack.c.l.b16 %v305
    %v5572 = vunpack.c.h.b16 %v305
    %v5573 = vunpack.c.l.b16 %v306
    %v5574 = vunpack.c.h.b16 %v306
    %v5575 = vunpack.c.l.b16 %v307
    %v5576 = vunpack.c.h.b16 %v307
    %v5577 = vunpack.c.l.b16 %v308
    %v5578 = vunpack.c.h.b16 %v308
    %v5579 = vunpack.c.l.b16 %v309
    %v5580 = vunpack.c.h.b16 %v309
    %v5581 = vunpack.c.l.b16 %v310
    %v5582 = vunpack.c.h.b16 %v310
    %v5583 = vunpack.c.l.b16 %v311
    %v5584 = vunpack.c.h.b16 %v311
    %v5585 = vunpack.c.l.b16 %v312
    %v5586 = vunpack.c.h.b16 %v312
    %v5587 = vunpack.c.l.b16 %v313
    %v5588 = vunpack.c.h.b16 %v313
    %v5589 = vunpack.c.l.b16 %v314
    %v5590 = vunpack.c.h.b16 %v314
    %v5591 = vunpack.c.l.b16 %v315
    %v5592 = vunpack.c.h.b16 %v315
    %v5593 = vunpack.c.l.b16 %v316
    %v5594 = vunpack.c.h.b16 %v316
    %v5595 = vunpack.c.l.b16 %v317
    %v5596 = vunpack.c.h.b16 %v317
    %v5597 = vunpack.c.l.b16 %v318
    %v5598 = vunpack.c.h.b16 %v318
    %v5599 = vunpack.c.l.b16 %v319
    %v5600 = vunpack.c.h.b16 %v319
    %v5601 = vunpack.c.l.b16 %v320
    %v5602 = vunpack.c.h.b16 %v320
    %v5603 = vunpack.c.l.b16 %v321
    %v5604 = vunpack.c.h.b16 %v321
    %v5605 = vunpack.c.l.b16 %v322
    %v5606 = vunpack.c.h.b16 %v322
    %v5607 = vunpack.c.l.b16 %v323
    %v5608 = vunpack.c.h.b16 %v323
    %v5609 = vunpack.c.l.b16 %v324
    %v5610 = vunpack.c.h.b16 %v324
    %v5611 = vunpack.c.l.b16 %v325
    %v5612 = vunpack.c.h.b16 %v325
    %v5613 = vunpack.c.l.b16 %v326
    %v5614 = vunpack.c.h.b16 %v326
    %v5615 = vunpack.c.l.b16 %v327
    %v5616 = vunpack.c.h.b16 %v327
    %v5617 = vunpack.c.l.b16 %v328
    %v5618 = vunpack.c.h.b16 %v328
    %v5619 = vunpack.c.l.b16 %v329
    %v5620 = vunpack.c.h.b16 %v329
    %v5621 = vunpack.c.l.b16 %v330
    %v5622 = vunpack.c.h.b16 %v330
    %v5623 = vunpack.c.l.b16 %v331
    %v5624 = vunpack.c.h.b16 %v331
    %v5625 = vunpack.c.l.b16 %v332
    %v5626 = vunpack.c.h.b16 %v332
    %v5627 = vunpack.c.l.b16 %v333
    %v5628 = vunpack.c.h.b16 %v333
    %v5629 = vunpack.c.l.b16 %v334
    %v5630 = vunpack.c.h.b16 %v334
    %v5631 = vunpack.c.l.b16 %v335
    %v5632 = vunpack.c.h.b16 %v335
    %v5633 = vunpack.c.l.b16 %v336
    %v5634 = vunpack.c.h.b16 %v336
    %v5635 = vunpack.c.l.b16 %v337
    %v5636 = vunpack.c.h.b16 %v337
    %v5637 = vunpack.c.l.b16 %v338
    %v5638 = vunpack.c.h.b16 %v338
    %v5639 = vunpack.c.l.b16 %v339
    %v5640 = vunpack.c.h.b16 %v339
    %v5641 = vunpack.c.l.b16 %v340
    %v5642 = vunpack.c.h.b16 %v340
    %v5643 = vunpack.c.l.b16 %v341
    %v5644 = vunpack.c.h.b16 %v341
    %v5645 = vunpack.c.l.b16 %v342
    %v5646 = vunpack.c.h.b16 %v342
    %v5647 = vunpack.c.l.b16 %v343
    %v5648 = vunpack.c.h.b16 %v343
    %v5649 = vunpack.c.l.b16 %v344
    %v5650 = vunpack.c.h.b16 %v344
    %v5651 = vunpack.c.l.b16 %v345
    %v5652 = vunpack.c.h.b16 %v345
    %v5653 = vunpack.c.l.b16 %v346
    %v5654 = vunpack.c.h.b16 %v346
    %v5655 = vunpack.c.l.b16 %v347
    %v5656 = vunpack.c.h.b16 %v347
    %v5657 = vunpack.c.l.b16 %v348
    %v5658 = vunpack.c.h.b16 %v348
    %v5659 = vunpack.c.l.b16 %v349
    %v5660 = vunpack.c.h.b16 %v349
    %v5661 = vunpack.c.l.b16 %v350
    %v5662 = vunpack.c.h.b16 %v350
    %v5663 = vunpack.c.l.b16 %v351
    %v5664 = vunpack.c.h.b16 %v351
    %v5665 = vunpack.c.l.b16 %v352
    %v5666 = vunpack.c.h.b16 %v352
    %v5667 = vunpack.c.l.b16 %v353
    %v5668 = vunpack.c.h.b16 %v353
    %v5669 = vunpack.c.l.b16 %v354
    %v5670 = vunpack.c.h.b16 %v354
    %v5671 = vunpack.c.l.b16 %v355
    %v5672 = vunpack.c.h.b16 %v355
    %v5673 = vunpack.c.l.b16 %v356
    %v5674 = vunpack.c.h.b16 %v356
    %v5675 = vunpack.c.l.b16 %v357
    %v5676 = vunpack.c.h.b16 %v357
    %v5677 = vunpack.c.l.b16 %v358
    %v5678 = vunpack.c.h.b16 %v358
    %v5679 = vunpack.c.l.b16 %v359
    %v5680 = vunpack.c.h.b16 %v359
    %v5681 = vunpack.c.l.b16 %v360
    %v5682 = vunpack.c.h.b16 %v360
    %v5683 = vunpack.c.l.b16 %v361
    %v5684 = vunpack.c.h.b16 %v361
    %v5685 = vunpack.c.l.b16 %v362
    %v5686 = vunpack.c.h.b16 %v362
    %v5687 = vunpack.c.l.b16 %v363
    %v5688 = vunpack.c.h.b16 %v363
    %v5689 = vunpack.c.l.b16 %v364
    %v5690 = vunpack.c.h.b16 %v364
    %v5691 = vunpack.c.l.b16 %v365
    %v5692 = vunpack.c.h.b16 %v365
    %v5693 = vunpack.c.l.b16 %v366
    %v5694 = vunpack.c.h.b16 %v366
    %v5695 = vunpack.c.l.b16 %v367
    %v5696 = vunpack.c.h.b16 %v367
    %v5697 = vunpack.c.l.b16 %v368
    %v5698 = vunpack.c.h.b16 %v368
    %v5699 = vunpack.c.l.b16 %v369
    %v5700 = vunpack.c.h.b16 %v369
    %v5701 = vunpack.c.l.b16 %v370
    %v5702 = vunpack.c.h.b16 %v370
    %v5703 = vunpack.c.l.b16 %v371
    %v5704 = vunpack.c.h.b16 %v371
    %v5705 = vunpack.c.l.b16 %v372
    %v5706 = vunpack.c.h.b16 %v372
    %v5707 = vunpack.c.l.b16 %v373
    %v5708 = vunpack.c.h.b16 %v373
    %v5709 = vunpack.c.l.b16 %v374
    %v5710 = vunpack.c.h.b16 %v374
    %v5711 = vunpack.c.l.b16 %v375
    %v5712 = vunpack.c.h.b16 %v375
    %v5713 = vpack.c.b16 %v5461, %v5457
    %v5714 = vpack.c.b16 %v5462, %v5458
    %v5715 = vpack.c.b16 %v5463, %v5459
    %v5716 = vpack.c.b16 %v5464, %v5460
    %v5717 = vpack.c.b16 %v5469, %v5465
    %v5718 = vpack.c.b16 %v5470, %v5466
    %v5719 = vpack.c.b16 %v5471, %v5467
    %v5720 = vpack.c.b16 %v5472, %v5468
    %v5721 = vpack.c.b16 %v5477, %v5473
    %v5722 = vpack.c.b16 %v5478, %v5474
    %v5723 = vpack.c.b16 %v5479, %v5475
    %v5724 = vpack.c.b16 %v5480, %v5476
    %v5725 = vpack.c.b16 %v5485, %v5481
    %v5726 = vpack.c.b16 %v5486, %v5482
    %v5727 = vpack.c.b16 %v5487, %v5483
    %v5728 = vpack.c.b16 %v5488, %v5484
    %v5729 = vpack.c.b16 %v5493, %v5489
    %v5730 = vpack.c.b16 %v5494, %v5490
    %v5731 = vpack.c.b16 %v5495, %v5491
    %v5732 = vpack.c.b16 %v5496, %v5492
    %v5733 = vpack.c.b16 %v5501, %v5497
    %v5734 = vpack.c.b16 %v5502, %v5498
    %v5735 = vpack.c.b16 %v5503, %v5499
    %v5736 = vpack.c.b16 %v5504, %v5500
    %v5737 = vpack.c.b16 %v5509, %v5505
    %v5738 = vpack.c.b16 %v5510, %v5506
    %v5739 = vpack.c.b16 %v5511, %v5507
    %v5740 = vpack.c.b16 %v5512, %v5508
    %v5741 = vpack.c.b16 %v5517, %v5513
    %v5742 = vpack.c.b16 %v5518, %v5514
    %v5743 = vpack.c.b16 %v5519, %v5515
    %v5744 = vpack.c.b16 %v5520, %v5516
    %v5745 = vpack.c.b16 %v5525, %v5521
    %v5746 = vpack.c.b16 %v5526, %v5522
    %v5747 = vpack.c.b16 %v5527, %v5523
    %v5748 = vpack.c.b16 %v5528, %v5524
    %v5749 = vpack.c.b16 %v5533, %v5529
    %v5750 = vpack.c.b16 %v5534, %v5530
    %v5751 = vpack.c.b16 %v5535, %v5531
    %v5752 = vpack.c.b16 %v5536, %v5532
    %v5753 = vpack.c.b16 %v5541, %v5537
    %v5754 = vpack.c.b16 %v5542, %v5538
    %v5755 = vpack.c.b16 %v5543, %v5539
    %v5756 = vpack.c.b16 %v5544, %v5540
    %v5757 = vpack.c.b16 %v5549, %v5545
    %v5758 = vpack.c.b16 %v5550, %v5546
    %v5759 = vpack.c.b16 %v5551, %v5547
    %v5760 = vpack.c.b16 %v5552, %v5548
    %v5761 = vpack.c.b16 %v5557, %v5553
    %v5762 = vpack.c.b16 %v5558, %v5554
    %v5763 = vpack.c.b16 %v5559, %v5555
    %v5764 = vpack.c.b16 %v5560, %v5556
    %v5765 = vpack.c.b16 %v5565, %v5561
    %v5766 = vpack.c.b16 %v5566, %v5562
    %v5767 = vpack.c.b16 %v5567, %v5563
    %v5768 = vpack.c.b16 %v5568, %v5564
    %v5769 = vpack.c.b16 %v5573, %v5569
    %v5770 = vpack.c.b16 %v5574, %v5570
    %v5771 = vpack.c.b16 %v5575, %v5571
    %v5772 = vpack.c.b16 %v5576, %v5572
    %v5773 = vpack.c.b16 %v5581, %v5577
    %v5774 = vpack.c.b16 %v5582, %v5578
    %v5775 = vpack.c.b16 %v5583, %v5579
    %v5776 = vpack.c.b16 %v5584, %v5580
    %v5777 = vpack.c.b16 %v5589, %v5585
    %v5778 = vpack.c.b16 %v5590, %v5586
    %v5779 = vpack.c.b16 %v5591, %v5587
    %v5780 = vpack.c.b16 %v5592, %v5588
    %v5781 = vpack.c.b16 %v5597, %v5593
    %v5782 = vpack.c.b16 %v5598, %v5594
    %v5783 = vpack.c.b16 %v5599, %v5595
    %v5784 = vpack.c.b16 %v5600, %v5596
    %v5785 = vpack.c.b16 %v5605, %v5601
    %v5786 = vpack.c.b16 %v5606, %v5602
    %v5787 = vpack.c.b16 %v5607, %v5603
    %v5788 = vpack.c.b16 %v5608, %v5604
    %v5789 = vpack.c.b16 %v5613, %v5609
    %v5790 = vpack.c.b16 %v5614, %v5610
    %v5791 = vpack.c.b16 %v5615, %v5611
    %v5792 = vpack.c.b16 %v5616, %v5612
    %v5793 = vpack.c.b16 %v5621, %v5617
    %v5794 = vpack.c.b16 %v5622, %v5618
    %v5795 = vpack.c.b16 %v5623, %v5619
    %v5796 = vpack.c.b16 %v5624, %v5620
    %v5797 = vpack.c.b16 %v5629, %v5625
    %v5798 = vpack.c.b16 %v5630, %v5626
    %v5799 = vpack.c.b16 %v5631, %v5627
    %v5800 = vpack.c.b16 %v5632, %v5628
    %v5801 = vpack.c.b16 %v5637, %v5633
    %v5802 = vpack.c.b16 %v5638, %v5634
    %v5803 = vpack.c.b16 %v5639, %v5635
    %v5804 = vpack.c.b16 %v5640, %v5636
    %v5805 = vpack.c.b16 %v5645, %v5641
    %v5806 = vpack.c.b16 %v5646, %v5642
    %v5807 = vpack.c.b16 %v5647, %v5643
    %v5808 = vpack.c.b16 %v5648, %v5644
    %v5809 = vpack.c.b16 %v5653, %v5649
    %v5810 = vpack.c.b16 %v5654, %v5650
    %v5811 = vpack.c.b16 %v5655, %v5651
    %v5812 = vpack.c.b16 %v5656, %v5652
    %v5813 = vpack.c.b16 %v5661, %v5657
    %v5814 = vpack.c.b16 %v5662, %v5658
    %v5815 = vpack.c.b16 %v5663, %v5659
    %v5816 = vpack.c.b16 %v5664, %v5660
    %v5817 = vpack.c.b16 %v5669, %v5665
    %v5818 = vpack.c.b16 %v5670, %v5666
    %v5819 = vpack.c.b16 %v5671, %v5667
    %v5820 = vpack.c.b16 %v5672, %v5668
    %v5821 = vpack.c.b16 %v5677, %v5673
    %v5822 = vpack.c.b16 %v5678, %v5674
    %v5823 = vpack.c.b16 %v5679, %v5675
    %v5824 = vpack.c.b16 %v5680, %v5676
    %v5825 = vpack.c.b16 %v5685, %v5681
    %v5826 = vpack.c.b16 %v5686, %v5682
    %v5827 = vpack.c.b16 %v5687, %v5683
    %v5828 = vpack.c.b16 %v5688, %v5684
    %v5829 = vpack.c.b16 %v5693, %v5689
    %v5830 = vpack.c.b16 %v5694, %v5690
    %v5831 = vpack.c.b16 %v5695, %v5691
    %v5832 = vpack.c.b16 %v5696, %v5692
    %v5833 = vpack.c.b16 %v5701, %v5697
    %v5834 = vpack.c.b16 %v5702, %v5698
    %v5835 = vpack.c.b16 %v5703, %v5699
    %v5836 = vpack.c.b16 %v5704, %v5700
    %v5837 = vpack.c.b16 %v5709, %v5705
    %v5838 = vpack.c.b16 %v5710, %v5706
    %v5839 = vpack.c.b16 %v5711, %v5707
    %v5840 = vpack.c.b16 %v5712, %v5708
    %5969 = vmatpush.bf16.msra.mxu0 %v5741
    %5970 = vmatpush.bf16.msra.mxu0 %v5737
    %5971 = vmatpush.bf16.msra.mxu0 %v5733
    %5972 = vmatpush.bf16.msra.mxu0 %v5729
    %5973 = vmatpush.bf16.msra.mxu0 %v5725
    %5974 = vmatpush.bf16.msra.mxu0 %v5721
    %5975 = vmatpush.bf16.msra.mxu0 %v5717
    %5976 = vmatpush.bf16.msra.mxu0 %v5713
    %5977 = vmatmul.bf16.gmra.mxu0 %v5316
    %v5978 = vpop.f32.mrf.mxu0
    %v5979 = vadd.f32 %v5321, %v5978
    %v5980 = vpop.f32.mrf.mxu0
    %5981 = vdwg.mxu0
    %5982 = vmatpush.bf16.msra.mxu0 %v5773
    %5983 = vmatpush.bf16.msra.mxu0 %v5769
    %5984 = vmatpush.bf16.msra.mxu0 %v5765
    %5985 = vmatpush.bf16.msra.mxu0 %v5761
    %5986 = vmatpush.bf16.msra.mxu0 %v5757
    %5987 = vmatpush.bf16.msra.mxu0 %v5753
    %5988 = vmatpush.bf16.msra.mxu0 %v5749
    %5989 = vmatpush.bf16.msra.mxu0 %v5745
    %5990 = vmatmul.bf16.gmra.mxu0 %v5317
    %v5991 = vpop.f32.mrf.mxu0
    %v5992 = vadd.f32 %v5979, %v5991
    %v5993 = vpop.f32.mrf.mxu0
    %5994 = vdwg.mxu0
    %5995 = vmatpush.bf16.msra.mxu0 %v5805
    %5996 = vmatpush.bf16.msra.mxu0 %v5801
    %5997 = vmatpush.bf16.msra.mxu0 %v5797
    %5998 = vmatpush.bf16.msra.mxu0 %v5793
    %5999 = vmatpush.bf16.msra.mxu0 %v5789
    %6000 = vmatpush.bf16.msra.mxu0 %v5785
    %6001 = vmatpush.bf16.msra.mxu0 %v5781
    %6002 = vmatpush.bf16.msra.mxu0 %v5777
    %6003 = vmatmul.bf16.gmra.mxu0 %v5318
    %v6004 = vpop.f32.mrf.mxu0
    %v6005 = vadd.f32 %v5992, %v6004
    %v6006 = vpop.f32.mrf.mxu0
    %6007 = vdwg.mxu0
    %6008 = vmatpush.bf16.msra.mxu0 %v5837
    %6009 = vmatpush.bf16.msra.mxu0 %v5833
    %6010 = vmatpush.bf16.msra.mxu0 %v5829
    %6011 = vmatpush.bf16.msra.mxu0 %v5825
    %6012 = vmatpush.bf16.msra.mxu0 %v5821
    %6013 = vmatpush.bf16.msra.mxu0 %v5817
    %6014 = vmatpush.bf16.msra.mxu0 %v5813
    %6015 = vmatpush.bf16.msra.mxu0 %v5809
    %6016 = vmatmul.bf16.gmra.mxu0 %v5319
    %v6017 = vpop.f32.mrf.mxu0
    %v6018 = vadd.f32 %v6005, %v6017
    %v6019 = vpop.f32.mrf.mxu0
    %6020 = vdwg.mxu0
    %6021 = vmatpush.bf16.msra.mxu0 %v5742
    %6022 = vmatpush.bf16.msra.mxu0 %v5738
    %6023 = vmatpush.bf16.msra.mxu0 %v5734
    %6024 = vmatpush.bf16.msra.mxu0 %v5730
    %6025 = vmatpush.bf16.msra.mxu0 %v5726
    %6026 = vmatpush.bf16.msra.mxu0 %v5722
    %6027 = vmatpush.bf16.msra.mxu0 %v5718
    %6028 = vmatpush.bf16.msra.mxu0 %v5714
    %6029 = vmatmul.bf16.gmra.mxu0 %v5316
    %v6030 = vpop.f32.mrf.mxu0
    %v6031 = vadd.f32 %v5322, %v6030
    %v6032 = vpop.f32.mrf.mxu0
    %6033 = vdwg.mxu0
    %6034 = vmatpush.bf16.msra.mxu0 %v5774
    %6035 = vmatpush.bf16.msra.mxu0 %v5770
    %6036 = vmatpush.bf16.msra.mxu0 %v5766
    %6037 = vmatpush.bf16.msra.mxu0 %v5762
    %6038 = vmatpush.bf16.msra.mxu0 %v5758
    %6039 = vmatpush.bf16.msra.mxu0 %v5754
    %6040 = vmatpush.bf16.msra.mxu0 %v5750
    %6041 = vmatpush.bf16.msra.mxu0 %v5746
    %6042 = vmatmul.bf16.gmra.mxu0 %v5317
    %v6043 = vpop.f32.mrf.mxu0
    %v6044 = vadd.f32 %v6031, %v6043
    %v6045 = vpop.f32.mrf.mxu0
    %6046 = vdwg.mxu0
    %6047 = vmatpush.bf16.msra.mxu0 %v5806
    %6048 = vmatpush.bf16.msra.mxu0 %v5802
    %6049 = vmatpush.bf16.msra.mxu0 %v5798
    %6050 = vmatpush.bf16.msra.mxu0 %v5794
    %6051 = vmatpush.bf16.msra.mxu0 %v5790
    %6052 = vmatpush.bf16.msra.mxu0 %v5786
    %6053 = vmatpush.bf16.msra.mxu0 %v5782
    %6054 = vmatpush.bf16.msra.mxu0 %v5778
    %6055 = vmatmul.bf16.gmra.mxu0 %v5318
    %v6056 = vpop.f32.mrf.mxu0
    %v6057 = vadd.f32 %v6044, %v6056
    %v6058 = vpop.f32.mrf.mxu0
    %6059 = vdwg.mxu0
    %6060 = vmatpush.bf16.msra.mxu0 %v5838
    %6061 = vmatpush.bf16.msra.mxu0 %v5834
    %6062 = vmatpush.bf16.msra.mxu0 %v5830
    %6063 = vmatpush.bf16.msra.mxu0 %v5826
    %6064 = vmatpush.bf16.msra.mxu0 %v5822
    %6065 = vmatpush.bf16.msra.mxu0 %v5818
    %6066 = vmatpush.bf16.msra.mxu0 %v5814
    %6067 = vmatpush.bf16.msra.mxu0 %v5810
    %6068 = vmatmul.bf16.gmra.mxu0 %v5319
    %v6069 = vpop.f32.mrf.mxu0
    %v6070 = vadd.f32 %v6057, %v6069
    %v6071 = vpop.f32.mrf.mxu0
    %6072 = vdwg.mxu0
    %6073 = vmatpush.bf16.msra.mxu0 %v5743
    %6074 = vmatpush.bf16.msra.mxu0 %v5739
    %6075 = vmatpush.bf16.msra.mxu0 %v5735
    %6076 = vmatpush.bf16.msra.mxu0 %v5731
    %6077 = vmatpush.bf16.msra.mxu0 %v5727
    %6078 = vmatpush.bf16.msra.mxu0 %v5723
    %6079 = vmatpush.bf16.msra.mxu0 %v5719
    %6080 = vmatpush.bf16.msra.mxu0 %v5715
    %6081 = vmatmul.bf16.gmra.mxu0 %v5316
    %v6082 = vpop.f32.mrf.mxu0
    %v6083 = vadd.f32 %v5323, %v6082
    %v6084 = vpop.f32.mrf.mxu0
    %6085 = vdwg.mxu0
    %6086 = vmatpush.bf16.msra.mxu0 %v5775
    %6087 = vmatpush.bf16.msra.mxu0 %v5771
    %6088 = vmatpush.bf16.msra.mxu0 %v5767
    %6089 = vmatpush.bf16.msra.mxu0 %v5763
    %6090 = vmatpush.bf16.msra.mxu0 %v5759
    %6091 = vmatpush.bf16.msra.mxu0 %v5755
    %6092 = vmatpush.bf16.msra.mxu0 %v5751
    %6093 = vmatpush.bf16.msra.mxu0 %v5747
    %6094 = vmatmul.bf16.gmra.mxu0 %v5317
    %v6095 = vpop.f32.mrf.mxu0
    %v6096 = vadd.f32 %v6083, %v6095
    %v6097 = vpop.f32.mrf.mxu0
    %6098 = vdwg.mxu0
    %6099 = vmatpush.bf16.msra.mxu0 %v5807
    %6100 = vmatpush.bf16.msra.mxu0 %v5803
    %6101 = vmatpush.bf16.msra.mxu0 %v5799
    %6102 = vmatpush.bf16.msra.mxu0 %v5795
    %6103 = vmatpush.bf16.msra.mxu0 %v5791
    %6104 = vmatpush.bf16.msra.mxu0 %v5787
    %6105 = vmatpush.bf16.msra.mxu0 %v5783
    %6106 = vmatpush.bf16.msra.mxu0 %v5779
    %6107 = vmatmul.bf16.gmra.mxu0 %v5318
    %v6108 = vpop.f32.mrf.mxu0
    %v6109 = vadd.f32 %v6096, %v6108
    %v6110 = vpop.f32.mrf.mxu0
    %6111 = vdwg.mxu0
    %6112 = vmatpush.bf16.msra.mxu0 %v5839
    %6113 = vmatpush.bf16.msra.mxu0 %v5835
    %6114 = vmatpush.bf16.msra.mxu0 %v5831
    %6115 = vmatpush.bf16.msra.mxu0 %v5827
    %6116 = vmatpush.bf16.msra.mxu0 %v5823
    %6117 = vmatpush.bf16.msra.mxu0 %v5819
    %6118 = vmatpush.bf16.msra.mxu0 %v5815
    %6119 = vmatpush.bf16.msra.mxu0 %v5811
    %6120 = vmatmul.bf16.gmra.mxu0 %v5319
    %v6121 = vpop.f32.mrf.mxu0
    %v6122 = vadd.f32 %v6109, %v6121
    %v6123 = vpop.f32.mrf.mxu0
    %6124 = vdwg.mxu0
    %6125 = vmatpush.bf16.msra.mxu0 %v5744
    %6126 = vmatpush.bf16.msra.mxu0 %v5740
    %6127 = vmatpush.bf16.msra.mxu0 %v5736
    %6128 = vmatpush.bf16.msra.mxu0 %v5732
    %6129 = vmatpush.bf16.msra.mxu0 %v5728
    %6130 = vmatpush.bf16.msra.mxu0 %v5724
    %6131 = vmatpush.bf16.msra.mxu0 %v5720
    %6132 = vmatpush.bf16.msra.mxu0 %v5716
    %6133 = vmatmul.bf16.gmra.mxu0 %v5316
    %v6134 = vpop.f32.mrf.mxu0
    %v6135 = vadd.f32 %v5324, %v6134
    %v6136 = vpop.f32.mrf.mxu0
    %6137 = vdwg.mxu0
    %6138 = vmatpush.bf16.msra.mxu0 %v5776
    %6139 = vmatpush.bf16.msra.mxu0 %v5772
    %6140 = vmatpush.bf16.msra.mxu0 %v5768
    %6141 = vmatpush.bf16.msra.mxu0 %v5764
    %6142 = vmatpush.bf16.msra.mxu0 %v5760
    %6143 = vmatpush.bf16.msra.mxu0 %v5756
    %6144 = vmatpush.bf16.msra.mxu0 %v5752
    %6145 = vmatpush.bf16.msra.mxu0 %v5748
    %6146 = vmatmul.bf16.gmra.mxu0 %v5317
    %v6147 = vpop.f32.mrf.mxu0
    %v6148 = vadd.f32 %v6135, %v6147
    %v6149 = vpop.f32.mrf.mxu0
    %6150 = vdwg.mxu0
    %6151 = vmatpush.bf16.msra.mxu0 %v5808
    %6152 = vmatpush.bf16.msra.mxu0 %v5804
    %6153 = vmatpush.bf16.msra.mxu0 %v5800
    %6154 = vmatpush.bf16.msra.mxu0 %v5796
    %6155 = vmatpush.bf16.msra.mxu0 %v5792
    %6156 = vmatpush.bf16.msra.mxu0 %v5788
    %6157 = vmatpush.bf16.msra.mxu0 %v5784
    %6158 = vmatpush.bf16.msra.mxu0 %v5780
    %6159 = vmatmul.bf16.gmra.mxu0 %v5318
    %v6160 = vpop.f32.mrf.mxu0
    %v6161 = vadd.f32 %v6148, %v6160
    %v6162 = vpop.f32.mrf.mxu0
    %6163 = vdwg.mxu0
    %6164 = vmatpush.bf16.msra.mxu0 %v5840
    %6165 = vmatpush.bf16.msra.mxu0 %v5836
    %6166 = vmatpush.bf16.msra.mxu0 %v5832
    %6167 = vmatpush.bf16.msra.mxu0 %v5828
    %6168 = vmatpush.bf16.msra.mxu0 %v5824
    %6169 = vmatpush.bf16.msra.mxu0 %v5820
    %6170 = vmatpush.bf16.msra.mxu0 %v5816
    %6171 = vmatpush.bf16.msra.mxu0 %v5812
    %6172 = vmatmul.bf16.gmra.mxu0 %v5319
    %v6173 = vpop.f32.mrf.mxu0
    %v6174 = vadd.f32 %v6161, %v6173
    %v6175 = vpop.f32.mrf.mxu0
    %6176 = vdwg.mxu0
    %v6177 = vmul.f32 %v6018, %v6018
    %v6178 = vmul.f32 %v6070, %v6070
    %v6179 = vmul.f32 %v6122, %v6122
    %v6180 = vmul.f32 %v6174, %v6174
    %vm6181 = vcmask 1041408
    %v6182 = vsel %vm6181, %v6177, 0.0
    %v6183 = vsel %vm6181, %v6178, 0.0
    %v6184 = vadd.f32 %v6182, %v6183
    %v6185 = vsel %vm6181, %v6179, 0.0
    %v6186 = vadd.f32 %v6184, %v6185
    %v6187 = vsel %vm6181, %v6180, 0.0
    %v6188 = vadd.f32 %v6186, %v6187
    %6189 = vadd.xlane.f32.xlu0 %v6188
    %v6190 = vpop.xlane.xlu0 %6189
    %v6191 = vadd.f32 %v6190, 1e-12
    %v6192 = vrsqrt.pop %v6191
    %v6193 = vmul.f32 %v6192, %v6191
    %v6194 = vmul.f32 %v6193, %v6192
    %v6195 = vmul.f32 0.5, %v6194
    %v6196 = vsub.f32 1.5, %v6195
    %v6197 = vmul.f32 %v6192, %v6196
    %vm6198 = vweird.f32 %v6191
    %vm6199 = vweird.f32 %v6192
    %vm6200 = vmor %vm6198, %vm6199
    %v6201 = vsel %vm6200, %v6192, %v6197
    %v6202 = vmul.f32 %v6018, %v6201
    %v6203 = vmul.f32 %v6070, %v6201
    %v6204 = vmul.f32 %v6122, %v6201
    %v6205 = vmul.f32 %v6174, %v6201
    %v6206 = vld [vmem:[#allocation5] sm:$0xff]
    %v6207 = vld [vmem:[#allocation5 + $0x8] sm:$0xff]
    %v6208 = vld [vmem:[#allocation5 + $0x10] sm:$0xff]
    %v6209 = vld [vmem:[#allocation5 + $0x18] sm:$0xff]
    %v6210 = vld [vmem:[#allocation5 + $0x20] sm:$0xff]
    %v6211 = vld [vmem:[#allocation5 + $0x28] sm:$0xff]
    %v6212 = vld [vmem:[#allocation5 + $0x30] sm:$0xff]
    %v6213 = vld [vmem:[#allocation5 + $0x38] sm:$0xff]
    %v6214 = vld [vmem:[#allocation5 + $0x40] sm:$0xff]
    %v6215 = vld [vmem:[#allocation5 + $0x48] sm:$0xff]
    %v6216 = vld [vmem:[#allocation5 + $0x50] sm:$0xff]
    %v6217 = vld [vmem:[#allocation5 + $0x58] sm:$0xff]
    %v6218 = vld [vmem:[#allocation5 + $0x60] sm:$0xff]
    %v6219 = vld [vmem:[#allocation5 + $0x68] sm:$0xff]
    %v6220 = vld [vmem:[#allocation5 + $0x70] sm:$0xff]
    %v6221 = vld [vmem:[#allocation5 + $0x78] sm:$0xff]
    %v6222 = vld [vmem:[#allocation5 + $0x80] sm:$0xff]
    %v6223 = vld [vmem:[#allocation5 + $0x88] sm:$0xff]
    %v6224 = vld [vmem:[#allocation5 + $0x90] sm:$0xff]
    %v6225 = vld [vmem:[#allocation5 + $0x98] sm:$0xff]
    %v6226 = vld [vmem:[#allocation5 + $0xa0] sm:$0xff]
    %v6227 = vld [vmem:[#allocation5 + $0xa8] sm:$0xff]
    %v6228 = vld [vmem:[#allocation5 + $0xb0] sm:$0xff]
    %v6229 = vld [vmem:[#allocation5 + $0xb8] sm:$0xff]
    %v6230 = vld [vmem:[#allocation5 + $0xc0] sm:$0xff]
    %v6231 = vld [vmem:[#allocation5 + $0xc8] sm:$0xff]
    %v6232 = vld [vmem:[#allocation5 + $0xd0] sm:$0xff]
    %v6233 = vld [vmem:[#allocation5 + $0xd8] sm:$0xff]
    %v6234 = vld [vmem:[#allocation5 + $0xe0] sm:$0xff]
    %v6235 = vld [vmem:[#allocation5 + $0xe8] sm:$0xff]
    %v6236 = vld [vmem:[#allocation5 + $0xf0] sm:$0xff]
    %v6237 = vld [vmem:[#allocation5 + $0xf8] sm:$0xff]
    %v6238 = vld [vmem:[#allocation5 + $0x100] sm:$0xff]
    %v6239 = vld [vmem:[#allocation5 + $0x108] sm:$0xff]
    %v6240 = vld [vmem:[#allocation5 + $0x110] sm:$0xff]
    %v6241 = vld [vmem:[#allocation5 + $0x118] sm:$0xff]
    %v6242 = vld [vmem:[#allocation5 + $0x120] sm:$0xff]
    %v6243 = vld [vmem:[#allocation5 + $0x128] sm:$0xff]
    %v6244 = vld [vmem:[#allocation5 + $0x130] sm:$0xff]
    %v6245 = vld [vmem:[#allocation5 + $0x138] sm:$0xff]
    %v6246 = vld [vmem:[#allocation5 + $0x140] sm:$0xff]
    %v6247 = vld [vmem:[#allocation5 + $0x148] sm:$0xff]
    %v6248 = vld [vmem:[#allocation5 + $0x150] sm:$0xff]
    %v6249 = vld [vmem:[#allocation5 + $0x158] sm:$0xff]
    %v6250 = vld [vmem:[#allocation5 + $0x160] sm:$0xff]
    %v6251 = vld [vmem:[#allocation5 + $0x168] sm:$0xff]
    %v6252 = vld [vmem:[#allocation5 + $0x170] sm:$0xff]
    %v6253 = vld [vmem:[#allocation5 + $0x178] sm:$0xff]
    %v6254 = vld [vmem:[#allocation5 + $0x180] sm:$0xff]
    %v6255 = vld [vmem:[#allocation5 + $0x188] sm:$0xff]
    %v6256 = vld [vmem:[#allocation5 + $0x190] sm:$0xff]
    %v6257 = vld [vmem:[#allocation5 + $0x198] sm:$0xff]
    %v6258 = vld [vmem:[#allocation5 + $0x1a0] sm:$0xff]
    %v6259 = vld [vmem:[#allocation5 + $0x1a8] sm:$0xff]
    %v6260 = vld [vmem:[#allocation5 + $0x1b0] sm:$0xff]
    %v6261 = vld [vmem:[#allocation5 + $0x1b8] sm:$0xff]
    %v6262 = vld [vmem:[#allocation5 + $0x1c0] sm:$0xff]
    %v6263 = vld [vmem:[#allocation5 + $0x1c8] sm:$0xff]
    %v6264 = vld [vmem:[#allocation5 + $0x1d0] sm:$0xff]
    %v6265 = vld [vmem:[#allocation5 + $0x1d8] sm:$0xff]
    %v6266 = vld [vmem:[#allocation5 + $0x1e0] sm:$0xff]
    %v6267 = vld [vmem:[#allocation5 + $0x1e8] sm:$0xff]
    %v6268 = vld [vmem:[#allocation5 + $0x1f0] sm:$0xff]
    %v6269 = vld [vmem:[#allocation5 + $0x1f8] sm:$0xff]
    %v6270 = vld [vmem:[#allocation5 + $0x200] sm:$0xff]
    %v6271 = vld [vmem:[#allocation5 + $0x208] sm:$0xff]
    %v6272 = vld [vmem:[#allocation5 + $0x210] sm:$0xff]
    %v6273 = vld [vmem:[#allocation5 + $0x218] sm:$0xff]
    %v6274 = vld [vmem:[#allocation5 + $0x220] sm:$0xff]
    %v6275 = vld [vmem:[#allocation5 + $0x228] sm:$0xff]
    %v6276 = vld [vmem:[#allocation5 + $0x230] sm:$0xff]
    %v6277 = vld [vmem:[#allocation5 + $0x238] sm:$0xff]
    %v6278 = vld [vmem:[#allocation5 + $0x240] sm:$0xff]
    %v6279 = vld [vmem:[#allocation5 + $0x248] sm:$0xff]
    %v6280 = vld [vmem:[#allocation5 + $0x250] sm:$0xff]
    %v6281 = vld [vmem:[#allocation5 + $0x258] sm:$0xff]
    %v6282 = vld [vmem:[#allocation5 + $0x260] sm:$0xff]
    %v6283 = vld [vmem:[#allocation5 + $0x268] sm:$0xff]
    %v6284 = vld [vmem:[#allocation5 + $0x270] sm:$0xff]
    %v6285 = vld [vmem:[#allocation5 + $0x278] sm:$0xff]
    %v6286 = vld [vmem:[#allocation5 + $0x280] sm:$0xff]
    %v6287 = vld [vmem:[#allocation5 + $0x288] sm:$0xff]
    %v6288 = vld [vmem:[#allocation5 + $0x290] sm:$0xff]
    %v6289 = vld [vmem:[#allocation5 + $0x298] sm:$0xff]
    %v6290 = vld [vmem:[#allocation5 + $0x2a0] sm:$0xff]
    %v6291 = vld [vmem:[#allocation5 + $0x2a8] sm:$0xff]
    %v6292 = vld [vmem:[#allocation5 + $0x2b0] sm:$0xff]
    %v6293 = vld [vmem:[#allocation5 + $0x2b8] sm:$0xff]
    %v6294 = vld [vmem:[#allocation5 + $0x2c0] sm:$0xff]
    %v6295 = vld [vmem:[#allocation5 + $0x2c8] sm:$0xff]
    %v6296 = vld [vmem:[#allocation5 + $0x2d0] sm:$0xff]
    %v6297 = vld [vmem:[#allocation5 + $0x2d8] sm:$0xff]
    %v6298 = vld [vmem:[#allocation5 + $0x2e0] sm:$0xff]
    %v6299 = vld [vmem:[#allocation5 + $0x2e8] sm:$0xff]
    %v6300 = vld [vmem:[#allocation5 + $0x2f0] sm:$0xff]
    %v6301 = vld [vmem:[#allocation5 + $0x2f8] sm:$0xff]
    %v6302 = vld [vmem:[#allocation5 + $0x300] sm:$0xff]
    %v6303 = vld [vmem:[#allocation5 + $0x308] sm:$0xff]
    %v6304 = vld [vmem:[#allocation5 + $0x310] sm:$0xff]
    %v6305 = vld [vmem:[#allocation5 + $0x318] sm:$0xff]
    %v6306 = vld [vmem:[#allocation5 + $0x320] sm:$0xff]
    %v6307 = vld [vmem:[#allocation5 + $0x328] sm:$0xff]
    %v6308 = vld [vmem:[#allocation5 + $0x330] sm:$0xff]
    %v6309 = vld [vmem:[#allocation5 + $0x338] sm:$0xff]
    %v6310 = vld [vmem:[#allocation5 + $0x340] sm:$0xff]
    %v6311 = vld [vmem:[#allocation5 + $0x348] sm:$0xff]
    %v6312 = vld [vmem:[#allocation5 + $0x350] sm:$0xff]
    %v6313 = vld [vmem:[#allocation5 + $0x358] sm:$0xff]
    %v6314 = vld [vmem:[#allocation5 + $0x360] sm:$0xff]
    %v6315 = vld [vmem:[#allocation5 + $0x368] sm:$0xff]
    %v6316 = vld [vmem:[#allocation5 + $0x370] sm:$0xff]
    %v6317 = vld [vmem:[#allocation5 + $0x378] sm:$0xff]
    %v6318 = vld [vmem:[#allocation5 + $0x380] sm:$0xff]
    %v6319 = vld [vmem:[#allocation5 + $0x388] sm:$0xff]
    %v6320 = vld [vmem:[#allocation5 + $0x390] sm:$0xff]
    %v6321 = vld [vmem:[#allocation5 + $0x398] sm:$0xff]
    %v6322 = vld [vmem:[#allocation5 + $0x3a0] sm:$0xff]
    %v6323 = vld [vmem:[#allocation5 + $0x3a8] sm:$0xff]
    %v6324 = vld [vmem:[#allocation5 + $0x3b0] sm:$0xff]
    %v6325 = vld [vmem:[#allocation5 + $0x3b8] sm:$0xff]
    %v6326 = vld [vmem:[#allocation5 + $0x3c0] sm:$0xff]
    %v6327 = vld [vmem:[#allocation5 + $0x3c8] sm:$0xff]
    %v6328 = vld [vmem:[#allocation5 + $0x3d0] sm:$0xff]
    %v6329 = vld [vmem:[#allocation5 + $0x3d8] sm:$0xff]
    %v6330 = vld [vmem:[#allocation5 + $0x3e0] sm:$0xff]
    %v6331 = vld [vmem:[#allocation5 + $0x3e8] sm:$0xff]
    %v6332 = vld [vmem:[#allocation5 + $0x3f0] sm:$0xff]
    %v6333 = vld [vmem:[#allocation5 + $0x3f8] sm:$0xff]
    %v6334 = vld [vmem:[#allocation5 + $0x400] sm:$0xff]
    %v6335 = vld [vmem:[#allocation5 + $0x408] sm:$0xff]
    %v6336 = vld [vmem:[#allocation5 + $0x410] sm:$0xff]
    %v6337 = vld [vmem:[#allocation5 + $0x418] sm:$0xff]
    %v6338 = vld [vmem:[#allocation5 + $0x420] sm:$0xff]
    %v6339 = vld [vmem:[#allocation5 + $0x428] sm:$0xff]
    %v6340 = vld [vmem:[#allocation5 + $0x430] sm:$0xff]
    %v6341 = vld [vmem:[#allocation5 + $0x438] sm:$0xff]
    %v6342 = vld [vmem:[#allocation5 + $0x440] sm:$0xff]
    %v6343 = vld [vmem:[#allocation5 + $0x448] sm:$0xff]
    %v6344 = vld [vmem:[#allocation5 + $0x450] sm:$0xff]
    %v6345 = vld [vmem:[#allocation5 + $0x458] sm:$0xff]
    %v6346 = vld [vmem:[#allocation5 + $0x460] sm:$0xff]
    %v6347 = vld [vmem:[#allocation5 + $0x468] sm:$0xff]
    %v6348 = vld [vmem:[#allocation5 + $0x470] sm:$0xff]
    %v6349 = vld [vmem:[#allocation5 + $0x478] sm:$0xff]
    %v6350 = vld [vmem:[#allocation5 + $0x480] sm:$0xff]
    %v6351 = vld [vmem:[#allocation5 + $0x488] sm:$0xff]
    %v6352 = vld [vmem:[#allocation5 + $0x490] sm:$0xff]
    %v6353 = vld [vmem:[#allocation5 + $0x498] sm:$0xff]
    %v6354 = vld [vmem:[#allocation5 + $0x4a0] sm:$0xff]
    %v6355 = vld [vmem:[#allocation5 + $0x4a8] sm:$0xff]
    %v6356 = vld [vmem:[#allocation5 + $0x4b0] sm:$0xff]
    %v6357 = vld [vmem:[#allocation5 + $0x4b8] sm:$0xff]
    %v6358 = vld [vmem:[#allocation5 + $0x4c0] sm:$0xff]
    %v6359 = vld [vmem:[#allocation5 + $0x4c8] sm:$0xff]
    %v6360 = vld [vmem:[#allocation5 + $0x4d0] sm:$0xff]
    %v6361 = vld [vmem:[#allocation5 + $0x4d8] sm:$0xff]
    %v6362 = vld [vmem:[#allocation5 + $0x4e0] sm:$0xff]
    %v6363 = vld [vmem:[#allocation5 + $0x4e8] sm:$0xff]
    %v6364 = vld [vmem:[#allocation5 + $0x4f0] sm:$0xff]
    %v6365 = vld [vmem:[#allocation5 + $0x4f8] sm:$0xff]
    %v6366 = vld [vmem:[#allocation5 + $0x500] sm:$0xff]
    %v6367 = vld [vmem:[#allocation5 + $0x508] sm:$0xff]
    %v6368 = vld [vmem:[#allocation5 + $0x510] sm:$0xff]
    %v6369 = vld [vmem:[#allocation5 + $0x518] sm:$0xff]
    %v6370 = vld [vmem:[#allocation5 + $0x520] sm:$0xff]
    %v6371 = vld [vmem:[#allocation5 + $0x528] sm:$0xff]
    %v6372 = vld [vmem:[#allocation5 + $0x530] sm:$0xff]
    %v6373 = vld [vmem:[#allocation5 + $0x538] sm:$0xff]
    %v6374 = vld [vmem:[#allocation5 + $0x540] sm:$0xff]
    %v6375 = vld [vmem:[#allocation5 + $0x548] sm:$0xff]
    %v6376 = vld [vmem:[#allocation5 + $0x550] sm:$0xff]
    %v6377 = vld [vmem:[#allocation5 + $0x558] sm:$0xff]
    %v6378 = vld [vmem:[#allocation5 + $0x560] sm:$0xff]
    %v6379 = vld [vmem:[#allocation5 + $0x568] sm:$0xff]
    %v6380 = vld [vmem:[#allocation5 + $0x570] sm:$0xff]
    %v6381 = vld [vmem:[#allocation5 + $0x578] sm:$0xff]
    %v6382 = vld [vmem:[#allocation5 + $0x580] sm:$0xff]
    %v6383 = vld [vmem:[#allocation5 + $0x588] sm:$0xff]
    %v6384 = vld [vmem:[#allocation5 + $0x590] sm:$0xff]
    %v6385 = vld [vmem:[#allocation5 + $0x598] sm:$0xff]
    %v6386 = vld [vmem:[#allocation5 + $0x5a0] sm:$0xff]
    %v6387 = vld [vmem:[#allocation5 + $0x5a8] sm:$0xff]
    %v6388 = vld [vmem:[#allocation5 + $0x5b0] sm:$0xff]
    %v6389 = vld [vmem:[#allocation5 + $0x5b8] sm:$0xff]
    %v6390 = vld [vmem:[#allocation5 + $0x5c0] sm:$0xff]
    %v6391 = vld [vmem:[#allocation5 + $0x5c8] sm:$0xff]
    %v6392 = vld [vmem:[#allocation5 + $0x5d0] sm:$0xff]
    %v6393 = vld [vmem:[#allocation5 + $0x5d8] sm:$0xff]
    %v6394 = vld [vmem:[#allocation5 + $0x5e0] sm:$0xff]
    %v6395 = vld [vmem:[#allocation5 + $0x5e8] sm:$0xff]
    %v6396 = vld [vmem:[#allocation5 + $0x5f0] sm:$0xff]
    %v6397 = vld [vmem:[#allocation5 + $0x5f8] sm:$0xff]
    %v6398 = vld [vmem:[#allocation5 + $0x600] sm:$0xff]
    %v6399 = vld [vmem:[#allocation5 + $0x608] sm:$0xff]
    %v6400 = vld [vmem:[#allocation5 + $0x610] sm:$0xff]
    %v6401 = vld [vmem:[#allocation5 + $0x618] sm:$0xff]
    %v6402 = vld [vmem:[#allocation5 + $0x620] sm:$0xff]
    %v6403 = vld [vmem:[#allocation5 + $0x628] sm:$0xff]
    %v6404 = vld [vmem:[#allocation5 + $0x630] sm:$0xff]
    %v6405 = vld [vmem:[#allocation5 + $0x638] sm:$0xff]
    %v6406 = vld [vmem:[#allocation5 + $0x640] sm:$0xff]
    %v6407 = vld [vmem:[#allocation5 + $0x648] sm:$0xff]
    %v6408 = vld [vmem:[#allocation5 + $0x650] sm:$0xff]
    %v6409 = vld [vmem:[#allocation5 + $0x658] sm:$0xff]
    %v6410 = vld [vmem:[#allocation5 + $0x660] sm:$0xff]
    %v6411 = vld [vmem:[#allocation5 + $0x668] sm:$0xff]
    %v6412 = vld [vmem:[#allocation5 + $0x670] sm:$0xff]
    %v6413 = vld [vmem:[#allocation5 + $0x678] sm:$0xff]
    %v6414 = vld [vmem:[#allocation5 + $0x680] sm:$0xff]
    %v6415 = vld [vmem:[#allocation5 + $0x688] sm:$0xff]
    %v6416 = vld [vmem:[#allocation5 + $0x690] sm:$0xff]
    %v6417 = vld [vmem:[#allocation5 + $0x698] sm:$0xff]
    %v6418 = vld [vmem:[#allocation5 + $0x6a0] sm:$0xff]
    %v6419 = vld [vmem:[#allocation5 + $0x6a8] sm:$0xff]
    %v6420 = vld [vmem:[#allocation5 + $0x6b0] sm:$0xff]
    %v6421 = vld [vmem:[#allocation5 + $0x6b8] sm:$0xff]
    %v6422 = vld [vmem:[#allocation5 + $0x6c0] sm:$0xff]
    %v6423 = vld [vmem:[#allocation5 + $0x6c8] sm:$0xff]
    %v6424 = vld [vmem:[#allocation5 + $0x6d0] sm:$0xff]
    %v6425 = vld [vmem:[#allocation5 + $0x6d8] sm:$0xff]
    %v6426 = vld [vmem:[#allocation5 + $0x6e0] sm:$0xff]
    %v6427 = vld [vmem:[#allocation5 + $0x6e8] sm:$0xff]
    %v6428 = vld [vmem:[#allocation5 + $0x6f0] sm:$0xff]
    %v6429 = vld [vmem:[#allocation5 + $0x6f8] sm:$0xff]
    %v6430 = vld [vmem:[#allocation5 + $0x700] sm:$0xff]
    %v6431 = vld [vmem:[#allocation5 + $0x708] sm:$0xff]
    %v6432 = vld [vmem:[#allocation5 + $0x710] sm:$0xff]
    %v6433 = vld [vmem:[#allocation5 + $0x718] sm:$0xff]
    %v6434 = vld [vmem:[#allocation5 + $0x720] sm:$0xff]
    %v6435 = vld [vmem:[#allocation5 + $0x728] sm:$0xff]
    %v6436 = vld [vmem:[#allocation5 + $0x730] sm:$0xff]
    %v6437 = vld [vmem:[#allocation5 + $0x738] sm:$0xff]
    %v6438 = vld [vmem:[#allocation5 + $0x740] sm:$0xff]
    %v6439 = vld [vmem:[#allocation5 + $0x748] sm:$0xff]
    %v6440 = vld [vmem:[#allocation5 + $0x750] sm:$0xff]
    %v6441 = vld [vmem:[#allocation5 + $0x758] sm:$0xff]
    %v6442 = vld [vmem:[#allocation5 + $0x760] sm:$0xff]
    %v6443 = vld [vmem:[#allocation5 + $0x768] sm:$0xff]
    %v6444 = vld [vmem:[#allocation5 + $0x770] sm:$0xff]
    %v6445 = vld [vmem:[#allocation5 + $0x778] sm:$0xff]
    %v6446 = vld [vmem:[#allocation5 + $0x780] sm:$0xff]
    %v6447 = vld [vmem:[#allocation5 + $0x788] sm:$0xff]
    %v6448 = vld [vmem:[#allocation5 + $0x790] sm:$0xff]
    %v6449 = vld [vmem:[#allocation5 + $0x798] sm:$0xff]
    %v6450 = vld [vmem:[#allocation5 + $0x7a0] sm:$0xff]
    %v6451 = vld [vmem:[#allocation5 + $0x7a8] sm:$0xff]
    %v6452 = vld [vmem:[#allocation5 + $0x7b0] sm:$0xff]
    %v6453 = vld [vmem:[#allocation5 + $0x7b8] sm:$0xff]
    %v6454 = vld [vmem:[#allocation5 + $0x7c0] sm:$0xff]
    %v6455 = vld [vmem:[#allocation5 + $0x7c8] sm:$0xff]
    %v6456 = vld [vmem:[#allocation5 + $0x7d0] sm:$0xff]
    %v6457 = vld [vmem:[#allocation5 + $0x7d8] sm:$0xff]
    %v6458 = vld [vmem:[#allocation5 + $0x7e0] sm:$0xff]
    %v6459 = vld [vmem:[#allocation5 + $0x7e8] sm:$0xff]
    %v6460 = vld [vmem:[#allocation5 + $0x7f0] sm:$0xff]
    %v6461 = vld [vmem:[#allocation5 + $0x7f8] sm:$0xff]
    %v6462 = vld [vmem:[#allocation5 + $0x800] sm:$0xff]
    %v6463 = vld [vmem:[#allocation5 + $0x808] sm:$0xff]
    %v6464 = vld [vmem:[#allocation5 + $0x810] sm:$0xff]
    %v6465 = vld [vmem:[#allocation5 + $0x818] sm:$0xff]
    %v6466 = vld [vmem:[#allocation5 + $0x820] sm:$0xff]
    %v6467 = vld [vmem:[#allocation5 + $0x828] sm:$0xff]
    %v6468 = vld [vmem:[#allocation5 + $0x830] sm:$0xff]
    %v6469 = vld [vmem:[#allocation5 + $0x838] sm:$0xff]
    %v6470 = vld [vmem:[#allocation5 + $0x840] sm:$0xff]
    %v6471 = vld [vmem:[#allocation5 + $0x848] sm:$0xff]
    %v6472 = vld [vmem:[#allocation5 + $0x850] sm:$0xff]
    %v6473 = vld [vmem:[#allocation5 + $0x858] sm:$0xff]
    %v6474 = vld [vmem:[#allocation5 + $0x860] sm:$0xff]
    %v6475 = vld [vmem:[#allocation5 + $0x868] sm:$0xff]
    %v6476 = vld [vmem:[#allocation5 + $0x870] sm:$0xff]
    %v6477 = vld [vmem:[#allocation5 + $0x878] sm:$0xff]
    %v6478 = vld [vmem:[#allocation5 + $0x880] sm:$0xff]
    %v6479 = vld [vmem:[#allocation5 + $0x888] sm:$0xff]
    %v6480 = vld [vmem:[#allocation5 + $0x890] sm:$0xff]
    %v6481 = vld [vmem:[#allocation5 + $0x898] sm:$0xff]
    %v6482 = vld [vmem:[#allocation5 + $0x8a0] sm:$0xff]
    %v6483 = vld [vmem:[#allocation5 + $0x8a8] sm:$0xff]
    %v6484 = vld [vmem:[#allocation5 + $0x8b0] sm:$0xff]
    %v6485 = vld [vmem:[#allocation5 + $0x8b8] sm:$0xff]
    %v6486 = vld [vmem:[#allocation5 + $0x8c0] sm:$0xff]
    %v6487 = vld [vmem:[#allocation5 + $0x8c8] sm:$0xff]
    %v6488 = vld [vmem:[#allocation5 + $0x8d0] sm:$0xff]
    %v6489 = vld [vmem:[#allocation5 + $0x8d8] sm:$0xff]
    %v6490 = vld [vmem:[#allocation5 + $0x8e0] sm:$0xff]
    %v6491 = vld [vmem:[#allocation5 + $0x8e8] sm:$0xff]
    %v6492 = vld [vmem:[#allocation5 + $0x8f0] sm:$0xff]
    %v6493 = vld [vmem:[#allocation5 + $0x8f8] sm:$0xff]
    %v6494 = vld [vmem:[#allocation5 + $0x900] sm:$0xff]
    %v6495 = vld [vmem:[#allocation5 + $0x908] sm:$0xff]
    %v6496 = vld [vmem:[#allocation5 + $0x910] sm:$0xff]
    %v6497 = vld [vmem:[#allocation5 + $0x918] sm:$0xff]
    %v6498 = vld [vmem:[#allocation5 + $0x920] sm:$0xff]
    %v6499 = vld [vmem:[#allocation5 + $0x928] sm:$0xff]
    %v6500 = vld [vmem:[#allocation5 + $0x930] sm:$0xff]
    %v6501 = vld [vmem:[#allocation5 + $0x938] sm:$0xff]
    %v6502 = vld [vmem:[#allocation5 + $0x940] sm:$0xff]
    %v6503 = vld [vmem:[#allocation5 + $0x948] sm:$0xff]
    %v6504 = vld [vmem:[#allocation5 + $0x950] sm:$0xff]
    %v6505 = vld [vmem:[#allocation5 + $0x958] sm:$0xff]
    %v6506 = vld [vmem:[#allocation5 + $0x960] sm:$0xff]
    %v6507 = vld [vmem:[#allocation5 + $0x968] sm:$0xff]
    %v6508 = vld [vmem:[#allocation5 + $0x970] sm:$0xff]
    %v6509 = vld [vmem:[#allocation5 + $0x978] sm:$0xff]
    %v6510 = vld [vmem:[#allocation5 + $0x980] sm:$0xff]
    %v6511 = vld [vmem:[#allocation5 + $0x988] sm:$0xff]
    %v6512 = vld [vmem:[#allocation5 + $0x990] sm:$0xff]
    %v6513 = vld [vmem:[#allocation5 + $0x998] sm:$0xff]
    %v6514 = vld [vmem:[#allocation5 + $0x9a0] sm:$0xff]
    %v6515 = vld [vmem:[#allocation5 + $0x9a8] sm:$0xff]
    %v6516 = vld [vmem:[#allocation5 + $0x9b0] sm:$0xff]
    %v6517 = vld [vmem:[#allocation5 + $0x9b8] sm:$0xff]
    %v6518 = vld [vmem:[#allocation5 + $0x9c0] sm:$0xff]
    %v6519 = vld [vmem:[#allocation5 + $0x9c8] sm:$0xff]
    %v6520 = vld [vmem:[#allocation5 + $0x9d0] sm:$0xff]
    %v6521 = vld [vmem:[#allocation5 + $0x9d8] sm:$0xff]
    %v6522 = vld [vmem:[#allocation5 + $0x9e0] sm:$0xff]
    %v6523 = vld [vmem:[#allocation5 + $0x9e8] sm:$0xff]
    %v6524 = vld [vmem:[#allocation5 + $0x9f0] sm:$0xff]
    %v6525 = vld [vmem:[#allocation5 + $0x9f8] sm:$0xff]
    %v6526 = vld [vmem:[#allocation5 + $0xa00] sm:$0xff]
    %v6527 = vld [vmem:[#allocation5 + $0xa08] sm:$0xff]
    %v6528 = vld [vmem:[#allocation5 + $0xa10] sm:$0xff]
    %v6529 = vld [vmem:[#allocation5 + $0xa18] sm:$0xff]
    %v6530 = vld [vmem:[#allocation5 + $0xa20] sm:$0xff]
    %v6531 = vld [vmem:[#allocation5 + $0xa28] sm:$0xff]
    %v6532 = vld [vmem:[#allocation5 + $0xa30] sm:$0xff]
    %v6533 = vld [vmem:[#allocation5 + $0xa38] sm:$0xff]
    %v6534 = vld [vmem:[#allocation5 + $0xa40] sm:$0xff]
    %v6535 = vld [vmem:[#allocation5 + $0xa48] sm:$0xff]
    %v6536 = vld [vmem:[#allocation5 + $0xa50] sm:$0xff]
    %v6537 = vld [vmem:[#allocation5 + $0xa58] sm:$0xff]
    %v6538 = vld [vmem:[#allocation5 + $0xa60] sm:$0xff]
    %v6539 = vld [vmem:[#allocation5 + $0xa68] sm:$0xff]
    %v6540 = vld [vmem:[#allocation5 + $0xa70] sm:$0xff]
    %v6541 = vld [vmem:[#allocation5 + $0xa78] sm:$0xff]
    %v6542 = vld [vmem:[#allocation5 + $0xa80] sm:$0xff]
    %v6543 = vld [vmem:[#allocation5 + $0xa88] sm:$0xff]
    %v6544 = vld [vmem:[#allocation5 + $0xa90] sm:$0xff]
    %v6545 = vld [vmem:[#allocation5 + $0xa98] sm:$0xff]
    %v6546 = vld [vmem:[#allocation5 + $0xaa0] sm:$0xff]
    %v6547 = vld [vmem:[#allocation5 + $0xaa8] sm:$0xff]
    %v6548 = vld [vmem:[#allocation5 + $0xab0] sm:$0xff]
    %v6549 = vld [vmem:[#allocation5 + $0xab8] sm:$0xff]
    %v6550 = vld [vmem:[#allocation5 + $0xac0] sm:$0xff]
    %v6551 = vld [vmem:[#allocation5 + $0xac8] sm:$0xff]
    %v6552 = vld [vmem:[#allocation5 + $0xad0] sm:$0xff]
    %v6553 = vld [vmem:[#allocation5 + $0xad8] sm:$0xff]
    %v6554 = vld [vmem:[#allocation5 + $0xae0] sm:$0xff]
    %v6555 = vld [vmem:[#allocation5 + $0xae8] sm:$0xff]
    %v6556 = vld [vmem:[#allocation5 + $0xaf0] sm:$0xff]
    %v6557 = vld [vmem:[#allocation5 + $0xaf8] sm:$0xff]
    %v6558 = vld [vmem:[#allocation5 + $0xb00] sm:$0xff]
    %v6559 = vld [vmem:[#allocation5 + $0xb08] sm:$0xff]
    %v6560 = vld [vmem:[#allocation5 + $0xb10] sm:$0xff]
    %v6561 = vld [vmem:[#allocation5 + $0xb18] sm:$0xff]
    %v6562 = vld [vmem:[#allocation5 + $0xb20] sm:$0xff]
    %v6563 = vld [vmem:[#allocation5 + $0xb28] sm:$0xff]
    %v6564 = vld [vmem:[#allocation5 + $0xb30] sm:$0xff]
    %v6565 = vld [vmem:[#allocation5 + $0xb38] sm:$0xff]
    %v6566 = vld [vmem:[#allocation5 + $0xb40] sm:$0xff]
    %v6567 = vld [vmem:[#allocation5 + $0xb48] sm:$0xff]
    %v6568 = vld [vmem:[#allocation5 + $0xb50] sm:$0xff]
    %v6569 = vld [vmem:[#allocation5 + $0xb58] sm:$0xff]
    %v6570 = vld [vmem:[#allocation5 + $0xb60] sm:$0xff]
    %v6571 = vld [vmem:[#allocation5 + $0xb68] sm:$0xff]
    %v6572 = vld [vmem:[#allocation5 + $0xb70] sm:$0xff]
    %v6573 = vld [vmem:[#allocation5 + $0xb78] sm:$0xff]
    %v6574 = vld [vmem:[#allocation5 + $0xb80] sm:$0xff]
    %v6575 = vld [vmem:[#allocation5 + $0xb88] sm:$0xff]
    %v6576 = vld [vmem:[#allocation5 + $0xb90] sm:$0xff]
    %v6577 = vld [vmem:[#allocation5 + $0xb98] sm:$0xff]
    %v6578 = vld [vmem:[#allocation5 + $0xba0] sm:$0xff]
    %v6579 = vld [vmem:[#allocation5 + $0xba8] sm:$0xff]
    %v6580 = vld [vmem:[#allocation5 + $0xbb0] sm:$0xff]
    %v6581 = vld [vmem:[#allocation5 + $0xbb8] sm:$0xff]
    %v6582 = vld [vmem:[#allocation5 + $0xbc0] sm:$0xff]
    %v6583 = vld [vmem:[#allocation5 + $0xbc8] sm:$0xff]
    %v6584 = vld [vmem:[#allocation5 + $0xbd0] sm:$0xff]
    %v6585 = vld [vmem:[#allocation5 + $0xbd8] sm:$0xff]
    %v6586 = vld [vmem:[#allocation5 + $0xbe0] sm:$0xff]
    %v6587 = vld [vmem:[#allocation5 + $0xbe8] sm:$0xff]
    %v6588 = vld [vmem:[#allocation5 + $0xbf0] sm:$0xff]
    %v6589 = vld [vmem:[#allocation5 + $0xbf8] sm:$0xff]
    %v6590 = vpack.c.bf16 %v6208, %v6206
    %v6591 = vpack.c.bf16 %v6209, %v6207
    %v6592 = vpack.c.bf16 %v6212, %v6210
    %v6593 = vpack.c.bf16 %v6213, %v6211
    %v6594 = vpack.c.bf16 %v6216, %v6214
    %v6595 = vpack.c.bf16 %v6217, %v6215
    %v6596 = vpack.c.bf16 %v6220, %v6218
    %v6597 = vpack.c.bf16 %v6221, %v6219
    %v6598 = vpack.c.bf16 %v6224, %v6222
    %v6599 = vpack.c.bf16 %v6225, %v6223
    %v6600 = vpack.c.bf16 %v6228, %v6226
    %v6601 = vpack.c.bf16 %v6229, %v6227
    %v6602 = vpack.c.bf16 %v6232, %v6230
    %v6603 = vpack.c.bf16 %v6233, %v6231
    %v6604 = vpack.c.bf16 %v6236, %v6234
    %v6605 = vpack.c.bf16 %v6237, %v6235
    %v6606 = vpack.c.bf16 %v6240, %v6238
    %v6607 = vpack.c.bf16 %v6241, %v6239
    %v6608 = vpack.c.bf16 %v6244, %v6242
    %v6609 = vpack.c.bf16 %v6245, %v6243
    %v6610 = vpack.c.bf16 %v6248, %v6246
    %v6611 = vpack.c.bf16 %v6249, %v6247
    %v6612 = vpack.c.bf16 %v6252, %v6250
    %v6613 = vpack.c.bf16 %v6253, %v6251
    %v6614 = vpack.c.bf16 %v6256, %v6254
    %v6615 = vpack.c.bf16 %v6257, %v6255
    %v6616 = vpack.c.bf16 %v6260, %v6258
    %v6617 = vpack.c.bf16 %v6261, %v6259
    %v6618 = vpack.c.bf16 %v6264, %v6262
    %v6619 = vpack.c.bf16 %v6265, %v6263
    %v6620 = vpack.c.bf16 %v6268, %v6266
    %v6621 = vpack.c.bf16 %v6269, %v6267
    %v6622 = vpack.c.bf16 %v6272, %v6270
    %v6623 = vpack.c.bf16 %v6273, %v6271
    %v6624 = vpack.c.bf16 %v6276, %v6274
    %v6625 = vpack.c.bf16 %v6277, %v6275
    %v6626 = vpack.c.bf16 %v6280, %v6278
    %v6627 = vpack.c.bf16 %v6281, %v6279
    %v6628 = vpack.c.bf16 %v6284, %v6282
    %v6629 = vpack.c.bf16 %v6285, %v6283
    %v6630 = vpack.c.bf16 %v6288, %v6286
    %v6631 = vpack.c.bf16 %v6289, %v6287
    %v6632 = vpack.c.bf16 %v6292, %v6290
    %v6633 = vpack.c.bf16 %v6293, %v6291
    %v6634 = vpack.c.bf16 %v6296, %v6294
    %v6635 = vpack.c.bf16 %v6297, %v6295
    %v6636 = vpack.c.bf16 %v6300, %v6298
    %v6637 = vpack.c.bf16 %v6301, %v6299
    %v6638 = vpack.c.bf16 %v6304, %v6302
    %v6639 = vpack.c.bf16 %v6305, %v6303
    %v6640 = vpack.c.bf16 %v6308, %v6306
    %v6641 = vpack.c.bf16 %v6309, %v6307
    %v6642 = vpack.c.bf16 %v6312, %v6310
    %v6643 = vpack.c.bf16 %v6313, %v6311
    %v6644 = vpack.c.bf16 %v6316, %v6314
    %v6645 = vpack.c.bf16 %v6317, %v6315
    %v6646 = vpack.c.bf16 %v6320, %v6318
    %v6647 = vpack.c.bf16 %v6321, %v6319
    %v6648 = vpack.c.bf16 %v6324, %v6322
    %v6649 = vpack.c.bf16 %v6325, %v6323
    %v6650 = vpack.c.bf16 %v6328, %v6326
    %v6651 = vpack.c.bf16 %v6329, %v6327
    %v6652 = vpack.c.bf16 %v6332, %v6330
    %v6653 = vpack.c.bf16 %v6333, %v6331
    %v6654 = vpack.c.bf16 %v6336, %v6334
    %v6655 = vpack.c.bf16 %v6337, %v6335
    %v6656 = vpack.c.bf16 %v6340, %v6338
    %v6657 = vpack.c.bf16 %v6341, %v6339
    %v6658 = vpack.c.bf16 %v6344, %v6342
    %v6659 = vpack.c.bf16 %v6345, %v6343
    %v6660 = vpack.c.bf16 %v6348, %v6346
    %v6661 = vpack.c.bf16 %v6349, %v6347
    %v6662 = vpack.c.bf16 %v6352, %v6350
    %v6663 = vpack.c.bf16 %v6353, %v6351
    %v6664 = vpack.c.bf16 %v6356, %v6354
    %v6665 = vpack.c.bf16 %v6357, %v6355
    %v6666 = vpack.c.bf16 %v6360, %v6358
    %v6667 = vpack.c.bf16 %v6361, %v6359
    %v6668 = vpack.c.bf16 %v6364, %v6362
    %v6669 = vpack.c.bf16 %v6365, %v6363
    %v6670 = vpack.c.bf16 %v6368, %v6366
    %v6671 = vpack.c.bf16 %v6369, %v6367
    %v6672 = vpack.c.bf16 %v6372, %v6370
    %v6673 = vpack.c.bf16 %v6373, %v6371
    %v6674 = vpack.c.bf16 %v6376, %v6374
    %v6675 = vpack.c.bf16 %v6377, %v6375
    %v6676 = vpack.c.bf16 %v6380, %v6378
    %v6677 = vpack.c.bf16 %v6381, %v6379
    %v6678 = vpack.c.bf16 %v6384, %v6382
    %v6679 = vpack.c.bf16 %v6385, %v6383
    %v6680 = vpack.c.bf16 %v6388, %v6386
    %v6681 = vpack.c.bf16 %v6389, %v6387
    %v6682 = vpack.c.bf16 %v6392, %v6390
    %v6683 = vpack.c.bf16 %v6393, %v6391
    %v6684 = vpack.c.bf16 %v6396, %v6394
    %v6685 = vpack.c.bf16 %v6397, %v6395
    %v6686 = vpack.c.bf16 %v6400, %v6398
    %v6687 = vpack.c.bf16 %v6401, %v6399
    %v6688 = vpack.c.bf16 %v6404, %v6402
    %v6689 = vpack.c.bf16 %v6405, %v6403
    %v6690 = vpack.c.bf16 %v6408, %v6406
    %v6691 = vpack.c.bf16 %v6409, %v6407
    %v6692 = vpack.c.bf16 %v6412, %v6410
    %v6693 = vpack.c.bf16 %v6413, %v6411
    %v6694 = vpack.c.bf16 %v6416, %v6414
    %v6695 = vpack.c.bf16 %v6417, %v6415
    %v6696 = vpack.c.bf16 %v6420, %v6418
    %v6697 = vpack.c.bf16 %v6421, %v6419
    %v6698 = vpack.c.bf16 %v6424, %v6422
    %v6699 = vpack.c.bf16 %v6425, %v6423
    %v6700 = vpack.c.bf16 %v6428, %v6426
    %v6701 = vpack.c.bf16 %v6429, %v6427
    %v6702 = vpack.c.bf16 %v6432, %v6430
    %v6703 = vpack.c.bf16 %v6433, %v6431
    %v6704 = vpack.c.bf16 %v6436, %v6434
    %v6705 = vpack.c.bf16 %v6437, %v6435
    %v6706 = vpack.c.bf16 %v6440, %v6438
    %v6707 = vpack.c.bf16 %v6441, %v6439
    %v6708 = vpack.c.bf16 %v6444, %v6442
    %v6709 = vpack.c.bf16 %v6445, %v6443
    %v6710 = vpack.c.bf16 %v6448, %v6446
    %v6711 = vpack.c.bf16 %v6449, %v6447
    %v6712 = vpack.c.bf16 %v6452, %v6450
    %v6713 = vpack.c.bf16 %v6453, %v6451
    %v6714 = vpack.c.bf16 %v6456, %v6454
    %v6715 = vpack.c.bf16 %v6457, %v6455
    %v6716 = vpack.c.bf16 %v6460, %v6458
    %v6717 = vpack.c.bf16 %v6461, %v6459
    %v6718 = vpack.c.bf16 %v6464, %v6462
    %v6719 = vpack.c.bf16 %v6465, %v6463
    %v6720 = vpack.c.bf16 %v6468, %v6466
    %v6721 = vpack.c.bf16 %v6469, %v6467
    %v6722 = vpack.c.bf16 %v6472, %v6470
    %v6723 = vpack.c.bf16 %v6473, %v6471
    %v6724 = vpack.c.bf16 %v6476, %v6474
    %v6725 = vpack.c.bf16 %v6477, %v6475
    %v6726 = vpack.c.bf16 %v6480, %v6478
    %v6727 = vpack.c.bf16 %v6481, %v6479
    %v6728 = vpack.c.bf16 %v6484, %v6482
    %v6729 = vpack.c.bf16 %v6485, %v6483
    %v6730 = vpack.c.bf16 %v6488, %v6486
    %v6731 = vpack.c.bf16 %v6489, %v6487
    %v6732 = vpack.c.bf16 %v6492, %v6490
    %v6733 = vpack.c.bf16 %v6493, %v6491
    %v6734 = vpack.c.bf16 %v6496, %v6494
    %v6735 = vpack.c.bf16 %v6497, %v6495
    %v6736 = vpack.c.bf16 %v6500, %v6498
    %v6737 = vpack.c.bf16 %v6501, %v6499
    %v6738 = vpack.c.bf16 %v6504, %v6502
    %v6739 = vpack.c.bf16 %v6505, %v6503
    %v6740 = vpack.c.bf16 %v6508, %v6506
    %v6741 = vpack.c.bf16 %v6509, %v6507
    %v6742 = vpack.c.bf16 %v6512, %v6510
    %v6743 = vpack.c.bf16 %v6513, %v6511
    %v6744 = vpack.c.bf16 %v6516, %v6514
    %v6745 = vpack.c.bf16 %v6517, %v6515
    %v6746 = vpack.c.bf16 %v6520, %v6518
    %v6747 = vpack.c.bf16 %v6521, %v6519
    %v6748 = vpack.c.bf16 %v6524, %v6522
    %v6749 = vpack.c.bf16 %v6525, %v6523
    %v6750 = vpack.c.bf16 %v6528, %v6526
    %v6751 = vpack.c.bf16 %v6529, %v6527
    %v6752 = vpack.c.bf16 %v6532, %v6530
    %v6753 = vpack.c.bf16 %v6533, %v6531
    %v6754 = vpack.c.bf16 %v6536, %v6534
    %v6755 = vpack.c.bf16 %v6537, %v6535
    %v6756 = vpack.c.bf16 %v6540, %v6538
    %v6757 = vpack.c.bf16 %v6541, %v6539
    %v6758 = vpack.c.bf16 %v6544, %v6542
    %v6759 = vpack.c.bf16 %v6545, %v6543
    %v6760 = vpack.c.bf16 %v6548, %v6546
    %v6761 = vpack.c.bf16 %v6549, %v6547
    %v6762 = vpack.c.bf16 %v6552, %v6550
    %v6763 = vpack.c.bf16 %v6553, %v6551
    %v6764 = vpack.c.bf16 %v6556, %v6554
    %v6765 = vpack.c.bf16 %v6557, %v6555
    %v6766 = vpack.c.bf16 %v6560, %v6558
    %v6767 = vpack.c.bf16 %v6561, %v6559
    %v6768 = vpack.c.bf16 %v6564, %v6562
    %v6769 = vpack.c.bf16 %v6565, %v6563
    %v6770 = vpack.c.bf16 %v6568, %v6566
    %v6771 = vpack.c.bf16 %v6569, %v6567
    %v6772 = vpack.c.bf16 %v6572, %v6570
    %v6773 = vpack.c.bf16 %v6573, %v6571
    %v6774 = vpack.c.bf16 %v6576, %v6574
    %v6775 = vpack.c.bf16 %v6577, %v6575
    %v6776 = vpack.c.bf16 %v6580, %v6578
    %v6777 = vpack.c.bf16 %v6581, %v6579
    %v6778 = vpack.c.bf16 %v6584, %v6582
    %v6779 = vpack.c.bf16 %v6585, %v6583
    %v6780 = vpack.c.bf16 %v6588, %v6586
    %v6781 = vpack.c.bf16 %v6589, %v6587
    %6782 = vmatpush.bf16.msra.mxu0 %v1024
    %6783 = vmatpush.bf16.msra.mxu0 %v1023
    %6784 = vmatpush.bf16.msra.mxu0 %v1022
    %6785 = vmatpush.bf16.msra.mxu0 %v1021
    %6786 = vmatpush.bf16.msra.mxu0 %v1020
    %6787 = vmatpush.bf16.msra.mxu0 %v1019
    %6788 = vmatpush.bf16.msra.mxu0 %v1018
    %6789 = vmatpush.bf16.msra.mxu0 %v1017
    %6790 = vmatmul.bf16.gmra.mxu0 %v6590
    %v6791 = vpop.f32.mrf.mxu0
    %v6792 = vadd.f32 0.0, %v6791
    %v6793 = vpop.f32.mrf.mxu0
    %v6794 = vadd.f32 0.0, %v6793
    %6795 = vmatmul.bf16.gmra.mxu0 %v6592
    %v6796 = vpop.f32.mrf.mxu0
    %v6797 = vadd.f32 0.0, %v6796
    %v6798 = vpop.f32.mrf.mxu0
    %v6799 = vadd.f32 0.0, %v6798
    %6800 = vmatmul.bf16.gmra.mxu0 %v6594
    %v6801 = vpop.f32.mrf.mxu0
    %v6802 = vadd.f32 0.0, %v6801
    %v6803 = vpop.f32.mrf.mxu0
    %v6804 = vadd.f32 0.0, %v6803
    %6805 = vmatmul.bf16.gmra.mxu0 %v6596
    %v6806 = vpop.f32.mrf.mxu0
    %v6807 = vadd.f32 0.0, %v6806
    %v6808 = vpop.f32.mrf.mxu0
    %v6809 = vadd.f32 0.0, %v6808
    %6810 = vmatmul.bf16.gmra.mxu0 %v6598
    %v6811 = vpop.f32.mrf.mxu0
    %v6812 = vadd.f32 0.0, %v6811
    %v6813 = vpop.f32.mrf.mxu0
    %v6814 = vadd.f32 0.0, %v6813
    %6815 = vmatmul.bf16.gmra.mxu0 %v6600
    %v6816 = vpop.f32.mrf.mxu0
    %v6817 = vadd.f32 0.0, %v6816
    %v6818 = vpop.f32.mrf.mxu0
    %v6819 = vadd.f32 0.0, %v6818
    %6820 = vmatmul.bf16.gmra.mxu0 %v6602
    %v6821 = vpop.f32.mrf.mxu0
    %v6822 = vadd.f32 0.0, %v6821
    %v6823 = vpop.f32.mrf.mxu0
    %v6824 = vadd.f32 0.0, %v6823
    %6825 = vmatmul.bf16.gmra.mxu0 %v6604
    %v6826 = vpop.f32.mrf.mxu0
    %v6827 = vadd.f32 0.0, %v6826
    %v6828 = vpop.f32.mrf.mxu0
    %v6829 = vadd.f32 0.0, %v6828
    %6830 = vmatmul.bf16.gmra.mxu0 %v6606
    %v6831 = vpop.f32.mrf.mxu0
    %v6832 = vadd.f32 0.0, %v6831
    %v6833 = vpop.f32.mrf.mxu0
    %v6834 = vadd.f32 0.0, %v6833
    %6835 = vmatmul.bf16.gmra.mxu0 %v6608
    %v6836 = vpop.f32.mrf.mxu0
    %v6837 = vadd.f32 0.0, %v6836
    %v6838 = vpop.f32.mrf.mxu0
    %v6839 = vadd.f32 0.0, %v6838
    %6840 = vmatmul.bf16.gmra.mxu0 %v6610
    %v6841 = vpop.f32.mrf.mxu0
    %v6842 = vadd.f32 0.0, %v6841
    %v6843 = vpop.f32.mrf.mxu0
    %v6844 = vadd.f32 0.0, %v6843
    %6845 = vmatmul.bf16.gmra.mxu0 %v6612
    %v6846 = vpop.f32.mrf.mxu0
    %v6847 = vadd.f32 0.0, %v6846
    %v6848 = vpop.f32.mrf.mxu0
    %v6849 = vadd.f32 0.0, %v6848
    %6850 = vmatmul.bf16.gmra.mxu0 %v6614
    %v6851 = vpop.f32.mrf.mxu0
    %v6852 = vadd.f32 0.0, %v6851
    %v6853 = vpop.f32.mrf.mxu0
    %v6854 = vadd.f32 0.0, %v6853
    %6855 = vmatmul.bf16.gmra.mxu0 %v6616
    %v6856 = vpop.f32.mrf.mxu0
    %v6857 = vadd.f32 0.0, %v6856
    %v6858 = vpop.f32.mrf.mxu0
    %v6859 = vadd.f32 0.0, %v6858
    %6860 = vmatmul.bf16.gmra.mxu0 %v6618
    %v6861 = vpop.f32.mrf.mxu0
    %v6862 = vadd.f32 0.0, %v6861
    %v6863 = vpop.f32.mrf.mxu0
    %v6864 = vadd.f32 0.0, %v6863
    %6865 = vmatmul.bf16.gmra.mxu0 %v6620
    %v6866 = vpop.f32.mrf.mxu0
    %v6867 = vadd.f32 0.0, %v6866
    %v6868 = vpop.f32.mrf.mxu0
    %v6869 = vadd.f32 0.0, %v6868
    %6870 = vmatmul.bf16.gmra.mxu0 %v6622
    %v6871 = vpop.f32.mrf.mxu0
    %v6872 = vadd.f32 0.0, %v6871
    %v6873 = vpop.f32.mrf.mxu0
    %v6874 = vadd.f32 0.0, %v6873
    %6875 = vmatmul.bf16.gmra.mxu0 %v6624
    %v6876 = vpop.f32.mrf.mxu0
    %v6877 = vadd.f32 0.0, %v6876
    %v6878 = vpop.f32.mrf.mxu0
    %v6879 = vadd.f32 0.0, %v6878
    %6880 = vmatmul.bf16.gmra.mxu0 %v6626
    %v6881 = vpop.f32.mrf.mxu0
    %v6882 = vadd.f32 0.0, %v6881
    %v6883 = vpop.f32.mrf.mxu0
    %v6884 = vadd.f32 0.0, %v6883
    %6885 = vmatmul.bf16.gmra.mxu0 %v6628
    %v6886 = vpop.f32.mrf.mxu0
    %v6887 = vadd.f32 0.0, %v6886
    %v6888 = vpop.f32.mrf.mxu0
    %v6889 = vadd.f32 0.0, %v6888
    %6890 = vmatmul.bf16.gmra.mxu0 %v6630
    %v6891 = vpop.f32.mrf.mxu0
    %v6892 = vadd.f32 0.0, %v6891
    %v6893 = vpop.f32.mrf.mxu0
    %v6894 = vadd.f32 0.0, %v6893
    %6895 = vmatmul.bf16.gmra.mxu0 %v6632
    %v6896 = vpop.f32.mrf.mxu0
    %v6897 = vadd.f32 0.0, %v6896
    %v6898 = vpop.f32.mrf.mxu0
    %v6899 = vadd.f32 0.0, %v6898
    %6900 = vmatmul.bf16.gmra.mxu0 %v6634
    %v6901 = vpop.f32.mrf.mxu0
    %v6902 = vadd.f32 0.0, %v6901
    %v6903 = vpop.f32.mrf.mxu0
    %v6904 = vadd.f32 0.0, %v6903
    %6905 = vmatmul.bf16.gmra.mxu0 %v6636
    %v6906 = vpop.f32.mrf.mxu0
    %v6907 = vadd.f32 0.0, %v6906
    %v6908 = vpop.f32.mrf.mxu0
    %v6909 = vadd.f32 0.0, %v6908
    %6910 = vmatmul.bf16.gmra.mxu0 %v6638
    %v6911 = vpop.f32.mrf.mxu0
    %v6912 = vadd.f32 0.0, %v6911
    %v6913 = vpop.f32.mrf.mxu0
    %v6914 = vadd.f32 0.0, %v6913
    %6915 = vmatmul.bf16.gmra.mxu0 %v6640
    %v6916 = vpop.f32.mrf.mxu0
    %v6917 = vadd.f32 0.0, %v6916
    %v6918 = vpop.f32.mrf.mxu0
    %v6919 = vadd.f32 0.0, %v6918
    %6920 = vmatmul.bf16.gmra.mxu0 %v6642
    %v6921 = vpop.f32.mrf.mxu0
    %v6922 = vadd.f32 0.0, %v6921
    %v6923 = vpop.f32.mrf.mxu0
    %v6924 = vadd.f32 0.0, %v6923
    %6925 = vmatmul.bf16.gmra.mxu0 %v6644
    %v6926 = vpop.f32.mrf.mxu0
    %v6927 = vadd.f32 0.0, %v6926
    %v6928 = vpop.f32.mrf.mxu0
    %v6929 = vadd.f32 0.0, %v6928
    %6930 = vmatmul.bf16.gmra.mxu0 %v6646
    %v6931 = vpop.f32.mrf.mxu0
    %v6932 = vadd.f32 0.0, %v6931
    %v6933 = vpop.f32.mrf.mxu0
    %v6934 = vadd.f32 0.0, %v6933
    %6935 = vmatmul.bf16.gmra.mxu0 %v6648
    %v6936 = vpop.f32.mrf.mxu0
    %v6937 = vadd.f32 0.0, %v6936
    %v6938 = vpop.f32.mrf.mxu0
    %v6939 = vadd.f32 0.0, %v6938
    %6940 = vmatmul.bf16.gmra.mxu0 %v6650
    %v6941 = vpop.f32.mrf.mxu0
    %v6942 = vadd.f32 0.0, %v6941
    %v6943 = vpop.f32.mrf.mxu0
    %v6944 = vadd.f32 0.0, %v6943
    %6945 = vmatmul.bf16.gmra.mxu0 %v6652
    %v6946 = vpop.f32.mrf.mxu0
    %v6947 = vadd.f32 0.0, %v6946
    %v6948 = vpop.f32.mrf.mxu0
    %v6949 = vadd.f32 0.0, %v6948
    %6950 = vmatmul.bf16.gmra.mxu0 %v6654
    %v6951 = vpop.f32.mrf.mxu0
    %v6952 = vadd.f32 0.0, %v6951
    %v6953 = vpop.f32.mrf.mxu0
    %v6954 = vadd.f32 0.0, %v6953
    %6955 = vmatmul.bf16.gmra.mxu0 %v6656
    %v6956 = vpop.f32.mrf.mxu0
    %v6957 = vadd.f32 0.0, %v6956
    %v6958 = vpop.f32.mrf.mxu0
    %v6959 = vadd.f32 0.0, %v6958
    %6960 = vmatmul.bf16.gmra.mxu0 %v6658
    %v6961 = vpop.f32.mrf.mxu0
    %v6962 = vadd.f32 0.0, %v6961
    %v6963 = vpop.f32.mrf.mxu0
    %v6964 = vadd.f32 0.0, %v6963
    %6965 = vmatmul.bf16.gmra.mxu0 %v6660
    %v6966 = vpop.f32.mrf.mxu0
    %v6967 = vadd.f32 0.0, %v6966
    %v6968 = vpop.f32.mrf.mxu0
    %v6969 = vadd.f32 0.0, %v6968
    %6970 = vmatmul.bf16.gmra.mxu0 %v6662
    %v6971 = vpop.f32.mrf.mxu0
    %v6972 = vadd.f32 0.0, %v6971
    %v6973 = vpop.f32.mrf.mxu0
    %v6974 = vadd.f32 0.0, %v6973
    %6975 = vmatmul.bf16.gmra.mxu0 %v6664
    %v6976 = vpop.f32.mrf.mxu0
    %v6977 = vadd.f32 0.0, %v6976
    %v6978 = vpop.f32.mrf.mxu0
    %v6979 = vadd.f32 0.0, %v6978
    %6980 = vmatmul.bf16.gmra.mxu0 %v6666
    %v6981 = vpop.f32.mrf.mxu0
    %v6982 = vadd.f32 0.0, %v6981
    %v6983 = vpop.f32.mrf.mxu0
    %v6984 = vadd.f32 0.0, %v6983
    %6985 = vmatmul.bf16.gmra.mxu0 %v6668
    %v6986 = vpop.f32.mrf.mxu0
    %v6987 = vadd.f32 0.0, %v6986
    %v6988 = vpop.f32.mrf.mxu0
    %v6989 = vadd.f32 0.0, %v6988
    %6990 = vmatmul.bf16.gmra.mxu0 %v6670
    %v6991 = vpop.f32.mrf.mxu0
    %v6992 = vadd.f32 0.0, %v6991
    %v6993 = vpop.f32.mrf.mxu0
    %v6994 = vadd.f32 0.0, %v6993
    %6995 = vmatmul.bf16.gmra.mxu0 %v6672
    %v6996 = vpop.f32.mrf.mxu0
    %v6997 = vadd.f32 0.0, %v6996
    %v6998 = vpop.f32.mrf.mxu0
    %v6999 = vadd.f32 0.0, %v6998
    %7000 = vmatmul.bf16.gmra.mxu0 %v6674
    %v7001 = vpop.f32.mrf.mxu0
    %v7002 = vadd.f32 0.0, %v7001
    %v7003 = vpop.f32.mrf.mxu0
    %v7004 = vadd.f32 0.0, %v7003
    %7005 = vmatmul.bf16.gmra.mxu0 %v6676
    %v7006 = vpop.f32.mrf.mxu0
    %v7007 = vadd.f32 0.0, %v7006
    %v7008 = vpop.f32.mrf.mxu0
    %v7009 = vadd.f32 0.0, %v7008
    %7010 = vmatmul.bf16.gmra.mxu0 %v6678
    %v7011 = vpop.f32.mrf.mxu0
    %v7012 = vadd.f32 0.0, %v7011
    %v7013 = vpop.f32.mrf.mxu0
    %v7014 = vadd.f32 0.0, %v7013
    %7015 = vmatmul.bf16.gmra.mxu0 %v6680
    %v7016 = vpop.f32.mrf.mxu0
    %v7017 = vadd.f32 0.0, %v7016
    %v7018 = vpop.f32.mrf.mxu0
    %v7019 = vadd.f32 0.0, %v7018
    %7020 = vmatmul.bf16.gmra.mxu0 %v6682
    %v7021 = vpop.f32.mrf.mxu0
    %v7022 = vadd.f32 0.0, %v7021
    %v7023 = vpop.f32.mrf.mxu0
    %v7024 = vadd.f32 0.0, %v7023
    %7025 = vmatmul.bf16.gmra.mxu0 %v6684
    %v7026 = vpop.f32.mrf.mxu0
    %v7027 = vadd.f32 0.0, %v7026
    %v7028 = vpop.f32.mrf.mxu0
    %v7029 = vadd.f32 0.0, %v7028
    %7030 = vmatmul.bf16.gmra.mxu0 %v6686
    %v7031 = vpop.f32.mrf.mxu0
    %v7032 = vadd.f32 0.0, %v7031
    %v7033 = vpop.f32.mrf.mxu0
    %v7034 = vadd.f32 0.0, %v7033
    %7035 = vmatmul.bf16.gmra.mxu0 %v6688
    %v7036 = vpop.f32.mrf.mxu0
    %v7037 = vadd.f32 0.0, %v7036
    %v7038 = vpop.f32.mrf.mxu0
    %v7039 = vadd.f32 0.0, %v7038
    %7040 = vmatmul.bf16.gmra.mxu0 %v6690
    %v7041 = vpop.f32.mrf.mxu0
    %v7042 = vadd.f32 0.0, %v7041
    %v7043 = vpop.f32.mrf.mxu0
    %v7044 = vadd.f32 0.0, %v7043
    %7045 = vmatmul.bf16.gmra.mxu0 %v6692
    %v7046 = vpop.f32.mrf.mxu0
    %v7047 = vadd.f32 0.0, %v7046
    %v7048 = vpop.f32.mrf.mxu0
    %v7049 = vadd.f32 0.0, %v7048
    %7050 = vmatmul.bf16.gmra.mxu0 %v6694
    %v7051 = vpop.f32.mrf.mxu0
    %v7052 = vadd.f32 0.0, %v7051
    %v7053 = vpop.f32.mrf.mxu0
    %v7054 = vadd.f32 0.0, %v7053
    %7055 = vmatmul.bf16.gmra.mxu0 %v6696
    %v7056 = vpop.f32.mrf.mxu0
    %v7057 = vadd.f32 0.0, %v7056
    %v7058 = vpop.f32.mrf.mxu0
    %v7059 = vadd.f32 0.0, %v7058
    %7060 = vmatmul.bf16.gmra.mxu0 %v6698
    %v7061 = vpop.f32.mrf.mxu0
    %v7062 = vadd.f32 0.0, %v7061
    %v7063 = vpop.f32.mrf.mxu0
    %v7064 = vadd.f32 0.0, %v7063
    %7065 = vmatmul.bf16.gmra.mxu0 %v6700
    %v7066 = vpop.f32.mrf.mxu0
    %v7067 = vadd.f32 0.0, %v7066
    %v7068 = vpop.f32.mrf.mxu0
    %v7069 = vadd.f32 0.0, %v7068
    %7070 = vmatmul.bf16.gmra.mxu0 %v6702
    %v7071 = vpop.f32.mrf.mxu0
    %v7072 = vadd.f32 0.0, %v7071
    %v7073 = vpop.f32.mrf.mxu0
    %v7074 = vadd.f32 0.0, %v7073
    %7075 = vmatmul.bf16.gmra.mxu0 %v6704
    %v7076 = vpop.f32.mrf.mxu0
    %v7077 = vadd.f32 0.0, %v7076
    %v7078 = vpop.f32.mrf.mxu0
    %v7079 = vadd.f32 0.0, %v7078
    %7080 = vmatmul.bf16.gmra.mxu0 %v6706
    %v7081 = vpop.f32.mrf.mxu0
    %v7082 = vadd.f32 0.0, %v7081
    %v7083 = vpop.f32.mrf.mxu0
    %v7084 = vadd.f32 0.0, %v7083
    %7085 = vmatmul.bf16.gmra.mxu0 %v6708
    %v7086 = vpop.f32.mrf.mxu0
    %v7087 = vadd.f32 0.0, %v7086
    %v7088 = vpop.f32.mrf.mxu0
    %v7089 = vadd.f32 0.0, %v7088
    %7090 = vmatmul.bf16.gmra.mxu0 %v6710
    %v7091 = vpop.f32.mrf.mxu0
    %v7092 = vadd.f32 0.0, %v7091
    %v7093 = vpop.f32.mrf.mxu0
    %v7094 = vadd.f32 0.0, %v7093
    %7095 = vmatmul.bf16.gmra.mxu0 %v6712
    %v7096 = vpop.f32.mrf.mxu0
    %v7097 = vadd.f32 0.0, %v7096
    %v7098 = vpop.f32.mrf.mxu0
    %v7099 = vadd.f32 0.0, %v7098
    %7100 = vmatmul.bf16.gmra.mxu0 %v6714
    %v7101 = vpop.f32.mrf.mxu0
    %v7102 = vadd.f32 0.0, %v7101
    %v7103 = vpop.f32.mrf.mxu0
    %v7104 = vadd.f32 0.0, %v7103
    %7105 = vmatmul.bf16.gmra.mxu0 %v6716
    %v7106 = vpop.f32.mrf.mxu0
    %v7107 = vadd.f32 0.0, %v7106
    %v7108 = vpop.f32.mrf.mxu0
    %v7109 = vadd.f32 0.0, %v7108
    %7110 = vmatmul.bf16.gmra.mxu0 %v6718
    %v7111 = vpop.f32.mrf.mxu0
    %v7112 = vadd.f32 0.0, %v7111
    %v7113 = vpop.f32.mrf.mxu0
    %v7114 = vadd.f32 0.0, %v7113
    %7115 = vmatmul.bf16.gmra.mxu0 %v6720
    %v7116 = vpop.f32.mrf.mxu0
    %v7117 = vadd.f32 0.0, %v7116
    %v7118 = vpop.f32.mrf.mxu0
    %v7119 = vadd.f32 0.0, %v7118
    %7120 = vmatmul.bf16.gmra.mxu0 %v6722
    %v7121 = vpop.f32.mrf.mxu0
    %v7122 = vadd.f32 0.0, %v7121
    %v7123 = vpop.f32.mrf.mxu0
    %v7124 = vadd.f32 0.0, %v7123
    %7125 = vmatmul.bf16.gmra.mxu0 %v6724
    %v7126 = vpop.f32.mrf.mxu0
    %v7127 = vadd.f32 0.0, %v7126
    %v7128 = vpop.f32.mrf.mxu0
    %v7129 = vadd.f32 0.0, %v7128
    %7130 = vmatmul.bf16.gmra.mxu0 %v6726
    %v7131 = vpop.f32.mrf.mxu0
    %v7132 = vadd.f32 0.0, %v7131
    %v7133 = vpop.f32.mrf.mxu0
    %v7134 = vadd.f32 0.0, %v7133
    %7135 = vmatmul.bf16.gmra.mxu0 %v6728
    %v7136 = vpop.f32.mrf.mxu0
    %v7137 = vadd.f32 0.0, %v7136
    %v7138 = vpop.f32.mrf.mxu0
    %v7139 = vadd.f32 0.0, %v7138
    %7140 = vmatmul.bf16.gmra.mxu0 %v6730
    %v7141 = vpop.f32.mrf.mxu0
    %v7142 = vadd.f32 0.0, %v7141
    %v7143 = vpop.f32.mrf.mxu0
    %v7144 = vadd.f32 0.0, %v7143
    %7145 = vmatmul.bf16.gmra.mxu0 %v6732
    %v7146 = vpop.f32.mrf.mxu0
    %v7147 = vadd.f32 0.0, %v7146
    %v7148 = vpop.f32.mrf.mxu0
    %v7149 = vadd.f32 0.0, %v7148
    %7150 = vmatmul.bf16.gmra.mxu0 %v6734
    %v7151 = vpop.f32.mrf.mxu0
    %v7152 = vadd.f32 0.0, %v7151
    %v7153 = vpop.f32.mrf.mxu0
    %v7154 = vadd.f32 0.0, %v7153
    %7155 = vmatmul.bf16.gmra.mxu0 %v6736
    %v7156 = vpop.f32.mrf.mxu0
    %v7157 = vadd.f32 0.0, %v7156
    %v7158 = vpop.f32.mrf.mxu0
    %v7159 = vadd.f32 0.0, %v7158
    %7160 = vmatmul.bf16.gmra.mxu0 %v6738
    %v7161 = vpop.f32.mrf.mxu0
    %v7162 = vadd.f32 0.0, %v7161
    %v7163 = vpop.f32.mrf.mxu0
    %v7164 = vadd.f32 0.0, %v7163
    %7165 = vmatmul.bf16.gmra.mxu0 %v6740
    %v7166 = vpop.f32.mrf.mxu0
    %v7167 = vadd.f32 0.0, %v7166
    %v7168 = vpop.f32.mrf.mxu0
    %v7169 = vadd.f32 0.0, %v7168
    %7170 = vmatmul.bf16.gmra.mxu0 %v6742
    %v7171 = vpop.f32.mrf.mxu0
    %v7172 = vadd.f32 0.0, %v7171
    %v7173 = vpop.f32.mrf.mxu0
    %v7174 = vadd.f32 0.0, %v7173
    %7175 = vmatmul.bf16.gmra.mxu0 %v6744
    %v7176 = vpop.f32.mrf.mxu0
    %v7177 = vadd.f32 0.0, %v7176
    %v7178 = vpop.f32.mrf.mxu0
    %v7179 = vadd.f32 0.0, %v7178
    %7180 = vmatmul.bf16.gmra.mxu0 %v6746
    %v7181 = vpop.f32.mrf.mxu0
    %v7182 = vadd.f32 0.0, %v7181
    %v7183 = vpop.f32.mrf.mxu0
    %v7184 = vadd.f32 0.0, %v7183
    %7185 = vmatmul.bf16.gmra.mxu0 %v6748
    %v7186 = vpop.f32.mrf.mxu0
    %v7187 = vadd.f32 0.0, %v7186
    %v7188 = vpop.f32.mrf.mxu0
    %v7189 = vadd.f32 0.0, %v7188
    %7190 = vmatmul.bf16.gmra.mxu0 %v6750
    %v7191 = vpop.f32.mrf.mxu0
    %v7192 = vadd.f32 0.0, %v7191
    %v7193 = vpop.f32.mrf.mxu0
    %v7194 = vadd.f32 0.0, %v7193
    %7195 = vmatmul.bf16.gmra.mxu0 %v6752
    %v7196 = vpop.f32.mrf.mxu0
    %v7197 = vadd.f32 0.0, %v7196
    %v7198 = vpop.f32.mrf.mxu0
    %v7199 = vadd.f32 0.0, %v7198
    %7200 = vmatmul.bf16.gmra.mxu0 %v6754
    %v7201 = vpop.f32.mrf.mxu0
    %v7202 = vadd.f32 0.0, %v7201
    %v7203 = vpop.f32.mrf.mxu0
    %v7204 = vadd.f32 0.0, %v7203
    %7205 = vmatmul.bf16.gmra.mxu0 %v6756
    %v7206 = vpop.f32.mrf.mxu0
    %v7207 = vadd.f32 0.0, %v7206
    %v7208 = vpop.f32.mrf.mxu0
    %v7209 = vadd.f32 0.0, %v7208
    %7210 = vmatmul.bf16.gmra.mxu0 %v6758
    %v7211 = vpop.f32.mrf.mxu0
    %v7212 = vadd.f32 0.0, %v7211
    %v7213 = vpop.f32.mrf.mxu0
    %v7214 = vadd.f32 0.0, %v7213
    %7215 = vmatmul.bf16.gmra.mxu0 %v6760
    %v7216 = vpop.f32.mrf.mxu0
    %v7217 = vadd.f32 0.0, %v7216
    %v7218 = vpop.f32.mrf.mxu0
    %v7219 = vadd.f32 0.0, %v7218
    %7220 = vmatmul.bf16.gmra.mxu0 %v6762
    %v7221 = vpop.f32.mrf.mxu0
    %v7222 = vadd.f32 0.0, %v7221
    %v7223 = vpop.f32.mrf.mxu0
    %v7224 = vadd.f32 0.0, %v7223
    %7225 = vmatmul.bf16.gmra.mxu0 %v6764
    %v7226 = vpop.f32.mrf.mxu0
    %v7227 = vadd.f32 0.0, %v7226
    %v7228 = vpop.f32.mrf.mxu0
    %v7229 = vadd.f32 0.0, %v7228
    %7230 = vmatmul.bf16.gmra.mxu0 %v6766
    %v7231 = vpop.f32.mrf.mxu0
    %v7232 = vadd.f32 0.0, %v7231
    %v7233 = vpop.f32.mrf.mxu0
    %v7234 = vadd.f32 0.0, %v7233
    %7235 = vmatmul.bf16.gmra.mxu0 %v6768
    %v7236 = vpop.f32.mrf.mxu0
    %v7237 = vadd.f32 0.0, %v7236
    %v7238 = vpop.f32.mrf.mxu0
    %v7239 = vadd.f32 0.0, %v7238
    %7240 = vmatmul.bf16.gmra.mxu0 %v6770
    %v7241 = vpop.f32.mrf.mxu0
    %v7242 = vadd.f32 0.0, %v7241
    %v7243 = vpop.f32.mrf.mxu0
    %v7244 = vadd.f32 0.0, %v7243
    %7245 = vmatmul.bf16.gmra.mxu0 %v6772
    %v7246 = vpop.f32.mrf.mxu0
    %v7247 = vadd.f32 0.0, %v7246
    %v7248 = vpop.f32.mrf.mxu0
    %v7249 = vadd.f32 0.0, %v7248
    %7250 = vmatmul.bf16.gmra.mxu0 %v6774
    %v7251 = vpop.f32.mrf.mxu0
    %v7252 = vadd.f32 0.0, %v7251
    %v7253 = vpop.f32.mrf.mxu0
    %v7254 = vadd.f32 0.0, %v7253
    %7255 = vmatmul.bf16.gmra.mxu0 %v6776
    %v7256 = vpop.f32.mrf.mxu0
    %v7257 = vadd.f32 0.0, %v7256
    %v7258 = vpop.f32.mrf.mxu0
    %v7259 = vadd.f32 0.0, %v7258
    %7260 = vmatmul.bf16.gmra.mxu0 %v6778
    %v7261 = vpop.f32.mrf.mxu0
    %v7262 = vadd.f32 0.0, %v7261
    %v7263 = vpop.f32.mrf.mxu0
    %v7264 = vadd.f32 0.0, %v7263
    %7265 = vmatmul.bf16.gmra.mxu0 %v6780
    %v7266 = vpop.f32.mrf.mxu0
    %v7267 = vadd.f32 0.0, %v7266
    %v7268 = vpop.f32.mrf.mxu0
    %v7269 = vadd.f32 0.0, %v7268
    %7270 = vdwg.mxu0
    %7271 = vmatpush.bf16.msra.mxu0 %v1032
    %7272 = vmatpush.bf16.msra.mxu0 %v1031
    %7273 = vmatpush.bf16.msra.mxu0 %v1030
    %7274 = vmatpush.bf16.msra.mxu0 %v1029
    %7275 = vmatpush.bf16.msra.mxu0 %v1028
    %7276 = vmatpush.bf16.msra.mxu0 %v1027
    %7277 = vmatpush.bf16.msra.mxu0 %v1026
    %7278 = vmatpush.bf16.msra.mxu0 %v1025
    %7279 = vmatmul.bf16.gmra.mxu0 %v6591
    %v7280 = vpop.f32.mrf.mxu0
    %v7281 = vadd.f32 %v6792, %v7280
    %v7282 = vpop.f32.mrf.mxu0
    %v7283 = vadd.f32 %v6794, %v7282
    %7284 = vmatmul.bf16.gmra.mxu0 %v6593
    %v7285 = vpop.f32.mrf.mxu0
    %v7286 = vadd.f32 %v6797, %v7285
    %v7287 = vpop.f32.mrf.mxu0
    %v7288 = vadd.f32 %v6799, %v7287
    %7289 = vmatmul.bf16.gmra.mxu0 %v6595
    %v7290 = vpop.f32.mrf.mxu0
    %v7291 = vadd.f32 %v6802, %v7290
    %v7292 = vpop.f32.mrf.mxu0
    %v7293 = vadd.f32 %v6804, %v7292
    %7294 = vmatmul.bf16.gmra.mxu0 %v6597
    %v7295 = vpop.f32.mrf.mxu0
    %v7296 = vadd.f32 %v6807, %v7295
    %v7297 = vpop.f32.mrf.mxu0
    %v7298 = vadd.f32 %v6809, %v7297
    %7299 = vmatmul.bf16.gmra.mxu0 %v6599
    %v7300 = vpop.f32.mrf.mxu0
    %v7301 = vadd.f32 %v6812, %v7300
    %v7302 = vpop.f32.mrf.mxu0
    %v7303 = vadd.f32 %v6814, %v7302
    %7304 = vmatmul.bf16.gmra.mxu0 %v6601
    %v7305 = vpop.f32.mrf.mxu0
    %v7306 = vadd.f32 %v6817, %v7305
    %v7307 = vpop.f32.mrf.mxu0
    %v7308 = vadd.f32 %v6819, %v7307
    %7309 = vmatmul.bf16.gmra.mxu0 %v6603
    %v7310 = vpop.f32.mrf.mxu0
    %v7311 = vadd.f32 %v6822, %v7310
    %v7312 = vpop.f32.mrf.mxu0
    %v7313 = vadd.f32 %v6824, %v7312
    %7314 = vmatmul.bf16.gmra.mxu0 %v6605
    %v7315 = vpop.f32.mrf.mxu0
    %v7316 = vadd.f32 %v6827, %v7315
    %v7317 = vpop.f32.mrf.mxu0
    %v7318 = vadd.f32 %v6829, %v7317
    %7319 = vmatmul.bf16.gmra.mxu0 %v6607
    %v7320 = vpop.f32.mrf.mxu0
    %v7321 = vadd.f32 %v6832, %v7320
    %v7322 = vpop.f32.mrf.mxu0
    %v7323 = vadd.f32 %v6834, %v7322
    %7324 = vmatmul.bf16.gmra.mxu0 %v6609
    %v7325 = vpop.f32.mrf.mxu0
    %v7326 = vadd.f32 %v6837, %v7325
    %v7327 = vpop.f32.mrf.mxu0
    %v7328 = vadd.f32 %v6839, %v7327
    %7329 = vmatmul.bf16.gmra.mxu0 %v6611
    %v7330 = vpop.f32.mrf.mxu0
    %v7331 = vadd.f32 %v6842, %v7330
    %v7332 = vpop.f32.mrf.mxu0
    %v7333 = vadd.f32 %v6844, %v7332
    %7334 = vmatmul.bf16.gmra.mxu0 %v6613
    %v7335 = vpop.f32.mrf.mxu0
    %v7336 = vadd.f32 %v6847, %v7335
    %v7337 = vpop.f32.mrf.mxu0
    %v7338 = vadd.f32 %v6849, %v7337
    %7339 = vmatmul.bf16.gmra.mxu0 %v6615
    %v7340 = vpop.f32.mrf.mxu0
    %v7341 = vadd.f32 %v6852, %v7340
    %v7342 = vpop.f32.mrf.mxu0
    %v7343 = vadd.f32 %v6854, %v7342
    %7344 = vmatmul.bf16.gmra.mxu0 %v6617
    %v7345 = vpop.f32.mrf.mxu0
    %v7346 = vadd.f32 %v6857, %v7345
    %v7347 = vpop.f32.mrf.mxu0
    %v7348 = vadd.f32 %v6859, %v7347
    %7349 = vmatmul.bf16.gmra.mxu0 %v6619
    %v7350 = vpop.f32.mrf.mxu0
    %v7351 = vadd.f32 %v6862, %v7350
    %v7352 = vpop.f32.mrf.mxu0
    %v7353 = vadd.f32 %v6864, %v7352
    %7354 = vmatmul.bf16.gmra.mxu0 %v6621
    %v7355 = vpop.f32.mrf.mxu0
    %v7356 = vadd.f32 %v6867, %v7355
    %v7357 = vpop.f32.mrf.mxu0
    %v7358 = vadd.f32 %v6869, %v7357
    %7359 = vmatmul.bf16.gmra.mxu0 %v6623
    %v7360 = vpop.f32.mrf.mxu0
    %v7361 = vadd.f32 %v6872, %v7360
    %v7362 = vpop.f32.mrf.mxu0
    %v7363 = vadd.f32 %v6874, %v7362
    %7364 = vmatmul.bf16.gmra.mxu0 %v6625
    %v7365 = vpop.f32.mrf.mxu0
    %v7366 = vadd.f32 %v6877, %v7365
    %v7367 = vpop.f32.mrf.mxu0
    %v7368 = vadd.f32 %v6879, %v7367
    %7369 = vmatmul.bf16.gmra.mxu0 %v6627
    %v7370 = vpop.f32.mrf.mxu0
    %v7371 = vadd.f32 %v6882, %v7370
    %v7372 = vpop.f32.mrf.mxu0
    %v7373 = vadd.f32 %v6884, %v7372
    %7374 = vmatmul.bf16.gmra.mxu0 %v6629
    %v7375 = vpop.f32.mrf.mxu0
    %v7376 = vadd.f32 %v6887, %v7375
    %v7377 = vpop.f32.mrf.mxu0
    %v7378 = vadd.f32 %v6889, %v7377
    %7379 = vmatmul.bf16.gmra.mxu0 %v6631
    %v7380 = vpop.f32.mrf.mxu0
    %v7381 = vadd.f32 %v6892, %v7380
    %v7382 = vpop.f32.mrf.mxu0
    %v7383 = vadd.f32 %v6894, %v7382
    %7384 = vmatmul.bf16.gmra.mxu0 %v6633
    %v7385 = vpop.f32.mrf.mxu0
    %v7386 = vadd.f32 %v6897, %v7385
    %v7387 = vpop.f32.mrf.mxu0
    %v7388 = vadd.f32 %v6899, %v7387
    %7389 = vmatmul.bf16.gmra.mxu0 %v6635
    %v7390 = vpop.f32.mrf.mxu0
    %v7391 = vadd.f32 %v6902, %v7390
    %v7392 = vpop.f32.mrf.mxu0
    %v7393 = vadd.f32 %v6904, %v7392
    %7394 = vmatmul.bf16.gmra.mxu0 %v6637
    %v7395 = vpop.f32.mrf.mxu0
    %v7396 = vadd.f32 %v6907, %v7395
    %v7397 = vpop.f32.mrf.mxu0
    %v7398 = vadd.f32 %v6909, %v7397
    %7399 = vmatmul.bf16.gmra.mxu0 %v6639
    %v7400 = vpop.f32.mrf.mxu0
    %v7401 = vadd.f32 %v6912, %v7400
    %v7402 = vpop.f32.mrf.mxu0
    %v7403 = vadd.f32 %v6914, %v7402
    %7404 = vmatmul.bf16.gmra.mxu0 %v6641
    %v7405 = vpop.f32.mrf.mxu0
    %v7406 = vadd.f32 %v6917, %v7405
    %v7407 = vpop.f32.mrf.mxu0
    %v7408 = vadd.f32 %v6919, %v7407
    %7409 = vmatmul.bf16.gmra.mxu0 %v6643
    %v7410 = vpop.f32.mrf.mxu0
    %v7411 = vadd.f32 %v6922, %v7410
    %v7412 = vpop.f32.mrf.mxu0
    %v7413 = vadd.f32 %v6924, %v7412
    %7414 = vmatmul.bf16.gmra.mxu0 %v6645
    %v7415 = vpop.f32.mrf.mxu0
    %v7416 = vadd.f32 %v6927, %v7415
    %v7417 = vpop.f32.mrf.mxu0
    %v7418 = vadd.f32 %v6929, %v7417
    %7419 = vmatmul.bf16.gmra.mxu0 %v6647
    %v7420 = vpop.f32.mrf.mxu0
    %v7421 = vadd.f32 %v6932, %v7420
    %v7422 = vpop.f32.mrf.mxu0
    %v7423 = vadd.f32 %v6934, %v7422
    %7424 = vmatmul.bf16.gmra.mxu0 %v6649
    %v7425 = vpop.f32.mrf.mxu0
    %v7426 = vadd.f32 %v6937, %v7425
    %v7427 = vpop.f32.mrf.mxu0
    %v7428 = vadd.f32 %v6939, %v7427
    %7429 = vmatmul.bf16.gmra.mxu0 %v6651
    %v7430 = vpop.f32.mrf.mxu0
    %v7431 = vadd.f32 %v6942, %v7430
    %v7432 = vpop.f32.mrf.mxu0
    %v7433 = vadd.f32 %v6944, %v7432
    %7434 = vmatmul.bf16.gmra.mxu0 %v6653
    %v7435 = vpop.f32.mrf.mxu0
    %v7436 = vadd.f32 %v6947, %v7435
    %v7437 = vpop.f32.mrf.mxu0
    %v7438 = vadd.f32 %v6949, %v7437
    %7439 = vmatmul.bf16.gmra.mxu0 %v6655
    %v7440 = vpop.f32.mrf.mxu0
    %v7441 = vadd.f32 %v6952, %v7440
    %v7442 = vpop.f32.mrf.mxu0
    %v7443 = vadd.f32 %v6954, %v7442
    %7444 = vmatmul.bf16.gmra.mxu0 %v6657
    %v7445 = vpop.f32.mrf.mxu0
    %v7446 = vadd.f32 %v6957, %v7445
    %v7447 = vpop.f32.mrf.mxu0
    %v7448 = vadd.f32 %v6959, %v7447
    %7449 = vmatmul.bf16.gmra.mxu0 %v6659
    %v7450 = vpop.f32.mrf.mxu0
    %v7451 = vadd.f32 %v6962, %v7450
    %v7452 = vpop.f32.mrf.mxu0
    %v7453 = vadd.f32 %v6964, %v7452
    %7454 = vmatmul.bf16.gmra.mxu0 %v6661
    %v7455 = vpop.f32.mrf.mxu0
    %v7456 = vadd.f32 %v6967, %v7455
    %v7457 = vpop.f32.mrf.mxu0
    %v7458 = vadd.f32 %v6969, %v7457
    %7459 = vmatmul.bf16.gmra.mxu0 %v6663
    %v7460 = vpop.f32.mrf.mxu0
    %v7461 = vadd.f32 %v6972, %v7460
    %v7462 = vpop.f32.mrf.mxu0
    %v7463 = vadd.f32 %v6974, %v7462
    %7464 = vmatmul.bf16.gmra.mxu0 %v6665
    %v7465 = vpop.f32.mrf.mxu0
    %v7466 = vadd.f32 %v6977, %v7465
    %v7467 = vpop.f32.mrf.mxu0
    %v7468 = vadd.f32 %v6979, %v7467
    %7469 = vmatmul.bf16.gmra.mxu0 %v6667
    %v7470 = vpop.f32.mrf.mxu0
    %v7471 = vadd.f32 %v6982, %v7470
    %v7472 = vpop.f32.mrf.mxu0
    %v7473 = vadd.f32 %v6984, %v7472
    %7474 = vmatmul.bf16.gmra.mxu0 %v6669
    %v7475 = vpop.f32.mrf.mxu0
    %v7476 = vadd.f32 %v6987, %v7475
    %v7477 = vpop.f32.mrf.mxu0
    %v7478 = vadd.f32 %v6989, %v7477
    %7479 = vmatmul.bf16.gmra.mxu0 %v6671
    %v7480 = vpop.f32.mrf.mxu0
    %v7481 = vadd.f32 %v6992, %v7480
    %v7482 = vpop.f32.mrf.mxu0
    %v7483 = vadd.f32 %v6994, %v7482
    %7484 = vmatmul.bf16.gmra.mxu0 %v6673
    %v7485 = vpop.f32.mrf.mxu0
    %v7486 = vadd.f32 %v6997, %v7485
    %v7487 = vpop.f32.mrf.mxu0
    %v7488 = vadd.f32 %v6999, %v7487
    %7489 = vmatmul.bf16.gmra.mxu0 %v6675
    %v7490 = vpop.f32.mrf.mxu0
    %v7491 = vadd.f32 %v7002, %v7490
    %v7492 = vpop.f32.mrf.mxu0
    %v7493 = vadd.f32 %v7004, %v7492
    %7494 = vmatmul.bf16.gmra.mxu0 %v6677
    %v7495 = vpop.f32.mrf.mxu0
    %v7496 = vadd.f32 %v7007, %v7495
    %v7497 = vpop.f32.mrf.mxu0
    %v7498 = vadd.f32 %v7009, %v7497
    %7499 = vmatmul.bf16.gmra.mxu0 %v6679
    %v7500 = vpop.f32.mrf.mxu0
    %v7501 = vadd.f32 %v7012, %v7500
    %v7502 = vpop.f32.mrf.mxu0
    %v7503 = vadd.f32 %v7014, %v7502
    %7504 = vmatmul.bf16.gmra.mxu0 %v6681
    %v7505 = vpop.f32.mrf.mxu0
    %v7506 = vadd.f32 %v7017, %v7505
    %v7507 = vpop.f32.mrf.mxu0
    %v7508 = vadd.f32 %v7019, %v7507
    %7509 = vmatmul.bf16.gmra.mxu0 %v6683
    %v7510 = vpop.f32.mrf.mxu0
    %v7511 = vadd.f32 %v7022, %v7510
    %v7512 = vpop.f32.mrf.mxu0
    %v7513 = vadd.f32 %v7024, %v7512
    %7514 = vmatmul.bf16.gmra.mxu0 %v6685
    %v7515 = vpop.f32.mrf.mxu0
    %v7516 = vadd.f32 %v7027, %v7515
    %v7517 = vpop.f32.mrf.mxu0
    %v7518 = vadd.f32 %v7029, %v7517
    %7519 = vmatmul.bf16.gmra.mxu0 %v6687
    %v7520 = vpop.f32.mrf.mxu0
    %v7521 = vadd.f32 %v7032, %v7520
    %v7522 = vpop.f32.mrf.mxu0
    %v7523 = vadd.f32 %v7034, %v7522
    %7524 = vmatmul.bf16.gmra.mxu0 %v6689
    %v7525 = vpop.f32.mrf.mxu0
    %v7526 = vadd.f32 %v7037, %v7525
    %v7527 = vpop.f32.mrf.mxu0
    %v7528 = vadd.f32 %v7039, %v7527
    %7529 = vmatmul.bf16.gmra.mxu0 %v6691
    %v7530 = vpop.f32.mrf.mxu0
    %v7531 = vadd.f32 %v7042, %v7530
    %v7532 = vpop.f32.mrf.mxu0
    %v7533 = vadd.f32 %v7044, %v7532
    %7534 = vmatmul.bf16.gmra.mxu0 %v6693
    %v7535 = vpop.f32.mrf.mxu0
    %v7536 = vadd.f32 %v7047, %v7535
    %v7537 = vpop.f32.mrf.mxu0
    %v7538 = vadd.f32 %v7049, %v7537
    %7539 = vmatmul.bf16.gmra.mxu0 %v6695
    %v7540 = vpop.f32.mrf.mxu0
    %v7541 = vadd.f32 %v7052, %v7540
    %v7542 = vpop.f32.mrf.mxu0
    %v7543 = vadd.f32 %v7054, %v7542
    %7544 = vmatmul.bf16.gmra.mxu0 %v6697
    %v7545 = vpop.f32.mrf.mxu0
    %v7546 = vadd.f32 %v7057, %v7545
    %v7547 = vpop.f32.mrf.mxu0
    %v7548 = vadd.f32 %v7059, %v7547
    %7549 = vmatmul.bf16.gmra.mxu0 %v6699
    %v7550 = vpop.f32.mrf.mxu0
    %v7551 = vadd.f32 %v7062, %v7550
    %v7552 = vpop.f32.mrf.mxu0
    %v7553 = vadd.f32 %v7064, %v7552
    %7554 = vmatmul.bf16.gmra.mxu0 %v6701
    %v7555 = vpop.f32.mrf.mxu0
    %v7556 = vadd.f32 %v7067, %v7555
    %v7557 = vpop.f32.mrf.mxu0
    %v7558 = vadd.f32 %v7069, %v7557
    %7559 = vmatmul.bf16.gmra.mxu0 %v6703
    %v7560 = vpop.f32.mrf.mxu0
    %v7561 = vadd.f32 %v7072, %v7560
    %v7562 = vpop.f32.mrf.mxu0
    %v7563 = vadd.f32 %v7074, %v7562
    %7564 = vmatmul.bf16.gmra.mxu0 %v6705
    %v7565 = vpop.f32.mrf.mxu0
    %v7566 = vadd.f32 %v7077, %v7565
    %v7567 = vpop.f32.mrf.mxu0
    %v7568 = vadd.f32 %v7079, %v7567
    %7569 = vmatmul.bf16.gmra.mxu0 %v6707
    %v7570 = vpop.f32.mrf.mxu0
    %v7571 = vadd.f32 %v7082, %v7570
    %v7572 = vpop.f32.mrf.mxu0
    %v7573 = vadd.f32 %v7084, %v7572
    %7574 = vmatmul.bf16.gmra.mxu0 %v6709
    %v7575 = vpop.f32.mrf.mxu0
    %v7576 = vadd.f32 %v7087, %v7575
    %v7577 = vpop.f32.mrf.mxu0
    %v7578 = vadd.f32 %v7089, %v7577
    %7579 = vmatmul.bf16.gmra.mxu0 %v6711
    %v7580 = vpop.f32.mrf.mxu0
    %v7581 = vadd.f32 %v7092, %v7580
    %v7582 = vpop.f32.mrf.mxu0
    %v7583 = vadd.f32 %v7094, %v7582
    %7584 = vmatmul.bf16.gmra.mxu0 %v6713
    %v7585 = vpop.f32.mrf.mxu0
    %v7586 = vadd.f32 %v7097, %v7585
    %v7587 = vpop.f32.mrf.mxu0
    %v7588 = vadd.f32 %v7099, %v7587
    %7589 = vmatmul.bf16.gmra.mxu0 %v6715
    %v7590 = vpop.f32.mrf.mxu0
    %v7591 = vadd.f32 %v7102, %v7590
    %v7592 = vpop.f32.mrf.mxu0
    %v7593 = vadd.f32 %v7104, %v7592
    %7594 = vmatmul.bf16.gmra.mxu0 %v6717
    %v7595 = vpop.f32.mrf.mxu0
    %v7596 = vadd.f32 %v7107, %v7595
    %v7597 = vpop.f32.mrf.mxu0
    %v7598 = vadd.f32 %v7109, %v7597
    %7599 = vmatmul.bf16.gmra.mxu0 %v6719
    %v7600 = vpop.f32.mrf.mxu0
    %v7601 = vadd.f32 %v7112, %v7600
    %v7602 = vpop.f32.mrf.mxu0
    %v7603 = vadd.f32 %v7114, %v7602
    %7604 = vmatmul.bf16.gmra.mxu0 %v6721
    %v7605 = vpop.f32.mrf.mxu0
    %v7606 = vadd.f32 %v7117, %v7605
    %v7607 = vpop.f32.mrf.mxu0
    %v7608 = vadd.f32 %v7119, %v7607
    %7609 = vmatmul.bf16.gmra.mxu0 %v6723
    %v7610 = vpop.f32.mrf.mxu0
    %v7611 = vadd.f32 %v7122, %v7610
    %v7612 = vpop.f32.mrf.mxu0
    %v7613 = vadd.f32 %v7124, %v7612
    %7614 = vmatmul.bf16.gmra.mxu0 %v6725
    %v7615 = vpop.f32.mrf.mxu0
    %v7616 = vadd.f32 %v7127, %v7615
    %v7617 = vpop.f32.mrf.mxu0
    %v7618 = vadd.f32 %v7129, %v7617
    %7619 = vmatmul.bf16.gmra.mxu0 %v6727
    %v7620 = vpop.f32.mrf.mxu0
    %v7621 = vadd.f32 %v7132, %v7620
    %v7622 = vpop.f32.mrf.mxu0
    %v7623 = vadd.f32 %v7134, %v7622
    %7624 = vmatmul.bf16.gmra.mxu0 %v6729
    %v7625 = vpop.f32.mrf.mxu0
    %v7626 = vadd.f32 %v7137, %v7625
    %v7627 = vpop.f32.mrf.mxu0
    %v7628 = vadd.f32 %v7139, %v7627
    %7629 = vmatmul.bf16.gmra.mxu0 %v6731
    %v7630 = vpop.f32.mrf.mxu0
    %v7631 = vadd.f32 %v7142, %v7630
    %v7632 = vpop.f32.mrf.mxu0
    %v7633 = vadd.f32 %v7144, %v7632
    %7634 = vmatmul.bf16.gmra.mxu0 %v6733
    %v7635 = vpop.f32.mrf.mxu0
    %v7636 = vadd.f32 %v7147, %v7635
    %v7637 = vpop.f32.mrf.mxu0
    %v7638 = vadd.f32 %v7149, %v7637
    %7639 = vmatmul.bf16.gmra.mxu0 %v6735
    %v7640 = vpop.f32.mrf.mxu0
    %v7641 = vadd.f32 %v7152, %v7640
    %v7642 = vpop.f32.mrf.mxu0
    %v7643 = vadd.f32 %v7154, %v7642
    %7644 = vmatmul.bf16.gmra.mxu0 %v6737
    %v7645 = vpop.f32.mrf.mxu0
    %v7646 = vadd.f32 %v7157, %v7645
    %v7647 = vpop.f32.mrf.mxu0
    %v7648 = vadd.f32 %v7159, %v7647
    %7649 = vmatmul.bf16.gmra.mxu0 %v6739
    %v7650 = vpop.f32.mrf.mxu0
    %v7651 = vadd.f32 %v7162, %v7650
    %v7652 = vpop.f32.mrf.mxu0
    %v7653 = vadd.f32 %v7164, %v7652
    %7654 = vmatmul.bf16.gmra.mxu0 %v6741
    %v7655 = vpop.f32.mrf.mxu0
    %v7656 = vadd.f32 %v7167, %v7655
    %v7657 = vpop.f32.mrf.mxu0
    %v7658 = vadd.f32 %v7169, %v7657
    %7659 = vmatmul.bf16.gmra.mxu0 %v6743
    %v7660 = vpop.f32.mrf.mxu0
    %v7661 = vadd.f32 %v7172, %v7660
    %v7662 = vpop.f32.mrf.mxu0
    %v7663 = vadd.f32 %v7174, %v7662
    %7664 = vmatmul.bf16.gmra.mxu0 %v6745
    %v7665 = vpop.f32.mrf.mxu0
    %v7666 = vadd.f32 %v7177, %v7665
    %v7667 = vpop.f32.mrf.mxu0
    %v7668 = vadd.f32 %v7179, %v7667
    %7669 = vmatmul.bf16.gmra.mxu0 %v6747
    %v7670 = vpop.f32.mrf.mxu0
    %v7671 = vadd.f32 %v7182, %v7670
    %v7672 = vpop.f32.mrf.mxu0
    %v7673 = vadd.f32 %v7184, %v7672
    %7674 = vmatmul.bf16.gmra.mxu0 %v6749
    %v7675 = vpop.f32.mrf.mxu0
    %v7676 = vadd.f32 %v7187, %v7675
    %v7677 = vpop.f32.mrf.mxu0
    %v7678 = vadd.f32 %v7189, %v7677
    %7679 = vmatmul.bf16.gmra.mxu0 %v6751
    %v7680 = vpop.f32.mrf.mxu0
    %v7681 = vadd.f32 %v7192, %v7680
    %v7682 = vpop.f32.mrf.mxu0
    %v7683 = vadd.f32 %v7194, %v7682
    %7684 = vmatmul.bf16.gmra.mxu0 %v6753
    %v7685 = vpop.f32.mrf.mxu0
    %v7686 = vadd.f32 %v7197, %v7685
    %v7687 = vpop.f32.mrf.mxu0
    %v7688 = vadd.f32 %v7199, %v7687
    %7689 = vmatmul.bf16.gmra.mxu0 %v6755
    %v7690 = vpop.f32.mrf.mxu0
    %v7691 = vadd.f32 %v7202, %v7690
    %v7692 = vpop.f32.mrf.mxu0
    %v7693 = vadd.f32 %v7204, %v7692
    %7694 = vmatmul.bf16.gmra.mxu0 %v6757
    %v7695 = vpop.f32.mrf.mxu0
    %v7696 = vadd.f32 %v7207, %v7695
    %v7697 = vpop.f32.mrf.mxu0
    %v7698 = vadd.f32 %v7209, %v7697
    %7699 = vmatmul.bf16.gmra.mxu0 %v6759
    %v7700 = vpop.f32.mrf.mxu0
    %v7701 = vadd.f32 %v7212, %v7700
    %v7702 = vpop.f32.mrf.mxu0
    %v7703 = vadd.f32 %v7214, %v7702
    %7704 = vmatmul.bf16.gmra.mxu0 %v6761
    %v7705 = vpop.f32.mrf.mxu0
    %v7706 = vadd.f32 %v7217, %v7705
    %v7707 = vpop.f32.mrf.mxu0
    %v7708 = vadd.f32 %v7219, %v7707
    %7709 = vmatmul.bf16.gmra.mxu0 %v6763
    %v7710 = vpop.f32.mrf.mxu0
    %v7711 = vadd.f32 %v7222, %v7710
    %v7712 = vpop.f32.mrf.mxu0
    %v7713 = vadd.f32 %v7224, %v7712
    %7714 = vmatmul.bf16.gmra.mxu0 %v6765
    %v7715 = vpop.f32.mrf.mxu0
    %v7716 = vadd.f32 %v7227, %v7715
    %v7717 = vpop.f32.mrf.mxu0
    %v7718 = vadd.f32 %v7229, %v7717
    %7719 = vmatmul.bf16.gmra.mxu0 %v6767
    %v7720 = vpop.f32.mrf.mxu0
    %v7721 = vadd.f32 %v7232, %v7720
    %v7722 = vpop.f32.mrf.mxu0
    %v7723 = vadd.f32 %v7234, %v7722
    %7724 = vmatmul.bf16.gmra.mxu0 %v6769
    %v7725 = vpop.f32.mrf.mxu0
    %v7726 = vadd.f32 %v7237, %v7725
    %v7727 = vpop.f32.mrf.mxu0
    %v7728 = vadd.f32 %v7239, %v7727
    %7729 = vmatmul.bf16.gmra.mxu0 %v6771
    %v7730 = vpop.f32.mrf.mxu0
    %v7731 = vadd.f32 %v7242, %v7730
    %v7732 = vpop.f32.mrf.mxu0
    %v7733 = vadd.f32 %v7244, %v7732
    %7734 = vmatmul.bf16.gmra.mxu0 %v6773
    %v7735 = vpop.f32.mrf.mxu0
    %v7736 = vadd.f32 %v7247, %v7735
    %v7737 = vpop.f32.mrf.mxu0
    %v7738 = vadd.f32 %v7249, %v7737
    %7739 = vmatmul.bf16.gmra.mxu0 %v6775
    %v7740 = vpop.f32.mrf.mxu0
    %v7741 = vadd.f32 %v7252, %v7740
    %v7742 = vpop.f32.mrf.mxu0
    %v7743 = vadd.f32 %v7254, %v7742
    %7744 = vmatmul.bf16.gmra.mxu0 %v6777
    %v7745 = vpop.f32.mrf.mxu0
    %v7746 = vadd.f32 %v7257, %v7745
    %v7747 = vpop.f32.mrf.mxu0
    %v7748 = vadd.f32 %v7259, %v7747
    %7749 = vmatmul.bf16.gmra.mxu0 %v6779
    %v7750 = vpop.f32.mrf.mxu0
    %v7751 = vadd.f32 %v7262, %v7750
    %v7752 = vpop.f32.mrf.mxu0
    %v7753 = vadd.f32 %v7264, %v7752
    %7754 = vmatmul.bf16.gmra.mxu0 %v6781
    %v7755 = vpop.f32.mrf.mxu0
    %v7756 = vadd.f32 %v7267, %v7755
    %v7757 = vpop.f32.mrf.mxu0
    %v7758 = vadd.f32 %v7269, %v7757
    %7759 = vdwg.mxu0
    %v7760 = vpack.c.bf16 %v7281, %v7281
    %v7761 = vpack.c.bf16 %v7283, %v7283
    %v7762 = vpack.c.bf16 %v7286, %v7286
    %v7763 = vpack.c.bf16 %v7288, %v7288
    %v7764 = vpack.c.bf16 %v7291, %v7291
    %v7765 = vpack.c.bf16 %v7293, %v7293
    %v7766 = vpack.c.bf16 %v7296, %v7296
    %v7767 = vpack.c.bf16 %v7298, %v7298
    %v7768 = vpack.c.bf16 %v7301, %v7301
    %v7769 = vpack.c.bf16 %v7303, %v7303
    %v7770 = vpack.c.bf16 %v7306, %v7306
    %v7771 = vpack.c.bf16 %v7308, %v7308
    %v7772 = vpack.c.bf16 %v7311, %v7311
    %v7773 = vpack.c.bf16 %v7313, %v7313
    %v7774 = vpack.c.bf16 %v7316, %v7316
    %v7775 = vpack.c.bf16 %v7318, %v7318
    %v7776 = vpack.c.bf16 %v7321, %v7321
    %v7777 = vpack.c.bf16 %v7323, %v7323
    %v7778 = vpack.c.bf16 %v7326, %v7326
    %v7779 = vpack.c.bf16 %v7328, %v7328
    %v7780 = vpack.c.bf16 %v7331, %v7331
    %v7781 = vpack.c.bf16 %v7333, %v7333
    %v7782 = vpack.c.bf16 %v7336, %v7336
    %v7783 = vpack.c.bf16 %v7338, %v7338
    %v7784 = vpack.c.bf16 %v7341, %v7341
    %v7785 = vpack.c.bf16 %v7343, %v7343
    %v7786 = vpack.c.bf16 %v7346, %v7346
    %v7787 = vpack.c.bf16 %v7348, %v7348
    %v7788 = vpack.c.bf16 %v7351, %v7351
    %v7789 = vpack.c.bf16 %v7353, %v7353
    %v7790 = vpack.c.bf16 %v7356, %v7356
    %v7791 = vpack.c.bf16 %v7358, %v7358
    %v7792 = vpack.c.bf16 %v7361, %v7361
    %v7793 = vpack.c.bf16 %v7363, %v7363
    %v7794 = vpack.c.bf16 %v7366, %v7366
    %v7795 = vpack.c.bf16 %v7368, %v7368
    %v7796 = vpack.c.bf16 %v7371, %v7371
    %v7797 = vpack.c.bf16 %v7373, %v7373
    %v7798 = vpack.c.bf16 %v7376, %v7376
    %v7799 = vpack.c.bf16 %v7378, %v7378
    %v7800 = vpack.c.bf16 %v7381, %v7381
    %v7801 = vpack.c.bf16 %v7383, %v7383
    %v7802 = vpack.c.bf16 %v7386, %v7386
    %v7803 = vpack.c.bf16 %v7388, %v7388
    %v7804 = vpack.c.bf16 %v7391, %v7391
    %v7805 = vpack.c.bf16 %v7393, %v7393
    %v7806 = vpack.c.bf16 %v7396, %v7396
    %v7807 = vpack.c.bf16 %v7398, %v7398
    %v7808 = vpack.c.bf16 %v7401, %v7401
    %v7809 = vpack.c.bf16 %v7403, %v7403
    %v7810 = vpack.c.bf16 %v7406, %v7406
    %v7811 = vpack.c.bf16 %v7408, %v7408
    %v7812 = vpack.c.bf16 %v7411, %v7411
    %v7813 = vpack.c.bf16 %v7413, %v7413
    %v7814 = vpack.c.bf16 %v7416, %v7416
    %v7815 = vpack.c.bf16 %v7418, %v7418
    %v7816 = vpack.c.bf16 %v7421, %v7421
    %v7817 = vpack.c.bf16 %v7423, %v7423
    %v7818 = vpack.c.bf16 %v7426, %v7426
    %v7819 = vpack.c.bf16 %v7428, %v7428
    %v7820 = vpack.c.bf16 %v7431, %v7431
    %v7821 = vpack.c.bf16 %v7433, %v7433
    %v7822 = vpack.c.bf16 %v7436, %v7436
    %v7823 = vpack.c.bf16 %v7438, %v7438
    %v7824 = vpack.c.bf16 %v7441, %v7441
    %v7825 = vpack.c.bf16 %v7443, %v7443
    %v7826 = vpack.c.bf16 %v7446, %v7446
    %v7827 = vpack.c.bf16 %v7448, %v7448
    %v7828 = vpack.c.bf16 %v7451, %v7451
    %v7829 = vpack.c.bf16 %v7453, %v7453
    %v7830 = vpack.c.bf16 %v7456, %v7456
    %v7831 = vpack.c.bf16 %v7458, %v7458
    %v7832 = vpack.c.bf16 %v7461, %v7461
    %v7833 = vpack.c.bf16 %v7463, %v7463
    %v7834 = vpack.c.bf16 %v7466, %v7466
    %v7835 = vpack.c.bf16 %v7468, %v7468
    %v7836 = vpack.c.bf16 %v7471, %v7471
    %v7837 = vpack.c.bf16 %v7473, %v7473
    %v7838 = vpack.c.bf16 %v7476, %v7476
    %v7839 = vpack.c.bf16 %v7478, %v7478
    %v7840 = vpack.c.bf16 %v7481, %v7481
    %v7841 = vpack.c.bf16 %v7483, %v7483
    %v7842 = vpack.c.bf16 %v7486, %v7486
    %v7843 = vpack.c.bf16 %v7488, %v7488
    %v7844 = vpack.c.bf16 %v7491, %v7491
    %v7845 = vpack.c.bf16 %v7493, %v7493
    %v7846 = vpack.c.bf16 %v7496, %v7496
    %v7847 = vpack.c.bf16 %v7498, %v7498
    %v7848 = vpack.c.bf16 %v7501, %v7501
    %v7849 = vpack.c.bf16 %v7503, %v7503
    %v7850 = vpack.c.bf16 %v7506, %v7506
    %v7851 = vpack.c.bf16 %v7508, %v7508
    %v7852 = vpack.c.bf16 %v7511, %v7511
    %v7853 = vpack.c.bf16 %v7513, %v7513
    %v7854 = vpack.c.bf16 %v7516, %v7516
    %v7855 = vpack.c.bf16 %v7518, %v7518
    %v7856 = vpack.c.bf16 %v7521, %v7521
    %v7857 = vpack.c.bf16 %v7523, %v7523
    %v7858 = vpack.c.bf16 %v7526, %v7526
    %v7859 = vpack.c.bf16 %v7528, %v7528
    %v7860 = vpack.c.bf16 %v7531, %v7531
    %v7861 = vpack.c.bf16 %v7533, %v7533
    %v7862 = vpack.c.bf16 %v7536, %v7536
    %v7863 = vpack.c.bf16 %v7538, %v7538
    %v7864 = vpack.c.bf16 %v7541, %v7541
    %v7865 = vpack.c.bf16 %v7543, %v7543
    %v7866 = vpack.c.bf16 %v7546, %v7546
    %v7867 = vpack.c.bf16 %v7548, %v7548
    %v7868 = vpack.c.bf16 %v7551, %v7551
    %v7869 = vpack.c.bf16 %v7553, %v7553
    %v7870 = vpack.c.bf16 %v7556, %v7556
    %v7871 = vpack.c.bf16 %v7558, %v7558
    %v7872 = vpack.c.bf16 %v7561, %v7561
    %v7873 = vpack.c.bf16 %v7563, %v7563
    %v7874 = vpack.c.bf16 %v7566, %v7566
    %v7875 = vpack.c.bf16 %v7568, %v7568
    %v7876 = vpack.c.bf16 %v7571, %v7571
    %v7877 = vpack.c.bf16 %v7573, %v7573
    %v7878 = vpack.c.bf16 %v7576, %v7576
    %v7879 = vpack.c.bf16 %v7578, %v7578
    %v7880 = vpack.c.bf16 %v7581, %v7581
    %v7881 = vpack.c.bf16 %v7583, %v7583
    %v7882 = vpack.c.bf16 %v7586, %v7586
    %v7883 = vpack.c.bf16 %v7588, %v7588
    %v7884 = vpack.c.bf16 %v7591, %v7591
    %v7885 = vpack.c.bf16 %v7593, %v7593
    %v7886 = vpack.c.bf16 %v7596, %v7596
    %v7887 = vpack.c.bf16 %v7598, %v7598
    %v7888 = vpack.c.bf16 %v7601, %v7601
    %v7889 = vpack.c.bf16 %v7603, %v7603
    %v7890 = vpack.c.bf16 %v7606, %v7606
    %v7891 = vpack.c.bf16 %v7608, %v7608
    %v7892 = vpack.c.bf16 %v7611, %v7611
    %v7893 = vpack.c.bf16 %v7613, %v7613
    %v7894 = vpack.c.bf16 %v7616, %v7616
    %v7895 = vpack.c.bf16 %v7618, %v7618
    %v7896 = vpack.c.bf16 %v7621, %v7621
    %v7897 = vpack.c.bf16 %v7623, %v7623
    %v7898 = vpack.c.bf16 %v7626, %v7626
    %v7899 = vpack.c.bf16 %v7628, %v7628
    %v7900 = vpack.c.bf16 %v7631, %v7631
    %v7901 = vpack.c.bf16 %v7633, %v7633
    %v7902 = vpack.c.bf16 %v7636, %v7636
    %v7903 = vpack.c.bf16 %v7638, %v7638
    %v7904 = vpack.c.bf16 %v7641, %v7641
    %v7905 = vpack.c.bf16 %v7643, %v7643
    %v7906 = vpack.c.bf16 %v7646, %v7646
    %v7907 = vpack.c.bf16 %v7648, %v7648
    %v7908 = vpack.c.bf16 %v7651, %v7651
    %v7909 = vpack.c.bf16 %v7653, %v7653
    %v7910 = vpack.c.bf16 %v7656, %v7656
    %v7911 = vpack.c.bf16 %v7658, %v7658
    %v7912 = vpack.c.bf16 %v7661, %v7661
    %v7913 = vpack.c.bf16 %v7663, %v7663
    %v7914 = vpack.c.bf16 %v7666, %v7666
    %v7915 = vpack.c.bf16 %v7668, %v7668
    %v7916 = vpack.c.bf16 %v7671, %v7671
    %v7917 = vpack.c.bf16 %v7673, %v7673
    %v7918 = vpack.c.bf16 %v7676, %v7676
    %v7919 = vpack.c.bf16 %v7678, %v7678
    %v7920 = vpack.c.bf16 %v7681, %v7681
    %v7921 = vpack.c.bf16 %v7683, %v7683
    %v7922 = vpack.c.bf16 %v7686, %v7686
    %v7923 = vpack.c.bf16 %v7688, %v7688
    %v7924 = vpack.c.bf16 %v7691, %v7691
    %v7925 = vpack.c.bf16 %v7693, %v7693
    %v7926 = vpack.c.bf16 %v7696, %v7696
    %v7927 = vpack.c.bf16 %v7698, %v7698
    %v7928 = vpack.c.bf16 %v7701, %v7701
    %v7929 = vpack.c.bf16 %v7703, %v7703
    %v7930 = vpack.c.bf16 %v7706, %v7706
    %v7931 = vpack.c.bf16 %v7708, %v7708
    %v7932 = vpack.c.bf16 %v7711, %v7711
    %v7933 = vpack.c.bf16 %v7713, %v7713
    %v7934 = vpack.c.bf16 %v7716, %v7716
    %v7935 = vpack.c.bf16 %v7718, %v7718
    %v7936 = vpack.c.bf16 %v7721, %v7721
    %v7937 = vpack.c.bf16 %v7723, %v7723
    %v7938 = vpack.c.bf16 %v7726, %v7726
    %v7939 = vpack.c.bf16 %v7728, %v7728
    %v7940 = vpack.c.bf16 %v7731, %v7731
    %v7941 = vpack.c.bf16 %v7733, %v7733
    %v7942 = vpack.c.bf16 %v7736, %v7736
    %v7943 = vpack.c.bf16 %v7738, %v7738
    %v7944 = vpack.c.bf16 %v7741, %v7741
    %v7945 = vpack.c.bf16 %v7743, %v7743
    %v7946 = vpack.c.bf16 %v7746, %v7746
    %v7947 = vpack.c.bf16 %v7748, %v7748
    %v7948 = vpack.c.bf16 %v7751, %v7751
    %v7949 = vpack.c.bf16 %v7753, %v7753
    %v7950 = vpack.c.bf16 %v7756, %v7756
    %v7951 = vpack.c.bf16 %v7758, %v7758
    %v7984 = vunpack.c.l.b16 %v7760
    %v7985 = vunpack.c.l.b16 %v7761
    %v7986 = vunpack.c.l.b16 %v7762
    %v7987 = vunpack.c.l.b16 %v7763
    %v7988 = vunpack.c.l.b16 %v7764
    %v7989 = vunpack.c.l.b16 %v7765
    %v7990 = vunpack.c.l.b16 %v7766
    %v7991 = vunpack.c.l.b16 %v7767
    %v7992 = vunpack.c.l.b16 %v7768
    %v7993 = vunpack.c.l.b16 %v7769
    %v7994 = vunpack.c.l.b16 %v7770
    %v7995 = vunpack.c.l.b16 %v7771
    %v7996 = vunpack.c.l.b16 %v7772
    %v7997 = vunpack.c.l.b16 %v7773
    %v7998 = vunpack.c.l.b16 %v7774
    %v7999 = vunpack.c.l.b16 %v7775
    %v8000 = vunpack.c.l.b16 %v7776
    %v8001 = vunpack.c.l.b16 %v7777
    %v8002 = vunpack.c.l.b16 %v7778
    %v8003 = vunpack.c.l.b16 %v7779
    %v8004 = vunpack.c.l.b16 %v7780
    %v8005 = vunpack.c.l.b16 %v7781
    %v8006 = vunpack.c.l.b16 %v7782
    %v8007 = vunpack.c.l.b16 %v7783
    %v8008 = vunpack.c.l.b16 %v7784
    %v8009 = vunpack.c.l.b16 %v7785
    %v8010 = vunpack.c.l.b16 %v7786
    %v8011 = vunpack.c.l.b16 %v7787
    %v8012 = vunpack.c.l.b16 %v7788
    %v8013 = vunpack.c.l.b16 %v7789
    %v8014 = vunpack.c.l.b16 %v7790
    %v8015 = vunpack.c.l.b16 %v7791
    %v8016 = vpack.c.b16 %v7985, %v7984
    %v8017 = vpack.c.b16 %v7987, %v7986
    %v8018 = vpack.c.b16 %v7989, %v7988
    %v8019 = vpack.c.b16 %v7991, %v7990
    %v8020 = vpack.c.b16 %v7993, %v7992
    %v8021 = vpack.c.b16 %v7995, %v7994
    %v8022 = vpack.c.b16 %v7997, %v7996
    %v8023 = vpack.c.b16 %v7999, %v7998
    %v8024 = vpack.c.b16 %v8001, %v8000
    %v8025 = vpack.c.b16 %v8003, %v8002
    %v8026 = vpack.c.b16 %v8005, %v8004
    %v8027 = vpack.c.b16 %v8007, %v8006
    %v8028 = vpack.c.b16 %v8009, %v8008
    %v8029 = vpack.c.b16 %v8011, %v8010
    %v8030 = vpack.c.b16 %v8013, %v8012
    %v8031 = vpack.c.b16 %v8015, %v8014
    %8048 = vmatpush.bf16.msra.mxu0 %v8023
    %8049 = vmatpush.bf16.msra.mxu0 %v8022
    %8050 = vmatpush.bf16.msra.mxu0 %v8021
    %8051 = vmatpush.bf16.msra.mxu0 %v8020
    %8052 = vmatpush.bf16.msra.mxu0 %v8019
    %8053 = vmatpush.bf16.msra.mxu0 %v8018
    %8054 = vmatpush.bf16.msra.mxu0 %v8017
    %8055 = vmatpush.bf16.msra.mxu0 %v8016
    %8056 = vmatmul.bf16.gmra.mxu0 %v2261
    %v8057 = vpop.f32.mrf.mxu0
    %v8058 = vadd.f32 0.0, %v8057
    %v8059 = vpop.f32.mrf.mxu0
    %v8060 = vadd.f32 0.0, %v8059
    %8061 = vmatmul.bf16.gmra.mxu0 %v2263
    %v8062 = vpop.f32.mrf.mxu0
    %v8063 = vadd.f32 0.0, %v8062
    %v8064 = vpop.f32.mrf.mxu0
    %v8065 = vadd.f32 0.0, %v8064
    %8066 = vmatmul.bf16.gmra.mxu0 %v2265
    %v8067 = vpop.f32.mrf.mxu0
    %v8068 = vadd.f32 0.0, %v8067
    %v8069 = vpop.f32.mrf.mxu0
    %v8070 = vadd.f32 0.0, %v8069
    %8071 = vmatmul.bf16.gmra.mxu0 %v2267
    %v8072 = vpop.f32.mrf.mxu0
    %v8073 = vadd.f32 0.0, %v8072
    %v8074 = vpop.f32.mrf.mxu0
    %v8075 = vadd.f32 0.0, %v8074
    %8076 = vmatmul.bf16.gmra.mxu0 %v2269
    %v8077 = vpop.f32.mrf.mxu0
    %v8078 = vadd.f32 0.0, %v8077
    %v8079 = vpop.f32.mrf.mxu0
    %v8080 = vadd.f32 0.0, %v8079
    %8081 = vmatmul.bf16.gmra.mxu0 %v2271
    %v8082 = vpop.f32.mrf.mxu0
    %v8083 = vadd.f32 0.0, %v8082
    %v8084 = vpop.f32.mrf.mxu0
    %v8085 = vadd.f32 0.0, %v8084
    %8086 = vmatmul.bf16.gmra.mxu0 %v2273
    %v8087 = vpop.f32.mrf.mxu0
    %v8088 = vadd.f32 0.0, %v8087
    %v8089 = vpop.f32.mrf.mxu0
    %v8090 = vadd.f32 0.0, %v8089
    %8091 = vdwg.mxu0
    %8092 = vmatpush.bf16.msra.mxu0 %v8031
    %8093 = vmatpush.bf16.msra.mxu0 %v8030
    %8094 = vmatpush.bf16.msra.mxu0 %v8029
    %8095 = vmatpush.bf16.msra.mxu0 %v8028
    %8096 = vmatpush.bf16.msra.mxu0 %v8027
    %8097 = vmatpush.bf16.msra.mxu0 %v8026
    %8098 = vmatpush.bf16.msra.mxu0 %v8025
    %8099 = vmatpush.bf16.msra.mxu0 %v8024
    %8100 = vmatmul.bf16.gmra.mxu0 %v2262
    %v8101 = vpop.f32.mrf.mxu0
    %v8102 = vadd.f32 %v8058, %v8101
    %v8103 = vpop.f32.mrf.mxu0
    %v8104 = vadd.f32 %v8060, %v8103
    %8105 = vmatmul.bf16.gmra.mxu0 %v2264
    %v8106 = vpop.f32.mrf.mxu0
    %v8107 = vadd.f32 %v8063, %v8106
    %v8108 = vpop.f32.mrf.mxu0
    %v8109 = vadd.f32 %v8065, %v8108
    %8110 = vmatmul.bf16.gmra.mxu0 %v2266
    %v8111 = vpop.f32.mrf.mxu0
    %v8112 = vadd.f32 %v8068, %v8111
    %v8113 = vpop.f32.mrf.mxu0
    %v8114 = vadd.f32 %v8070, %v8113
    %8115 = vmatmul.bf16.gmra.mxu0 %v2268
    %v8116 = vpop.f32.mrf.mxu0
    %v8117 = vadd.f32 %v8073, %v8116
    %v8118 = vpop.f32.mrf.mxu0
    %v8119 = vadd.f32 %v8075, %v8118
    %8120 = vmatmul.bf16.gmra.mxu0 %v2270
    %v8121 = vpop.f32.mrf.mxu0
    %v8122 = vadd.f32 %v8078, %v8121
    %v8123 = vpop.f32.mrf.mxu0
    %v8124 = vadd.f32 %v8080, %v8123
    %8125 = vmatmul.bf16.gmra.mxu0 %v2272
    %v8126 = vpop.f32.mrf.mxu0
    %v8127 = vadd.f32 %v8083, %v8126
    %v8128 = vpop.f32.mrf.mxu0
    %v8129 = vadd.f32 %v8085, %v8128
    %8130 = vmatmul.bf16.gmra.mxu0 %v2274
    %v8131 = vpop.f32.mrf.mxu0
    %v8132 = vadd.f32 %v8088, %v8131
    %v8133 = vpop.f32.mrf.mxu0
    %v8134 = vadd.f32 %v8090, %v8133
    %8135 = vdwg.mxu0
    %v8168 = vunpack.c.l.b16 %v7792
    %v8169 = vunpack.c.l.b16 %v7793
    %v8170 = vunpack.c.l.b16 %v7794
    %v8171 = vunpack.c.l.b16 %v7795
    %v8172 = vunpack.c.l.b16 %v7796
    %v8173 = vunpack.c.l.b16 %v7797
    %v8174 = vunpack.c.l.b16 %v7798
    %v8175 = vunpack.c.l.b16 %v7799
    %v8176 = vunpack.c.l.b16 %v7800
    %v8177 = vunpack.c.l.b16 %v7801
    %v8178 = vunpack.c.l.b16 %v7802
    %v8179 = vunpack.c.l.b16 %v7803
    %v8180 = vunpack.c.l.b16 %v7804
    %v8181 = vunpack.c.l.b16 %v7805
    %v8182 = vunpack.c.l.b16 %v7806
    %v8183 = vunpack.c.l.b16 %v7807
    %v8184 = vunpack.c.l.b16 %v7808
    %v8185 = vunpack.c.l.b16 %v7809
    %v8186 = vunpack.c.l.b16 %v7810
    %v8187 = vunpack.c.l.b16 %v7811
    %v8188 = vunpack.c.l.b16 %v7812
    %v8189 = vunpack.c.l.b16 %v7813
    %v8190 = vunpack.c.l.b16 %v7814
    %v8191 = vunpack.c.l.b16 %v7815
    %v8192 = vunpack.c.l.b16 %v7816
    %v8193 = vunpack.c.l.b16 %v7817
    %v8194 = vunpack.c.l.b16 %v7818
    %v8195 = vunpack.c.l.b16 %v7819
    %v8196 = vunpack.c.l.b16 %v7820
    %v8197 = vunpack.c.l.b16 %v7821
    %v8198 = vunpack.c.l.b16 %v7822
    %v8199 = vunpack.c.l.b16 %v7823
    %v8200 = vpack.c.b16 %v8169, %v8168
    %v8201 = vpack.c.b16 %v8171, %v8170
    %v8202 = vpack.c.b16 %v8173, %v8172
    %v8203 = vpack.c.b16 %v8175, %v8174
    %v8204 = vpack.c.b16 %v8177, %v8176
    %v8205 = vpack.c.b16 %v8179, %v8178
    %v8206 = vpack.c.b16 %v8181, %v8180
    %v8207 = vpack.c.b16 %v8183, %v8182
    %v8208 = vpack.c.b16 %v8185, %v8184
    %v8209 = vpack.c.b16 %v8187, %v8186
    %v8210 = vpack.c.b16 %v8189, %v8188
    %v8211 = vpack.c.b16 %v8191, %v8190
    %v8212 = vpack.c.b16 %v8193, %v8192
    %v8213 = vpack.c.b16 %v8195, %v8194
    %v8214 = vpack.c.b16 %v8197, %v8196
    %v8215 = vpack.c.b16 %v8199, %v8198
    %8232 = vmatpush.bf16.msra.mxu0 %v8207
    %8233 = vmatpush.bf16.msra.mxu0 %v8206
    %8234 = vmatpush.bf16.msra.mxu0 %v8205
    %8235 = vmatpush.bf16.msra.mxu0 %v8204
    %8236 = vmatpush.bf16.msra.mxu0 %v8203
    %8237 = vmatpush.bf16.msra.mxu0 %v8202
    %8238 = vmatpush.bf16.msra.mxu0 %v8201
    %8239 = vmatpush.bf16.msra.mxu0 %v8200
    %8240 = vmatmul.bf16.gmra.mxu0 %v2261
    %v8241 = vpop.f32.mrf.mxu0
    %v8242 = vadd.f32 0.0, %v8241
    %v8243 = vpop.f32.mrf.mxu0
    %v8244 = vadd.f32 0.0, %v8243
    %8245 = vmatmul.bf16.gmra.mxu0 %v2263
    %v8246 = vpop.f32.mrf.mxu0
    %v8247 = vadd.f32 0.0, %v8246
    %v8248 = vpop.f32.mrf.mxu0
    %v8249 = vadd.f32 0.0, %v8248
    %8250 = vmatmul.bf16.gmra.mxu0 %v2265
    %v8251 = vpop.f32.mrf.mxu0
    %v8252 = vadd.f32 0.0, %v8251
    %v8253 = vpop.f32.mrf.mxu0
    %v8254 = vadd.f32 0.0, %v8253
    %8255 = vmatmul.bf16.gmra.mxu0 %v2267
    %v8256 = vpop.f32.mrf.mxu0
    %v8257 = vadd.f32 0.0, %v8256
    %v8258 = vpop.f32.mrf.mxu0
    %v8259 = vadd.f32 0.0, %v8258
    %8260 = vmatmul.bf16.gmra.mxu0 %v2269
    %v8261 = vpop.f32.mrf.mxu0
    %v8262 = vadd.f32 0.0, %v8261
    %v8263 = vpop.f32.mrf.mxu0
    %v8264 = vadd.f32 0.0, %v8263
    %8265 = vmatmul.bf16.gmra.mxu0 %v2271
    %v8266 = vpop.f32.mrf.mxu0
    %v8267 = vadd.f32 0.0, %v8266
    %v8268 = vpop.f32.mrf.mxu0
    %v8269 = vadd.f32 0.0, %v8268
    %8270 = vmatmul.bf16.gmra.mxu0 %v2273
    %v8271 = vpop.f32.mrf.mxu0
    %v8272 = vadd.f32 0.0, %v8271
    %v8273 = vpop.f32.mrf.mxu0
    %v8274 = vadd.f32 0.0, %v8273
    %8275 = vdwg.mxu0
    %8276 = vmatpush.bf16.msra.mxu0 %v8215
    %8277 = vmatpush.bf16.msra.mxu0 %v8214
    %8278 = vmatpush.bf16.msra.mxu0 %v8213
    %8279 = vmatpush.bf16.msra.mxu0 %v8212
    %8280 = vmatpush.bf16.msra.mxu0 %v8211
    %8281 = vmatpush.bf16.msra.mxu0 %v8210
    %8282 = vmatpush.bf16.msra.mxu0 %v8209
    %8283 = vmatpush.bf16.msra.mxu0 %v8208
    %8284 = vmatmul.bf16.gmra.mxu0 %v2262
    %v8285 = vpop.f32.mrf.mxu0
    %v8286 = vadd.f32 %v8242, %v8285
    %v8287 = vpop.f32.mrf.mxu0
    %v8288 = vadd.f32 %v8244, %v8287
    %8289 = vmatmul.bf16.gmra.mxu0 %v2264
    %v8290 = vpop.f32.mrf.mxu0
    %v8291 = vadd.f32 %v8247, %v8290
    %v8292 = vpop.f32.mrf.mxu0
    %v8293 = vadd.f32 %v8249, %v8292
    %8294 = vmatmul.bf16.gmra.mxu0 %v2266
    %v8295 = vpop.f32.mrf.mxu0
    %v8296 = vadd.f32 %v8252, %v8295
    %v8297 = vpop.f32.mrf.mxu0
    %v8298 = vadd.f32 %v8254, %v8297
    %8299 = vmatmul.bf16.gmra.mxu0 %v2268
    %v8300 = vpop.f32.mrf.mxu0
    %v8301 = vadd.f32 %v8257, %v8300
    %v8302 = vpop.f32.mrf.mxu0
    %v8303 = vadd.f32 %v8259, %v8302
    %8304 = vmatmul.bf16.gmra.mxu0 %v2270
    %v8305 = vpop.f32.mrf.mxu0
    %v8306 = vadd.f32 %v8262, %v8305
    %v8307 = vpop.f32.mrf.mxu0
    %v8308 = vadd.f32 %v8264, %v8307
    %8309 = vmatmul.bf16.gmra.mxu0 %v2272
    %v8310 = vpop.f32.mrf.mxu0
    %v8311 = vadd.f32 %v8267, %v8310
    %v8312 = vpop.f32.mrf.mxu0
    %v8313 = vadd.f32 %v8269, %v8312
    %8314 = vmatmul.bf16.gmra.mxu0 %v2274
    %v8315 = vpop.f32.mrf.mxu0
    %v8316 = vadd.f32 %v8272, %v8315
    %v8317 = vpop.f32.mrf.mxu0
    %v8318 = vadd.f32 %v8274, %v8317
    %8319 = vdwg.mxu0
    %v8352 = vunpack.c.l.b16 %v7824
    %v8353 = vunpack.c.l.b16 %v7825
    %v8354 = vunpack.c.l.b16 %v7826
    %v8355 = vunpack.c.l.b16 %v7827
    %v8356 = vunpack.c.l.b16 %v7828
    %v8357 = vunpack.c.l.b16 %v7829
    %v8358 = vunpack.c.l.b16 %v7830
    %v8359 = vunpack.c.l.b16 %v7831
    %v8360 = vunpack.c.l.b16 %v7832
    %v8361 = vunpack.c.l.b16 %v7833
    %v8362 = vunpack.c.l.b16 %v7834
    %v8363 = vunpack.c.l.b16 %v7835
    %v8364 = vunpack.c.l.b16 %v7836
    %v8365 = vunpack.c.l.b16 %v7837
    %v8366 = vunpack.c.l.b16 %v7838
    %v8367 = vunpack.c.l.b16 %v7839
    %v8368 = vunpack.c.l.b16 %v7840
    %v8369 = vunpack.c.l.b16 %v7841
    %v8370 = vunpack.c.l.b16 %v7842
    %v8371 = vunpack.c.l.b16 %v7843
    %v8372 = vunpack.c.l.b16 %v7844
    %v8373 = vunpack.c.l.b16 %v7845
    %v8374 = vunpack.c.l.b16 %v7846
    %v8375 = vunpack.c.l.b16 %v7847
    %v8376 = vunpack.c.l.b16 %v7848
    %v8377 = vunpack.c.l.b16 %v7849
    %v8378 = vunpack.c.l.b16 %v7850
    %v8379 = vunpack.c.l.b16 %v7851
    %v8380 = vunpack.c.l.b16 %v7852
    %v8381 = vunpack.c.l.b16 %v7853
    %v8382 = vunpack.c.l.b16 %v7854
    %v8383 = vunpack.c.l.b16 %v7855
    %v8384 = vpack.c.b16 %v8353, %v8352
    %v8385 = vpack.c.b16 %v8355, %v8354
    %v8386 = vpack.c.b16 %v8357, %v8356
    %v8387 = vpack.c.b16 %v8359, %v8358
    %v8388 = vpack.c.b16 %v8361, %v8360
    %v8389 = vpack.c.b16 %v8363, %v8362
    %v8390 = vpack.c.b16 %v8365, %v8364
    %v8391 = vpack.c.b16 %v8367, %v8366
    %v8392 = vpack.c.b16 %v8369, %v8368
    %v8393 = vpack.c.b16 %v8371, %v8370
    %v8394 = vpack.c.b16 %v8373, %v8372
    %v8395 = vpack.c.b16 %v8375, %v8374
    %v8396 = vpack.c.b16 %v8377, %v8376
    %v8397 = vpack.c.b16 %v8379, %v8378
    %v8398 = vpack.c.b16 %v8381, %v8380
    %v8399 = vpack.c.b16 %v8383, %v8382
    %8416 = vmatpush.bf16.msra.mxu0 %v8391
    %8417 = vmatpush.bf16.msra.mxu0 %v8390
    %8418 = vmatpush.bf16.msra.mxu0 %v8389
    %8419 = vmatpush.bf16.msra.mxu0 %v8388
    %8420 = vmatpush.bf16.msra.mxu0 %v8387
    %8421 = vmatpush.bf16.msra.mxu0 %v8386
    %8422 = vmatpush.bf16.msra.mxu0 %v8385
    %8423 = vmatpush.bf16.msra.mxu0 %v8384
    %8424 = vmatmul.bf16.gmra.mxu0 %v2261
    %v8425 = vpop.f32.mrf.mxu0
    %v8426 = vadd.f32 0.0, %v8425
    %v8427 = vpop.f32.mrf.mxu0
    %v8428 = vadd.f32 0.0, %v8427
    %8429 = vmatmul.bf16.gmra.mxu0 %v2263
    %v8430 = vpop.f32.mrf.mxu0
    %v8431 = vadd.f32 0.0, %v8430
    %v8432 = vpop.f32.mrf.mxu0
    %v8433 = vadd.f32 0.0, %v8432
    %8434 = vmatmul.bf16.gmra.mxu0 %v2265
    %v8435 = vpop.f32.mrf.mxu0
    %v8436 = vadd.f32 0.0, %v8435
    %v8437 = vpop.f32.mrf.mxu0
    %v8438 = vadd.f32 0.0, %v8437
    %8439 = vmatmul.bf16.gmra.mxu0 %v2267
    %v8440 = vpop.f32.mrf.mxu0
    %v8441 = vadd.f32 0.0, %v8440
    %v8442 = vpop.f32.mrf.mxu0
    %v8443 = vadd.f32 0.0, %v8442
    %8444 = vmatmul.bf16.gmra.mxu0 %v2269
    %v8445 = vpop.f32.mrf.mxu0
    %v8446 = vadd.f32 0.0, %v8445
    %v8447 = vpop.f32.mrf.mxu0
    %v8448 = vadd.f32 0.0, %v8447
    %8449 = vmatmul.bf16.gmra.mxu0 %v2271
    %v8450 = vpop.f32.mrf.mxu0
    %v8451 = vadd.f32 0.0, %v8450
    %v8452 = vpop.f32.mrf.mxu0
    %v8453 = vadd.f32 0.0, %v8452
    %8454 = vmatmul.bf16.gmra.mxu0 %v2273
    %v8455 = vpop.f32.mrf.mxu0
    %v8456 = vadd.f32 0.0, %v8455
    %v8457 = vpop.f32.mrf.mxu0
    %v8458 = vadd.f32 0.0, %v8457
    %8459 = vdwg.mxu0
    %8460 = vmatpush.bf16.msra.mxu0 %v8399
    %8461 = vmatpush.bf16.msra.mxu0 %v8398
    %8462 = vmatpush.bf16.msra.mxu0 %v8397
    %8463 = vmatpush.bf16.msra.mxu0 %v8396
    %8464 = vmatpush.bf16.msra.mxu0 %v8395
    %8465 = vmatpush.bf16.msra.mxu0 %v8394
    %8466 = vmatpush.bf16.msra.mxu0 %v8393
    %8467 = vmatpush.bf16.msra.mxu0 %v8392
    %8468 = vmatmul.bf16.gmra.mxu0 %v2262
    %v8469 = vpop.f32.mrf.mxu0
    %v8470 = vadd.f32 %v8426, %v8469
    %v8471 = vpop.f32.mrf.mxu0
    %v8472 = vadd.f32 %v8428, %v8471
    %8473 = vmatmul.bf16.gmra.mxu0 %v2264
    %v8474 = vpop.f32.mrf.mxu0
    %v8475 = vadd.f32 %v8431, %v8474
    %v8476 = vpop.f32.mrf.mxu0
    %v8477 = vadd.f32 %v8433, %v8476
    %8478 = vmatmul.bf16.gmra.mxu0 %v2266
    %v8479 = vpop.f32.mrf.mxu0
    %v8480 = vadd.f32 %v8436, %v8479
    %v8481 = vpop.f32.mrf.mxu0
    %v8482 = vadd.f32 %v8438, %v8481
    %8483 = vmatmul.bf16.gmra.mxu0 %v2268
    %v8484 = vpop.f32.mrf.mxu0
    %v8485 = vadd.f32 %v8441, %v8484
    %v8486 = vpop.f32.mrf.mxu0
    %v8487 = vadd.f32 %v8443, %v8486
    %8488 = vmatmul.bf16.gmra.mxu0 %v2270
    %v8489 = vpop.f32.mrf.mxu0
    %v8490 = vadd.f32 %v8446, %v8489
    %v8491 = vpop.f32.mrf.mxu0
    %v8492 = vadd.f32 %v8448, %v8491
    %8493 = vmatmul.bf16.gmra.mxu0 %v2272
    %v8494 = vpop.f32.mrf.mxu0
    %v8495 = vadd.f32 %v8451, %v8494
    %v8496 = vpop.f32.mrf.mxu0
    %v8497 = vadd.f32 %v8453, %v8496
    %8498 = vmatmul.bf16.gmra.mxu0 %v2274
    %v8499 = vpop.f32.mrf.mxu0
    %v8500 = vadd.f32 %v8456, %v8499
    %v8501 = vpop.f32.mrf.mxu0
    %v8502 = vadd.f32 %v8458, %v8501
    %8503 = vdwg.mxu0
    %v8536 = vunpack.c.l.b16 %v7856
    %v8537 = vunpack.c.l.b16 %v7857
    %v8538 = vunpack.c.l.b16 %v7858
    %v8539 = vunpack.c.l.b16 %v7859
    %v8540 = vunpack.c.l.b16 %v7860
    %v8541 = vunpack.c.l.b16 %v7861
    %v8542 = vunpack.c.l.b16 %v7862
    %v8543 = vunpack.c.l.b16 %v7863
    %v8544 = vunpack.c.l.b16 %v7864
    %v8545 = vunpack.c.l.b16 %v7865
    %v8546 = vunpack.c.l.b16 %v7866
    %v8547 = vunpack.c.l.b16 %v7867
    %v8548 = vunpack.c.l.b16 %v7868
    %v8549 = vunpack.c.l.b16 %v7869
    %v8550 = vunpack.c.l.b16 %v7870
    %v8551 = vunpack.c.l.b16 %v7871
    %v8552 = vunpack.c.l.b16 %v7872
    %v8553 = vunpack.c.l.b16 %v7873
    %v8554 = vunpack.c.l.b16 %v7874
    %v8555 = vunpack.c.l.b16 %v7875
    %v8556 = vunpack.c.l.b16 %v7876
    %v8557 = vunpack.c.l.b16 %v7877
    %v8558 = vunpack.c.l.b16 %v7878
    %v8559 = vunpack.c.l.b16 %v7879
    %v8560 = vunpack.c.l.b16 %v7880
    %v8561 = vunpack.c.l.b16 %v7881
    %v8562 = vunpack.c.l.b16 %v7882
    %v8563 = vunpack.c.l.b16 %v7883
    %v8564 = vunpack.c.l.b16 %v7884
    %v8565 = vunpack.c.l.b16 %v7885
    %v8566 = vunpack.c.l.b16 %v7886
    %v8567 = vunpack.c.l.b16 %v7887
    %v8568 = vpack.c.b16 %v8537, %v8536
    %v8569 = vpack.c.b16 %v8539, %v8538
    %v8570 = vpack.c.b16 %v8541, %v8540
    %v8571 = vpack.c.b16 %v8543, %v8542
    %v8572 = vpack.c.b16 %v8545, %v8544
    %v8573 = vpack.c.b16 %v8547, %v8546
    %v8574 = vpack.c.b16 %v8549, %v8548
    %v8575 = vpack.c.b16 %v8551, %v8550
    %v8576 = vpack.c.b16 %v8553, %v8552
    %v8577 = vpack.c.b16 %v8555, %v8554
    %v8578 = vpack.c.b16 %v8557, %v8556
    %v8579 = vpack.c.b16 %v8559, %v8558
    %v8580 = vpack.c.b16 %v8561, %v8560
    %v8581 = vpack.c.b16 %v8563, %v8562
    %v8582 = vpack.c.b16 %v8565, %v8564
    %v8583 = vpack.c.b16 %v8567, %v8566
    %8600 = vmatpush.bf16.msra.mxu0 %v8575
    %8601 = vmatpush.bf16.msra.mxu0 %v8574
    %8602 = vmatpush.bf16.msra.mxu0 %v8573
    %8603 = vmatpush.bf16.msra.mxu0 %v8572
    %8604 = vmatpush.bf16.msra.mxu0 %v8571
    %8605 = vmatpush.bf16.msra.mxu0 %v8570
    %8606 = vmatpush.bf16.msra.mxu0 %v8569
    %8607 = vmatpush.bf16.msra.mxu0 %v8568
    %8608 = vmatmul.bf16.gmra.mxu0 %v2261
    %v8609 = vpop.f32.mrf.mxu0
    %v8610 = vadd.f32 0.0, %v8609
    %v8611 = vpop.f32.mrf.mxu0
    %v8612 = vadd.f32 0.0, %v8611
    %8613 = vmatmul.bf16.gmra.mxu0 %v2263
    %v8614 = vpop.f32.mrf.mxu0
    %v8615 = vadd.f32 0.0, %v8614
    %v8616 = vpop.f32.mrf.mxu0
    %v8617 = vadd.f32 0.0, %v8616
    %8618 = vmatmul.bf16.gmra.mxu0 %v2265
    %v8619 = vpop.f32.mrf.mxu0
    %v8620 = vadd.f32 0.0, %v8619
    %v8621 = vpop.f32.mrf.mxu0
    %v8622 = vadd.f32 0.0, %v8621
    %8623 = vmatmul.bf16.gmra.mxu0 %v2267
    %v8624 = vpop.f32.mrf.mxu0
    %v8625 = vadd.f32 0.0, %v8624
    %v8626 = vpop.f32.mrf.mxu0
    %v8627 = vadd.f32 0.0, %v8626
    %8628 = vmatmul.bf16.gmra.mxu0 %v2269
    %v8629 = vpop.f32.mrf.mxu0
    %v8630 = vadd.f32 0.0, %v8629
    %v8631 = vpop.f32.mrf.mxu0
    %v8632 = vadd.f32 0.0, %v8631
    %8633 = vmatmul.bf16.gmra.mxu0 %v2271
    %v8634 = vpop.f32.mrf.mxu0
    %v8635 = vadd.f32 0.0, %v8634
    %v8636 = vpop.f32.mrf.mxu0
    %v8637 = vadd.f32 0.0, %v8636
    %8638 = vmatmul.bf16.gmra.mxu0 %v2273
    %v8639 = vpop.f32.mrf.mxu0
    %v8640 = vadd.f32 0.0, %v8639
    %v8641 = vpop.f32.mrf.mxu0
    %v8642 = vadd.f32 0.0, %v8641
    %8643 = vdwg.mxu0
    %8644 = vmatpush.bf16.msra.mxu0 %v8583
    %8645 = vmatpush.bf16.msra.mxu0 %v8582
    %8646 = vmatpush.bf16.msra.mxu0 %v8581
    %8647 = vmatpush.bf16.msra.mxu0 %v8580
    %8648 = vmatpush.bf16.msra.mxu0 %v8579
    %8649 = vmatpush.bf16.msra.mxu0 %v8578
    %8650 = vmatpush.bf16.msra.mxu0 %v8577
    %8651 = vmatpush.bf16.msra.mxu0 %v8576
    %8652 = vmatmul.bf16.gmra.mxu0 %v2262
    %v8653 = vpop.f32.mrf.mxu0
    %v8654 = vadd.f32 %v8610, %v8653
    %v8655 = vpop.f32.mrf.mxu0
    %v8656 = vadd.f32 %v8612, %v8655
    %8657 = vmatmul.bf16.gmra.mxu0 %v2264
    %v8658 = vpop.f32.mrf.mxu0
    %v8659 = vadd.f32 %v8615, %v8658
    %v8660 = vpop.f32.mrf.mxu0
    %v8661 = vadd.f32 %v8617, %v8660
    %8662 = vmatmul.bf16.gmra.mxu0 %v2266
    %v8663 = vpop.f32.mrf.mxu0
    %v8664 = vadd.f32 %v8620, %v8663
    %v8665 = vpop.f32.mrf.mxu0
    %v8666 = vadd.f32 %v8622, %v8665
    %8667 = vmatmul.bf16.gmra.mxu0 %v2268
    %v8668 = vpop.f32.mrf.mxu0
    %v8669 = vadd.f32 %v8625, %v8668
    %v8670 = vpop.f32.mrf.mxu0
    %v8671 = vadd.f32 %v8627, %v8670
    %8672 = vmatmul.bf16.gmra.mxu0 %v2270
    %v8673 = vpop.f32.mrf.mxu0
    %v8674 = vadd.f32 %v8630, %v8673
    %v8675 = vpop.f32.mrf.mxu0
    %v8676 = vadd.f32 %v8632, %v8675
    %8677 = vmatmul.bf16.gmra.mxu0 %v2272
    %v8678 = vpop.f32.mrf.mxu0
    %v8679 = vadd.f32 %v8635, %v8678
    %v8680 = vpop.f32.mrf.mxu0
    %v8681 = vadd.f32 %v8637, %v8680
    %8682 = vmatmul.bf16.gmra.mxu0 %v2274
    %v8683 = vpop.f32.mrf.mxu0
    %v8684 = vadd.f32 %v8640, %v8683
    %v8685 = vpop.f32.mrf.mxu0
    %v8686 = vadd.f32 %v8642, %v8685
    %8687 = vdwg.mxu0
    %v8720 = vunpack.c.l.b16 %v7888
    %v8721 = vunpack.c.l.b16 %v7889
    %v8722 = vunpack.c.l.b16 %v7890
    %v8723 = vunpack.c.l.b16 %v7891
    %v8724 = vunpack.c.l.b16 %v7892
    %v8725 = vunpack.c.l.b16 %v7893
    %v8726 = vunpack.c.l.b16 %v7894
    %v8727 = vunpack.c.l.b16 %v7895
    %v8728 = vunpack.c.l.b16 %v7896
    %v8729 = vunpack.c.l.b16 %v7897
    %v8730 = vunpack.c.l.b16 %v7898
    %v8731 = vunpack.c.l.b16 %v7899
    %v8732 = vunpack.c.l.b16 %v7900
    %v8733 = vunpack.c.l.b16 %v7901
    %v8734 = vunpack.c.l.b16 %v7902
    %v8735 = vunpack.c.l.b16 %v7903
    %v8736 = vunpack.c.l.b16 %v7904
    %v8737 = vunpack.c.l.b16 %v7905
    %v8738 = vunpack.c.l.b16 %v7906
    %v8739 = vunpack.c.l.b16 %v7907
    %v8740 = vunpack.c.l.b16 %v7908
    %v8741 = vunpack.c.l.b16 %v7909
    %v8742 = vunpack.c.l.b16 %v7910
    %v8743 = vunpack.c.l.b16 %v7911
    %v8744 = vunpack.c.l.b16 %v7912
    %v8745 = vunpack.c.l.b16 %v7913
    %v8746 = vunpack.c.l.b16 %v7914
    %v8747 = vunpack.c.l.b16 %v7915
    %v8748 = vunpack.c.l.b16 %v7916
    %v8749 = vunpack.c.l.b16 %v7917
    %v8750 = vunpack.c.l.b16 %v7918
    %v8751 = vunpack.c.l.b16 %v7919
    %v8752 = vpack.c.b16 %v8721, %v8720
    %v8753 = vpack.c.b16 %v8723, %v8722
    %v8754 = vpack.c.b16 %v8725, %v8724
    %v8755 = vpack.c.b16 %v8727, %v8726
    %v8756 = vpack.c.b16 %v8729, %v8728
    %v8757 = vpack.c.b16 %v8731, %v8730
    %v8758 = vpack.c.b16 %v8733, %v8732
    %v8759 = vpack.c.b16 %v8735, %v8734
    %v8760 = vpack.c.b16 %v8737, %v8736
    %v8761 = vpack.c.b16 %v8739, %v8738
    %v8762 = vpack.c.b16 %v8741, %v8740
    %v8763 = vpack.c.b16 %v8743, %v8742
    %v8764 = vpack.c.b16 %v8745, %v8744
    %v8765 = vpack.c.b16 %v8747, %v8746
    %v8766 = vpack.c.b16 %v8749, %v8748
    %v8767 = vpack.c.b16 %v8751, %v8750
    %8784 = vmatpush.bf16.msra.mxu0 %v8759
    %8785 = vmatpush.bf16.msra.mxu0 %v8758
    %8786 = vmatpush.bf16.msra.mxu0 %v8757
    %8787 = vmatpush.bf16.msra.mxu0 %v8756
    %8788 = vmatpush.bf16.msra.mxu0 %v8755
    %8789 = vmatpush.bf16.msra.mxu0 %v8754
    %8790 = vmatpush.bf16.msra.mxu0 %v8753
    %8791 = vmatpush.bf16.msra.mxu0 %v8752
    %8792 = vmatmul.bf16.gmra.mxu0 %v2261
    %v8793 = vpop.f32.mrf.mxu0
    %v8794 = vadd.f32 0.0, %v8793
    %v8795 = vpop.f32.mrf.mxu0
    %v8796 = vadd.f32 0.0, %v8795
    %8797 = vmatmul.bf16.gmra.mxu0 %v2263
    %v8798 = vpop.f32.mrf.mxu0
    %v8799 = vadd.f32 0.0, %v8798
    %v8800 = vpop.f32.mrf.mxu0
    %v8801 = vadd.f32 0.0, %v8800
    %8802 = vmatmul.bf16.gmra.mxu0 %v2265
    %v8803 = vpop.f32.mrf.mxu0
    %v8804 = vadd.f32 0.0, %v8803
    %v8805 = vpop.f32.mrf.mxu0
    %v8806 = vadd.f32 0.0, %v8805
    %8807 = vmatmul.bf16.gmra.mxu0 %v2267
    %v8808 = vpop.f32.mrf.mxu0
    %v8809 = vadd.f32 0.0, %v8808
    %v8810 = vpop.f32.mrf.mxu0
    %v8811 = vadd.f32 0.0, %v8810
    %8812 = vmatmul.bf16.gmra.mxu0 %v2269
    %v8813 = vpop.f32.mrf.mxu0
    %v8814 = vadd.f32 0.0, %v8813
    %v8815 = vpop.f32.mrf.mxu0
    %v8816 = vadd.f32 0.0, %v8815
    %8817 = vmatmul.bf16.gmra.mxu0 %v2271
    %v8818 = vpop.f32.mrf.mxu0
    %v8819 = vadd.f32 0.0, %v8818
    %v8820 = vpop.f32.mrf.mxu0
    %v8821 = vadd.f32 0.0, %v8820
    %8822 = vmatmul.bf16.gmra.mxu0 %v2273
    %v8823 = vpop.f32.mrf.mxu0
    %v8824 = vadd.f32 0.0, %v8823
    %v8825 = vpop.f32.mrf.mxu0
    %v8826 = vadd.f32 0.0, %v8825
    %8827 = vdwg.mxu0
    %8828 = vmatpush.bf16.msra.mxu0 %v8767
    %8829 = vmatpush.bf16.msra.mxu0 %v8766
    %8830 = vmatpush.bf16.msra.mxu0 %v8765
    %8831 = vmatpush.bf16.msra.mxu0 %v8764
    %8832 = vmatpush.bf16.msra.mxu0 %v8763
    %8833 = vmatpush.bf16.msra.mxu0 %v8762
    %8834 = vmatpush.bf16.msra.mxu0 %v8761
    %8835 = vmatpush.bf16.msra.mxu0 %v8760
    %8836 = vmatmul.bf16.gmra.mxu0 %v2262
    %v8837 = vpop.f32.mrf.mxu0
    %v8838 = vadd.f32 %v8794, %v8837
    %v8839 = vpop.f32.mrf.mxu0
    %v8840 = vadd.f32 %v8796, %v8839
    %8841 = vmatmul.bf16.gmra.mxu0 %v2264
    %v8842 = vpop.f32.mrf.mxu0
    %v8843 = vadd.f32 %v8799, %v8842
    %v8844 = vpop.f32.mrf.mxu0
    %v8845 = vadd.f32 %v8801, %v8844
    %8846 = vmatmul.bf16.gmra.mxu0 %v2266
    %v8847 = vpop.f32.mrf.mxu0
    %v8848 = vadd.f32 %v8804, %v8847
    %v8849 = vpop.f32.mrf.mxu0
    %v8850 = vadd.f32 %v8806, %v8849
    %8851 = vmatmul.bf16.gmra.mxu0 %v2268
    %v8852 = vpop.f32.mrf.mxu0
    %v8853 = vadd.f32 %v8809, %v8852
    %v8854 = vpop.f32.mrf.mxu0
    %v8855 = vadd.f32 %v8811, %v8854
    %8856 = vmatmul.bf16.gmra.mxu0 %v2270
    %v8857 = vpop.f32.mrf.mxu0
    %v8858 = vadd.f32 %v8814, %v8857
    %v8859 = vpop.f32.mrf.mxu0
    %v8860 = vadd.f32 %v8816, %v8859
    %8861 = vmatmul.bf16.gmra.mxu0 %v2272
    %v8862 = vpop.f32.mrf.mxu0
    %v8863 = vadd.f32 %v8819, %v8862
    %v8864 = vpop.f32.mrf.mxu0
    %v8865 = vadd.f32 %v8821, %v8864
    %8866 = vmatmul.bf16.gmra.mxu0 %v2274
    %v8867 = vpop.f32.mrf.mxu0
    %v8868 = vadd.f32 %v8824, %v8867
    %v8869 = vpop.f32.mrf.mxu0
    %v8870 = vadd.f32 %v8826, %v8869
    %8871 = vdwg.mxu0
    %v8904 = vunpack.c.l.b16 %v7920
    %v8905 = vunpack.c.l.b16 %v7921
    %v8906 = vunpack.c.l.b16 %v7922
    %v8907 = vunpack.c.l.b16 %v7923
    %v8908 = vunpack.c.l.b16 %v7924
    %v8909 = vunpack.c.l.b16 %v7925
    %v8910 = vunpack.c.l.b16 %v7926
    %v8911 = vunpack.c.l.b16 %v7927
    %v8912 = vunpack.c.l.b16 %v7928
    %v8913 = vunpack.c.l.b16 %v7929
    %v8914 = vunpack.c.l.b16 %v7930
    %v8915 = vunpack.c.l.b16 %v7931
    %v8916 = vunpack.c.l.b16 %v7932
    %v8917 = vunpack.c.l.b16 %v7933
    %v8918 = vunpack.c.l.b16 %v7934
    %v8919 = vunpack.c.l.b16 %v7935
    %v8920 = vunpack.c.l.b16 %v7936
    %v8921 = vunpack.c.l.b16 %v7937
    %v8922 = vunpack.c.l.b16 %v7938
    %v8923 = vunpack.c.l.b16 %v7939
    %v8924 = vunpack.c.l.b16 %v7940
    %v8925 = vunpack.c.l.b16 %v7941
    %v8926 = vunpack.c.l.b16 %v7942
    %v8927 = vunpack.c.l.b16 %v7943
    %v8928 = vunpack.c.l.b16 %v7944
    %v8929 = vunpack.c.l.b16 %v7945
    %v8930 = vunpack.c.l.b16 %v7946
    %v8931 = vunpack.c.l.b16 %v7947
    %v8932 = vunpack.c.l.b16 %v7948
    %v8933 = vunpack.c.l.b16 %v7949
    %v8934 = vunpack.c.l.b16 %v7950
    %v8935 = vunpack.c.l.b16 %v7951
    %v8936 = vpack.c.b16 %v8905, %v8904
    %v8937 = vpack.c.b16 %v8907, %v8906
    %v8938 = vpack.c.b16 %v8909, %v8908
    %v8939 = vpack.c.b16 %v8911, %v8910
    %v8940 = vpack.c.b16 %v8913, %v8912
    %v8941 = vpack.c.b16 %v8915, %v8914
    %v8942 = vpack.c.b16 %v8917, %v8916
    %v8943 = vpack.c.b16 %v8919, %v8918
    %v8944 = vpack.c.b16 %v8921, %v8920
    %v8945 = vpack.c.b16 %v8923, %v8922
    %v8946 = vpack.c.b16 %v8925, %v8924
    %v8947 = vpack.c.b16 %v8927, %v8926
    %v8948 = vpack.c.b16 %v8929, %v8928
    %v8949 = vpack.c.b16 %v8931, %v8930
    %v8950 = vpack.c.b16 %v8933, %v8932
    %v8951 = vpack.c.b16 %v8935, %v8934
    %8968 = vmatpush.bf16.msra.mxu0 %v8943
    %8969 = vmatpush.bf16.msra.mxu0 %v8942
    %8970 = vmatpush.bf16.msra.mxu0 %v8941
    %8971 = vmatpush.bf16.msra.mxu0 %v8940
    %8972 = vmatpush.bf16.msra.mxu0 %v8939
    %8973 = vmatpush.bf16.msra.mxu0 %v8938
    %8974 = vmatpush.bf16.msra.mxu0 %v8937
    %8975 = vmatpush.bf16.msra.mxu0 %v8936
    %8976 = vmatmul.bf16.gmra.mxu0 %v2261
    %v8977 = vpop.f32.mrf.mxu0
    %v8978 = vadd.f32 0.0, %v8977
    %v8979 = vpop.f32.mrf.mxu0
    %v8980 = vadd.f32 0.0, %v8979
    %8981 = vmatmul.bf16.gmra.mxu0 %v2263
    %v8982 = vpop.f32.mrf.mxu0
    %v8983 = vadd.f32 0.0, %v8982
    %v8984 = vpop.f32.mrf.mxu0
    %v8985 = vadd.f32 0.0, %v8984
    %8986 = vmatmul.bf16.gmra.mxu0 %v2265
    %v8987 = vpop.f32.mrf.mxu0
    %v8988 = vadd.f32 0.0, %v8987
    %v8989 = vpop.f32.mrf.mxu0
    %v8990 = vadd.f32 0.0, %v8989
    %8991 = vmatmul.bf16.gmra.mxu0 %v2267
    %v8992 = vpop.f32.mrf.mxu0
    %v8993 = vadd.f32 0.0, %v8992
    %v8994 = vpop.f32.mrf.mxu0
    %v8995 = vadd.f32 0.0, %v8994
    %8996 = vmatmul.bf16.gmra.mxu0 %v2269
    %v8997 = vpop.f32.mrf.mxu0
    %v8998 = vadd.f32 0.0, %v8997
    %v8999 = vpop.f32.mrf.mxu0
    %v9000 = vadd.f32 0.0, %v8999
    %9001 = vmatmul.bf16.gmra.mxu0 %v2271
    %v9002 = vpop.f32.mrf.mxu0
    %v9003 = vadd.f32 0.0, %v9002
    %v9004 = vpop.f32.mrf.mxu0
    %v9005 = vadd.f32 0.0, %v9004
    %9006 = vmatmul.bf16.gmra.mxu0 %v2273
    %v9007 = vpop.f32.mrf.mxu0
    %v9008 = vadd.f32 0.0, %v9007
    %v9009 = vpop.f32.mrf.mxu0
    %v9010 = vadd.f32 0.0, %v9009
    %9011 = vdwg.mxu0
    %9012 = vmatpush.bf16.msra.mxu0 %v8951
    %9013 = vmatpush.bf16.msra.mxu0 %v8950
    %9014 = vmatpush.bf16.msra.mxu0 %v8949
    %9015 = vmatpush.bf16.msra.mxu0 %v8948
    %9016 = vmatpush.bf16.msra.mxu0 %v8947
    %9017 = vmatpush.bf16.msra.mxu0 %v8946
    %9018 = vmatpush.bf16.msra.mxu0 %v8945
    %9019 = vmatpush.bf16.msra.mxu0 %v8944
    %9020 = vmatmul.bf16.gmra.mxu0 %v2262
    %v9021 = vpop.f32.mrf.mxu0
    %v9022 = vadd.f32 %v8978, %v9021
    %v9023 = vpop.f32.mrf.mxu0
    %v9024 = vadd.f32 %v8980, %v9023
    %9025 = vmatmul.bf16.gmra.mxu0 %v2264
    %v9026 = vpop.f32.mrf.mxu0
    %v9027 = vadd.f32 %v8983, %v9026
    %v9028 = vpop.f32.mrf.mxu0
    %v9029 = vadd.f32 %v8985, %v9028
    %9030 = vmatmul.bf16.gmra.mxu0 %v2266
    %v9031 = vpop.f32.mrf.mxu0
    %v9032 = vadd.f32 %v8988, %v9031
    %v9033 = vpop.f32.mrf.mxu0
    %v9034 = vadd.f32 %v8990, %v9033
    %9035 = vmatmul.bf16.gmra.mxu0 %v2268
    %v9036 = vpop.f32.mrf.mxu0
    %v9037 = vadd.f32 %v8993, %v9036
    %v9038 = vpop.f32.mrf.mxu0
    %v9039 = vadd.f32 %v8995, %v9038
    %9040 = vmatmul.bf16.gmra.mxu0 %v2270
    %v9041 = vpop.f32.mrf.mxu0
    %v9042 = vadd.f32 %v8998, %v9041
    %v9043 = vpop.f32.mrf.mxu0
    %v9044 = vadd.f32 %v9000, %v9043
    %9045 = vmatmul.bf16.gmra.mxu0 %v2272
    %v9046 = vpop.f32.mrf.mxu0
    %v9047 = vadd.f32 %v9003, %v9046
    %v9048 = vpop.f32.mrf.mxu0
    %v9049 = vadd.f32 %v9005, %v9048
    %9050 = vmatmul.bf16.gmra.mxu0 %v2274
    %v9051 = vpop.f32.mrf.mxu0
    %v9052 = vadd.f32 %v9008, %v9051
    %v9053 = vpop.f32.mrf.mxu0
    %v9054 = vadd.f32 %v9010, %v9053
    %9055 = vdwg.mxu0
    %v9056 = vpack.c.bf16 %v8104, %v8102
    %v9057 = vpack.c.bf16 %v8109, %v8107
    %v9058 = vpack.c.bf16 %v8114, %v8112
    %v9059 = vpack.c.bf16 %v8119, %v8117
    %v9060 = vpack.c.bf16 %v8124, %v8122
    %v9061 = vpack.c.bf16 %v8129, %v8127
    %v9062 = vpack.c.bf16 %v8134, %v8132
    %v9063 = vpack.c.bf16 %v8288, %v8286
    %v9064 = vpack.c.bf16 %v8293, %v8291
    %v9065 = vpack.c.bf16 %v8298, %v8296
    %v9066 = vpack.c.bf16 %v8303, %v8301
    %v9067 = vpack.c.bf16 %v8308, %v8306
    %v9068 = vpack.c.bf16 %v8313, %v8311
    %v9069 = vpack.c.bf16 %v8318, %v8316
    %v9070 = vpack.c.bf16 %v8472, %v8470
    %v9071 = vpack.c.bf16 %v8477, %v8475
    %v9072 = vpack.c.bf16 %v8482, %v8480
    %v9073 = vpack.c.bf16 %v8487, %v8485
    %v9074 = vpack.c.bf16 %v8492, %v8490
    %v9075 = vpack.c.bf16 %v8497, %v8495
    %v9076 = vpack.c.bf16 %v8502, %v8500
    %v9077 = vpack.c.bf16 %v8656, %v8654
    %v9078 = vpack.c.bf16 %v8661, %v8659
    %v9079 = vpack.c.bf16 %v8666, %v8664
    %v9080 = vpack.c.bf16 %v8671, %v8669
    %v9081 = vpack.c.bf16 %v8676, %v8674
    %v9082 = vpack.c.bf16 %v8681, %v8679
    %v9083 = vpack.c.bf16 %v8686, %v8684
    %v9084 = vpack.c.bf16 %v8840, %v8838
    %v9085 = vpack.c.bf16 %v8845, %v8843
    %v9086 = vpack.c.bf16 %v8850, %v8848
    %v9087 = vpack.c.bf16 %v8855, %v8853
    %v9088 = vpack.c.bf16 %v8860, %v8858
    %v9089 = vpack.c.bf16 %v8865, %v8863
    %v9090 = vpack.c.bf16 %v8870, %v8868
    %v9091 = vpack.c.bf16 %v9024, %v9022
    %v9092 = vpack.c.bf16 %v9029, %v9027
    %v9093 = vpack.c.bf16 %v9034, %v9032
    %v9094 = vpack.c.bf16 %v9039, %v9037
    %v9095 = vpack.c.bf16 %v9044, %v9042
    %v9096 = vpack.c.bf16 %v9049, %v9047
    %v9097 = vpack.c.bf16 %v9054, %v9052
    %9098 = vmatpush.bf16.msra.mxu0 %v3568
    %9099 = vmatpush.bf16.msra.mxu0 %v3564
    %9100 = vmatpush.bf16.msra.mxu0 %v3560
    %9101 = vmatpush.bf16.msra.mxu0 %v3556
    %9102 = vmatpush.bf16.msra.mxu0 %v3552
    %9103 = vmatpush.bf16.msra.mxu0 %v3548
    %9104 = vmatpush.bf16.msra.mxu0 %v3544
    %9105 = vmatpush.bf16.msra.mxu0 %v3540
    %9106 = vmatmul.bf16.gmra.mxu0 %v9056
    %v9107 = vpop.f32.mrf.mxu0
    %v9108 = vadd.f32 %v3436, %v9107
    %v9109 = vpop.f32.mrf.mxu0
    %v9110 = vadd.f32 %v3436, %v9109
    %9111 = vmatmul.bf16.gmra.mxu0 %v9057
    %v9112 = vpop.f32.mrf.mxu0
    %v9113 = vadd.f32 %v3436, %v9112
    %v9114 = vpop.f32.mrf.mxu0
    %v9115 = vadd.f32 %v3436, %v9114
    %9116 = vmatmul.bf16.gmra.mxu0 %v9058
    %v9117 = vpop.f32.mrf.mxu0
    %v9118 = vadd.f32 %v3436, %v9117
    %v9119 = vpop.f32.mrf.mxu0
    %v9120 = vadd.f32 %v3436, %v9119
    %9121 = vmatmul.bf16.gmra.mxu0 %v9059
    %v9122 = vpop.f32.mrf.mxu0
    %v9123 = vadd.f32 %v3436, %v9122
    %v9124 = vpop.f32.mrf.mxu0
    %v9125 = vadd.f32 %v3436, %v9124
    %9126 = vmatmul.bf16.gmra.mxu0 %v9060
    %v9127 = vpop.f32.mrf.mxu0
    %v9128 = vadd.f32 %v3436, %v9127
    %v9129 = vpop.f32.mrf.mxu0
    %v9130 = vadd.f32 %v3436, %v9129
    %9131 = vmatmul.bf16.gmra.mxu0 %v9061
    %v9132 = vpop.f32.mrf.mxu0
    %v9133 = vadd.f32 %v3436, %v9132
    %v9134 = vpop.f32.mrf.mxu0
    %v9135 = vadd.f32 %v3436, %v9134
    %9136 = vmatmul.bf16.gmra.mxu0 %v9062
    %v9137 = vpop.f32.mrf.mxu0
    %v9138 = vadd.f32 %v3436, %v9137
    %v9139 = vpop.f32.mrf.mxu0
    %v9140 = vadd.f32 %v3436, %v9139
    %9141 = vmatmul.bf16.gmra.mxu0 %v9063
    %v9142 = vpop.f32.mrf.mxu0
    %v9143 = vadd.f32 %v3436, %v9142
    %v9144 = vpop.f32.mrf.mxu0
    %v9145 = vadd.f32 %v3436, %v9144
    %9146 = vmatmul.bf16.gmra.mxu0 %v9064
    %v9147 = vpop.f32.mrf.mxu0
    %v9148 = vadd.f32 %v3436, %v9147
    %v9149 = vpop.f32.mrf.mxu0
    %v9150 = vadd.f32 %v3436, %v9149
    %9151 = vmatmul.bf16.gmra.mxu0 %v9065
    %v9152 = vpop.f32.mrf.mxu0
    %v9153 = vadd.f32 %v3436, %v9152
    %v9154 = vpop.f32.mrf.mxu0
    %v9155 = vadd.f32 %v3436, %v9154
    %9156 = vmatmul.bf16.gmra.mxu0 %v9066
    %v9157 = vpop.f32.mrf.mxu0
    %v9158 = vadd.f32 %v3436, %v9157
    %v9159 = vpop.f32.mrf.mxu0
    %v9160 = vadd.f32 %v3436, %v9159
    %9161 = vmatmul.bf16.gmra.mxu0 %v9067
    %v9162 = vpop.f32.mrf.mxu0
    %v9163 = vadd.f32 %v3436, %v9162
    %v9164 = vpop.f32.mrf.mxu0
    %v9165 = vadd.f32 %v3436, %v9164
    %9166 = vmatmul.bf16.gmra.mxu0 %v9068
    %v9167 = vpop.f32.mrf.mxu0
    %v9168 = vadd.f32 %v3436, %v9167
    %v9169 = vpop.f32.mrf.mxu0
    %v9170 = vadd.f32 %v3436, %v9169
    %9171 = vmatmul.bf16.gmra.mxu0 %v9069
    %v9172 = vpop.f32.mrf.mxu0
    %v9173 = vadd.f32 %v3436, %v9172
    %v9174 = vpop.f32.mrf.mxu0
    %v9175 = vadd.f32 %v3436, %v9174
    %9176 = vmatmul.bf16.gmra.mxu0 %v9070
    %v9177 = vpop.f32.mrf.mxu0
    %v9178 = vadd.f32 %v3436, %v9177
    %v9179 = vpop.f32.mrf.mxu0
    %v9180 = vadd.f32 %v3436, %v9179
    %9181 = vmatmul.bf16.gmra.mxu0 %v9071
    %v9182 = vpop.f32.mrf.mxu0
    %v9183 = vadd.f32 %v3436, %v9182
    %v9184 = vpop.f32.mrf.mxu0
    %v9185 = vadd.f32 %v3436, %v9184
    %9186 = vmatmul.bf16.gmra.mxu0 %v9072
    %v9187 = vpop.f32.mrf.mxu0
    %v9188 = vadd.f32 %v3436, %v9187
    %v9189 = vpop.f32.mrf.mxu0
    %v9190 = vadd.f32 %v3436, %v9189
    %9191 = vmatmul.bf16.gmra.mxu0 %v9073
    %v9192 = vpop.f32.mrf.mxu0
    %v9193 = vadd.f32 %v3436, %v9192
    %v9194 = vpop.f32.mrf.mxu0
    %v9195 = vadd.f32 %v3436, %v9194
    %9196 = vmatmul.bf16.gmra.mxu0 %v9074
    %v9197 = vpop.f32.mrf.mxu0
    %v9198 = vadd.f32 %v3436, %v9197
    %v9199 = vpop.f32.mrf.mxu0
    %v9200 = vadd.f32 %v3436, %v9199
    %9201 = vmatmul.bf16.gmra.mxu0 %v9075
    %v9202 = vpop.f32.mrf.mxu0
    %v9203 = vadd.f32 %v3436, %v9202
    %v9204 = vpop.f32.mrf.mxu0
    %v9205 = vadd.f32 %v3436, %v9204
    %9206 = vmatmul.bf16.gmra.mxu0 %v9076
    %v9207 = vpop.f32.mrf.mxu0
    %v9208 = vadd.f32 %v3436, %v9207
    %v9209 = vpop.f32.mrf.mxu0
    %v9210 = vadd.f32 %v3436, %v9209
    %9211 = vmatmul.bf16.gmra.mxu0 %v9077
    %v9212 = vpop.f32.mrf.mxu0
    %v9213 = vadd.f32 %v3436, %v9212
    %v9214 = vpop.f32.mrf.mxu0
    %v9215 = vadd.f32 %v3436, %v9214
    %9216 = vmatmul.bf16.gmra.mxu0 %v9078
    %v9217 = vpop.f32.mrf.mxu0
    %v9218 = vadd.f32 %v3436, %v9217
    %v9219 = vpop.f32.mrf.mxu0
    %v9220 = vadd.f32 %v3436, %v9219
    %9221 = vmatmul.bf16.gmra.mxu0 %v9079
    %v9222 = vpop.f32.mrf.mxu0
    %v9223 = vadd.f32 %v3436, %v9222
    %v9224 = vpop.f32.mrf.mxu0
    %v9225 = vadd.f32 %v3436, %v9224
    %9226 = vmatmul.bf16.gmra.mxu0 %v9080
    %v9227 = vpop.f32.mrf.mxu0
    %v9228 = vadd.f32 %v3436, %v9227
    %v9229 = vpop.f32.mrf.mxu0
    %v9230 = vadd.f32 %v3436, %v9229
    %9231 = vmatmul.bf16.gmra.mxu0 %v9081
    %v9232 = vpop.f32.mrf.mxu0
    %v9233 = vadd.f32 %v3436, %v9232
    %v9234 = vpop.f32.mrf.mxu0
    %v9235 = vadd.f32 %v3436, %v9234
    %9236 = vmatmul.bf16.gmra.mxu0 %v9082
    %v9237 = vpop.f32.mrf.mxu0
    %v9238 = vadd.f32 %v3436, %v9237
    %v9239 = vpop.f32.mrf.mxu0
    %v9240 = vadd.f32 %v3436, %v9239
    %9241 = vmatmul.bf16.gmra.mxu0 %v9083
    %v9242 = vpop.f32.mrf.mxu0
    %v9243 = vadd.f32 %v3436, %v9242
    %v9244 = vpop.f32.mrf.mxu0
    %v9245 = vadd.f32 %v3436, %v9244
    %9246 = vmatmul.bf16.gmra.mxu0 %v9084
    %v9247 = vpop.f32.mrf.mxu0
    %v9248 = vadd.f32 %v3436, %v9247
    %v9249 = vpop.f32.mrf.mxu0
    %v9250 = vadd.f32 %v3436, %v9249
    %9251 = vmatmul.bf16.gmra.mxu0 %v9085
    %v9252 = vpop.f32.mrf.mxu0
    %v9253 = vadd.f32 %v3436, %v9252
    %v9254 = vpop.f32.mrf.mxu0
    %v9255 = vadd.f32 %v3436, %v9254
    %9256 = vmatmul.bf16.gmra.mxu0 %v9086
    %v9257 = vpop.f32.mrf.mxu0
    %v9258 = vadd.f32 %v3436, %v9257
    %v9259 = vpop.f32.mrf.mxu0
    %v9260 = vadd.f32 %v3436, %v9259
    %9261 = vmatmul.bf16.gmra.mxu0 %v9087
    %v9262 = vpop.f32.mrf.mxu0
    %v9263 = vadd.f32 %v3436, %v9262
    %v9264 = vpop.f32.mrf.mxu0
    %v9265 = vadd.f32 %v3436, %v9264
    %9266 = vmatmul.bf16.gmra.mxu0 %v9088
    %v9267 = vpop.f32.mrf.mxu0
    %v9268 = vadd.f32 %v3436, %v9267
    %v9269 = vpop.f32.mrf.mxu0
    %v9270 = vadd.f32 %v3436, %v9269
    %9271 = vmatmul.bf16.gmra.mxu0 %v9089
    %v9272 = vpop.f32.mrf.mxu0
    %v9273 = vadd.f32 %v3436, %v9272
    %v9274 = vpop.f32.mrf.mxu0
    %v9275 = vadd.f32 %v3436, %v9274
    %9276 = vmatmul.bf16.gmra.mxu0 %v9090
    %v9277 = vpop.f32.mrf.mxu0
    %v9278 = vadd.f32 %v3436, %v9277
    %v9279 = vpop.f32.mrf.mxu0
    %v9280 = vadd.f32 %v3436, %v9279
    %9281 = vmatmul.bf16.gmra.mxu0 %v9091
    %v9282 = vpop.f32.mrf.mxu0
    %v9283 = vadd.f32 %v3436, %v9282
    %v9284 = vpop.f32.mrf.mxu0
    %v9285 = vadd.f32 %v3436, %v9284
    %9286 = vmatmul.bf16.gmra.mxu0 %v9092
    %v9287 = vpop.f32.mrf.mxu0
    %v9288 = vadd.f32 %v3436, %v9287
    %v9289 = vpop.f32.mrf.mxu0
    %v9290 = vadd.f32 %v3436, %v9289
    %9291 = vmatmul.bf16.gmra.mxu0 %v9093
    %v9292 = vpop.f32.mrf.mxu0
    %v9293 = vadd.f32 %v3436, %v9292
    %v9294 = vpop.f32.mrf.mxu0
    %v9295 = vadd.f32 %v3436, %v9294
    %9296 = vmatmul.bf16.gmra.mxu0 %v9094
    %v9297 = vpop.f32.mrf.mxu0
    %v9298 = vadd.f32 %v3436, %v9297
    %v9299 = vpop.f32.mrf.mxu0
    %v9300 = vadd.f32 %v3436, %v9299
    %9301 = vmatmul.bf16.gmra.mxu0 %v9095
    %v9302 = vpop.f32.mrf.mxu0
    %v9303 = vadd.f32 %v3436, %v9302
    %v9304 = vpop.f32.mrf.mxu0
    %v9305 = vadd.f32 %v3436, %v9304
    %9306 = vmatmul.bf16.gmra.mxu0 %v9096
    %v9307 = vpop.f32.mrf.mxu0
    %v9308 = vadd.f32 %v3436, %v9307
    %v9309 = vpop.f32.mrf.mxu0
    %v9310 = vadd.f32 %v3436, %v9309
    %9311 = vmatmul.bf16.gmra.mxu0 %v9097
    %v9312 = vpop.f32.mrf.mxu0
    %v9313 = vadd.f32 %v3436, %v9312
    %v9314 = vpop.f32.mrf.mxu0
    %v9315 = vadd.f32 %v3436, %v9314
    %9316 = vdwg.mxu0
    %9317 = vmatpush.bf16.msra.mxu0 %v3569
    %9318 = vmatpush.bf16.msra.mxu0 %v3565
    %9319 = vmatpush.bf16.msra.mxu0 %v3561
    %9320 = vmatpush.bf16.msra.mxu0 %v3557
    %9321 = vmatpush.bf16.msra.mxu0 %v3553
    %9322 = vmatpush.bf16.msra.mxu0 %v3549
    %9323 = vmatpush.bf16.msra.mxu0 %v3545
    %9324 = vmatpush.bf16.msra.mxu0 %v3541
    %9325 = vmatmul.bf16.gmra.mxu0 %v9056
    %v9326 = vpop.f32.mrf.mxu0
    %v9327 = vadd.f32 %v3437, %v9326
    %v9328 = vpop.f32.mrf.mxu0
    %v9329 = vadd.f32 %v3437, %v9328
    %9330 = vmatmul.bf16.gmra.mxu0 %v9057
    %v9331 = vpop.f32.mrf.mxu0
    %v9332 = vadd.f32 %v3437, %v9331
    %v9333 = vpop.f32.mrf.mxu0
    %v9334 = vadd.f32 %v3437, %v9333
    %9335 = vmatmul.bf16.gmra.mxu0 %v9058
    %v9336 = vpop.f32.mrf.mxu0
    %v9337 = vadd.f32 %v3437, %v9336
    %v9338 = vpop.f32.mrf.mxu0
    %v9339 = vadd.f32 %v3437, %v9338
    %9340 = vmatmul.bf16.gmra.mxu0 %v9059
    %v9341 = vpop.f32.mrf.mxu0
    %v9342 = vadd.f32 %v3437, %v9341
    %v9343 = vpop.f32.mrf.mxu0
    %v9344 = vadd.f32 %v3437, %v9343
    %9345 = vmatmul.bf16.gmra.mxu0 %v9060
    %v9346 = vpop.f32.mrf.mxu0
    %v9347 = vadd.f32 %v3437, %v9346
    %v9348 = vpop.f32.mrf.mxu0
    %v9349 = vadd.f32 %v3437, %v9348
    %9350 = vmatmul.bf16.gmra.mxu0 %v9061
    %v9351 = vpop.f32.mrf.mxu0
    %v9352 = vadd.f32 %v3437, %v9351
    %v9353 = vpop.f32.mrf.mxu0
    %v9354 = vadd.f32 %v3437, %v9353
    %9355 = vmatmul.bf16.gmra.mxu0 %v9062
    %v9356 = vpop.f32.mrf.mxu0
    %v9357 = vadd.f32 %v3437, %v9356
    %v9358 = vpop.f32.mrf.mxu0
    %v9359 = vadd.f32 %v3437, %v9358
    %9360 = vmatmul.bf16.gmra.mxu0 %v9063
    %v9361 = vpop.f32.mrf.mxu0
    %v9362 = vadd.f32 %v3437, %v9361
    %v9363 = vpop.f32.mrf.mxu0
    %v9364 = vadd.f32 %v3437, %v9363
    %9365 = vmatmul.bf16.gmra.mxu0 %v9064
    %v9366 = vpop.f32.mrf.mxu0
    %v9367 = vadd.f32 %v3437, %v9366
    %v9368 = vpop.f32.mrf.mxu0
    %v9369 = vadd.f32 %v3437, %v9368
    %9370 = vmatmul.bf16.gmra.mxu0 %v9065
    %v9371 = vpop.f32.mrf.mxu0
    %v9372 = vadd.f32 %v3437, %v9371
    %v9373 = vpop.f32.mrf.mxu0
    %v9374 = vadd.f32 %v3437, %v9373
    %9375 = vmatmul.bf16.gmra.mxu0 %v9066
    %v9376 = vpop.f32.mrf.mxu0
    %v9377 = vadd.f32 %v3437, %v9376
    %v9378 = vpop.f32.mrf.mxu0
    %v9379 = vadd.f32 %v3437, %v9378
    %9380 = vmatmul.bf16.gmra.mxu0 %v9067
    %v9381 = vpop.f32.mrf.mxu0
    %v9382 = vadd.f32 %v3437, %v9381
    %v9383 = vpop.f32.mrf.mxu0
    %v9384 = vadd.f32 %v3437, %v9383
    %9385 = vmatmul.bf16.gmra.mxu0 %v9068
    %v9386 = vpop.f32.mrf.mxu0
    %v9387 = vadd.f32 %v3437, %v9386
    %v9388 = vpop.f32.mrf.mxu0
    %v9389 = vadd.f32 %v3437, %v9388
    %9390 = vmatmul.bf16.gmra.mxu0 %v9069
    %v9391 = vpop.f32.mrf.mxu0
    %v9392 = vadd.f32 %v3437, %v9391
    %v9393 = vpop.f32.mrf.mxu0
    %v9394 = vadd.f32 %v3437, %v9393
    %9395 = vmatmul.bf16.gmra.mxu0 %v9070
    %v9396 = vpop.f32.mrf.mxu0
    %v9397 = vadd.f32 %v3437, %v9396
    %v9398 = vpop.f32.mrf.mxu0
    %v9399 = vadd.f32 %v3437, %v9398
    %9400 = vmatmul.bf16.gmra.mxu0 %v9071
    %v9401 = vpop.f32.mrf.mxu0
    %v9402 = vadd.f32 %v3437, %v9401
    %v9403 = vpop.f32.mrf.mxu0
    %v9404 = vadd.f32 %v3437, %v9403
    %9405 = vmatmul.bf16.gmra.mxu0 %v9072
    %v9406 = vpop.f32.mrf.mxu0
    %v9407 = vadd.f32 %v3437, %v9406
    %v9408 = vpop.f32.mrf.mxu0
    %v9409 = vadd.f32 %v3437, %v9408
    %9410 = vmatmul.bf16.gmra.mxu0 %v9073
    %v9411 = vpop.f32.mrf.mxu0
    %v9412 = vadd.f32 %v3437, %v9411
    %v9413 = vpop.f32.mrf.mxu0
    %v9414 = vadd.f32 %v3437, %v9413
    %9415 = vmatmul.bf16.gmra.mxu0 %v9074
    %v9416 = vpop.f32.mrf.mxu0
    %v9417 = vadd.f32 %v3437, %v9416
    %v9418 = vpop.f32.mrf.mxu0
    %v9419 = vadd.f32 %v3437, %v9418
    %9420 = vmatmul.bf16.gmra.mxu0 %v9075
    %v9421 = vpop.f32.mrf.mxu0
    %v9422 = vadd.f32 %v3437, %v9421
    %v9423 = vpop.f32.mrf.mxu0
    %v9424 = vadd.f32 %v3437, %v9423
    %9425 = vmatmul.bf16.gmra.mxu0 %v9076
    %v9426 = vpop.f32.mrf.mxu0
    %v9427 = vadd.f32 %v3437, %v9426
    %v9428 = vpop.f32.mrf.mxu0
    %v9429 = vadd.f32 %v3437, %v9428
    %9430 = vmatmul.bf16.gmra.mxu0 %v9077
    %v9431 = vpop.f32.mrf.mxu0
    %v9432 = vadd.f32 %v3437, %v9431
    %v9433 = vpop.f32.mrf.mxu0
    %v9434 = vadd.f32 %v3437, %v9433
    %9435 = vmatmul.bf16.gmra.mxu0 %v9078
    %v9436 = vpop.f32.mrf.mxu0
    %v9437 = vadd.f32 %v3437, %v9436
    %v9438 = vpop.f32.mrf.mxu0
    %v9439 = vadd.f32 %v3437, %v9438
    %9440 = vmatmul.bf16.gmra.mxu0 %v9079
    %v9441 = vpop.f32.mrf.mxu0
    %v9442 = vadd.f32 %v3437, %v9441
    %v9443 = vpop.f32.mrf.mxu0
    %v9444 = vadd.f32 %v3437, %v9443
    %9445 = vmatmul.bf16.gmra.mxu0 %v9080
    %v9446 = vpop.f32.mrf.mxu0
    %v9447 = vadd.f32 %v3437, %v9446
    %v9448 = vpop.f32.mrf.mxu0
    %v9449 = vadd.f32 %v3437, %v9448
    %9450 = vmatmul.bf16.gmra.mxu0 %v9081
    %v9451 = vpop.f32.mrf.mxu0
    %v9452 = vadd.f32 %v3437, %v9451
    %v9453 = vpop.f32.mrf.mxu0
    %v9454 = vadd.f32 %v3437, %v9453
    %9455 = vmatmul.bf16.gmra.mxu0 %v9082
    %v9456 = vpop.f32.mrf.mxu0
    %v9457 = vadd.f32 %v3437, %v9456
    %v9458 = vpop.f32.mrf.mxu0
    %v9459 = vadd.f32 %v3437, %v9458
    %9460 = vmatmul.bf16.gmra.mxu0 %v9083
    %v9461 = vpop.f32.mrf.mxu0
    %v9462 = vadd.f32 %v3437, %v9461
    %v9463 = vpop.f32.mrf.mxu0
    %v9464 = vadd.f32 %v3437, %v9463
    %9465 = vmatmul.bf16.gmra.mxu0 %v9084
    %v9466 = vpop.f32.mrf.mxu0
    %v9467 = vadd.f32 %v3437, %v9466
    %v9468 = vpop.f32.mrf.mxu0
    %v9469 = vadd.f32 %v3437, %v9468
    %9470 = vmatmul.bf16.gmra.mxu0 %v9085
    %v9471 = vpop.f32.mrf.mxu0
    %v9472 = vadd.f32 %v3437, %v9471
    %v9473 = vpop.f32.mrf.mxu0
    %v9474 = vadd.f32 %v3437, %v9473
    %9475 = vmatmul.bf16.gmra.mxu0 %v9086
    %v9476 = vpop.f32.mrf.mxu0
    %v9477 = vadd.f32 %v3437, %v9476
    %v9478 = vpop.f32.mrf.mxu0
    %v9479 = vadd.f32 %v3437, %v9478
    %9480 = vmatmul.bf16.gmra.mxu0 %v9087
    %v9481 = vpop.f32.mrf.mxu0
    %v9482 = vadd.f32 %v3437, %v9481
    %v9483 = vpop.f32.mrf.mxu0
    %v9484 = vadd.f32 %v3437, %v9483
    %9485 = vmatmul.bf16.gmra.mxu0 %v9088
    %v9486 = vpop.f32.mrf.mxu0
    %v9487 = vadd.f32 %v3437, %v9486
    %v9488 = vpop.f32.mrf.mxu0
    %v9489 = vadd.f32 %v3437, %v9488
    %9490 = vmatmul.bf16.gmra.mxu0 %v9089
    %v9491 = vpop.f32.mrf.mxu0
    %v9492 = vadd.f32 %v3437, %v9491
    %v9493 = vpop.f32.mrf.mxu0
    %v9494 = vadd.f32 %v3437, %v9493
    %9495 = vmatmul.bf16.gmra.mxu0 %v9090
    %v9496 = vpop.f32.mrf.mxu0
    %v9497 = vadd.f32 %v3437, %v9496
    %v9498 = vpop.f32.mrf.mxu0
    %v9499 = vadd.f32 %v3437, %v9498
    %9500 = vmatmul.bf16.gmra.mxu0 %v9091
    %v9501 = vpop.f32.mrf.mxu0
    %v9502 = vadd.f32 %v3437, %v9501
    %v9503 = vpop.f32.mrf.mxu0
    %v9504 = vadd.f32 %v3437, %v9503
    %9505 = vmatmul.bf16.gmra.mxu0 %v9092
    %v9506 = vpop.f32.mrf.mxu0
    %v9507 = vadd.f32 %v3437, %v9506
    %v9508 = vpop.f32.mrf.mxu0
    %v9509 = vadd.f32 %v3437, %v9508
    %9510 = vmatmul.bf16.gmra.mxu0 %v9093
    %v9511 = vpop.f32.mrf.mxu0
    %v9512 = vadd.f32 %v3437, %v9511
    %v9513 = vpop.f32.mrf.mxu0
    %v9514 = vadd.f32 %v3437, %v9513
    %9515 = vmatmul.bf16.gmra.mxu0 %v9094
    %v9516 = vpop.f32.mrf.mxu0
    %v9517 = vadd.f32 %v3437, %v9516
    %v9518 = vpop.f32.mrf.mxu0
    %v9519 = vadd.f32 %v3437, %v9518
    %9520 = vmatmul.bf16.gmra.mxu0 %v9095
    %v9521 = vpop.f32.mrf.mxu0
    %v9522 = vadd.f32 %v3437, %v9521
    %v9523 = vpop.f32.mrf.mxu0
    %v9524 = vadd.f32 %v3437, %v9523
    %9525 = vmatmul.bf16.gmra.mxu0 %v9096
    %v9526 = vpop.f32.mrf.mxu0
    %v9527 = vadd.f32 %v3437, %v9526
    %v9528 = vpop.f32.mrf.mxu0
    %v9529 = vadd.f32 %v3437, %v9528
    %9530 = vmatmul.bf16.gmra.mxu0 %v9097
    %v9531 = vpop.f32.mrf.mxu0
    %v9532 = vadd.f32 %v3437, %v9531
    %v9533 = vpop.f32.mrf.mxu0
    %v9534 = vadd.f32 %v3437, %v9533
    %9535 = vdwg.mxu0
    %9536 = vmatpush.bf16.msra.mxu0 %v3570
    %9537 = vmatpush.bf16.msra.mxu0 %v3566
    %9538 = vmatpush.bf16.msra.mxu0 %v3562
    %9539 = vmatpush.bf16.msra.mxu0 %v3558
    %9540 = vmatpush.bf16.msra.mxu0 %v3554
    %9541 = vmatpush.bf16.msra.mxu0 %v3550
    %9542 = vmatpush.bf16.msra.mxu0 %v3546
    %9543 = vmatpush.bf16.msra.mxu0 %v3542
    %9544 = vmatmul.bf16.gmra.mxu0 %v9056
    %v9545 = vpop.f32.mrf.mxu0
    %v9546 = vadd.f32 %v3438, %v9545
    %v9547 = vpop.f32.mrf.mxu0
    %v9548 = vadd.f32 %v3438, %v9547
    %9549 = vmatmul.bf16.gmra.mxu0 %v9057
    %v9550 = vpop.f32.mrf.mxu0
    %v9551 = vadd.f32 %v3438, %v9550
    %v9552 = vpop.f32.mrf.mxu0
    %v9553 = vadd.f32 %v3438, %v9552
    %9554 = vmatmul.bf16.gmra.mxu0 %v9058
    %v9555 = vpop.f32.mrf.mxu0
    %v9556 = vadd.f32 %v3438, %v9555
    %v9557 = vpop.f32.mrf.mxu0
    %v9558 = vadd.f32 %v3438, %v9557
    %9559 = vmatmul.bf16.gmra.mxu0 %v9059
    %v9560 = vpop.f32.mrf.mxu0
    %v9561 = vadd.f32 %v3438, %v9560
    %v9562 = vpop.f32.mrf.mxu0
    %v9563 = vadd.f32 %v3438, %v9562
    %9564 = vmatmul.bf16.gmra.mxu0 %v9060
    %v9565 = vpop.f32.mrf.mxu0
    %v9566 = vadd.f32 %v3438, %v9565
    %v9567 = vpop.f32.mrf.mxu0
    %v9568 = vadd.f32 %v3438, %v9567
    %9569 = vmatmul.bf16.gmra.mxu0 %v9061
    %v9570 = vpop.f32.mrf.mxu0
    %v9571 = vadd.f32 %v3438, %v9570
    %v9572 = vpop.f32.mrf.mxu0
    %v9573 = vadd.f32 %v3438, %v9572
    %9574 = vmatmul.bf16.gmra.mxu0 %v9062
    %v9575 = vpop.f32.mrf.mxu0
    %v9576 = vadd.f32 %v3438, %v9575
    %v9577 = vpop.f32.mrf.mxu0
    %v9578 = vadd.f32 %v3438, %v9577
    %9579 = vmatmul.bf16.gmra.mxu0 %v9063
    %v9580 = vpop.f32.mrf.mxu0
    %v9581 = vadd.f32 %v3438, %v9580
    %v9582 = vpop.f32.mrf.mxu0
    %v9583 = vadd.f32 %v3438, %v9582
    %9584 = vmatmul.bf16.gmra.mxu0 %v9064
    %v9585 = vpop.f32.mrf.mxu0
    %v9586 = vadd.f32 %v3438, %v9585
    %v9587 = vpop.f32.mrf.mxu0
    %v9588 = vadd.f32 %v3438, %v9587
    %9589 = vmatmul.bf16.gmra.mxu0 %v9065
    %v9590 = vpop.f32.mrf.mxu0
    %v9591 = vadd.f32 %v3438, %v9590
    %v9592 = vpop.f32.mrf.mxu0
    %v9593 = vadd.f32 %v3438, %v9592
    %9594 = vmatmul.bf16.gmra.mxu0 %v9066
    %v9595 = vpop.f32.mrf.mxu0
    %v9596 = vadd.f32 %v3438, %v9595
    %v9597 = vpop.f32.mrf.mxu0
    %v9598 = vadd.f32 %v3438, %v9597
    %9599 = vmatmul.bf16.gmra.mxu0 %v9067
    %v9600 = vpop.f32.mrf.mxu0
    %v9601 = vadd.f32 %v3438, %v9600
    %v9602 = vpop.f32.mrf.mxu0
    %v9603 = vadd.f32 %v3438, %v9602
    %9604 = vmatmul.bf16.gmra.mxu0 %v9068
    %v9605 = vpop.f32.mrf.mxu0
    %v9606 = vadd.f32 %v3438, %v9605
    %v9607 = vpop.f32.mrf.mxu0
    %v9608 = vadd.f32 %v3438, %v9607
    %9609 = vmatmul.bf16.gmra.mxu0 %v9069
    %v9610 = vpop.f32.mrf.mxu0
    %v9611 = vadd.f32 %v3438, %v9610
    %v9612 = vpop.f32.mrf.mxu0
    %v9613 = vadd.f32 %v3438, %v9612
    %9614 = vmatmul.bf16.gmra.mxu0 %v9070
    %v9615 = vpop.f32.mrf.mxu0
    %v9616 = vadd.f32 %v3438, %v9615
    %v9617 = vpop.f32.mrf.mxu0
    %v9618 = vadd.f32 %v3438, %v9617
    %9619 = vmatmul.bf16.gmra.mxu0 %v9071
    %v9620 = vpop.f32.mrf.mxu0
    %v9621 = vadd.f32 %v3438, %v9620
    %v9622 = vpop.f32.mrf.mxu0
    %v9623 = vadd.f32 %v3438, %v9622
    %9624 = vmatmul.bf16.gmra.mxu0 %v9072
    %v9625 = vpop.f32.mrf.mxu0
    %v9626 = vadd.f32 %v3438, %v9625
    %v9627 = vpop.f32.mrf.mxu0
    %v9628 = vadd.f32 %v3438, %v9627
    %9629 = vmatmul.bf16.gmra.mxu0 %v9073
    %v9630 = vpop.f32.mrf.mxu0
    %v9631 = vadd.f32 %v3438, %v9630
    %v9632 = vpop.f32.mrf.mxu0
    %v9633 = vadd.f32 %v3438, %v9632
    %9634 = vmatmul.bf16.gmra.mxu0 %v9074
    %v9635 = vpop.f32.mrf.mxu0
    %v9636 = vadd.f32 %v3438, %v9635
    %v9637 = vpop.f32.mrf.mxu0
    %v9638 = vadd.f32 %v3438, %v9637
    %9639 = vmatmul.bf16.gmra.mxu0 %v9075
    %v9640 = vpop.f32.mrf.mxu0
    %v9641 = vadd.f32 %v3438, %v9640
    %v9642 = vpop.f32.mrf.mxu0
    %v9643 = vadd.f32 %v3438, %v9642
    %9644 = vmatmul.bf16.gmra.mxu0 %v9076
    %v9645 = vpop.f32.mrf.mxu0
    %v9646 = vadd.f32 %v3438, %v9645
    %v9647 = vpop.f32.mrf.mxu0
    %v9648 = vadd.f32 %v3438, %v9647
    %9649 = vmatmul.bf16.gmra.mxu0 %v9077
    %v9650 = vpop.f32.mrf.mxu0
    %v9651 = vadd.f32 %v3438, %v9650
    %v9652 = vpop.f32.mrf.mxu0
    %v9653 = vadd.f32 %v3438, %v9652
    %9654 = vmatmul.bf16.gmra.mxu0 %v9078
    %v9655 = vpop.f32.mrf.mxu0
    %v9656 = vadd.f32 %v3438, %v9655
    %v9657 = vpop.f32.mrf.mxu0
    %v9658 = vadd.f32 %v3438, %v9657
    %9659 = vmatmul.bf16.gmra.mxu0 %v9079
    %v9660 = vpop.f32.mrf.mxu0
    %v9661 = vadd.f32 %v3438, %v9660
    %v9662 = vpop.f32.mrf.mxu0
    %v9663 = vadd.f32 %v3438, %v9662
    %9664 = vmatmul.bf16.gmra.mxu0 %v9080
    %v9665 = vpop.f32.mrf.mxu0
    %v9666 = vadd.f32 %v3438, %v9665
    %v9667 = vpop.f32.mrf.mxu0
    %v9668 = vadd.f32 %v3438, %v9667
    %9669 = vmatmul.bf16.gmra.mxu0 %v9081
    %v9670 = vpop.f32.mrf.mxu0
    %v9671 = vadd.f32 %v3438, %v9670
    %v9672 = vpop.f32.mrf.mxu0
    %v9673 = vadd.f32 %v3438, %v9672
    %9674 = vmatmul.bf16.gmra.mxu0 %v9082
    %v9675 = vpop.f32.mrf.mxu0
    %v9676 = vadd.f32 %v3438, %v9675
    %v9677 = vpop.f32.mrf.mxu0
    %v9678 = vadd.f32 %v3438, %v9677
    %9679 = vmatmul.bf16.gmra.mxu0 %v9083
    %v9680 = vpop.f32.mrf.mxu0
    %v9681 = vadd.f32 %v3438, %v9680
    %v9682 = vpop.f32.mrf.mxu0
    %v9683 = vadd.f32 %v3438, %v9682
    %9684 = vmatmul.bf16.gmra.mxu0 %v9084
    %v9685 = vpop.f32.mrf.mxu0
    %v9686 = vadd.f32 %v3438, %v9685
    %v9687 = vpop.f32.mrf.mxu0
    %v9688 = vadd.f32 %v3438, %v9687
    %9689 = vmatmul.bf16.gmra.mxu0 %v9085
    %v9690 = vpop.f32.mrf.mxu0
    %v9691 = vadd.f32 %v3438, %v9690
    %v9692 = vpop.f32.mrf.mxu0
    %v9693 = vadd.f32 %v3438, %v9692
    %9694 = vmatmul.bf16.gmra.mxu0 %v9086
    %v9695 = vpop.f32.mrf.mxu0
    %v9696 = vadd.f32 %v3438, %v9695
    %v9697 = vpop.f32.mrf.mxu0
    %v9698 = vadd.f32 %v3438, %v9697
    %9699 = vmatmul.bf16.gmra.mxu0 %v9087
    %v9700 = vpop.f32.mrf.mxu0
    %v9701 = vadd.f32 %v3438, %v9700
    %v9702 = vpop.f32.mrf.mxu0
    %v9703 = vadd.f32 %v3438, %v9702
    %9704 = vmatmul.bf16.gmra.mxu0 %v9088
    %v9705 = vpop.f32.mrf.mxu0
    %v9706 = vadd.f32 %v3438, %v9705
    %v9707 = vpop.f32.mrf.mxu0
    %v9708 = vadd.f32 %v3438, %v9707
    %9709 = vmatmul.bf16.gmra.mxu0 %v9089
    %v9710 = vpop.f32.mrf.mxu0
    %v9711 = vadd.f32 %v3438, %v9710
    %v9712 = vpop.f32.mrf.mxu0
    %v9713 = vadd.f32 %v3438, %v9712
    %9714 = vmatmul.bf16.gmra.mxu0 %v9090
    %v9715 = vpop.f32.mrf.mxu0
    %v9716 = vadd.f32 %v3438, %v9715
    %v9717 = vpop.f32.mrf.mxu0
    %v9718 = vadd.f32 %v3438, %v9717
    %9719 = vmatmul.bf16.gmra.mxu0 %v9091
    %v9720 = vpop.f32.mrf.mxu0
    %v9721 = vadd.f32 %v3438, %v9720
    %v9722 = vpop.f32.mrf.mxu0
    %v9723 = vadd.f32 %v3438, %v9722
    %9724 = vmatmul.bf16.gmra.mxu0 %v9092
    %v9725 = vpop.f32.mrf.mxu0
    %v9726 = vadd.f32 %v3438, %v9725
    %v9727 = vpop.f32.mrf.mxu0
    %v9728 = vadd.f32 %v3438, %v9727
    %9729 = vmatmul.bf16.gmra.mxu0 %v9093
    %v9730 = vpop.f32.mrf.mxu0
    %v9731 = vadd.f32 %v3438, %v9730
    %v9732 = vpop.f32.mrf.mxu0
    %v9733 = vadd.f32 %v3438, %v9732
    %9734 = vmatmul.bf16.gmra.mxu0 %v9094
    %v9735 = vpop.f32.mrf.mxu0
    %v9736 = vadd.f32 %v3438, %v9735
    %v9737 = vpop.f32.mrf.mxu0
    %v9738 = vadd.f32 %v3438, %v9737
    %9739 = vmatmul.bf16.gmra.mxu0 %v9095
    %v9740 = vpop.f32.mrf.mxu0
    %v9741 = vadd.f32 %v3438, %v9740
    %v9742 = vpop.f32.mrf.mxu0
    %v9743 = vadd.f32 %v3438, %v9742
    %9744 = vmatmul.bf16.gmra.mxu0 %v9096
    %v9745 = vpop.f32.mrf.mxu0
    %v9746 = vadd.f32 %v3438, %v9745
    %v9747 = vpop.f32.mrf.mxu0
    %v9748 = vadd.f32 %v3438, %v9747
    %9749 = vmatmul.bf16.gmra.mxu0 %v9097
    %v9750 = vpop.f32.mrf.mxu0
    %v9751 = vadd.f32 %v3438, %v9750
    %v9752 = vpop.f32.mrf.mxu0
    %v9753 = vadd.f32 %v3438, %v9752
    %9754 = vdwg.mxu0
    %9755 = vmatpush.bf16.msra.mxu0 %v3571
    %9756 = vmatpush.bf16.msra.mxu0 %v3567
    %9757 = vmatpush.bf16.msra.mxu0 %v3563
    %9758 = vmatpush.bf16.msra.mxu0 %v3559
    %9759 = vmatpush.bf16.msra.mxu0 %v3555
    %9760 = vmatpush.bf16.msra.mxu0 %v3551
    %9761 = vmatpush.bf16.msra.mxu0 %v3547
    %9762 = vmatpush.bf16.msra.mxu0 %v3543
    %9763 = vmatmul.bf16.gmra.mxu0 %v9056
    %v9764 = vpop.f32.mrf.mxu0
    %v9765 = vadd.f32 %v3439, %v9764
    %v9766 = vpop.f32.mrf.mxu0
    %v9767 = vadd.f32 %v3439, %v9766
    %9768 = vmatmul.bf16.gmra.mxu0 %v9057
    %v9769 = vpop.f32.mrf.mxu0
    %v9770 = vadd.f32 %v3439, %v9769
    %v9771 = vpop.f32.mrf.mxu0
    %v9772 = vadd.f32 %v3439, %v9771
    %9773 = vmatmul.bf16.gmra.mxu0 %v9058
    %v9774 = vpop.f32.mrf.mxu0
    %v9775 = vadd.f32 %v3439, %v9774
    %v9776 = vpop.f32.mrf.mxu0
    %v9777 = vadd.f32 %v3439, %v9776
    %9778 = vmatmul.bf16.gmra.mxu0 %v9059
    %v9779 = vpop.f32.mrf.mxu0
    %v9780 = vadd.f32 %v3439, %v9779
    %v9781 = vpop.f32.mrf.mxu0
    %v9782 = vadd.f32 %v3439, %v9781
    %9783 = vmatmul.bf16.gmra.mxu0 %v9060
    %v9784 = vpop.f32.mrf.mxu0
    %v9785 = vadd.f32 %v3439, %v9784
    %v9786 = vpop.f32.mrf.mxu0
    %v9787 = vadd.f32 %v3439, %v9786
    %9788 = vmatmul.bf16.gmra.mxu0 %v9061
    %v9789 = vpop.f32.mrf.mxu0
    %v9790 = vadd.f32 %v3439, %v9789
    %v9791 = vpop.f32.mrf.mxu0
    %v9792 = vadd.f32 %v3439, %v9791
    %9793 = vmatmul.bf16.gmra.mxu0 %v9062
    %v9794 = vpop.f32.mrf.mxu0
    %v9795 = vadd.f32 %v3439, %v9794
    %v9796 = vpop.f32.mrf.mxu0
    %v9797 = vadd.f32 %v3439, %v9796
    %9798 = vmatmul.bf16.gmra.mxu0 %v9063
    %v9799 = vpop.f32.mrf.mxu0
    %v9800 = vadd.f32 %v3439, %v9799
    %v9801 = vpop.f32.mrf.mxu0
    %v9802 = vadd.f32 %v3439, %v9801
    %9803 = vmatmul.bf16.gmra.mxu0 %v9064
    %v9804 = vpop.f32.mrf.mxu0
    %v9805 = vadd.f32 %v3439, %v9804
    %v9806 = vpop.f32.mrf.mxu0
    %v9807 = vadd.f32 %v3439, %v9806
    %9808 = vmatmul.bf16.gmra.mxu0 %v9065
    %v9809 = vpop.f32.mrf.mxu0
    %v9810 = vadd.f32 %v3439, %v9809
    %v9811 = vpop.f32.mrf.mxu0
    %v9812 = vadd.f32 %v3439, %v9811
    %9813 = vmatmul.bf16.gmra.mxu0 %v9066
    %v9814 = vpop.f32.mrf.mxu0
    %v9815 = vadd.f32 %v3439, %v9814
    %v9816 = vpop.f32.mrf.mxu0
    %v9817 = vadd.f32 %v3439, %v9816
    %9818 = vmatmul.bf16.gmra.mxu0 %v9067
    %v9819 = vpop.f32.mrf.mxu0
    %v9820 = vadd.f32 %v3439, %v9819
    %v9821 = vpop.f32.mrf.mxu0
    %v9822 = vadd.f32 %v3439, %v9821
    %9823 = vmatmul.bf16.gmra.mxu0 %v9068
    %v9824 = vpop.f32.mrf.mxu0
    %v9825 = vadd.f32 %v3439, %v9824
    %v9826 = vpop.f32.mrf.mxu0
    %v9827 = vadd.f32 %v3439, %v9826
    %9828 = vmatmul.bf16.gmra.mxu0 %v9069
    %v9829 = vpop.f32.mrf.mxu0
    %v9830 = vadd.f32 %v3439, %v9829
    %v9831 = vpop.f32.mrf.mxu0
    %v9832 = vadd.f32 %v3439, %v9831
    %9833 = vmatmul.bf16.gmra.mxu0 %v9070
    %v9834 = vpop.f32.mrf.mxu0
    %v9835 = vadd.f32 %v3439, %v9834
    %v9836 = vpop.f32.mrf.mxu0
    %v9837 = vadd.f32 %v3439, %v9836
    %9838 = vmatmul.bf16.gmra.mxu0 %v9071
    %v9839 = vpop.f32.mrf.mxu0
    %v9840 = vadd.f32 %v3439, %v9839
    %v9841 = vpop.f32.mrf.mxu0
    %v9842 = vadd.f32 %v3439, %v9841
    %9843 = vmatmul.bf16.gmra.mxu0 %v9072
    %v9844 = vpop.f32.mrf.mxu0
    %v9845 = vadd.f32 %v3439, %v9844
    %v9846 = vpop.f32.mrf.mxu0
    %v9847 = vadd.f32 %v3439, %v9846
    %9848 = vmatmul.bf16.gmra.mxu0 %v9073
    %v9849 = vpop.f32.mrf.mxu0
    %v9850 = vadd.f32 %v3439, %v9849
    %v9851 = vpop.f32.mrf.mxu0
    %v9852 = vadd.f32 %v3439, %v9851
    %9853 = vmatmul.bf16.gmra.mxu0 %v9074
    %v9854 = vpop.f32.mrf.mxu0
    %v9855 = vadd.f32 %v3439, %v9854
    %v9856 = vpop.f32.mrf.mxu0
    %v9857 = vadd.f32 %v3439, %v9856
    %9858 = vmatmul.bf16.gmra.mxu0 %v9075
    %v9859 = vpop.f32.mrf.mxu0
    %v9860 = vadd.f32 %v3439, %v9859
    %v9861 = vpop.f32.mrf.mxu0
    %v9862 = vadd.f32 %v3439, %v9861
    %9863 = vmatmul.bf16.gmra.mxu0 %v9076
    %v9864 = vpop.f32.mrf.mxu0
    %v9865 = vadd.f32 %v3439, %v9864
    %v9866 = vpop.f32.mrf.mxu0
    %v9867 = vadd.f32 %v3439, %v9866
    %9868 = vmatmul.bf16.gmra.mxu0 %v9077
    %v9869 = vpop.f32.mrf.mxu0
    %v9870 = vadd.f32 %v3439, %v9869
    %v9871 = vpop.f32.mrf.mxu0
    %v9872 = vadd.f32 %v3439, %v9871
    %9873 = vmatmul.bf16.gmra.mxu0 %v9078
    %v9874 = vpop.f32.mrf.mxu0
    %v9875 = vadd.f32 %v3439, %v9874
    %v9876 = vpop.f32.mrf.mxu0
    %v9877 = vadd.f32 %v3439, %v9876
    %9878 = vmatmul.bf16.gmra.mxu0 %v9079
    %v9879 = vpop.f32.mrf.mxu0
    %v9880 = vadd.f32 %v3439, %v9879
    %v9881 = vpop.f32.mrf.mxu0
    %v9882 = vadd.f32 %v3439, %v9881
    %9883 = vmatmul.bf16.gmra.mxu0 %v9080
    %v9884 = vpop.f32.mrf.mxu0
    %v9885 = vadd.f32 %v3439, %v9884
    %v9886 = vpop.f32.mrf.mxu0
    %v9887 = vadd.f32 %v3439, %v9886
    %9888 = vmatmul.bf16.gmra.mxu0 %v9081
    %v9889 = vpop.f32.mrf.mxu0
    %v9890 = vadd.f32 %v3439, %v9889
    %v9891 = vpop.f32.mrf.mxu0
    %v9892 = vadd.f32 %v3439, %v9891
    %9893 = vmatmul.bf16.gmra.mxu0 %v9082
    %v9894 = vpop.f32.mrf.mxu0
    %v9895 = vadd.f32 %v3439, %v9894
    %v9896 = vpop.f32.mrf.mxu0
    %v9897 = vadd.f32 %v3439, %v9896
    %9898 = vmatmul.bf16.gmra.mxu0 %v9083
    %v9899 = vpop.f32.mrf.mxu0
    %v9900 = vadd.f32 %v3439, %v9899
    %v9901 = vpop.f32.mrf.mxu0
    %v9902 = vadd.f32 %v3439, %v9901
    %9903 = vmatmul.bf16.gmra.mxu0 %v9084
    %v9904 = vpop.f32.mrf.mxu0
    %v9905 = vadd.f32 %v3439, %v9904
    %v9906 = vpop.f32.mrf.mxu0
    %v9907 = vadd.f32 %v3439, %v9906
    %9908 = vmatmul.bf16.gmra.mxu0 %v9085
    %v9909 = vpop.f32.mrf.mxu0
    %v9910 = vadd.f32 %v3439, %v9909
    %v9911 = vpop.f32.mrf.mxu0
    %v9912 = vadd.f32 %v3439, %v9911
    %9913 = vmatmul.bf16.gmra.mxu0 %v9086
    %v9914 = vpop.f32.mrf.mxu0
    %v9915 = vadd.f32 %v3439, %v9914
    %v9916 = vpop.f32.mrf.mxu0
    %v9917 = vadd.f32 %v3439, %v9916
    %9918 = vmatmul.bf16.gmra.mxu0 %v9087
    %v9919 = vpop.f32.mrf.mxu0
    %v9920 = vadd.f32 %v3439, %v9919
    %v9921 = vpop.f32.mrf.mxu0
    %v9922 = vadd.f32 %v3439, %v9921
    %9923 = vmatmul.bf16.gmra.mxu0 %v9088
    %v9924 = vpop.f32.mrf.mxu0
    %v9925 = vadd.f32 %v3439, %v9924
    %v9926 = vpop.f32.mrf.mxu0
    %v9927 = vadd.f32 %v3439, %v9926
    %9928 = vmatmul.bf16.gmra.mxu0 %v9089
    %v9929 = vpop.f32.mrf.mxu0
    %v9930 = vadd.f32 %v3439, %v9929
    %v9931 = vpop.f32.mrf.mxu0
    %v9932 = vadd.f32 %v3439, %v9931
    %9933 = vmatmul.bf16.gmra.mxu0 %v9090
    %v9934 = vpop.f32.mrf.mxu0
    %v9935 = vadd.f32 %v3439, %v9934
    %v9936 = vpop.f32.mrf.mxu0
    %v9937 = vadd.f32 %v3439, %v9936
    %9938 = vmatmul.bf16.gmra.mxu0 %v9091
    %v9939 = vpop.f32.mrf.mxu0
    %v9940 = vadd.f32 %v3439, %v9939
    %v9941 = vpop.f32.mrf.mxu0
    %v9942 = vadd.f32 %v3439, %v9941
    %9943 = vmatmul.bf16.gmra.mxu0 %v9092
    %v9944 = vpop.f32.mrf.mxu0
    %v9945 = vadd.f32 %v3439, %v9944
    %v9946 = vpop.f32.mrf.mxu0
    %v9947 = vadd.f32 %v3439, %v9946
    %9948 = vmatmul.bf16.gmra.mxu0 %v9093
    %v9949 = vpop.f32.mrf.mxu0
    %v9950 = vadd.f32 %v3439, %v9949
    %v9951 = vpop.f32.mrf.mxu0
    %v9952 = vadd.f32 %v3439, %v9951
    %9953 = vmatmul.bf16.gmra.mxu0 %v9094
    %v9954 = vpop.f32.mrf.mxu0
    %v9955 = vadd.f32 %v3439, %v9954
    %v9956 = vpop.f32.mrf.mxu0
    %v9957 = vadd.f32 %v3439, %v9956
    %9958 = vmatmul.bf16.gmra.mxu0 %v9095
    %v9959 = vpop.f32.mrf.mxu0
    %v9960 = vadd.f32 %v3439, %v9959
    %v9961 = vpop.f32.mrf.mxu0
    %v9962 = vadd.f32 %v3439, %v9961
    %9963 = vmatmul.bf16.gmra.mxu0 %v9096
    %v9964 = vpop.f32.mrf.mxu0
    %v9965 = vadd.f32 %v3439, %v9964
    %v9966 = vpop.f32.mrf.mxu0
    %v9967 = vadd.f32 %v3439, %v9966
    %9968 = vmatmul.bf16.gmra.mxu0 %v9097
    %v9969 = vpop.f32.mrf.mxu0
    %v9970 = vadd.f32 %v3439, %v9969
    %v9971 = vpop.f32.mrf.mxu0
    %v9972 = vadd.f32 %v3439, %v9971
    %9973 = vdwg.mxu0
    %v9974 = vmax.f32 %v9108, 0.0
    %v9975 = vmax.f32 %v9327, 0.0
    %v9976 = vmax.f32 %v9546, 0.0
    %v9977 = vmax.f32 %v9765, 0.0
    %v9978 = vmax.f32 %v9110, 0.0
    %v9979 = vmax.f32 %v9329, 0.0
    %v9980 = vmax.f32 %v9548, 0.0
    %v9981 = vmax.f32 %v9767, 0.0
    %v9982 = vmax.f32 %v9113, 0.0
    %v9983 = vmax.f32 %v9332, 0.0
    %v9984 = vmax.f32 %v9551, 0.0
    %v9985 = vmax.f32 %v9770, 0.0
    %v9986 = vmax.f32 %v9115, 0.0
    %v9987 = vmax.f32 %v9334, 0.0
    %v9988 = vmax.f32 %v9553, 0.0
    %v9989 = vmax.f32 %v9772, 0.0
    %v9990 = vmax.f32 %v9118, 0.0
    %v9991 = vmax.f32 %v9337, 0.0
    %v9992 = vmax.f32 %v9556, 0.0
    %v9993 = vmax.f32 %v9775, 0.0
    %v9994 = vmax.f32 %v9120, 0.0
    %v9995 = vmax.f32 %v9339, 0.0
    %v9996 = vmax.f32 %v9558, 0.0
    %v9997 = vmax.f32 %v9777, 0.0
    %v9998 = vmax.f32 %v9123, 0.0
    %v9999 = vmax.f32 %v9342, 0.0
    %v10000 = vmax.f32 %v9561, 0.0
    %v10001 = vmax.f32 %v9780, 0.0
    %v10002 = vmax.f32 %v9125, 0.0
    %v10003 = vmax.f32 %v9344, 0.0
    %v10004 = vmax.f32 %v9563, 0.0
    %v10005 = vmax.f32 %v9782, 0.0
    %v10006 = vmax.f32 %v9128, 0.0
    %v10007 = vmax.f32 %v9347, 0.0
    %v10008 = vmax.f32 %v9566, 0.0
    %v10009 = vmax.f32 %v9785, 0.0
    %v10010 = vmax.f32 %v9130, 0.0
    %v10011 = vmax.f32 %v9349, 0.0
    %v10012 = vmax.f32 %v9568, 0.0
    %v10013 = vmax.f32 %v9787, 0.0
    %v10014 = vmax.f32 %v9133, 0.0
    %v10015 = vmax.f32 %v9352, 0.0
    %v10016 = vmax.f32 %v9571, 0.0
    %v10017 = vmax.f32 %v9790, 0.0
    %v10018 = vmax.f32 %v9135, 0.0
    %v10019 = vmax.f32 %v9354, 0.0
    %v10020 = vmax.f32 %v9573, 0.0
    %v10021 = vmax.f32 %v9792, 0.0
    %v10022 = vmax.f32 %v9138, 0.0
    %v10023 = vmax.f32 %v9357, 0.0
    %v10024 = vmax.f32 %v9576, 0.0
    %v10025 = vmax.f32 %v9795, 0.0
    %v10026 = vmax.f32 %v9140, 0.0
    %v10027 = vmax.f32 %v9359, 0.0
    %v10028 = vmax.f32 %v9578, 0.0
    %v10029 = vmax.f32 %v9797, 0.0
    %v10030 = vmax.f32 %v9143, 0.0
    %v10031 = vmax.f32 %v9362, 0.0
    %v10032 = vmax.f32 %v9581, 0.0
    %v10033 = vmax.f32 %v9800, 0.0
    %v10034 = vmax.f32 %v9145, 0.0
    %v10035 = vmax.f32 %v9364, 0.0
    %v10036 = vmax.f32 %v9583, 0.0
    %v10037 = vmax.f32 %v9802, 0.0
    %v10038 = vmax.f32 %v9148, 0.0
    %v10039 = vmax.f32 %v9367, 0.0
    %v10040 = vmax.f32 %v9586, 0.0
    %v10041 = vmax.f32 %v9805, 0.0
    %v10042 = vmax.f32 %v9150, 0.0
    %v10043 = vmax.f32 %v9369, 0.0
    %v10044 = vmax.f32 %v9588, 0.0
    %v10045 = vmax.f32 %v9807, 0.0
    %v10046 = vmax.f32 %v9153, 0.0
    %v10047 = vmax.f32 %v9372, 0.0
    %v10048 = vmax.f32 %v9591, 0.0
    %v10049 = vmax.f32 %v9810, 0.0
    %v10050 = vmax.f32 %v9155, 0.0
    %v10051 = vmax.f32 %v9374, 0.0
    %v10052 = vmax.f32 %v9593, 0.0
    %v10053 = vmax.f32 %v9812, 0.0
    %v10054 = vmax.f32 %v9158, 0.0
    %v10055 = vmax.f32 %v9377, 0.0
    %v10056 = vmax.f32 %v9596, 0.0
    %v10057 = vmax.f32 %v9815, 0.0
    %v10058 = vmax.f32 %v9160, 0.0
    %v10059 = vmax.f32 %v9379, 0.0
    %v10060 = vmax.f32 %v9598, 0.0
    %v10061 = vmax.f32 %v9817, 0.0
    %v10062 = vmax.f32 %v9163, 0.0
    %v10063 = vmax.f32 %v9382, 0.0
    %v10064 = vmax.f32 %v9601, 0.0
    %v10065 = vmax.f32 %v9820, 0.0
    %v10066 = vmax.f32 %v9165, 0.0
    %v10067 = vmax.f32 %v9384, 0.0
    %v10068 = vmax.f32 %v9603, 0.0
    %v10069 = vmax.f32 %v9822, 0.0
    %v10070 = vmax.f32 %v9168, 0.0
    %v10071 = vmax.f32 %v9387, 0.0
    %v10072 = vmax.f32 %v9606, 0.0
    %v10073 = vmax.f32 %v9825, 0.0
    %v10074 = vmax.f32 %v9170, 0.0
    %v10075 = vmax.f32 %v9389, 0.0
    %v10076 = vmax.f32 %v9608, 0.0
    %v10077 = vmax.f32 %v9827, 0.0
    %v10078 = vmax.f32 %v9173, 0.0
    %v10079 = vmax.f32 %v9392, 0.0
    %v10080 = vmax.f32 %v9611, 0.0
    %v10081 = vmax.f32 %v9830, 0.0
    %v10082 = vmax.f32 %v9175, 0.0
    %v10083 = vmax.f32 %v9394, 0.0
    %v10084 = vmax.f32 %v9613, 0.0
    %v10085 = vmax.f32 %v9832, 0.0
    %v10086 = vmax.f32 %v9178, 0.0
    %v10087 = vmax.f32 %v9397, 0.0
    %v10088 = vmax.f32 %v9616, 0.0
    %v10089 = vmax.f32 %v9835, 0.0
    %v10090 = vmax.f32 %v9180, 0.0
    %v10091 = vmax.f32 %v9399, 0.0
    %v10092 = vmax.f32 %v9618, 0.0
    %v10093 = vmax.f32 %v9837, 0.0
    %v10094 = vmax.f32 %v9183, 0.0
    %v10095 = vmax.f32 %v9402, 0.0
    %v10096 = vmax.f32 %v9621, 0.0
    %v10097 = vmax.f32 %v9840, 0.0
    %v10098 = vmax.f32 %v9185, 0.0
    %v10099 = vmax.f32 %v9404, 0.0
    %v10100 = vmax.f32 %v9623, 0.0
    %v10101 = vmax.f32 %v9842, 0.0
    %v10102 = vmax.f32 %v9188, 0.0
    %v10103 = vmax.f32 %v9407, 0.0
    %v10104 = vmax.f32 %v9626, 0.0
    %v10105 = vmax.f32 %v9845, 0.0
    %v10106 = vmax.f32 %v9190, 0.0
    %v10107 = vmax.f32 %v9409, 0.0
    %v10108 = vmax.f32 %v9628, 0.0
    %v10109 = vmax.f32 %v9847, 0.0
    %v10110 = vmax.f32 %v9193, 0.0
    %v10111 = vmax.f32 %v9412, 0.0
    %v10112 = vmax.f32 %v9631, 0.0
    %v10113 = vmax.f32 %v9850, 0.0
    %v10114 = vmax.f32 %v9195, 0.0
    %v10115 = vmax.f32 %v9414, 0.0
    %v10116 = vmax.f32 %v9633, 0.0
    %v10117 = vmax.f32 %v9852, 0.0
    %v10118 = vmax.f32 %v9198, 0.0
    %v10119 = vmax.f32 %v9417, 0.0
    %v10120 = vmax.f32 %v9636, 0.0
    %v10121 = vmax.f32 %v9855, 0.0
    %v10122 = vmax.f32 %v9200, 0.0
    %v10123 = vmax.f32 %v9419, 0.0
    %v10124 = vmax.f32 %v9638, 0.0
    %v10125 = vmax.f32 %v9857, 0.0
    %v10126 = vmax.f32 %v9203, 0.0
    %v10127 = vmax.f32 %v9422, 0.0
    %v10128 = vmax.f32 %v9641, 0.0
    %v10129 = vmax.f32 %v9860, 0.0
    %v10130 = vmax.f32 %v9205, 0.0
    %v10131 = vmax.f32 %v9424, 0.0
    %v10132 = vmax.f32 %v9643, 0.0
    %v10133 = vmax.f32 %v9862, 0.0
    %v10134 = vmax.f32 %v9208, 0.0
    %v10135 = vmax.f32 %v9427, 0.0
    %v10136 = vmax.f32 %v9646, 0.0
    %v10137 = vmax.f32 %v9865, 0.0
    %v10138 = vmax.f32 %v9210, 0.0
    %v10139 = vmax.f32 %v9429, 0.0
    %v10140 = vmax.f32 %v9648, 0.0
    %v10141 = vmax.f32 %v9867, 0.0
    %v10142 = vmax.f32 %v9213, 0.0
    %v10143 = vmax.f32 %v9432, 0.0
    %v10144 = vmax.f32 %v9651, 0.0
    %v10145 = vmax.f32 %v9870, 0.0
    %v10146 = vmax.f32 %v9215, 0.0
    %v10147 = vmax.f32 %v9434, 0.0
    %v10148 = vmax.f32 %v9653, 0.0
    %v10149 = vmax.f32 %v9872, 0.0
    %v10150 = vmax.f32 %v9218, 0.0
    %v10151 = vmax.f32 %v9437, 0.0
    %v10152 = vmax.f32 %v9656, 0.0
    %v10153 = vmax.f32 %v9875, 0.0
    %v10154 = vmax.f32 %v9220, 0.0
    %v10155 = vmax.f32 %v9439, 0.0
    %v10156 = vmax.f32 %v9658, 0.0
    %v10157 = vmax.f32 %v9877, 0.0
    %v10158 = vmax.f32 %v9223, 0.0
    %v10159 = vmax.f32 %v9442, 0.0
    %v10160 = vmax.f32 %v9661, 0.0
    %v10161 = vmax.f32 %v9880, 0.0
    %v10162 = vmax.f32 %v9225, 0.0
    %v10163 = vmax.f32 %v9444, 0.0
    %v10164 = vmax.f32 %v9663, 0.0
    %v10165 = vmax.f32 %v9882, 0.0
    %v10166 = vmax.f32 %v9228, 0.0
    %v10167 = vmax.f32 %v9447, 0.0
    %v10168 = vmax.f32 %v9666, 0.0
    %v10169 = vmax.f32 %v9885, 0.0
    %v10170 = vmax.f32 %v9230, 0.0
    %v10171 = vmax.f32 %v9449, 0.0
    %v10172 = vmax.f32 %v9668, 0.0
    %v10173 = vmax.f32 %v9887, 0.0
    %v10174 = vmax.f32 %v9233, 0.0
    %v10175 = vmax.f32 %v9452, 0.0
    %v10176 = vmax.f32 %v9671, 0.0
    %v10177 = vmax.f32 %v9890, 0.0
    %v10178 = vmax.f32 %v9235, 0.0
    %v10179 = vmax.f32 %v9454, 0.0
    %v10180 = vmax.f32 %v9673, 0.0
    %v10181 = vmax.f32 %v9892, 0.0
    %v10182 = vmax.f32 %v9238, 0.0
    %v10183 = vmax.f32 %v9457, 0.0
    %v10184 = vmax.f32 %v9676, 0.0
    %v10185 = vmax.f32 %v9895, 0.0
    %v10186 = vmax.f32 %v9240, 0.0
    %v10187 = vmax.f32 %v9459, 0.0
    %v10188 = vmax.f32 %v9678, 0.0
    %v10189 = vmax.f32 %v9897, 0.0
    %v10190 = vmax.f32 %v9243, 0.0
    %v10191 = vmax.f32 %v9462, 0.0
    %v10192 = vmax.f32 %v9681, 0.0
    %v10193 = vmax.f32 %v9900, 0.0
    %v10194 = vmax.f32 %v9245, 0.0
    %v10195 = vmax.f32 %v9464, 0.0
    %v10196 = vmax.f32 %v9683, 0.0
    %v10197 = vmax.f32 %v9902, 0.0
    %v10198 = vmax.f32 %v9248, 0.0
    %v10199 = vmax.f32 %v9467, 0.0
    %v10200 = vmax.f32 %v9686, 0.0
    %v10201 = vmax.f32 %v9905, 0.0
    %v10202 = vmax.f32 %v9250, 0.0
    %v10203 = vmax.f32 %v9469, 0.0
    %v10204 = vmax.f32 %v9688, 0.0
    %v10205 = vmax.f32 %v9907, 0.0
    %v10206 = vmax.f32 %v9253, 0.0
    %v10207 = vmax.f32 %v9472, 0.0
    %v10208 = vmax.f32 %v9691, 0.0
    %v10209 = vmax.f32 %v9910, 0.0
    %v10210 = vmax.f32 %v9255, 0.0
    %v10211 = vmax.f32 %v9474, 0.0
    %v10212 = vmax.f32 %v9693, 0.0
    %v10213 = vmax.f32 %v9912, 0.0
    %v10214 = vmax.f32 %v9258, 0.0
    %v10215 = vmax.f32 %v9477, 0.0
    %v10216 = vmax.f32 %v9696, 0.0
    %v10217 = vmax.f32 %v9915, 0.0
    %v10218 = vmax.f32 %v9260, 0.0
    %v10219 = vmax.f32 %v9479, 0.0
    %v10220 = vmax.f32 %v9698, 0.0
    %v10221 = vmax.f32 %v9917, 0.0
    %v10222 = vmax.f32 %v9263, 0.0
    %v10223 = vmax.f32 %v9482, 0.0
    %v10224 = vmax.f32 %v9701, 0.0
    %v10225 = vmax.f32 %v9920, 0.0
    %v10226 = vmax.f32 %v9265, 0.0
    %v10227 = vmax.f32 %v9484, 0.0
    %v10228 = vmax.f32 %v9703, 0.0
    %v10229 = vmax.f32 %v9922, 0.0
    %v10230 = vmax.f32 %v9268, 0.0
    %v10231 = vmax.f32 %v9487, 0.0
    %v10232 = vmax.f32 %v9706, 0.0
    %v10233 = vmax.f32 %v9925, 0.0
    %v10234 = vmax.f32 %v9270, 0.0
    %v10235 = vmax.f32 %v9489, 0.0
    %v10236 = vmax.f32 %v9708, 0.0
    %v10237 = vmax.f32 %v9927, 0.0
    %v10238 = vmax.f32 %v9273, 0.0
    %v10239 = vmax.f32 %v9492, 0.0
    %v10240 = vmax.f32 %v9711, 0.0
    %v10241 = vmax.f32 %v9930, 0.0
    %v10242 = vmax.f32 %v9275, 0.0
    %v10243 = vmax.f32 %v9494, 0.0
    %v10244 = vmax.f32 %v9713, 0.0
    %v10245 = vmax.f32 %v9932, 0.0
    %v10246 = vmax.f32 %v9278, 0.0
    %v10247 = vmax.f32 %v9497, 0.0
    %v10248 = vmax.f32 %v9716, 0.0
    %v10249 = vmax.f32 %v9935, 0.0
    %v10250 = vmax.f32 %v9280, 0.0
    %v10251 = vmax.f32 %v9499, 0.0
    %v10252 = vmax.f32 %v9718, 0.0
    %v10253 = vmax.f32 %v9937, 0.0
    %v10254 = vmax.f32 %v9283, 0.0
    %v10255 = vmax.f32 %v9502, 0.0
    %v10256 = vmax.f32 %v9721, 0.0
    %v10257 = vmax.f32 %v9940, 0.0
    %v10258 = vmax.f32 %v9285, 0.0
    %v10259 = vmax.f32 %v9504, 0.0
    %v10260 = vmax.f32 %v9723, 0.0
    %v10261 = vmax.f32 %v9942, 0.0
    %v10262 = vmax.f32 %v9288, 0.0
    %v10263 = vmax.f32 %v9507, 0.0
    %v10264 = vmax.f32 %v9726, 0.0
    %v10265 = vmax.f32 %v9945, 0.0
    %v10266 = vmax.f32 %v9290, 0.0
    %v10267 = vmax.f32 %v9509, 0.0
    %v10268 = vmax.f32 %v9728, 0.0
    %v10269 = vmax.f32 %v9947, 0.0
    %v10270 = vmax.f32 %v9293, 0.0
    %v10271 = vmax.f32 %v9512, 0.0
    %v10272 = vmax.f32 %v9731, 0.0
    %v10273 = vmax.f32 %v9950, 0.0
    %v10274 = vmax.f32 %v9295, 0.0
    %v10275 = vmax.f32 %v9514, 0.0
    %v10276 = vmax.f32 %v9733, 0.0
    %v10277 = vmax.f32 %v9952, 0.0
    %v10278 = vmax.f32 %v9298, 0.0
    %v10279 = vmax.f32 %v9517, 0.0
    %v10280 = vmax.f32 %v9736, 0.0
    %v10281 = vmax.f32 %v9955, 0.0
    %v10282 = vmax.f32 %v9300, 0.0
    %v10283 = vmax.f32 %v9519, 0.0
    %v10284 = vmax.f32 %v9738, 0.0
    %v10285 = vmax.f32 %v9957, 0.0
    %v10286 = vmax.f32 %v9303, 0.0
    %v10287 = vmax.f32 %v9522, 0.0
    %v10288 = vmax.f32 %v9741, 0.0
    %v10289 = vmax.f32 %v9960, 0.0
    %v10290 = vmax.f32 %v9305, 0.0
    %v10291 = vmax.f32 %v9524, 0.0
    %v10292 = vmax.f32 %v9743, 0.0
    %v10293 = vmax.f32 %v9962, 0.0
    %v10294 = vmax.f32 %v9308, 0.0
    %v10295 = vmax.f32 %v9527, 0.0
    %v10296 = vmax.f32 %v9746, 0.0
    %v10297 = vmax.f32 %v9965, 0.0
    %v10298 = vmax.f32 %v9310, 0.0
    %v10299 = vmax.f32 %v9529, 0.0
    %v10300 = vmax.f32 %v9748, 0.0
    %v10301 = vmax.f32 %v9967, 0.0
    %v10302 = vmax.f32 %v9313, 0.0
    %v10303 = vmax.f32 %v9532, 0.0
    %v10304 = vmax.f32 %v9751, 0.0
    %v10305 = vmax.f32 %v9970, 0.0
    %v10306 = vmax.f32 %v9315, 0.0
    %v10307 = vmax.f32 %v9534, 0.0
    %v10308 = vmax.f32 %v9753, 0.0
    %v10309 = vmax.f32 %v9972, 0.0
    %v10310 = vpack.c.bf16 %v9978, %v9974
    %v10311 = vpack.c.bf16 %v9979, %v9975
    %v10312 = vpack.c.bf16 %v9980, %v9976
    %v10313 = vpack.c.bf16 %v9981, %v9977
    %v10314 = vpack.c.bf16 %v9986, %v9982
    %v10315 = vpack.c.bf16 %v9987, %v9983
    %v10316 = vpack.c.bf16 %v9988, %v9984
    %v10317 = vpack.c.bf16 %v9989, %v9985
    %v10318 = vpack.c.bf16 %v9994, %v9990
    %v10319 = vpack.c.bf16 %v9995, %v9991
    %v10320 = vpack.c.bf16 %v9996, %v9992
    %v10321 = vpack.c.bf16 %v9997, %v9993
    %v10322 = vpack.c.bf16 %v10002, %v9998
    %v10323 = vpack.c.bf16 %v10003, %v9999
    %v10324 = vpack.c.bf16 %v10004, %v10000
    %v10325 = vpack.c.bf16 %v10005, %v10001
    %v10326 = vpack.c.bf16 %v10010, %v10006
    %v10327 = vpack.c.bf16 %v10011, %v10007
    %v10328 = vpack.c.bf16 %v10012, %v10008
    %v10329 = vpack.c.bf16 %v10013, %v10009
    %v10330 = vpack.c.bf16 %v10018, %v10014
    %v10331 = vpack.c.bf16 %v10019, %v10015
    %v10332 = vpack.c.bf16 %v10020, %v10016
    %v10333 = vpack.c.bf16 %v10021, %v10017
    %v10334 = vpack.c.bf16 %v10026, %v10022
    %v10335 = vpack.c.bf16 %v10027, %v10023
    %v10336 = vpack.c.bf16 %v10028, %v10024
    %v10337 = vpack.c.bf16 %v10029, %v10025
    %v10338 = vpack.c.bf16 %v10034, %v10030
    %v10339 = vpack.c.bf16 %v10035, %v10031
    %v10340 = vpack.c.bf16 %v10036, %v10032
    %v10341 = vpack.c.bf16 %v10037, %v10033
    %v10342 = vpack.c.bf16 %v10042, %v10038
    %v10343 = vpack.c.bf16 %v10043, %v10039
    %v10344 = vpack.c.bf16 %v10044, %v10040
    %v10345 = vpack.c.bf16 %v10045, %v10041
    %v10346 = vpack.c.bf16 %v10050, %v10046
    %v10347 = vpack.c.bf16 %v10051, %v10047
    %v10348 = vpack.c.bf16 %v10052, %v10048
    %v10349 = vpack.c.bf16 %v10053, %v10049
    %v10350 = vpack.c.bf16 %v10058, %v10054
    %v10351 = vpack.c.bf16 %v10059, %v10055
    %v10352 = vpack.c.bf16 %v10060, %v10056
    %v10353 = vpack.c.bf16 %v10061, %v10057
    %v10354 = vpack.c.bf16 %v10066, %v10062
    %v10355 = vpack.c.bf16 %v10067, %v10063
    %v10356 = vpack.c.bf16 %v10068, %v10064
    %v10357 = vpack.c.bf16 %v10069, %v10065
    %v10358 = vpack.c.bf16 %v10074, %v10070
    %v10359 = vpack.c.bf16 %v10075, %v10071
    %v10360 = vpack.c.bf16 %v10076, %v10072
    %v10361 = vpack.c.bf16 %v10077, %v10073
    %v10362 = vpack.c.bf16 %v10082, %v10078
    %v10363 = vpack.c.bf16 %v10083, %v10079
    %v10364 = vpack.c.bf16 %v10084, %v10080
    %v10365 = vpack.c.bf16 %v10085, %v10081
    %v10366 = vpack.c.bf16 %v10090, %v10086
    %v10367 = vpack.c.bf16 %v10091, %v10087
    %v10368 = vpack.c.bf16 %v10092, %v10088
    %v10369 = vpack.c.bf16 %v10093, %v10089
    %v10370 = vpack.c.bf16 %v10098, %v10094
    %v10371 = vpack.c.bf16 %v10099, %v10095
    %v10372 = vpack.c.bf16 %v10100, %v10096
    %v10373 = vpack.c.bf16 %v10101, %v10097
    %v10374 = vpack.c.bf16 %v10106, %v10102
    %v10375 = vpack.c.bf16 %v10107, %v10103
    %v10376 = vpack.c.bf16 %v10108, %v10104
    %v10377 = vpack.c.bf16 %v10109, %v10105
    %v10378 = vpack.c.bf16 %v10114, %v10110
    %v10379 = vpack.c.bf16 %v10115, %v10111
    %v10380 = vpack.c.bf16 %v10116, %v10112
    %v10381 = vpack.c.bf16 %v10117, %v10113
    %v10382 = vpack.c.bf16 %v10122, %v10118
    %v10383 = vpack.c.bf16 %v10123, %v10119
    %v10384 = vpack.c.bf16 %v10124, %v10120
    %v10385 = vpack.c.bf16 %v10125, %v10121
    %v10386 = vpack.c.bf16 %v10130, %v10126
    %v10387 = vpack.c.bf16 %v10131, %v10127
    %v10388 = vpack.c.bf16 %v10132, %v10128
    %v10389 = vpack.c.bf16 %v10133, %v10129
    %v10390 = vpack.c.bf16 %v10138, %v10134
    %v10391 = vpack.c.bf16 %v10139, %v10135
    %v10392 = vpack.c.bf16 %v10140, %v10136
    %v10393 = vpack.c.bf16 %v10141, %v10137
    %v10394 = vpack.c.bf16 %v10146, %v10142
    %v10395 = vpack.c.bf16 %v10147, %v10143
    %v10396 = vpack.c.bf16 %v10148, %v10144
    %v10397 = vpack.c.bf16 %v10149, %v10145
    %v10398 = vpack.c.bf16 %v10154, %v10150
    %v10399 = vpack.c.bf16 %v10155, %v10151
    %v10400 = vpack.c.bf16 %v10156, %v10152
    %v10401 = vpack.c.bf16 %v10157, %v10153
    %v10402 = vpack.c.bf16 %v10162, %v10158
    %v10403 = vpack.c.bf16 %v10163, %v10159
    %v10404 = vpack.c.bf16 %v10164, %v10160
    %v10405 = vpack.c.bf16 %v10165, %v10161
    %v10406 = vpack.c.bf16 %v10170, %v10166
    %v10407 = vpack.c.bf16 %v10171, %v10167
    %v10408 = vpack.c.bf16 %v10172, %v10168
    %v10409 = vpack.c.bf16 %v10173, %v10169
    %v10410 = vpack.c.bf16 %v10178, %v10174
    %v10411 = vpack.c.bf16 %v10179, %v10175
    %v10412 = vpack.c.bf16 %v10180, %v10176
    %v10413 = vpack.c.bf16 %v10181, %v10177
    %v10414 = vpack.c.bf16 %v10186, %v10182
    %v10415 = vpack.c.bf16 %v10187, %v10183
    %v10416 = vpack.c.bf16 %v10188, %v10184
    %v10417 = vpack.c.bf16 %v10189, %v10185
    %v10418 = vpack.c.bf16 %v10194, %v10190
    %v10419 = vpack.c.bf16 %v10195, %v10191
    %v10420 = vpack.c.bf16 %v10196, %v10192
    %v10421 = vpack.c.bf16 %v10197, %v10193
    %v10422 = vpack.c.bf16 %v10202, %v10198
    %v10423 = vpack.c.bf16 %v10203, %v10199
    %v10424 = vpack.c.bf16 %v10204, %v10200
    %v10425 = vpack.c.bf16 %v10205, %v10201
    %v10426 = vpack.c.bf16 %v10210, %v10206
    %v10427 = vpack.c.bf16 %v10211, %v10207
    %v10428 = vpack.c.bf16 %v10212, %v10208
    %v10429 = vpack.c.bf16 %v10213, %v10209
    %v10430 = vpack.c.bf16 %v10218, %v10214
    %v10431 = vpack.c.bf16 %v10219, %v10215
    %v10432 = vpack.c.bf16 %v10220, %v10216
    %v10433 = vpack.c.bf16 %v10221, %v10217
    %v10434 = vpack.c.bf16 %v10226, %v10222
    %v10435 = vpack.c.bf16 %v10227, %v10223
    %v10436 = vpack.c.bf16 %v10228, %v10224
    %v10437 = vpack.c.bf16 %v10229, %v10225
    %v10438 = vpack.c.bf16 %v10234, %v10230
    %v10439 = vpack.c.bf16 %v10235, %v10231
    %v10440 = vpack.c.bf16 %v10236, %v10232
    %v10441 = vpack.c.bf16 %v10237, %v10233
    %v10442 = vpack.c.bf16 %v10242, %v10238
    %v10443 = vpack.c.bf16 %v10243, %v10239
    %v10444 = vpack.c.bf16 %v10244, %v10240
    %v10445 = vpack.c.bf16 %v10245, %v10241
    %v10446 = vpack.c.bf16 %v10250, %v10246
    %v10447 = vpack.c.bf16 %v10251, %v10247
    %v10448 = vpack.c.bf16 %v10252, %v10248
    %v10449 = vpack.c.bf16 %v10253, %v10249
    %v10450 = vpack.c.bf16 %v10258, %v10254
    %v10451 = vpack.c.bf16 %v10259, %v10255
    %v10452 = vpack.c.bf16 %v10260, %v10256
    %v10453 = vpack.c.bf16 %v10261, %v10257
    %v10454 = vpack.c.bf16 %v10266, %v10262
    %v10455 = vpack.c.bf16 %v10267, %v10263
    %v10456 = vpack.c.bf16 %v10268, %v10264
    %v10457 = vpack.c.bf16 %v10269, %v10265
    %v10458 = vpack.c.bf16 %v10274, %v10270
    %v10459 = vpack.c.bf16 %v10275, %v10271
    %v10460 = vpack.c.bf16 %v10276, %v10272
    %v10461 = vpack.c.bf16 %v10277, %v10273
    %v10462 = vpack.c.bf16 %v10282, %v10278
    %v10463 = vpack.c.bf16 %v10283, %v10279
    %v10464 = vpack.c.bf16 %v10284, %v10280
    %v10465 = vpack.c.bf16 %v10285, %v10281
    %v10466 = vpack.c.bf16 %v10290, %v10286
    %v10467 = vpack.c.bf16 %v10291, %v10287
    %v10468 = vpack.c.bf16 %v10292, %v10288
    %v10469 = vpack.c.bf16 %v10293, %v10289
    %v10470 = vpack.c.bf16 %v10298, %v10294
    %v10471 = vpack.c.bf16 %v10299, %v10295
    %v10472 = vpack.c.bf16 %v10300, %v10296
    %v10473 = vpack.c.bf16 %v10301, %v10297
    %v10474 = vpack.c.bf16 %v10306, %v10302
    %v10475 = vpack.c.bf16 %v10307, %v10303
    %v10476 = vpack.c.bf16 %v10308, %v10304
    %v10477 = vpack.c.bf16 %v10309, %v10305
    %10478 = vst [vmem:[#allocation1] ss:$9 sm:$0xff] %v214
    %v10479 = vld [vmem:[#allocation1] sm:$0xff]
    %v10480 = vld [vmem:[#allocation1 + $0x9] sm:$0xff]
    %v10481 = vld [vmem:[#allocation1 + $0x12] sm:$0xff]
    %v10482 = vld [vmem:[#allocation1 + $0x1b] sm:$0xff]
    %v10483 = vld [vmem:[#allocation1 + $0x24] sm:$0xff]
    %v10484 = vld [vmem:[#allocation1 + $0x2d] sm:$0xff]
    %v10490 = vsel %vm4997, %v10484, 0
    %10492 = vmatpush.bf16.msra.mxu0 %v10338
    %10493 = vmatpush.bf16.msra.mxu0 %v10334
    %10494 = vmatpush.bf16.msra.mxu0 %v10330
    %10495 = vmatpush.bf16.msra.mxu0 %v10326
    %10496 = vmatpush.bf16.msra.mxu0 %v10322
    %10497 = vmatpush.bf16.msra.mxu0 %v10318
    %10498 = vmatpush.bf16.msra.mxu0 %v10314
    %10499 = vmatpush.bf16.msra.mxu0 %v10310
    %10500 = vmatmul.bf16.gmra.mxu0 %v10479
    %v10501 = vpop.f32.mrf.mxu0
    %v10502 = vadd.f32 0.0, %v10501
    %v10503 = vpop.f32.mrf.mxu0
    %10504 = vdwg.mxu0
    %10505 = vmatpush.bf16.msra.mxu0 %v10370
    %10506 = vmatpush.bf16.msra.mxu0 %v10366
    %10507 = vmatpush.bf16.msra.mxu0 %v10362
    %10508 = vmatpush.bf16.msra.mxu0 %v10358
    %10509 = vmatpush.bf16.msra.mxu0 %v10354
    %10510 = vmatpush.bf16.msra.mxu0 %v10350
    %10511 = vmatpush.bf16.msra.mxu0 %v10346
    %10512 = vmatpush.bf16.msra.mxu0 %v10342
    %10513 = vmatmul.bf16.gmra.mxu0 %v10480
    %v10514 = vpop.f32.mrf.mxu0
    %v10515 = vadd.f32 %v10502, %v10514
    %v10516 = vpop.f32.mrf.mxu0
    %10517 = vdwg.mxu0
    %10518 = vmatpush.bf16.msra.mxu0 %v10402
    %10519 = vmatpush.bf16.msra.mxu0 %v10398
    %10520 = vmatpush.bf16.msra.mxu0 %v10394
    %10521 = vmatpush.bf16.msra.mxu0 %v10390
    %10522 = vmatpush.bf16.msra.mxu0 %v10386
    %10523 = vmatpush.bf16.msra.mxu0 %v10382
    %10524 = vmatpush.bf16.msra.mxu0 %v10378
    %10525 = vmatpush.bf16.msra.mxu0 %v10374
    %10526 = vmatmul.bf16.gmra.mxu0 %v10481
    %v10527 = vpop.f32.mrf.mxu0
    %v10528 = vadd.f32 %v10515, %v10527
    %v10529 = vpop.f32.mrf.mxu0
    %10530 = vdwg.mxu0
    %10531 = vmatpush.bf16.msra.mxu0 %v10434
    %10532 = vmatpush.bf16.msra.mxu0 %v10430
    %10533 = vmatpush.bf16.msra.mxu0 %v10426
    %10534 = vmatpush.bf16.msra.mxu0 %v10422
    %10535 = vmatpush.bf16.msra.mxu0 %v10418
    %10536 = vmatpush.bf16.msra.mxu0 %v10414
    %10537 = vmatpush.bf16.msra.mxu0 %v10410
    %10538 = vmatpush.bf16.msra.mxu0 %v10406
    %10539 = vmatmul.bf16.gmra.mxu0 %v10482
    %v10540 = vpop.f32.mrf.mxu0
    %v10541 = vadd.f32 %v10528, %v10540
    %v10542 = vpop.f32.mrf.mxu0
    %10543 = vdwg.mxu0
    %10544 = vmatpush.bf16.msra.mxu0 %v10466
    %10545 = vmatpush.bf16.msra.mxu0 %v10462
    %10546 = vmatpush.bf16.msra.mxu0 %v10458
    %10547 = vmatpush.bf16.msra.mxu0 %v10454
    %10548 = vmatpush.bf16.msra.mxu0 %v10450
    %10549 = vmatpush.bf16.msra.mxu0 %v10446
    %10550 = vmatpush.bf16.msra.mxu0 %v10442
    %10551 = vmatpush.bf16.msra.mxu0 %v10438
    %10552 = vmatmul.bf16.gmra.mxu0 %v10483
    %v10553 = vpop.f32.mrf.mxu0
    %v10554 = vadd.f32 %v10541, %v10553
    %v10555 = vpop.f32.mrf.mxu0
    %10556 = vdwg.mxu0
    %10557 = vmatpush.bf16.msra.mxu0 0
    %10558 = vmatpush.bf16.msra.mxu0 0
    %10559 = vmatpush.bf16.msra.mxu0 0
    %10560 = vmatpush.bf16.msra.mxu0 0
    %10561 = vmatpush.bf16.msra.mxu0 0
    %10562 = vmatpush.bf16.msra.mxu0 0
    %10563 = vmatpush.bf16.msra.mxu0 %v10474
    %10564 = vmatpush.bf16.msra.mxu0 %v10470
    %10565 = vmatmul.bf16.gmra.mxu0 %v10490
    %v10566 = vpop.f32.mrf.mxu0
    %v10567 = vadd.f32 %v10554, %v10566
    %v10568 = vpop.f32.mrf.mxu0
    %10569 = vdwg.mxu0
    %10570 = vmatpush.bf16.msra.mxu0 %v10339
    %10571 = vmatpush.bf16.msra.mxu0 %v10335
    %10572 = vmatpush.bf16.msra.mxu0 %v10331
    %10573 = vmatpush.bf16.msra.mxu0 %v10327
    %10574 = vmatpush.bf16.msra.mxu0 %v10323
    %10575 = vmatpush.bf16.msra.mxu0 %v10319
    %10576 = vmatpush.bf16.msra.mxu0 %v10315
    %10577 = vmatpush.bf16.msra.mxu0 %v10311
    %10578 = vmatmul.bf16.gmra.mxu0 %v10479
    %v10579 = vpop.f32.mrf.mxu0
    %v10580 = vadd.f32 0.0, %v10579
    %v10581 = vpop.f32.mrf.mxu0
    %10582 = vdwg.mxu0
    %10583 = vmatpush.bf16.msra.mxu0 %v10371
    %10584 = vmatpush.bf16.msra.mxu0 %v10367
    %10585 = vmatpush.bf16.msra.mxu0 %v10363
    %10586 = vmatpush.bf16.msra.mxu0 %v10359
    %10587 = vmatpush.bf16.msra.mxu0 %v10355
    %10588 = vmatpush.bf16.msra.mxu0 %v10351
    %10589 = vmatpush.bf16.msra.mxu0 %v10347
    %10590 = vmatpush.bf16.msra.mxu0 %v10343
    %10591 = vmatmul.bf16.gmra.mxu0 %v10480
    %v10592 = vpop.f32.mrf.mxu0
    %v10593 = vadd.f32 %v10580, %v10592
    %v10594 = vpop.f32.mrf.mxu0
    %10595 = vdwg.mxu0
    %10596 = vmatpush.bf16.msra.mxu0 %v10403
    %10597 = vmatpush.bf16.msra.mxu0 %v10399
    %10598 = vmatpush.bf16.msra.mxu0 %v10395
    %10599 = vmatpush.bf16.msra.mxu0 %v10391
    %10600 = vmatpush.bf16.msra.mxu0 %v10387
    %10601 = vmatpush.bf16.msra.mxu0 %v10383
    %10602 = vmatpush.bf16.msra.mxu0 %v10379
    %10603 = vmatpush.bf16.msra.mxu0 %v10375
    %10604 = vmatmul.bf16.gmra.mxu0 %v10481
    %v10605 = vpop.f32.mrf.mxu0
    %v10606 = vadd.f32 %v10593, %v10605
    %v10607 = vpop.f32.mrf.mxu0
    %10608 = vdwg.mxu0
    %10609 = vmatpush.bf16.msra.mxu0 %v10435
    %10610 = vmatpush.bf16.msra.mxu0 %v10431
    %10611 = vmatpush.bf16.msra.mxu0 %v10427
    %10612 = vmatpush.bf16.msra.mxu0 %v10423
    %10613 = vmatpush.bf16.msra.mxu0 %v10419
    %10614 = vmatpush.bf16.msra.mxu0 %v10415
    %10615 = vmatpush.bf16.msra.mxu0 %v10411
    %10616 = vmatpush.bf16.msra.mxu0 %v10407
    %10617 = vmatmul.bf16.gmra.mxu0 %v10482
    %v10618 = vpop.f32.mrf.mxu0
    %v10619 = vadd.f32 %v10606, %v10618
    %v10620 = vpop.f32.mrf.mxu0
    %10621 = vdwg.mxu0
    %10622 = vmatpush.bf16.msra.mxu0 %v10467
    %10623 = vmatpush.bf16.msra.mxu0 %v10463
    %10624 = vmatpush.bf16.msra.mxu0 %v10459
    %10625 = vmatpush.bf16.msra.mxu0 %v10455
    %10626 = vmatpush.bf16.msra.mxu0 %v10451
    %10627 = vmatpush.bf16.msra.mxu0 %v10447
    %10628 = vmatpush.bf16.msra.mxu0 %v10443
    %10629 = vmatpush.bf16.msra.mxu0 %v10439
    %10630 = vmatmul.bf16.gmra.mxu0 %v10483
    %v10631 = vpop.f32.mrf.mxu0
    %v10632 = vadd.f32 %v10619, %v10631
    %v10633 = vpop.f32.mrf.mxu0
    %10634 = vdwg.mxu0
    %10635 = vmatpush.bf16.msra.mxu0 0
    %10636 = vmatpush.bf16.msra.mxu0 0
    %10637 = vmatpush.bf16.msra.mxu0 0
    %10638 = vmatpush.bf16.msra.mxu0 0
    %10639 = vmatpush.bf16.msra.mxu0 0
    %10640 = vmatpush.bf16.msra.mxu0 0
    %10641 = vmatpush.bf16.msra.mxu0 %v10475
    %10642 = vmatpush.bf16.msra.mxu0 %v10471
    %10643 = vmatmul.bf16.gmra.mxu0 %v10490
    %v10644 = vpop.f32.mrf.mxu0
    %v10645 = vadd.f32 %v10632, %v10644
    %v10646 = vpop.f32.mrf.mxu0
    %10647 = vdwg.mxu0
    %10648 = vmatpush.bf16.msra.mxu0 %v10340
    %10649 = vmatpush.bf16.msra.mxu0 %v10336
    %10650 = vmatpush.bf16.msra.mxu0 %v10332
    %10651 = vmatpush.bf16.msra.mxu0 %v10328
    %10652 = vmatpush.bf16.msra.mxu0 %v10324
    %10653 = vmatpush.bf16.msra.mxu0 %v10320
    %10654 = vmatpush.bf16.msra.mxu0 %v10316
    %10655 = vmatpush.bf16.msra.mxu0 %v10312
    %10656 = vmatmul.bf16.gmra.mxu0 %v10479
    %v10657 = vpop.f32.mrf.mxu0
    %v10658 = vadd.f32 0.0, %v10657
    %v10659 = vpop.f32.mrf.mxu0
    %10660 = vdwg.mxu0
    %10661 = vmatpush.bf16.msra.mxu0 %v10372
    %10662 = vmatpush.bf16.msra.mxu0 %v10368
    %10663 = vmatpush.bf16.msra.mxu0 %v10364
    %10664 = vmatpush.bf16.msra.mxu0 %v10360
    %10665 = vmatpush.bf16.msra.mxu0 %v10356
    %10666 = vmatpush.bf16.msra.mxu0 %v10352
    %10667 = vmatpush.bf16.msra.mxu0 %v10348
    %10668 = vmatpush.bf16.msra.mxu0 %v10344
    %10669 = vmatmul.bf16.gmra.mxu0 %v10480
    %v10670 = vpop.f32.mrf.mxu0
    %v10671 = vadd.f32 %v10658, %v10670
    %v10672 = vpop.f32.mrf.mxu0
    %10673 = vdwg.mxu0
    %10674 = vmatpush.bf16.msra.mxu0 %v10404
    %10675 = vmatpush.bf16.msra.mxu0 %v10400
    %10676 = vmatpush.bf16.msra.mxu0 %v10396
    %10677 = vmatpush.bf16.msra.mxu0 %v10392
    %10678 = vmatpush.bf16.msra.mxu0 %v10388
    %10679 = vmatpush.bf16.msra.mxu0 %v10384
    %10680 = vmatpush.bf16.msra.mxu0 %v10380
    %10681 = vmatpush.bf16.msra.mxu0 %v10376
    %10682 = vmatmul.bf16.gmra.mxu0 %v10481
    %v10683 = vpop.f32.mrf.mxu0
    %v10684 = vadd.f32 %v10671, %v10683
    %v10685 = vpop.f32.mrf.mxu0
    %10686 = vdwg.mxu0
    %10687 = vmatpush.bf16.msra.mxu0 %v10436
    %10688 = vmatpush.bf16.msra.mxu0 %v10432
    %10689 = vmatpush.bf16.msra.mxu0 %v10428
    %10690 = vmatpush.bf16.msra.mxu0 %v10424
    %10691 = vmatpush.bf16.msra.mxu0 %v10420
    %10692 = vmatpush.bf16.msra.mxu0 %v10416
    %10693 = vmatpush.bf16.msra.mxu0 %v10412
    %10694 = vmatpush.bf16.msra.mxu0 %v10408
    %10695 = vmatmul.bf16.gmra.mxu0 %v10482
    %v10696 = vpop.f32.mrf.mxu0
    %v10697 = vadd.f32 %v10684, %v10696
    %v10698 = vpop.f32.mrf.mxu0
    %10699 = vdwg.mxu0
    %10700 = vmatpush.bf16.msra.mxu0 %v10468
    %10701 = vmatpush.bf16.msra.mxu0 %v10464
    %10702 = vmatpush.bf16.msra.mxu0 %v10460
    %10703 = vmatpush.bf16.msra.mxu0 %v10456
    %10704 = vmatpush.bf16.msra.mxu0 %v10452
    %10705 = vmatpush.bf16.msra.mxu0 %v10448
    %10706 = vmatpush.bf16.msra.mxu0 %v10444
    %10707 = vmatpush.bf16.msra.mxu0 %v10440
    %10708 = vmatmul.bf16.gmra.mxu0 %v10483
    %v10709 = vpop.f32.mrf.mxu0
    %v10710 = vadd.f32 %v10697, %v10709
    %v10711 = vpop.f32.mrf.mxu0
    %10712 = vdwg.mxu0
    %10713 = vmatpush.bf16.msra.mxu0 0
    %10714 = vmatpush.bf16.msra.mxu0 0
    %10715 = vmatpush.bf16.msra.mxu0 0
    %10716 = vmatpush.bf16.msra.mxu0 0
    %10717 = vmatpush.bf16.msra.mxu0 0
    %10718 = vmatpush.bf16.msra.mxu0 0
    %10719 = vmatpush.bf16.msra.mxu0 %v10476
    %10720 = vmatpush.bf16.msra.mxu0 %v10472
    %10721 = vmatmul.bf16.gmra.mxu0 %v10490
    %v10722 = vpop.f32.mrf.mxu0
    %v10723 = vadd.f32 %v10710, %v10722
    %v10724 = vpop.f32.mrf.mxu0
    %10725 = vdwg.mxu0
    %10726 = vmatpush.bf16.msra.mxu0 %v10341
    %10727 = vmatpush.bf16.msra.mxu0 %v10337
    %10728 = vmatpush.bf16.msra.mxu0 %v10333
    %10729 = vmatpush.bf16.msra.mxu0 %v10329
    %10730 = vmatpush.bf16.msra.mxu0 %v10325
    %10731 = vmatpush.bf16.msra.mxu0 %v10321
    %10732 = vmatpush.bf16.msra.mxu0 %v10317
    %10733 = vmatpush.bf16.msra.mxu0 %v10313
    %10734 = vmatmul.bf16.gmra.mxu0 %v10479
    %v10735 = vpop.f32.mrf.mxu0
    %v10736 = vadd.f32 0.0, %v10735
    %v10737 = vpop.f32.mrf.mxu0
    %10738 = vdwg.mxu0
    %10739 = vmatpush.bf16.msra.mxu0 %v10373
    %10740 = vmatpush.bf16.msra.mxu0 %v10369
    %10741 = vmatpush.bf16.msra.mxu0 %v10365
    %10742 = vmatpush.bf16.msra.mxu0 %v10361
    %10743 = vmatpush.bf16.msra.mxu0 %v10357
    %10744 = vmatpush.bf16.msra.mxu0 %v10353
    %10745 = vmatpush.bf16.msra.mxu0 %v10349
    %10746 = vmatpush.bf16.msra.mxu0 %v10345
    %10747 = vmatmul.bf16.gmra.mxu0 %v10480
    %v10748 = vpop.f32.mrf.mxu0
    %v10749 = vadd.f32 %v10736, %v10748
    %v10750 = vpop.f32.mrf.mxu0
    %10751 = vdwg.mxu0
    %10752 = vmatpush.bf16.msra.mxu0 %v10405
    %10753 = vmatpush.bf16.msra.mxu0 %v10401
    %10754 = vmatpush.bf16.msra.mxu0 %v10397
    %10755 = vmatpush.bf16.msra.mxu0 %v10393
    %10756 = vmatpush.bf16.msra.mxu0 %v10389
    %10757 = vmatpush.bf16.msra.mxu0 %v10385
    %10758 = vmatpush.bf16.msra.mxu0 %v10381
    %10759 = vmatpush.bf16.msra.mxu0 %v10377
    %10760 = vmatmul.bf16.gmra.mxu0 %v10481
    %v10761 = vpop.f32.mrf.mxu0
    %v10762 = vadd.f32 %v10749, %v10761
    %v10763 = vpop.f32.mrf.mxu0
    %10764 = vdwg.mxu0
    %10765 = vmatpush.bf16.msra.mxu0 %v10437
    %10766 = vmatpush.bf16.msra.mxu0 %v10433
    %10767 = vmatpush.bf16.msra.mxu0 %v10429
    %10768 = vmatpush.bf16.msra.mxu0 %v10425
    %10769 = vmatpush.bf16.msra.mxu0 %v10421
    %10770 = vmatpush.bf16.msra.mxu0 %v10417
    %10771 = vmatpush.bf16.msra.mxu0 %v10413
    %10772 = vmatpush.bf16.msra.mxu0 %v10409
    %10773 = vmatmul.bf16.gmra.mxu0 %v10482
    %v10774 = vpop.f32.mrf.mxu0
    %v10775 = vadd.f32 %v10762, %v10774
    %v10776 = vpop.f32.mrf.mxu0
    %10777 = vdwg.mxu0
    %10778 = vmatpush.bf16.msra.mxu0 %v10469
    %10779 = vmatpush.bf16.msra.mxu0 %v10465
    %10780 = vmatpush.bf16.msra.mxu0 %v10461
    %10781 = vmatpush.bf16.msra.mxu0 %v10457
    %10782 = vmatpush.bf16.msra.mxu0 %v10453
    %10783 = vmatpush.bf16.msra.mxu0 %v10449
    %10784 = vmatpush.bf16.msra.mxu0 %v10445
    %10785 = vmatpush.bf16.msra.mxu0 %v10441
    %10786 = vmatmul.bf16.gmra.mxu0 %v10483
    %v10787 = vpop.f32.mrf.mxu0
    %v10788 = vadd.f32 %v10775, %v10787
    %v10789 = vpop.f32.mrf.mxu0
    %10790 = vdwg.mxu0
    %10791 = vmatpush.bf16.msra.mxu0 0
    %10792 = vmatpush.bf16.msra.mxu0 0
    %10793 = vmatpush.bf16.msra.mxu0 0
    %10794 = vmatpush.bf16.msra.mxu0 0
    %10795 = vmatpush.bf16.msra.mxu0 0
    %10796 = vmatpush.bf16.msra.mxu0 0
    %10797 = vmatpush.bf16.msra.mxu0 %v10477
    %10798 = vmatpush.bf16.msra.mxu0 %v10473
    %10799 = vmatmul.bf16.gmra.mxu0 %v10490
    %v10800 = vpop.f32.mrf.mxu0
    %v10801 = vadd.f32 %v10788, %v10800
    %v10802 = vpop.f32.mrf.mxu0
    %10803 = vdwg.mxu0
    %v10804 = vmul.f32 %v10567, 0.0029761905
    %v10805 = vmul.f32 %v10645, 0.0029761905
    %v10806 = vmul.f32 %v10723, 0.0029761905
    %v10807 = vmul.f32 %v10801, 0.0029761905
    %v10808 = vpack.c.bf16 %v10804, %v10804
    %v10809 = vpack.c.bf16 %v10805, %v10805
    %v10810 = vpack.c.bf16 %v10806, %v10806
    %v10811 = vpack.c.bf16 %v10807, %v10807
    %10812 = vmatpush.bf16.msra.mxu0 %v5741
    %10813 = vmatpush.bf16.msra.mxu0 %v5737
    %10814 = vmatpush.bf16.msra.mxu0 %v5733
    %10815 = vmatpush.bf16.msra.mxu0 %v5729
    %10816 = vmatpush.bf16.msra.mxu0 %v5725
    %10817 = vmatpush.bf16.msra.mxu0 %v5721
    %10818 = vmatpush.bf16.msra.mxu0 %v5717
    %10819 = vmatpush.bf16.msra.mxu0 %v5713
    %10820 = vmatmul.bf16.gmra.mxu0 %v10808
    %v10821 = vpop.f32.mrf.mxu0
    %v10822 = vadd.f32 %v5321, %v10821
    %v10823 = vpop.f32.mrf.mxu0
    %10824 = vdwg.mxu0
    %10825 = vmatpush.bf16.msra.mxu0 %v5773
    %10826 = vmatpush.bf16.msra.mxu0 %v5769
    %10827 = vmatpush.bf16.msra.mxu0 %v5765
    %10828 = vmatpush.bf16.msra.mxu0 %v5761
    %10829 = vmatpush.bf16.msra.mxu0 %v5757
    %10830 = vmatpush.bf16.msra.mxu0 %v5753
    %10831 = vmatpush.bf16.msra.mxu0 %v5749
    %10832 = vmatpush.bf16.msra.mxu0 %v5745
    %10833 = vmatmul.bf16.gmra.mxu0 %v10809
    %v10834 = vpop.f32.mrf.mxu0
    %v10835 = vadd.f32 %v10822, %v10834
    %v10836 = vpop.f32.mrf.mxu0
    %10837 = vdwg.mxu0
    %10838 = vmatpush.bf16.msra.mxu0 %v5805
    %10839 = vmatpush.bf16.msra.mxu0 %v5801
    %10840 = vmatpush.bf16.msra.mxu0 %v5797
    %10841 = vmatpush.bf16.msra.mxu0 %v5793
    %10842 = vmatpush.bf16.msra.mxu0 %v5789
    %10843 = vmatpush.bf16.msra.mxu0 %v5785
    %10844 = vmatpush.bf16.msra.mxu0 %v5781
    %10845 = vmatpush.bf16.msra.mxu0 %v5777
    %10846 = vmatmul.bf16.gmra.mxu0 %v10810
    %v10847 = vpop.f32.mrf.mxu0
    %v10848 = vadd.f32 %v10835, %v10847
    %v10849 = vpop.f32.mrf.mxu0
    %10850 = vdwg.mxu0
    %10851 = vmatpush.bf16.msra.mxu0 %v5837
    %10852 = vmatpush.bf16.msra.mxu0 %v5833
    %10853 = vmatpush.bf16.msra.mxu0 %v5829
    %10854 = vmatpush.bf16.msra.mxu0 %v5825
    %10855 = vmatpush.bf16.msra.mxu0 %v5821
    %10856 = vmatpush.bf16.msra.mxu0 %v5817
    %10857 = vmatpush.bf16.msra.mxu0 %v5813
    %10858 = vmatpush.bf16.msra.mxu0 %v5809
    %10859 = vmatmul.bf16.gmra.mxu0 %v10811
    %v10860 = vpop.f32.mrf.mxu0
    %v10861 = vadd.f32 %v10848, %v10860
    %v10862 = vpop.f32.mrf.mxu0
    %10863 = vdwg.mxu0
    %10864 = vmatpush.bf16.msra.mxu0 %v5742
    %10865 = vmatpush.bf16.msra.mxu0 %v5738
    %10866 = vmatpush.bf16.msra.mxu0 %v5734
    %10867 = vmatpush.bf16.msra.mxu0 %v5730
    %10868 = vmatpush.bf16.msra.mxu0 %v5726
    %10869 = vmatpush.bf16.msra.mxu0 %v5722
    %10870 = vmatpush.bf16.msra.mxu0 %v5718
    %10871 = vmatpush.bf16.msra.mxu0 %v5714
    %10872 = vmatmul.bf16.gmra.mxu0 %v10808
    %v10873 = vpop.f32.mrf.mxu0
    %v10874 = vadd.f32 %v5322, %v10873
    %v10875 = vpop.f32.mrf.mxu0
    %10876 = vdwg.mxu0
    %10877 = vmatpush.bf16.msra.mxu0 %v5774
    %10878 = vmatpush.bf16.msra.mxu0 %v5770
    %10879 = vmatpush.bf16.msra.mxu0 %v5766
    %10880 = vmatpush.bf16.msra.mxu0 %v5762
    %10881 = vmatpush.bf16.msra.mxu0 %v5758
    %10882 = vmatpush.bf16.msra.mxu0 %v5754
    %10883 = vmatpush.bf16.msra.mxu0 %v5750
    %10884 = vmatpush.bf16.msra.mxu0 %v5746
    %10885 = vmatmul.bf16.gmra.mxu0 %v10809
    %v10886 = vpop.f32.mrf.mxu0
    %v10887 = vadd.f32 %v10874, %v10886
    %v10888 = vpop.f32.mrf.mxu0
    %10889 = vdwg.mxu0
    %10890 = vmatpush.bf16.msra.mxu0 %v5806
    %10891 = vmatpush.bf16.msra.mxu0 %v5802
    %10892 = vmatpush.bf16.msra.mxu0 %v5798
    %10893 = vmatpush.bf16.msra.mxu0 %v5794
    %10894 = vmatpush.bf16.msra.mxu0 %v5790
    %10895 = vmatpush.bf16.msra.mxu0 %v5786
    %10896 = vmatpush.bf16.msra.mxu0 %v5782
    %10897 = vmatpush.bf16.msra.mxu0 %v5778
    %10898 = vmatmul.bf16.gmra.mxu0 %v10810
    %v10899 = vpop.f32.mrf.mxu0
    %v10900 = vadd.f32 %v10887, %v10899
    %v10901 = vpop.f32.mrf.mxu0
    %10902 = vdwg.mxu0
    %10903 = vmatpush.bf16.msra.mxu0 %v5838
    %10904 = vmatpush.bf16.msra.mxu0 %v5834
    %10905 = vmatpush.bf16.msra.mxu0 %v5830
    %10906 = vmatpush.bf16.msra.mxu0 %v5826
    %10907 = vmatpush.bf16.msra.mxu0 %v5822
    %10908 = vmatpush.bf16.msra.mxu0 %v5818
    %10909 = vmatpush.bf16.msra.mxu0 %v5814
    %10910 = vmatpush.bf16.msra.mxu0 %v5810
    %10911 = vmatmul.bf16.gmra.mxu0 %v10811
    %v10912 = vpop.f32.mrf.mxu0
    %v10913 = vadd.f32 %v10900, %v10912
    %v10914 = vpop.f32.mrf.mxu0
    %10915 = vdwg.mxu0
    %10916 = vmatpush.bf16.msra.mxu0 %v5743
    %10917 = vmatpush.bf16.msra.mxu0 %v5739
    %10918 = vmatpush.bf16.msra.mxu0 %v5735
    %10919 = vmatpush.bf16.msra.mxu0 %v5731
    %10920 = vmatpush.bf16.msra.mxu0 %v5727
    %10921 = vmatpush.bf16.msra.mxu0 %v5723
    %10922 = vmatpush.bf16.msra.mxu0 %v5719
    %10923 = vmatpush.bf16.msra.mxu0 %v5715
    %10924 = vmatmul.bf16.gmra.mxu0 %v10808
    %v10925 = vpop.f32.mrf.mxu0
    %v10926 = vadd.f32 %v5323, %v10925
    %v10927 = vpop.f32.mrf.mxu0
    %10928 = vdwg.mxu0
    %10929 = vmatpush.bf16.msra.mxu0 %v5775
    %10930 = vmatpush.bf16.msra.mxu0 %v5771
    %10931 = vmatpush.bf16.msra.mxu0 %v5767
    %10932 = vmatpush.bf16.msra.mxu0 %v5763
    %10933 = vmatpush.bf16.msra.mxu0 %v5759
    %10934 = vmatpush.bf16.msra.mxu0 %v5755
    %10935 = vmatpush.bf16.msra.mxu0 %v5751
    %10936 = vmatpush.bf16.msra.mxu0 %v5747
    %10937 = vmatmul.bf16.gmra.mxu0 %v10809
    %v10938 = vpop.f32.mrf.mxu0
    %v10939 = vadd.f32 %v10926, %v10938
    %v10940 = vpop.f32.mrf.mxu0
    %10941 = vdwg.mxu0
    %10942 = vmatpush.bf16.msra.mxu0 %v5807
    %10943 = vmatpush.bf16.msra.mxu0 %v5803
    %10944 = vmatpush.bf16.msra.mxu0 %v5799
    %10945 = vmatpush.bf16.msra.mxu0 %v5795
    %10946 = vmatpush.bf16.msra.mxu0 %v5791
    %10947 = vmatpush.bf16.msra.mxu0 %v5787
    %10948 = vmatpush.bf16.msra.mxu0 %v5783
    %10949 = vmatpush.bf16.msra.mxu0 %v5779
    %10950 = vmatmul.bf16.gmra.mxu0 %v10810
    %v10951 = vpop.f32.mrf.mxu0
    %v10952 = vadd.f32 %v10939, %v10951
    %v10953 = vpop.f32.mrf.mxu0
    %10954 = vdwg.mxu0
    %10955 = vmatpush.bf16.msra.mxu0 %v5839
    %10956 = vmatpush.bf16.msra.mxu0 %v5835
    %10957 = vmatpush.bf16.msra.mxu0 %v5831
    %10958 = vmatpush.bf16.msra.mxu0 %v5827
    %10959 = vmatpush.bf16.msra.mxu0 %v5823
    %10960 = vmatpush.bf16.msra.mxu0 %v5819
    %10961 = vmatpush.bf16.msra.mxu0 %v5815
    %10962 = vmatpush.bf16.msra.mxu0 %v5811
    %10963 = vmatmul.bf16.gmra.mxu0 %v10811
    %v10964 = vpop.f32.mrf.mxu0
    %v10965 = vadd.f32 %v10952, %v10964
    %v10966 = vpop.f32.mrf.mxu0
    %10967 = vdwg.mxu0
    %10968 = vmatpush.bf16.msra.mxu0 %v5744
    %10969 = vmatpush.bf16.msra.mxu0 %v5740
    %10970 = vmatpush.bf16.msra.mxu0 %v5736
    %10971 = vmatpush.bf16.msra.mxu0 %v5732
    %10972 = vmatpush.bf16.msra.mxu0 %v5728
    %10973 = vmatpush.bf16.msra.mxu0 %v5724
    %10974 = vmatpush.bf16.msra.mxu0 %v5720
    %10975 = vmatpush.bf16.msra.mxu0 %v5716
    %10976 = vmatmul.bf16.gmra.mxu0 %v10808
    %v10977 = vpop.f32.mrf.mxu0
    %v10978 = vadd.f32 %v5324, %v10977
    %v10979 = vpop.f32.mrf.mxu0
    %10980 = vdwg.mxu0
    %10981 = vmatpush.bf16.msra.mxu0 %v5776
    %10982 = vmatpush.bf16.msra.mxu0 %v5772
    %10983 = vmatpush.bf16.msra.mxu0 %v5768
    %10984 = vmatpush.bf16.msra.mxu0 %v5764
    %10985 = vmatpush.bf16.msra.mxu0 %v5760
    %10986 = vmatpush.bf16.msra.mxu0 %v5756
    %10987 = vmatpush.bf16.msra.mxu0 %v5752
    %10988 = vmatpush.bf16.msra.mxu0 %v5748
    %10989 = vmatmul.bf16.gmra.mxu0 %v10809
    %v10990 = vpop.f32.mrf.mxu0
    %v10991 = vadd.f32 %v10978, %v10990
    %v10992 = vpop.f32.mrf.mxu0
    %10993 = vdwg.mxu0
    %10994 = vmatpush.bf16.msra.mxu0 %v5808
    %10995 = vmatpush.bf16.msra.mxu0 %v5804
    %10996 = vmatpush.bf16.msra.mxu0 %v5800
    %10997 = vmatpush.bf16.msra.mxu0 %v5796
    %10998 = vmatpush.bf16.msra.mxu0 %v5792
    %10999 = vmatpush.bf16.msra.mxu0 %v5788
    %11000 = vmatpush.bf16.msra.mxu0 %v5784
    %11001 = vmatpush.bf16.msra.mxu0 %v5780
    %11002 = vmatmul.bf16.gmra.mxu0 %v10810
    %v11003 = vpop.f32.mrf.mxu0
    %v11004 = vadd.f32 %v10991, %v11003
    %v11005 = vpop.f32.mrf.mxu0
    %11006 = vdwg.mxu0
    %11007 = vmatpush.bf16.msra.mxu0 %v5840
    %11008 = vmatpush.bf16.msra.mxu0 %v5836
    %11009 = vmatpush.bf16.msra.mxu0 %v5832
    %11010 = vmatpush.bf16.msra.mxu0 %v5828
    %11011 = vmatpush.bf16.msra.mxu0 %v5824
    %11012 = vmatpush.bf16.msra.mxu0 %v5820
    %11013 = vmatpush.bf16.msra.mxu0 %v5816
    %11014 = vmatpush.bf16.msra.mxu0 %v5812
    %11015 = vmatmul.bf16.gmra.mxu0 %v10811
    %v11016 = vpop.f32.mrf.mxu0
    %v11017 = vadd.f32 %v11004, %v11016
    %v11018 = vpop.f32.mrf.mxu0
    %11019 = vdwg.mxu0
    %v11020 = vmul.f32 %v10861, %v10861
    %v11021 = vmul.f32 %v10913, %v10913
    %v11022 = vmul.f32 %v10965, %v10965
    %v11023 = vmul.f32 %v11017, %v11017
    %v11024 = vsel %vm6181, %v11020, 0.0
    %v11025 = vsel %vm6181, %v11021, 0.0
    %v11026 = vadd.f32 %v11024, %v11025
    %v11027 = vsel %vm6181, %v11022, 0.0
    %v11028 = vadd.f32 %v11026, %v11027
    %v11029 = vsel %vm6181, %v11023, 0.0
    %v11030 = vadd.f32 %v11028, %v11029
    %11031 = vadd.xlane.f32.xlu0 %v11030
    %v11032 = vpop.xlane.xlu0 %11031
    %v11033 = vadd.f32 %v11032, 1e-12
    %v11034 = vrsqrt.pop %v11033
    %v11035 = vmul.f32 %v11034, %v11033
    %v11036 = vmul.f32 %v11035, %v11034
    %v11037 = vmul.f32 0.5, %v11036
    %v11038 = vsub.f32 1.5, %v11037
    %v11039 = vmul.f32 %v11034, %v11038
    %vm11040 = vweird.f32 %v11033
    %vm11041 = vweird.f32 %v11034
    %vm11042 = vmor %vm11040, %vm11041
    %v11043 = vsel %vm11042, %v11034, %v11039
    %v11044 = vmul.f32 %v10861, %v11043
    %v11045 = vmul.f32 %v10913, %v11043
    %v11046 = vmul.f32 %v10965, %v11043
    %v11047 = vmul.f32 %v11017, %v11043
    %v11048 = vmul.f32 %v6202, %v11044
    %v11049 = vmul.f32 %v6203, %v11045
    %v11050 = vmul.f32 %v6204, %v11046
    %v11051 = vmul.f32 %v6205, %v11047
    %v11052 = vsel %vm6181, %v11048, 0.0
    %v11053 = vrot.slane %v11052, 4
    %v11054 = vadd.f32 %v11052, %v11053
    %v11055 = vrot.slane %v11054, 2
    %v11056 = vadd.f32 %v11054, %v11055
    %v11057 = vrot.slane %v11056, 1
    %v11058 = vadd.f32 %v11056, %v11057
    %v11059 = vsel %vm6181, %v11049, 0.0
    %v11060 = vrot.slane %v11059, 4
    %v11061 = vadd.f32 %v11059, %v11060
    %v11062 = vrot.slane %v11061, 2
    %v11063 = vadd.f32 %v11061, %v11062
    %v11064 = vrot.slane %v11063, 1
    %v11065 = vadd.f32 %v11063, %v11064
    %v11066 = vsel %vm6181, %v11050, 0.0
    %v11067 = vrot.slane %v11066, 4
    %v11068 = vadd.f32 %v11066, %v11067
    %v11069 = vrot.slane %v11068, 2
    %v11070 = vadd.f32 %v11068, %v11069
    %v11071 = vrot.slane %v11070, 1
    %v11072 = vadd.f32 %v11070, %v11071
    %v11073 = vsel %vm6181, %v11051, 0.0
    %v11074 = vrot.slane %v11073, 4
    %v11075 = vadd.f32 %v11073, %v11074
    %v11076 = vrot.slane %v11075, 2
    %v11077 = vadd.f32 %v11075, %v11076
    %v11078 = vrot.slane %v11077, 1
    %v11079 = vadd.f32 %v11077, %v11078
    %v11080 = vadd.f32 %v11058, %v11065
    %v11081 = vadd.f32 %v11080, %v11072
    %v11082 = vadd.f32 %v11081, %v11079
    %11083 = vadd.xlane.f32.xlu0 %v11082
    %v11084 = vpop.xlane.xlu0 %11083
    %v11085 = vmul.f32 %v11084, 0.5
    %v11086 = vsub.f32 1.0, %v11085
    %vm11087 = vcmask 0
    %11088 = vst.msk [vmem:[#allocation17] sm:$0x1] %vm11087, %v11086
    // Predicated region
    $region74: #{id_loss_forward.1} parent=1 // pred_check
      _
    $region75: #{id_loss_forward.1} parent=1 // pred_check_branch
      %11090 = sbr.rel (0) target = $region77
    $region76: #{id_loss_forward.1} parent=1 // pred_region
      %11092 = vsyncadd [#allocation4], 0
      %s11094 = sshll.u32 [#allocation17], 4
      %s11095 = int_to_ptr.vmem [resolvable:$true] %s11094
      %s11096 = sshll.u32 %s9, 4
      %s11097 = int_to_ptr.hbm [resolvable:$true] %s11096
      %11099 = dma.vmem_to_hbm [thread:$0]  %s11095, 16, %s11097, [#allocation4]
    $region77: #{id_loss_forward.1} parent=1 // pred_fallthru
      _
    // Predicated region
    $region78: #{id_loss_forward.1} parent=1 // pred_check
      _
    $region79: #{id_loss_forward.1} parent=1 // pred_check_branch
      %11101 = sbr.rel (0) target = $region81
    $region80: #{id_loss_forward.1} parent=1 // pred_region
      %11103 = dma.done [#allocation4], 16
    $region81: #{id_loss_forward.1} parent=1 // pred_fallthru
      _
    %11104 = vsyncpa [#allocation3], 1
    %11105 = vsyncpa [#allocation6], 1
    %11106 = vsyncpa [#allocation9], 1
    %11107 = vsyncpa [#allocation12], 1
    %11108 = vsyncpa [#allocation15], 1
    %11109 = vsyncpa [#allocation4], 1

</llo_original>
